<compile_context>
chip_gen: v7x
topology: tpu7x:2x2x1
jax: 0.10.0
libtpu: 0.0.40
codegen_flags: <defaults>
</compile_context>

<pallas_src>
import math

import numpy as np
import jax
import jax.numpy as jnp
from jax import lax
from jax.experimental import pallas as pl
from jax.experimental.pallas import tpu as pltpu

BN_EPS = 1e-5
PRELU_INIT = 0.25
_VMEM_LIMIT = 32 * 1024 * 1024      # scoped-VMEM guardrail, safe on v5e/v6e/v7x
_FUSE_PALLAS_MIN_ROWS = 4096        # below this a pallas_call costs more than the matmul


def _round_up(x, m):
    return (x + m - 1) // m * m


# ----------------------------------------------------------------------------
# BatchNorm folding + merged per-channel epilogue operand
# ----------------------------------------------------------------------------
def bn_fold(conv_bias, bn):
    scale = bn["gamma"] / jnp.sqrt(bn["var"] + BN_EPS)
    bias = bn["beta"] + (conv_bias - bn["mean"]) * scale
    return scale, bias


def _sba_cols(scale, bias, alpha, d):
    """(D, 3) f32 operand: columns = [scale, bias, PReLU alpha]; channel on sublanes.

    PReLU alpha is a single scalar broadcast to all channels, matching nn.PReLU()
    (num_parameters=1, init 0.25) in the reference module.
    """
    return jnp.stack([scale.astype(jnp.float32),
                      bias.astype(jnp.float32),
                      jnp.full((d,), alpha, jnp.float32)], axis=1)


# ----------------------------------------------------------------------------
# Kernel 1: fused 3x3 conv (pad=1) + BN + PReLU ("down_conv"), channel-major
# ----------------------------------------------------------------------------
def conv3x3_bn_prelu_nchw(x_nchw, w_oihw, conv_bias, bn, alpha):
    """Conv2d(C, D, 3, padding=1) + BatchNorm(eval) + PReLU, NCHW in / NCHW out.

    out^T[d, r] = sum_{t=(ky,kx)} (W_t @ Xpad)[d, r + ky*Wp + kx]   with r = h*Wp + w.
    The matmul result's lane axis is the flattened padded-spatial dim, so the 9 tap
    row-slices (t*D) are sublane aligned and only small lane shifts remain.
    """
    N, C, H, W = x_nchw.shape
    D = w_oihw.shape[0]
    Hp, Wp = H + 2, W + 2
    s_out = H * Wp                               # one output lane per padded column pos
    max_off = 2 * Wp + 2
    s_in = _round_up(s_out + max_off, 128)       # lane-padded input width
    offs = tuple(ky * Wp + kx for ky in range(3) for kx in range(3))

    # bf16 *before* pad/flatten: all wrapper-side HBM traffic at half width.
    xb = x_nchw.astype(jnp.bfloat16)
    xb = jnp.pad(xb, ((0, 0), (0, 0), (1, 1), (1, 1)))           # (N, C, Hp, Wp)
    xb = xb.reshape(N, C, Hp * Wp)
    xb = jnp.pad(xb, ((0, 0), (0, 0), (0, s_in - Hp * Wp)))
    xb = xb.reshape(N * C, s_in)

    # (D, C, 3, 3) -> (9D, C): row (3*ky + kx)*D + d  holds W[d, :, ky, kx].
    wt = jnp.transpose(w_oihw, (2, 3, 0, 1)).reshape(9 * D, C).astype(jnp.bfloat16)

    scale, bias = bn_fold(conv_bias, bn)
    sba = _sba_cols(scale, bias, alpha, D)

    def kernel(w_ref, x_ref, sba_ref, o_ref):
        # One MXU matmul per image: K folded -> weights VMEM-resident (constant block
        # index), no accumulator init / read-modify-write across grid steps.
        p = jnp.dot(w_ref[...], x_ref[...],
                    preferred_element_type=jnp.float32)           # (9D, s_in) f32
        # Tap reduction: row offsets t*D are sublane aligned; the lane shifts are the
        # only relayouts (cheap cross-lane selects on (D, s_out) f32 tiles).
        acc = p[0:D, 0:s_out]                                     # tap (ky=0, kx=0)
        for t in range(1, 9):
            off = offs[t]
            acc = acc + p[t * D:(t + 1) * D, off:off + s_out]
        # Folded BN + PReLU; per-channel params on the sublane axis, read once.
        scale_v = sba_ref[:, 0:1]
        shift_v = sba_ref[:, 1:2]
        alpha_v = sba_ref[:, 2:3]
        z = acc * scale_v + shift_v
        o_ref[...] = jnp.where(z >= 0.0, z, alpha_v * z)

    out = pl.pallas_call(
        kernel,
        out_shape=jax.ShapeDtypeStruct((N * D, s_out), jnp.float32),
        grid_spec=pltpu.PrefetchScalarGridSpec(
            num_scalar_prefetch=0,
            grid=(N,),
            in_specs=[
                pl.BlockSpec((9 * D, C), lambda n: (0, 0)),       # resident weights
                pl.BlockSpec((C, s_in), lambda n: (n, 0)),
                pl.BlockSpec((D, 3), lambda n: (0, 0)),
            ],
            out_specs=pl.BlockSpec((D, s_out), lambda n: (n, 0)),
        ),
        compiler_params=pltpu.CompilerParams(
            dimension_semantics=("parallel",),
            vmem_limit_bytes=_VMEM_LIMIT),
    )(wt, xb, sba)

    # Drop the two padded columns per image row: (N, D, H, Wp) -> (N, D, H, W).
    return out.reshape(N, D, H, Wp)[:, :, :, :W]


# ----------------------------------------------------------------------------
# Kernel 2: fused 1x1 conv + BN + PReLU ("fuse"), transposed / lane-dense
# ----------------------------------------------------------------------------
def fuse_conv1x1_bn_prelu(cat_nchw, w_oihw, conv_bias, bn, alpha,
                          *, min_pallas_rows=_FUSE_PALLAS_MIN_ROWS):
    """1x1 conv (4D -> D) + BatchNorm(eval) + PReLU on NCHW input.

    Pallas path computes out^T = W @ cat^T so the store is lane dense (last dim = image
    rows, padded to a multiple of 128), K (=4D) is a single folded step (direct write,
    no zero-init/accumulate), and M is split into >=2 "parallel" tiles so both v7x
    TensorCores get work.  Below `min_pallas_rows` the custom-call overhead exceeds the
    work, so plain jnp (XLA-fused) is used instead, per the performance review.
    """
    N, K, H, W = cat_nchw.shape
    D = w_oihw.shape[0]
    M = N * H * W
    scale, bias = bn_fold(conv_bias, bn)
    wf = w_oihw.reshape(D, K)

    if M < min_pallas_rows:
        z = jnp.einsum("dk,nkhw->ndhw", wf.astype(jnp.bfloat16),
                       cat_nchw.astype(jnp.bfloat16),
                       preferred_element_type=jnp.float32)
        z = z * scale[None, :, None, None] + bias[None, :, None, None]
        return jnp.where(z >= 0.0, z, alpha * z)

    # (N, K, H*W) -> (K, N*H*W); bf16 before the transpose/pad to halve HBM traffic.
    catT = jnp.transpose(cat_nchw.astype(jnp.bfloat16).reshape(N, K, H * W),
                         (1, 0, 2)).reshape(K, M)
    tm = min(2048, _round_up(-(-_round_up(M, 128) // 2), 128))   # >=2 tiles when possible
    m_pad = _round_up(M, tm)
    if m_pad != M:
        catT = jnp.pad(catT, ((0, 0), (0, m_pad - M)))
    sba = _sba_cols(scale, bias, alpha, D)

    def kernel(w_ref, x_ref, sba_ref, o_ref):
        z = jnp.dot(w_ref[...], x_ref[...], preferred_element_type=jnp.float32)
        z = z * sba_ref[:, 0:1] + sba_ref[:, 1:2]
        o_ref[...] = jnp.where(z >= 0.0, z, sba_ref[:, 2:3] * z)

    outT = pl.pallas_call(
        kernel,
        out_shape=jax.ShapeDtypeStruct((D, m_pad), jnp.float32),
        grid_spec=pltpu.PrefetchScalarGridSpec(
            num_scalar_prefetch=0,
            grid=(m_pad // tm,),
            in_specs=[
                pl.BlockSpec((D, K), lambda i: (0, 0)),           # resident weights
                pl.BlockSpec((K, tm), lambda i: (0, i)),
                pl.BlockSpec((D, 3), lambda i: (0, 0)),
            ],
            out_specs=pl.BlockSpec((D, tm), lambda i: (0, i)),
        ),
        compiler_params=pltpu.CompilerParams(
            dimension_semantics=("parallel",),
            vmem_limit_bytes=_VMEM_LIMIT),
    )(wf.astype(jnp.bfloat16), catT, sba)

    out = outT[:, :M].reshape(D, N, H, W)
    return jnp.transpose(out, (1, 0, 2, 3))


# ----------------------------------------------------------------------------
# Plain-JAX glue: pooling / interpolation matrices and the tiny pyramid branches
# ----------------------------------------------------------------------------
def _pool_matrix(out_size, in_size):
    """AdaptiveAvgPool2d 1-D matrix (PyTorch floor/ceil bin boundaries), (out, in)."""
    m = np.zeros((out_size, in_size), np.float32)
    for i in range(out_size):
        lo = (i * in_size) // out_size
        hi = -((-(i + 1) * in_size) // out_size)
        m[i, lo:hi] = 1.0 / (hi - lo)
    return jnp.asarray(m)


def _interp_matrix(out_size, in_size):
    """1-D bilinear interpolation matrix, align_corners=True, (out, in)."""
    if in_size == 1:
        return jnp.ones((out_size, 1), jnp.float32)
    m = np.zeros((out_size, in_size), np.float32)
    for o in range(out_size):
        src = o * (in_size - 1) / (out_size - 1)
        i0 = min(int(np.floor(src)), in_size - 1)
        i1 = min(i0 + 1, in_size - 1)
        w1 = src - i0
        m[o, i0] += 1.0 - w1
        m[o, i1] += w1
    return jnp.asarray(m)


def _pyramid_concat(xd, params):
    """AdaptiveAvgPool -> 1x1 conv + BN + PReLU -> bilinear up (align_corners) -> concat.

    Pool / upsample are small matrices applied with einsum (a couple of fused
    contractions instead of ~50 slice+mean HLOs).  These branches touch 1..36 spatial
    positions of 32x32 matmuls, far below where a pallas_call launch pays off, so they
    stay in plain jnp.
    """
    N, D, H, W = xd.shape
    ups = []
    for s, name in zip((1, 2, 3, 6), ("c1", "c2", "c3", "c4")):
        Ph, Pw = _pool_matrix(s, H), _pool_matrix(s, W)
        pooled = jnp.einsum("ih,jw,nchw->ncij", Ph, Pw, xd)          # (N, D, s, s)
        wt = params[f"{name}_w"].reshape(D, D)
        sc, bi = bn_fold(params[f"{name}_b"], params[f"{name}_bn"])
        z = jnp.einsum("dc,ncij->ndij", wt, pooled)
        z = z * sc[None, :, None, None] + bi[None, :, None, None]
        y = jnp.where(z >= 0.0, z, params[f"{name}_prelu"] * z)
        Ah, Aw = _interp_matrix(H, s), _interp_matrix(W, s)
        ups.append(jnp.einsum("hi,wj,ndij->ndhw", Ah, Aw, y))
    return jnp.concatenate(ups, axis=1)                               # (N, 4D, H, W)


# ----------------------------------------------------------------------------
# Parameter init (deterministic, mirrors weight_init semantics)
# ----------------------------------------------------------------------------
def init_params(key, down_dim=32, in_ch=2048):
    ks = jax.random.split(key, 6)

    def kaiming(k, shape):  # (out, in, kh, kw); fan_in, relu gain
        fan_in = shape[1] * shape[2] * shape[3]
        return jax.random.normal(k, shape, jnp.float32) * math.sqrt(2.0 / fan_in)

    p = {"down_w": kaiming(ks[0], (down_dim, in_ch, 3, 3)),
         "down_b": jnp.zeros((down_dim,), jnp.float32)}
    for i in range(1, 5):
        p[f"c{i}_w"] = kaiming(ks[i], (down_dim, down_dim, 1, 1))
        p[f"c{i}_b"] = jnp.zeros((down_dim,), jnp.float32)
    p["fuse_w"] = kaiming(ks[5], (down_dim, 4 * down_dim, 1, 1))
    p["fuse_b"] = jnp.zeros((down_dim,), jnp.float32)
    for name in ("down", "c1", "c2", "c3", "c4", "fuse"):
        p[f"{name}_bn"] = dict(gamma=jnp.ones((down_dim,), jnp.float32),
                               beta=jnp.zeros((down_dim,), jnp.float32),
                               mean=jnp.zeros((down_dim,), jnp.float32),
                               var=jnp.ones((down_dim,), jnp.float32))
        p[f"{name}_prelu"] = PRELU_INIT
    return p


# ----------------------------------------------------------------------------
# PPM forward (Pallas) and an independent plain-JAX reference
# ----------------------------------------------------------------------------
def ppm_forward(x_nchw, params):
    xd = conv3x3_bn_prelu_nchw(x_nchw, params["down_w"], params["down_b"],
                               params["down_bn"], params["down_prelu"])
    cat = _pyramid_concat(xd, params)
    return fuse_conv1x1_bn_prelu(cat, params["fuse_w"], params["fuse_b"],
                                 params["fuse_bn"], params["fuse_prelu"])


def ppm_forward_ref(x_nchw, params):
    """Independent reference (lax.conv / jnp.dot), same bf16 operand policy."""
    N, _, H, W = x_nchw.shape
    D = params["down_w"].shape[0]

    x = jnp.transpose(x_nchw, (0, 2, 3, 1)).astype(jnp.bfloat16)        # NHWC
    w_hwio = jnp.transpose(params["down_w"], (2, 3, 1, 0)).astype(jnp.bfloat16)
    z = lax.conv_general_dilated(x, w_hwio, window_strides=(1, 1),
                                 padding=((1, 1), (1, 1)),
                                 dimension_numbers=("NHWC", "HWIO", "NHWC"),
                                 preferred_element_type=jnp.float32)
    sc, bi = bn_fold(params["down_b"], params["down_bn"])
    z = z * sc + bi
    xd = jnp.where(z >= 0.0, z, params["down_prelu"] * z)
    xd = jnp.transpose(xd, (0, 3, 1, 2))                                # NCHW

    cat = _pyramid_concat(xd, params)

    sc, bi = bn_fold(params["fuse_b"], params["fuse_bn"])
    a = jnp.transpose(cat, (0, 2, 3, 1)).reshape(N * H * W, 4 * D)
    z = jnp.dot(a.astype(jnp.bfloat16),
                params["fuse_w"].reshape(D, 4 * D).T.astype(jnp.bfloat16),
                preferred_element_type=jnp.float32) * sc + bi
    out = jnp.where(z >= 0.0, z, params["fuse_prelu"] * z).reshape(N, H, W, D)
    return jnp.transpose(out, (0, 3, 1, 2))


# ----------------------------------------------------------------------------
if __name__ == "__main__":
    key = jax.random.PRNGKey(0)
    k_param, k_x, k_fuse = jax.random.split(key, 3)

    down_dim = 32
    # The module hard-codes 2048 input channels; keep batch/spatial small.
    x = jax.random.normal(k_x, (2, 2048, 16, 16), jnp.float32)
    params = init_params(k_param, down_dim=down_dim, in_ch=2048)

    out = jax.block_until_ready(jax.jit(ppm_forward)(x, params))
    assert out.shape == (2, down_dim, 16, 16), out.shape

    # Both paths use identical bf16 operand quantization with f32 accumulation, so the
    # residual difference is accumulation-order only; 1e-2 is comfortable.
    ref = jax.block_until_ready(jax.jit(ppm_forward_ref)(x, params))
    err = float(jnp.max(jnp.abs(out - ref)))
    assert jnp.allclose(out, ref, rtol=1e-2, atol=1e-2), err

    # The fuse conv only takes its Pallas path above the row gate; exercise that path
    # directly (M = 4096) so the kernel stays compiled and correct.
    cat_big = jax.random.normal(k_fuse, (1, 4 * down_dim, 64, 64), jnp.float32)
    fuse_args = (cat_big, params["fuse_w"], params["fuse_b"],
                 params["fuse_bn"], params["fuse_prelu"])
    f_pallas = jax.block_until_ready(
        jax.jit(lambda *a: fuse_conv1x1_bn_prelu(*a, min_pallas_rows=0))(*fuse_args))
    f_ref = jax.block_until_ready(
        jax.jit(lambda *a: fuse_conv1x1_bn_prelu(*a, min_pallas_rows=1 << 30))(*fuse_args))
    err2 = float(jnp.max(jnp.abs(f_pallas - f_ref)))
    assert jnp.allclose(f_pallas, f_ref, rtol=1e-2, atol=1e-2), err2

    print("KERNEL_OK")
</pallas_src>

<mosaic_0001>
module attributes {stable_mosaic.version = 11 : i64} {
  func.func @kernel(%arg0: i32, %arg1: memref<288x2048xbf16, #tpu.memory_space<vmem>>, %arg2: memref<2048x384xbf16, #tpu.memory_space<vmem>>, %arg3: memref<32x3xf32, #tpu.memory_space<vmem>>, %arg4: memref<32x288xf32, #tpu.memory_space<vmem>>) attributes {dimension_semantics = [#tpu.dimension_semantics<parallel>], iteration_bounds = array<i64: 2>, scalar_prefetch = 0 : i64, scratch_operands = 0 : i64, tpu.core_type = #tpu.core_type<tc>, window_params = [{pipeline_mode = #tpu.pipeline_mode<synchronous>, transform_indices = @transform_0, window_bounds = array<i64: 288, 2048>}, {transform_indices = @transform_1, window_bounds = array<i64: 2048, 384>}, {pipeline_mode = #tpu.pipeline_mode<synchronous>, transform_indices = @transform_2, window_bounds = array<i64: 32, 3>}, {transform_indices = @transform_3, window_bounds = array<i64: 32, 288>}]} {
    %c0 = arith.constant 0 : index
    %c0_0 = arith.constant 0 : index
    %0 = vector.load %arg1[%c0, %c0_0] : memref<288x2048xbf16, #tpu.memory_space<vmem>>, vector<288x2048xbf16>
    %c0_1 = arith.constant 0 : index
    %c0_2 = arith.constant 0 : index
    %1 = vector.load %arg2[%c0_1, %c0_2] : memref<2048x384xbf16, #tpu.memory_space<vmem>>, vector<2048x384xbf16>
    %cst = arith.constant dense<0.000000e+00> : vector<288x384xf32>
    %2 = tpu.matmul %0, %1, %cst {dimension_numbers = #tpu.dot_dimension_numbers<[1], [0], [0], [1], [0, 0, 1, 1], [], []>} : vector<288x2048xbf16>, vector<2048x384xbf16>, vector<288x384xf32> -> vector<288x384xf32>
    %3 = vector.extract_strided_slice %2 {offsets = [0, 0], sizes = [32, 288], strides = [1, 1]} : vector<288x384xf32> to vector<32x288xf32>
    %4 = vector.extract_strided_slice %2 {offsets = [32, 1], sizes = [32, 288], strides = [1, 1]} : vector<288x384xf32> to vector<32x288xf32>
    %5 = arith.addf %3, %4 : vector<32x288xf32>
    %6 = vector.extract_strided_slice %2 {offsets = [64, 2], sizes = [32, 288], strides = [1, 1]} : vector<288x384xf32> to vector<32x288xf32>
    %7 = arith.addf %5, %6 : vector<32x288xf32>
    %8 = vector.extract_strided_slice %2 {offsets = [96, 18], sizes = [32, 288], strides = [1, 1]} : vector<288x384xf32> to vector<32x288xf32>
    %9 = arith.addf %7, %8 : vector<32x288xf32>
    %10 = vector.extract_strided_slice %2 {offsets = [128, 19], sizes = [32, 288], strides = [1, 1]} : vector<288x384xf32> to vector<32x288xf32>
    %11 = arith.addf %9, %10 : vector<32x288xf32>
    %12 = vector.extract_strided_slice %2 {offsets = [160, 20], sizes = [32, 288], strides = [1, 1]} : vector<288x384xf32> to vector<32x288xf32>
    %13 = arith.addf %11, %12 : vector<32x288xf32>
    %14 = vector.extract_strided_slice %2 {offsets = [192, 36], sizes = [32, 288], strides = [1, 1]} : vector<288x384xf32> to vector<32x288xf32>
    %15 = arith.addf %13, %14 : vector<32x288xf32>
    %16 = vector.extract_strided_slice %2 {offsets = [224, 37], sizes = [32, 288], strides = [1, 1]} : vector<288x384xf32> to vector<32x288xf32>
    %17 = arith.addf %15, %16 : vector<32x288xf32>
    %18 = vector.extract_strided_slice %2 {offsets = [256, 38], sizes = [32, 288], strides = [1, 1]} : vector<288x384xf32> to vector<32x288xf32>
    %19 = arith.addf %17, %18 : vector<32x288xf32>
    %c0_3 = arith.constant 0 : index
    %c0_4 = arith.constant 0 : index
    %20 = vector.load %arg3[%c0_3, %c0_4] : memref<32x3xf32, #tpu.memory_space<vmem>>, vector<32x1xf32>
    %c0_5 = arith.constant 0 : index
    %c1 = arith.constant 1 : index
    %21 = vector.load %arg3[%c0_5, %c1] : memref<32x3xf32, #tpu.memory_space<vmem>>, vector<32x1xf32>
    %c0_6 = arith.constant 0 : index
    %c2 = arith.constant 2 : index
    %22 = vector.load %arg3[%c0_6, %c2] : memref<32x3xf32, #tpu.memory_space<vmem>>, vector<32x1xf32>
    %23 = vector.broadcast %20 : vector<32x1xf32> to vector<32x288xf32>
    %24 = arith.mulf %19, %23 : vector<32x288xf32>
    %25 = vector.broadcast %21 : vector<32x1xf32> to vector<32x288xf32>
    %26 = arith.addf %24, %25 : vector<32x288xf32>
    %cst_7 = arith.constant 0.000000e+00 : f32
    %27 = vector.broadcast %cst_7 : f32 to vector<32x288xf32>
    %28 = arith.cmpf oge, %26, %27 : vector<32x288xf32>
    %29 = vector.broadcast %22 : vector<32x1xf32> to vector<32x288xf32>
    %30 = arith.mulf %29, %26 : vector<32x288xf32>
    %31 = arith.select %28, %26, %30 : vector<32x288xi1>, vector<32x288xf32>
    %c0_8 = arith.constant 0 : index
    %c0_9 = arith.constant 0 : index
    %32 = vector.load %arg4[%c0_8, %c0_9] : memref<32x288xf32, #tpu.memory_space<vmem>>, vector<32x288xf32>
    tpu.vector_store %arg4[%c0_8, %c0_9], %31 {strides = array<i32>} : memref<32x288xf32, #tpu.memory_space<vmem>>, vector<32x288xf32>,
    return
  }
  func.func @transform_0(%arg0: i32) -> (i32, i32) {
    %c0_i32 = arith.constant 0 : i32
    %c0_i32_0 = arith.constant 0 : i32
    %c0_i32_1 = arith.constant 0 : i32
    return %c0_i32, %c0_i32_0 : i32, i32
  }
  func.func @transform_1(%arg0: i32) -> (i32, i32) {
    %c0_i32 = arith.constant 0 : i32
    %c0_i32_0 = arith.constant 0 : i32
    return %arg0, %c0_i32 : i32, i32
  }
  func.func @transform_2(%arg0: i32) -> (i32, i32) {
    %c0_i32 = arith.constant 0 : i32
    %c0_i32_0 = arith.constant 0 : i32
    %c0_i32_1 = arith.constant 0 : i32
    return %c0_i32, %c0_i32_0 : i32, i32
  }
  func.func @transform_3(%arg0: i32) -> (i32, i32) {
    %c0_i32 = arith.constant 0 : i32
    %c0_i32_0 = arith.constant 0 : i32
    return %arg0, %c0_i32 : i32, i32
  }
}

</mosaic_0001>

<llo_original>
// kernel: ppm_forward.1
$region0: #{ppm_forward.1}
  #allocation0 [shape = 'u32[]', space=smem, size = 0x4, offset = 0x4, fixed_abs, tag = 'smem constant byte address 0x4 - core index']
  #allocation1 [shape = 'u32[144,128]{1,0:T(1,128)}', space=vmem, size = 0x12000, scoped, tag = 'internal scratch']
  %s0 = inlined_call_operand.vmem [shape: bf16[288,2048], index: 0, kind: input, shape index: {}]
  %s1 = inlined_call_operand.vmem [shape: bf16[4096,384], index: 1, kind: input, shape index: {}]
  %s2 = inlined_call_operand.vmem [shape: f32[32,3], index: 2, kind: input, shape index: {}]
  %s3 = inlined_call_operand.vmem [shape: f32[64,288], index: 3, kind: output, shape index: {}]
  %s4 = sld [smem:[#allocation0]]
  $region45: #{ppm_forward.1} parent=0
    _
  %s6 = ssub.s32 1, %s4
  %s7 = scalar_select 0, %s6, %s4
  loop: start=0, step=1, limit=4
  $region2: #{ppm_forward.1} parent=0 // loop_pre_header
    _
  $region3: #{ppm_forward.1} parent=0 // loop_header
    %s9 = sphi 0, %s13
    %p10 = scmp.ge.s32.totalorder %s9, 4
    %s17 = sphi 0, %s17
    %s19 = sphi 0, %s17
    %s20 = sphi 0, %s19
    %s34 = sphi 0, %s20
    %s40 = sphi 0, %s42
    %s43 = sphi 0, %s40
    %s44 = sphi 0, %s43
    %s60 = sphi 0, %s44
    %s64 = sphi 0, %s64
    %s66 = sphi 0, %s64
    %s67 = sphi 0, %s66
    %s81 = sphi 0, %s67
    %s87 = sphi 0, %s89
    %s90 = sphi 0, %s87
    %s91 = sphi 0, %s90
    %s107 = sphi 0, %s91
  $region4: #{ppm_forward.1} parent=0 // loop_header_branch
    %12 = sbr.rel (%p10) target = $region8
  $region5: #{ppm_forward.1} parent=0 // loop_body
    %s14 = ssub.s32 %s9, 1
    %s15 = ssub.s32 %s9, 2
    %s16 = sadd.s32 %s9, 1
    %s18 = sadd.s32 %s17, 1
    %p21 = scmp.eq.s32.totalorder %s9, 1
    %p22 = scmp.ne.s32.totalorder %s17, %s19
    %p23 = scmp.eq.s32.totalorder %s9, 0
    %p24 = por %p22, %p23
    %p25 = scmp.ne.s32.totalorder %s17, %s19
    %p26 = scmp.eq.s32.totalorder %s14, 1
    %p27 = por %p25, %p26
    %p28 = scmp.ne.s32.totalorder %s19, %s20
    %p29 = scmp.eq.s32.totalorder %s14, 0
    %p30 = por %p28, %p29
    %p31 = scmp.ne.s32.totalorder %s19, %s20
    %p32 = scmp.eq.s32.totalorder %s15, 1
    %p33 = por %p31, %p32
    %p35 = scmp.ne.s32.totalorder %s20, %s34
    %p36 = scmp.eq.s32.totalorder %s15, 0
    %p37 = por %p35, %p36
    %s38 = ssub.s32 %s9, %s16
    %p39 = scmp.eq.s32.totalorder %s38, 0
    %s41 = sadd.s32 %s40, 1
    %s42 = scalar_select %p39, %s40, %s41
    %p45 = pneg %p39
    %p46 = scmp.eq.s32.totalorder %s9, 1
    %p47 = por %p45, %p46
    %p48 = scmp.ne.s32.totalorder %s40, %s43
    %p49 = scmp.eq.s32.totalorder %s9, 0
    %p50 = por %p48, %p49
    %p51 = scmp.ne.s32.totalorder %s40, %s43
    %p52 = scmp.eq.s32.totalorder %s14, 1
    %p53 = por %p51, %p52
    %p54 = scmp.ne.s32.totalorder %s43, %s44
    %p55 = scmp.eq.s32.totalorder %s14, 0
    %p56 = por %p54, %p55
    %p57 = scmp.ne.s32.totalorder %s43, %s44
    %p58 = scmp.eq.s32.totalorder %s15, 1
    %p59 = por %p57, %p58
    %p61 = scmp.ne.s32.totalorder %s44, %s60
    %p62 = scmp.eq.s32.totalorder %s15, 0
    %p63 = por %p61, %p62
    %s65 = sadd.s32 %s64, 1
    %p68 = scmp.eq.s32.totalorder %s9, 1
    %p69 = scmp.ne.s32.totalorder %s64, %s66
    %p70 = scmp.eq.s32.totalorder %s9, 0
    %p71 = por %p69, %p70
    %p72 = scmp.ne.s32.totalorder %s64, %s66
    %p73 = scmp.eq.s32.totalorder %s14, 1
    %p74 = por %p72, %p73
    %p75 = scmp.ne.s32.totalorder %s66, %s67
    %p76 = scmp.eq.s32.totalorder %s14, 0
    %p77 = por %p75, %p76
    %p78 = scmp.ne.s32.totalorder %s66, %s67
    %p79 = scmp.eq.s32.totalorder %s15, 1
    %p80 = por %p78, %p79
    %p82 = scmp.ne.s32.totalorder %s67, %s81
    %p83 = scmp.eq.s32.totalorder %s15, 0
    %p84 = por %p82, %p83
    %s85 = ssub.s32 %s9, %s16
    %p86 = scmp.eq.s32.totalorder %s85, 0
    %s88 = sadd.s32 %s87, 1
    %s89 = scalar_select %p86, %s87, %s88
    %p92 = pneg %p86
    %p93 = scmp.eq.s32.totalorder %s9, 1
    %p94 = por %p92, %p93
    %p95 = scmp.ne.s32.totalorder %s87, %s90
    %p96 = scmp.eq.s32.totalorder %s9, 0
    %p97 = por %p95, %p96
    %p98 = scmp.ne.s32.totalorder %s87, %s90
    %p99 = scmp.eq.s32.totalorder %s14, 1
    %p100 = por %p98, %p99
    %p101 = scmp.ne.s32.totalorder %s90, %s91
    %p102 = scmp.eq.s32.totalorder %s14, 0
    %p103 = por %p101, %p102
    %p104 = scmp.ne.s32.totalorder %s90, %s91
    %p105 = scmp.eq.s32.totalorder %s15, 1
    %p106 = por %p104, %p105
    %p108 = scmp.ne.s32.totalorder %s91, %s107
    %p109 = scmp.eq.s32.totalorder %s15, 0
    %p110 = por %p108, %p109
    %p111 = scmp.le.s32.totalorder 1, %s9
    %p112 = scmp.lt.s32.totalorder %s9, 3
    %p113 = pnand %p111, %p112
    %p114 = pneg %p113
    // Predicated region
    $region9: #{ppm_forward.1} parent=5 // pred_check
      _
    $region10: #{ppm_forward.1} parent=5 // pred_check_branch
      %116 = sbr.rel (%p113) target = $region12
    $region11: #{ppm_forward.1} parent=5 // pred_region
      %s117 = ssub.s32 %s9, 1
      // Predicated region
      $region13: #{ppm_forward.1} parent=11 // pred_check
        %p118 = pneg %p30
      $region14: #{ppm_forward.1} parent=11 // pred_check_branch
        %120 = sbr.rel (%p118) target = $region16
      $region15: #{ppm_forward.1} parent=11 // pred_region
        _
      $region16: #{ppm_forward.1} parent=11 // pred_fallthru
        _
      // Predicated region
      $region17: #{ppm_forward.1} parent=11 // pred_check
        %p121 = pneg %p77
      $region18: #{ppm_forward.1} parent=11 // pred_check_branch
        %123 = sbr.rel (%p121) target = $region20
      $region19: #{ppm_forward.1} parent=11 // pred_region
        _
      $region20: #{ppm_forward.1} parent=11 // pred_fallthru
        _
    $region12: #{ppm_forward.1} parent=5 // pred_fallthru
      _
    %p124 = scmp.lt.s32.totalorder %s9, 2
    // Predicated region
    $region21: #{ppm_forward.1} parent=5 // pred_check
      %p125 = pneg %p124
    $region22: #{ppm_forward.1} parent=5 // pred_check_branch
      %127 = sbr.rel (%p125) target = $region24
    $region23: #{ppm_forward.1} parent=5 // pred_region
      // Predicated region
      $region25: #{ppm_forward.1} parent=23 // pred_check
        %p128 = pneg %p50
      $region26: #{ppm_forward.1} parent=23 // pred_check_branch
        %130 = sbr.rel (%p128) target = $region28
      $region27: #{ppm_forward.1} parent=23 // pred_region
        %s131 = smul.u32 256, %s9
        %p132 = scmp.lt.s32.totalorder %s131, 511
        %s133 = scalar_select %p132, %s131, 511
        %s134 = smul.addr %s133, 3
        %s135 = smul.addr %s134, 4
        %s136 = scalar_lea.vmem %s1, %s135
        %s137 = smul.u32 256, %s9
      $region28: #{ppm_forward.1} parent=23 // pred_fallthru
        _
    $region24: #{ppm_forward.1} parent=5 // pred_fallthru
      _
    %p138 = scmp.le.s32.totalorder 1, %s9
    %p139 = scmp.lt.s32.totalorder %s9, 3
    %p140 = pnand %p138, %p139
    %p141 = pneg %p140
    // Predicated region
    $region29: #{ppm_forward.1} parent=5 // pred_check
      _
    $region30: #{ppm_forward.1} parent=5 // pred_check_branch
      %143 = sbr.rel (%p140) target = $region32
    $region31: #{ppm_forward.1} parent=5 // pred_region
      %s144 = ssub.s32 %s9, 1
      %p145 = pneg %p30
      %p146 = pneg %p27
      %s147 = smul.u32 256, %s14
      %p148 = scmp.lt.s32.totalorder %s147, 511
      %s149 = scalar_select %p148, %s147, 511
      %s150 = smul.addr %s149, 3
      %s151 = smul.addr %s150, 4
      %s152 = scalar_lea.vmem %s1, %s151
      %p153 = pneg %p56
      %p154 = pneg %p53
      %p155 = pneg %p77
      %p156 = pneg %p74
      %p157 = pneg %p103
      %p158 = pneg %p100
      %s159 = smul.u32 4, %s14
      %p160 = scmp.lt.s32.totalorder %s159, 7
      %s161 = scalar_select %p160, %s159, 7
      %s162 = smul.addr %s161, 3
      %s163 = smul.addr %s162, 8
      %s164 = scalar_lea.vmem %s3, %s163
      %s165 = smul.u32 256, %s14
      %p166 = scmp.lt.s32.totalorder %s165, 511
      %s167 = scalar_select %p166, %s165, 511
      %s168 = smul.addr %s167, 3
      %s169 = smul.addr %s168, 4
      %s170 = scalar_lea.vmem %s1, %s169
      %s171 = smul.u32 256, %s14
      %s172 = smul.u32 4, %s14
      %p173 = scmp.lt.s32.totalorder %s172, 7
      %s174 = scalar_select %p173, %s172, 7
      %s175 = smul.addr %s174, 3
      %s176 = smul.addr %s175, 8
      %s177 = scalar_lea.vmem %s3, %s176
      %s178 = smul.u32 4, %s14
      %v180 = vld [vmem:[%s0] sm:$0xff]
      %v181 = vld [vmem:[%s0 + $0x8] sm:$0xff]
      %v182 = vld [vmem:[%s0 + $0x10] sm:$0xff]
      %v183 = vld [vmem:[%s0 + $0x18] sm:$0xff]
      %v184 = vld [vmem:[%s0 + $0x20] sm:$0xff]
      %v185 = vld [vmem:[%s0 + $0x28] sm:$0xff]
      %v186 = vld [vmem:[%s0 + $0x30] sm:$0xff]
      %v187 = vld [vmem:[%s0 + $0x38] sm:$0xff]
      %v188 = vld [vmem:[%s0 + $0x40] sm:$0xff]
      %v189 = vld [vmem:[%s0 + $0x48] sm:$0xff]
      %v190 = vld [vmem:[%s0 + $0x50] sm:$0xff]
      %v191 = vld [vmem:[%s0 + $0x58] sm:$0xff]
      %v192 = vld [vmem:[%s0 + $0x60] sm:$0xff]
      %v193 = vld [vmem:[%s0 + $0x68] sm:$0xff]
      %v194 = vld [vmem:[%s0 + $0x70] sm:$0xff]
      %v195 = vld [vmem:[%s0 + $0x78] sm:$0xff]
      %v196 = vld [vmem:[%s0 + $0x80] sm:$0xff]
      %v197 = vld [vmem:[%s0 + $0x88] sm:$0xff]
      %v198 = vld [vmem:[%s0 + $0x90] sm:$0xff]
      %v199 = vld [vmem:[%s0 + $0x98] sm:$0xff]
      %v200 = vld [vmem:[%s0 + $0xa0] sm:$0xff]
      %v201 = vld [vmem:[%s0 + $0xa8] sm:$0xff]
      %v202 = vld [vmem:[%s0 + $0xb0] sm:$0xff]
      %v203 = vld [vmem:[%s0 + $0xb8] sm:$0xff]
      %v204 = vld [vmem:[%s0 + $0xc0] sm:$0xff]
      %v205 = vld [vmem:[%s0 + $0xc8] sm:$0xff]
      %v206 = vld [vmem:[%s0 + $0xd0] sm:$0xff]
      %v207 = vld [vmem:[%s0 + $0xd8] sm:$0xff]
      %v208 = vld [vmem:[%s0 + $0xe0] sm:$0xff]
      %v209 = vld [vmem:[%s0 + $0xe8] sm:$0xff]
      %v210 = vld [vmem:[%s0 + $0xf0] sm:$0xff]
      %v211 = vld [vmem:[%s0 + $0xf8] sm:$0xff]
      %v212 = vld [vmem:[%s0 + $0x100] sm:$0xff]
      %v213 = vld [vmem:[%s0 + $0x108] sm:$0xff]
      %v214 = vld [vmem:[%s0 + $0x110] sm:$0xff]
      %v215 = vld [vmem:[%s0 + $0x118] sm:$0xff]
      %v216 = vld [vmem:[%s0 + $0x120] sm:$0xff]
      %v217 = vld [vmem:[%s0 + $0x128] sm:$0xff]
      %v218 = vld [vmem:[%s0 + $0x130] sm:$0xff]
      %v219 = vld [vmem:[%s0 + $0x138] sm:$0xff]
      %v220 = vld [vmem:[%s0 + $0x140] sm:$0xff]
      %v221 = vld [vmem:[%s0 + $0x148] sm:$0xff]
      %v222 = vld [vmem:[%s0 + $0x150] sm:$0xff]
      %v223 = vld [vmem:[%s0 + $0x158] sm:$0xff]
      %v224 = vld [vmem:[%s0 + $0x160] sm:$0xff]
      %v225 = vld [vmem:[%s0 + $0x168] sm:$0xff]
      %v226 = vld [vmem:[%s0 + $0x170] sm:$0xff]
      %v227 = vld [vmem:[%s0 + $0x178] sm:$0xff]
      %v228 = vld [vmem:[%s0 + $0x180] sm:$0xff]
      %v229 = vld [vmem:[%s0 + $0x188] sm:$0xff]
      %v230 = vld [vmem:[%s0 + $0x190] sm:$0xff]
      %v231 = vld [vmem:[%s0 + $0x198] sm:$0xff]
      %v232 = vld [vmem:[%s0 + $0x1a0] sm:$0xff]
      %v233 = vld [vmem:[%s0 + $0x1a8] sm:$0xff]
      %v234 = vld [vmem:[%s0 + $0x1b0] sm:$0xff]
      %v235 = vld [vmem:[%s0 + $0x1b8] sm:$0xff]
      %v236 = vld [vmem:[%s0 + $0x1c0] sm:$0xff]
      %v237 = vld [vmem:[%s0 + $0x1c8] sm:$0xff]
      %v238 = vld [vmem:[%s0 + $0x1d0] sm:$0xff]
      %v239 = vld [vmem:[%s0 + $0x1d8] sm:$0xff]
      %v240 = vld [vmem:[%s0 + $0x1e0] sm:$0xff]
      %v241 = vld [vmem:[%s0 + $0x1e8] sm:$0xff]
      %v242 = vld [vmem:[%s0 + $0x1f0] sm:$0xff]
      %v243 = vld [vmem:[%s0 + $0x1f8] sm:$0xff]
      %v244 = vld [vmem:[%s0 + $0x200] sm:$0xff]
      %v245 = vld [vmem:[%s0 + $0x208] sm:$0xff]
      %v246 = vld [vmem:[%s0 + $0x210] sm:$0xff]
      %v247 = vld [vmem:[%s0 + $0x218] sm:$0xff]
      %v248 = vld [vmem:[%s0 + $0x220] sm:$0xff]
      %v249 = vld [vmem:[%s0 + $0x228] sm:$0xff]
      %v250 = vld [vmem:[%s0 + $0x230] sm:$0xff]
      %v251 = vld [vmem:[%s0 + $0x238] sm:$0xff]
      %v252 = vld [vmem:[%s0 + $0x240] sm:$0xff]
      %v253 = vld [vmem:[%s0 + $0x248] sm:$0xff]
      %v254 = vld [vmem:[%s0 + $0x250] sm:$0xff]
      %v255 = vld [vmem:[%s0 + $0x258] sm:$0xff]
      %v256 = vld [vmem:[%s0 + $0x260] sm:$0xff]
      %v257 = vld [vmem:[%s0 + $0x268] sm:$0xff]
      %v258 = vld [vmem:[%s0 + $0x270] sm:$0xff]
      %v259 = vld [vmem:[%s0 + $0x278] sm:$0xff]
      %v260 = vld [vmem:[%s0 + $0x280] sm:$0xff]
      %v261 = vld [vmem:[%s0 + $0x288] sm:$0xff]
      %v262 = vld [vmem:[%s0 + $0x290] sm:$0xff]
      %v263 = vld [vmem:[%s0 + $0x298] sm:$0xff]
      %v264 = vld [vmem:[%s0 + $0x2a0] sm:$0xff]
      %v265 = vld [vmem:[%s0 + $0x2a8] sm:$0xff]
      %v266 = vld [vmem:[%s0 + $0x2b0] sm:$0xff]
      %v267 = vld [vmem:[%s0 + $0x2b8] sm:$0xff]
      %v268 = vld [vmem:[%s0 + $0x2c0] sm:$0xff]
      %v269 = vld [vmem:[%s0 + $0x2c8] sm:$0xff]
      %v270 = vld [vmem:[%s0 + $0x2d0] sm:$0xff]
      %v271 = vld [vmem:[%s0 + $0x2d8] sm:$0xff]
      %v272 = vld [vmem:[%s0 + $0x2e0] sm:$0xff]
      %v273 = vld [vmem:[%s0 + $0x2e8] sm:$0xff]
      %v274 = vld [vmem:[%s0 + $0x2f0] sm:$0xff]
      %v275 = vld [vmem:[%s0 + $0x2f8] sm:$0xff]
      %v276 = vld [vmem:[%s0 + $0x300] sm:$0xff]
      %v277 = vld [vmem:[%s0 + $0x308] sm:$0xff]
      %v278 = vld [vmem:[%s0 + $0x310] sm:$0xff]
      %v279 = vld [vmem:[%s0 + $0x318] sm:$0xff]
      %v280 = vld [vmem:[%s0 + $0x320] sm:$0xff]
      %v281 = vld [vmem:[%s0 + $0x328] sm:$0xff]
      %v282 = vld [vmem:[%s0 + $0x330] sm:$0xff]
      %v283 = vld [vmem:[%s0 + $0x338] sm:$0xff]
      %v284 = vld [vmem:[%s0 + $0x340] sm:$0xff]
      %v285 = vld [vmem:[%s0 + $0x348] sm:$0xff]
      %v286 = vld [vmem:[%s0 + $0x350] sm:$0xff]
      %v287 = vld [vmem:[%s0 + $0x358] sm:$0xff]
      %v288 = vld [vmem:[%s0 + $0x360] sm:$0xff]
      %v289 = vld [vmem:[%s0 + $0x368] sm:$0xff]
      %v290 = vld [vmem:[%s0 + $0x370] sm:$0xff]
      %v291 = vld [vmem:[%s0 + $0x378] sm:$0xff]
      %v292 = vld [vmem:[%s0 + $0x380] sm:$0xff]
      %v293 = vld [vmem:[%s0 + $0x388] sm:$0xff]
      %v294 = vld [vmem:[%s0 + $0x390] sm:$0xff]
      %v295 = vld [vmem:[%s0 + $0x398] sm:$0xff]
      %v296 = vld [vmem:[%s0 + $0x3a0] sm:$0xff]
      %v297 = vld [vmem:[%s0 + $0x3a8] sm:$0xff]
      %v298 = vld [vmem:[%s0 + $0x3b0] sm:$0xff]
      %v299 = vld [vmem:[%s0 + $0x3b8] sm:$0xff]
      %v300 = vld [vmem:[%s0 + $0x3c0] sm:$0xff]
      %v301 = vld [vmem:[%s0 + $0x3c8] sm:$0xff]
      %v302 = vld [vmem:[%s0 + $0x3d0] sm:$0xff]
      %v303 = vld [vmem:[%s0 + $0x3d8] sm:$0xff]
      %v304 = vld [vmem:[%s0 + $0x3e0] sm:$0xff]
      %v305 = vld [vmem:[%s0 + $0x3e8] sm:$0xff]
      %v306 = vld [vmem:[%s0 + $0x3f0] sm:$0xff]
      %v307 = vld [vmem:[%s0 + $0x3f8] sm:$0xff]
      %v308 = vld [vmem:[%s0 + $0x400] sm:$0xff]
      %v309 = vld [vmem:[%s0 + $0x408] sm:$0xff]
      %v310 = vld [vmem:[%s0 + $0x410] sm:$0xff]
      %v311 = vld [vmem:[%s0 + $0x418] sm:$0xff]
      %v312 = vld [vmem:[%s0 + $0x420] sm:$0xff]
      %v313 = vld [vmem:[%s0 + $0x428] sm:$0xff]
      %v314 = vld [vmem:[%s0 + $0x430] sm:$0xff]
      %v315 = vld [vmem:[%s0 + $0x438] sm:$0xff]
      %v316 = vld [vmem:[%s0 + $0x440] sm:$0xff]
      %v317 = vld [vmem:[%s0 + $0x448] sm:$0xff]
      %v318 = vld [vmem:[%s0 + $0x450] sm:$0xff]
      %v319 = vld [vmem:[%s0 + $0x458] sm:$0xff]
      %v320 = vld [vmem:[%s0 + $0x460] sm:$0xff]
      %v321 = vld [vmem:[%s0 + $0x468] sm:$0xff]
      %v322 = vld [vmem:[%s0 + $0x470] sm:$0xff]
      %v323 = vld [vmem:[%s0 + $0x478] sm:$0xff]
      %v324 = vld [vmem:[%s0 + $0x480] sm:$0xff]
      %v325 = vld [vmem:[%s0 + $0x488] sm:$0xff]
      %v326 = vld [vmem:[%s0 + $0x490] sm:$0xff]
      %v327 = vld [vmem:[%s0 + $0x498] sm:$0xff]
      %v328 = vld [vmem:[%s0 + $0x4a0] sm:$0xff]
      %v329 = vld [vmem:[%s0 + $0x4a8] sm:$0xff]
      %v330 = vld [vmem:[%s0 + $0x4b0] sm:$0xff]
      %v331 = vld [vmem:[%s0 + $0x4b8] sm:$0xff]
      %v332 = vld [vmem:[%s0 + $0x4c0] sm:$0xff]
      %v333 = vld [vmem:[%s0 + $0x4c8] sm:$0xff]
      %v334 = vld [vmem:[%s0 + $0x4d0] sm:$0xff]
      %v335 = vld [vmem:[%s0 + $0x4d8] sm:$0xff]
      %v336 = vld [vmem:[%s0 + $0x4e0] sm:$0xff]
      %v337 = vld [vmem:[%s0 + $0x4e8] sm:$0xff]
      %v338 = vld [vmem:[%s0 + $0x4f0] sm:$0xff]
      %v339 = vld [vmem:[%s0 + $0x4f8] sm:$0xff]
      %v340 = vld [vmem:[%s0 + $0x500] sm:$0xff]
      %v341 = vld [vmem:[%s0 + $0x508] sm:$0xff]
      %v342 = vld [vmem:[%s0 + $0x510] sm:$0xff]
      %v343 = vld [vmem:[%s0 + $0x518] sm:$0xff]
      %v344 = vld [vmem:[%s0 + $0x520] sm:$0xff]
      %v345 = vld [vmem:[%s0 + $0x528] sm:$0xff]
      %v346 = vld [vmem:[%s0 + $0x530] sm:$0xff]
      %v347 = vld [vmem:[%s0 + $0x538] sm:$0xff]
      %v348 = vld [vmem:[%s0 + $0x540] sm:$0xff]
      %v349 = vld [vmem:[%s0 + $0x548] sm:$0xff]
      %v350 = vld [vmem:[%s0 + $0x550] sm:$0xff]
      %v351 = vld [vmem:[%s0 + $0x558] sm:$0xff]
      %v352 = vld [vmem:[%s0 + $0x560] sm:$0xff]
      %v353 = vld [vmem:[%s0 + $0x568] sm:$0xff]
      %v354 = vld [vmem:[%s0 + $0x570] sm:$0xff]
      %v355 = vld [vmem:[%s0 + $0x578] sm:$0xff]
      %v356 = vld [vmem:[%s0 + $0x580] sm:$0xff]
      %v357 = vld [vmem:[%s0 + $0x588] sm:$0xff]
      %v358 = vld [vmem:[%s0 + $0x590] sm:$0xff]
      %v359 = vld [vmem:[%s0 + $0x598] sm:$0xff]
      %v360 = vld [vmem:[%s0 + $0x5a0] sm:$0xff]
      %v361 = vld [vmem:[%s0 + $0x5a8] sm:$0xff]
      %v362 = vld [vmem:[%s0 + $0x5b0] sm:$0xff]
      %v363 = vld [vmem:[%s0 + $0x5b8] sm:$0xff]
      %v364 = vld [vmem:[%s0 + $0x5c0] sm:$0xff]
      %v365 = vld [vmem:[%s0 + $0x5c8] sm:$0xff]
      %v366 = vld [vmem:[%s0 + $0x5d0] sm:$0xff]
      %v367 = vld [vmem:[%s0 + $0x5d8] sm:$0xff]
      %v368 = vld [vmem:[%s0 + $0x5e0] sm:$0xff]
      %v369 = vld [vmem:[%s0 + $0x5e8] sm:$0xff]
      %v370 = vld [vmem:[%s0 + $0x5f0] sm:$0xff]
      %v371 = vld [vmem:[%s0 + $0x5f8] sm:$0xff]
      %v372 = vld [vmem:[%s0 + $0x600] sm:$0xff]
      %v373 = vld [vmem:[%s0 + $0x608] sm:$0xff]
      %v374 = vld [vmem:[%s0 + $0x610] sm:$0xff]
      %v375 = vld [vmem:[%s0 + $0x618] sm:$0xff]
      %v376 = vld [vmem:[%s0 + $0x620] sm:$0xff]
      %v377 = vld [vmem:[%s0 + $0x628] sm:$0xff]
      %v378 = vld [vmem:[%s0 + $0x630] sm:$0xff]
      %v379 = vld [vmem:[%s0 + $0x638] sm:$0xff]
      %v380 = vld [vmem:[%s0 + $0x640] sm:$0xff]
      %v381 = vld [vmem:[%s0 + $0x648] sm:$0xff]
      %v382 = vld [vmem:[%s0 + $0x650] sm:$0xff]
      %v383 = vld [vmem:[%s0 + $0x658] sm:$0xff]
      %v384 = vld [vmem:[%s0 + $0x660] sm:$0xff]
      %v385 = vld [vmem:[%s0 + $0x668] sm:$0xff]
      %v386 = vld [vmem:[%s0 + $0x670] sm:$0xff]
      %v387 = vld [vmem:[%s0 + $0x678] sm:$0xff]
      %v388 = vld [vmem:[%s0 + $0x680] sm:$0xff]
      %v389 = vld [vmem:[%s0 + $0x688] sm:$0xff]
      %v390 = vld [vmem:[%s0 + $0x690] sm:$0xff]
      %v391 = vld [vmem:[%s0 + $0x698] sm:$0xff]
      %v392 = vld [vmem:[%s0 + $0x6a0] sm:$0xff]
      %v393 = vld [vmem:[%s0 + $0x6a8] sm:$0xff]
      %v394 = vld [vmem:[%s0 + $0x6b0] sm:$0xff]
      %v395 = vld [vmem:[%s0 + $0x6b8] sm:$0xff]
      %v396 = vld [vmem:[%s0 + $0x6c0] sm:$0xff]
      %v397 = vld [vmem:[%s0 + $0x6c8] sm:$0xff]
      %v398 = vld [vmem:[%s0 + $0x6d0] sm:$0xff]
      %v399 = vld [vmem:[%s0 + $0x6d8] sm:$0xff]
      %v400 = vld [vmem:[%s0 + $0x6e0] sm:$0xff]
      %v401 = vld [vmem:[%s0 + $0x6e8] sm:$0xff]
      %v402 = vld [vmem:[%s0 + $0x6f0] sm:$0xff]
      %v403 = vld [vmem:[%s0 + $0x6f8] sm:$0xff]
      %v404 = vld [vmem:[%s0 + $0x700] sm:$0xff]
      %v405 = vld [vmem:[%s0 + $0x708] sm:$0xff]
      %v406 = vld [vmem:[%s0 + $0x710] sm:$0xff]
      %v407 = vld [vmem:[%s0 + $0x718] sm:$0xff]
      %v408 = vld [vmem:[%s0 + $0x720] sm:$0xff]
      %v409 = vld [vmem:[%s0 + $0x728] sm:$0xff]
      %v410 = vld [vmem:[%s0 + $0x730] sm:$0xff]
      %v411 = vld [vmem:[%s0 + $0x738] sm:$0xff]
      %v412 = vld [vmem:[%s0 + $0x740] sm:$0xff]
      %v413 = vld [vmem:[%s0 + $0x748] sm:$0xff]
      %v414 = vld [vmem:[%s0 + $0x750] sm:$0xff]
      %v415 = vld [vmem:[%s0 + $0x758] sm:$0xff]
      %v416 = vld [vmem:[%s0 + $0x760] sm:$0xff]
      %v417 = vld [vmem:[%s0 + $0x768] sm:$0xff]
      %v418 = vld [vmem:[%s0 + $0x770] sm:$0xff]
      %v419 = vld [vmem:[%s0 + $0x778] sm:$0xff]
      %v420 = vld [vmem:[%s0 + $0x780] sm:$0xff]
      %v421 = vld [vmem:[%s0 + $0x788] sm:$0xff]
      %v422 = vld [vmem:[%s0 + $0x790] sm:$0xff]
      %v423 = vld [vmem:[%s0 + $0x798] sm:$0xff]
      %v424 = vld [vmem:[%s0 + $0x7a0] sm:$0xff]
      %v425 = vld [vmem:[%s0 + $0x7a8] sm:$0xff]
      %v426 = vld [vmem:[%s0 + $0x7b0] sm:$0xff]
      %v427 = vld [vmem:[%s0 + $0x7b8] sm:$0xff]
      %v428 = vld [vmem:[%s0 + $0x7c0] sm:$0xff]
      %v429 = vld [vmem:[%s0 + $0x7c8] sm:$0xff]
      %v430 = vld [vmem:[%s0 + $0x7d0] sm:$0xff]
      %v431 = vld [vmem:[%s0 + $0x7d8] sm:$0xff]
      %v432 = vld [vmem:[%s0 + $0x7e0] sm:$0xff]
      %v433 = vld [vmem:[%s0 + $0x7e8] sm:$0xff]
      %v434 = vld [vmem:[%s0 + $0x7f0] sm:$0xff]
      %v435 = vld [vmem:[%s0 + $0x7f8] sm:$0xff]
      %v436 = vld [vmem:[%s0 + $0x800] sm:$0xff]
      %v437 = vld [vmem:[%s0 + $0x808] sm:$0xff]
      %v438 = vld [vmem:[%s0 + $0x810] sm:$0xff]
      %v439 = vld [vmem:[%s0 + $0x818] sm:$0xff]
      %v440 = vld [vmem:[%s0 + $0x820] sm:$0xff]
      %v441 = vld [vmem:[%s0 + $0x828] sm:$0xff]
      %v442 = vld [vmem:[%s0 + $0x830] sm:$0xff]
      %v443 = vld [vmem:[%s0 + $0x838] sm:$0xff]
      %v444 = vld [vmem:[%s0 + $0x840] sm:$0xff]
      %v445 = vld [vmem:[%s0 + $0x848] sm:$0xff]
      %v446 = vld [vmem:[%s0 + $0x850] sm:$0xff]
      %v447 = vld [vmem:[%s0 + $0x858] sm:$0xff]
      %v448 = vld [vmem:[%s0 + $0x860] sm:$0xff]
      %v449 = vld [vmem:[%s0 + $0x868] sm:$0xff]
      %v450 = vld [vmem:[%s0 + $0x870] sm:$0xff]
      %v451 = vld [vmem:[%s0 + $0x878] sm:$0xff]
      %v452 = vld [vmem:[%s0 + $0x880] sm:$0xff]
      %v453 = vld [vmem:[%s0 + $0x888] sm:$0xff]
      %v454 = vld [vmem:[%s0 + $0x890] sm:$0xff]
      %v455 = vld [vmem:[%s0 + $0x898] sm:$0xff]
      %v456 = vld [vmem:[%s0 + $0x8a0] sm:$0xff]
      %v457 = vld [vmem:[%s0 + $0x8a8] sm:$0xff]
      %v458 = vld [vmem:[%s0 + $0x8b0] sm:$0xff]
      %v459 = vld [vmem:[%s0 + $0x8b8] sm:$0xff]
      %v460 = vld [vmem:[%s0 + $0x8c0] sm:$0xff]
      %v461 = vld [vmem:[%s0 + $0x8c8] sm:$0xff]
      %v462 = vld [vmem:[%s0 + $0x8d0] sm:$0xff]
      %v463 = vld [vmem:[%s0 + $0x8d8] sm:$0xff]
      %v464 = vld [vmem:[%s0 + $0x8e0] sm:$0xff]
      %v465 = vld [vmem:[%s0 + $0x8e8] sm:$0xff]
      %v466 = vld [vmem:[%s0 + $0x8f0] sm:$0xff]
      %v467 = vld [vmem:[%s0 + $0x8f8] sm:$0xff]
      %v468 = vld [vmem:[%s170] sm:$0xff]
      %v469 = vld [vmem:[%s170 + $0x8] sm:$0xf]
      %v470 = vld [vmem:[%s170 + $0xc] sm:$0xff]
      %v471 = vld [vmem:[%s170 + $0x14] sm:$0xf]
      %v472 = vld [vmem:[%s170 + $0x18] sm:$0xff]
      %v473 = vld [vmem:[%s170 + $0x20] sm:$0xf]
      %v474 = vld [vmem:[%s170 + $0x24] sm:$0xff]
      %v475 = vld [vmem:[%s170 + $0x2c] sm:$0xf]
      %v476 = vld [vmem:[%s170 + $0x30] sm:$0xff]
      %v477 = vld [vmem:[%s170 + $0x38] sm:$0xf]
      %v478 = vld [vmem:[%s170 + $0x3c] sm:$0xff]
      %v479 = vld [vmem:[%s170 + $0x44] sm:$0xf]
      %v480 = vld [vmem:[%s170 + $0x48] sm:$0xff]
      %v481 = vld [vmem:[%s170 + $0x50] sm:$0xf]
      %v482 = vld [vmem:[%s170 + $0x54] sm:$0xff]
      %v483 = vld [vmem:[%s170 + $0x5c] sm:$0xf]
      %v484 = vld [vmem:[%s170 + $0x60] sm:$0xff]
      %v485 = vld [vmem:[%s170 + $0x68] sm:$0xf]
      %v486 = vld [vmem:[%s170 + $0x6c] sm:$0xff]
      %v487 = vld [vmem:[%s170 + $0x74] sm:$0xf]
      %v488 = vld [vmem:[%s170 + $0x78] sm:$0xff]
      %v489 = vld [vmem:[%s170 + $0x80] sm:$0xf]
      %v490 = vld [vmem:[%s170 + $0x84] sm:$0xff]
      %v491 = vld [vmem:[%s170 + $0x8c] sm:$0xf]
      %v492 = vld [vmem:[%s170 + $0x90] sm:$0xff]
      %v493 = vld [vmem:[%s170 + $0x98] sm:$0xf]
      %v494 = vld [vmem:[%s170 + $0x9c] sm:$0xff]
      %v495 = vld [vmem:[%s170 + $0xa4] sm:$0xf]
      %v496 = vld [vmem:[%s170 + $0xa8] sm:$0xff]
      %v497 = vld [vmem:[%s170 + $0xb0] sm:$0xf]
      %v498 = vld [vmem:[%s170 + $0xb4] sm:$0xff]
      %v499 = vld [vmem:[%s170 + $0xbc] sm:$0xf]
      %v500 = vld [vmem:[%s170 + $0xc0] sm:$0xff]
      %v501 = vld [vmem:[%s170 + $0xc8] sm:$0xf]
      %v502 = vld [vmem:[%s170 + $0xcc] sm:$0xff]
      %v503 = vld [vmem:[%s170 + $0xd4] sm:$0xf]
      %v504 = vld [vmem:[%s170 + $0xd8] sm:$0xff]
      %v505 = vld [vmem:[%s170 + $0xe0] sm:$0xf]
      %v506 = vld [vmem:[%s170 + $0xe4] sm:$0xff]
      %v507 = vld [vmem:[%s170 + $0xec] sm:$0xf]
      %v508 = vld [vmem:[%s170 + $0xf0] sm:$0xff]
      %v509 = vld [vmem:[%s170 + $0xf8] sm:$0xf]
      %v510 = vld [vmem:[%s170 + $0xfc] sm:$0xff]
      %v511 = vld [vmem:[%s170 + $0x104] sm:$0xf]
      %v512 = vld [vmem:[%s170 + $0x108] sm:$0xff]
      %v513 = vld [vmem:[%s170 + $0x110] sm:$0xf]
      %v514 = vld [vmem:[%s170 + $0x114] sm:$0xff]
      %v515 = vld [vmem:[%s170 + $0x11c] sm:$0xf]
      %v516 = vld [vmem:[%s170 + $0x120] sm:$0xff]
      %v517 = vld [vmem:[%s170 + $0x128] sm:$0xf]
      %v518 = vld [vmem:[%s170 + $0x12c] sm:$0xff]
      %v519 = vld [vmem:[%s170 + $0x134] sm:$0xf]
      %v520 = vld [vmem:[%s170 + $0x138] sm:$0xff]
      %v521 = vld [vmem:[%s170 + $0x140] sm:$0xf]
      %v522 = vld [vmem:[%s170 + $0x144] sm:$0xff]
      %v523 = vld [vmem:[%s170 + $0x14c] sm:$0xf]
      %v524 = vld [vmem:[%s170 + $0x150] sm:$0xff]
      %v525 = vld [vmem:[%s170 + $0x158] sm:$0xf]
      %v526 = vld [vmem:[%s170 + $0x15c] sm:$0xff]
      %v527 = vld [vmem:[%s170 + $0x164] sm:$0xf]
      %v528 = vld [vmem:[%s170 + $0x168] sm:$0xff]
      %v529 = vld [vmem:[%s170 + $0x170] sm:$0xf]
      %v530 = vld [vmem:[%s170 + $0x174] sm:$0xff]
      %v531 = vld [vmem:[%s170 + $0x17c] sm:$0xf]
      %v532 = vld [vmem:[%s170 + $0x180] sm:$0xff]
      %v533 = vld [vmem:[%s170 + $0x188] sm:$0xf]
      %v534 = vld [vmem:[%s170 + $0x18c] sm:$0xff]
      %v535 = vld [vmem:[%s170 + $0x194] sm:$0xf]
      %v536 = vld [vmem:[%s170 + $0x198] sm:$0xff]
      %v537 = vld [vmem:[%s170 + $0x1a0] sm:$0xf]
      %v538 = vld [vmem:[%s170 + $0x1a4] sm:$0xff]
      %v539 = vld [vmem:[%s170 + $0x1ac] sm:$0xf]
      %v540 = vld [vmem:[%s170 + $0x1b0] sm:$0xff]
      %v541 = vld [vmem:[%s170 + $0x1b8] sm:$0xf]
      %v542 = vld [vmem:[%s170 + $0x1bc] sm:$0xff]
      %v543 = vld [vmem:[%s170 + $0x1c4] sm:$0xf]
      %v544 = vld [vmem:[%s170 + $0x1c8] sm:$0xff]
      %v545 = vld [vmem:[%s170 + $0x1d0] sm:$0xf]
      %v546 = vld [vmem:[%s170 + $0x1d4] sm:$0xff]
      %v547 = vld [vmem:[%s170 + $0x1dc] sm:$0xf]
      %v548 = vld [vmem:[%s170 + $0x1e0] sm:$0xff]
      %v549 = vld [vmem:[%s170 + $0x1e8] sm:$0xf]
      %v550 = vld [vmem:[%s170 + $0x1ec] sm:$0xff]
      %v551 = vld [vmem:[%s170 + $0x1f4] sm:$0xf]
      %v552 = vld [vmem:[%s170 + $0x1f8] sm:$0xff]
      %v553 = vld [vmem:[%s170 + $0x200] sm:$0xf]
      %v554 = vld [vmem:[%s170 + $0x204] sm:$0xff]
      %v555 = vld [vmem:[%s170 + $0x20c] sm:$0xf]
      %v556 = vld [vmem:[%s170 + $0x210] sm:$0xff]
      %v557 = vld [vmem:[%s170 + $0x218] sm:$0xf]
      %v558 = vld [vmem:[%s170 + $0x21c] sm:$0xff]
      %v559 = vld [vmem:[%s170 + $0x224] sm:$0xf]
      %v560 = vld [vmem:[%s170 + $0x228] sm:$0xff]
      %v561 = vld [vmem:[%s170 + $0x230] sm:$0xf]
      %v562 = vld [vmem:[%s170 + $0x234] sm:$0xff]
      %v563 = vld [vmem:[%s170 + $0x23c] sm:$0xf]
      %v564 = vld [vmem:[%s170 + $0x240] sm:$0xff]
      %v565 = vld [vmem:[%s170 + $0x248] sm:$0xf]
      %v566 = vld [vmem:[%s170 + $0x24c] sm:$0xff]
      %v567 = vld [vmem:[%s170 + $0x254] sm:$0xf]
      %v568 = vld [vmem:[%s170 + $0x258] sm:$0xff]
      %v569 = vld [vmem:[%s170 + $0x260] sm:$0xf]
      %v570 = vld [vmem:[%s170 + $0x264] sm:$0xff]
      %v571 = vld [vmem:[%s170 + $0x26c] sm:$0xf]
      %v572 = vld [vmem:[%s170 + $0x270] sm:$0xff]
      %v573 = vld [vmem:[%s170 + $0x278] sm:$0xf]
      %v574 = vld [vmem:[%s170 + $0x27c] sm:$0xff]
      %v575 = vld [vmem:[%s170 + $0x284] sm:$0xf]
      %v576 = vld [vmem:[%s170 + $0x288] sm:$0xff]
      %v577 = vld [vmem:[%s170 + $0x290] sm:$0xf]
      %v578 = vld [vmem:[%s170 + $0x294] sm:$0xff]
      %v579 = vld [vmem:[%s170 + $0x29c] sm:$0xf]
      %v580 = vld [vmem:[%s170 + $0x2a0] sm:$0xff]
      %v581 = vld [vmem:[%s170 + $0x2a8] sm:$0xf]
      %v582 = vld [vmem:[%s170 + $0x2ac] sm:$0xff]
      %v583 = vld [vmem:[%s170 + $0x2b4] sm:$0xf]
      %v584 = vld [vmem:[%s170 + $0x2b8] sm:$0xff]
      %v585 = vld [vmem:[%s170 + $0x2c0] sm:$0xf]
      %v586 = vld [vmem:[%s170 + $0x2c4] sm:$0xff]
      %v587 = vld [vmem:[%s170 + $0x2cc] sm:$0xf]
      %v588 = vld [vmem:[%s170 + $0x2d0] sm:$0xff]
      %v589 = vld [vmem:[%s170 + $0x2d8] sm:$0xf]
      %v590 = vld [vmem:[%s170 + $0x2dc] sm:$0xff]
      %v591 = vld [vmem:[%s170 + $0x2e4] sm:$0xf]
      %v592 = vld [vmem:[%s170 + $0x2e8] sm:$0xff]
      %v593 = vld [vmem:[%s170 + $0x2f0] sm:$0xf]
      %v594 = vld [vmem:[%s170 + $0x2f4] sm:$0xff]
      %v595 = vld [vmem:[%s170 + $0x2fc] sm:$0xf]
      %v596 = vld [vmem:[%s170 + $0x300] sm:$0xff]
      %v597 = vld [vmem:[%s170 + $0x308] sm:$0xf]
      %v598 = vld [vmem:[%s170 + $0x30c] sm:$0xff]
      %v599 = vld [vmem:[%s170 + $0x314] sm:$0xf]
      %v600 = vld [vmem:[%s170 + $0x318] sm:$0xff]
      %v601 = vld [vmem:[%s170 + $0x320] sm:$0xf]
      %v602 = vld [vmem:[%s170 + $0x324] sm:$0xff]
      %v603 = vld [vmem:[%s170 + $0x32c] sm:$0xf]
      %v604 = vld [vmem:[%s170 + $0x330] sm:$0xff]
      %v605 = vld [vmem:[%s170 + $0x338] sm:$0xf]
      %v606 = vld [vmem:[%s170 + $0x33c] sm:$0xff]
      %v607 = vld [vmem:[%s170 + $0x344] sm:$0xf]
      %v608 = vld [vmem:[%s170 + $0x348] sm:$0xff]
      %v609 = vld [vmem:[%s170 + $0x350] sm:$0xf]
      %v610 = vld [vmem:[%s170 + $0x354] sm:$0xff]
      %v611 = vld [vmem:[%s170 + $0x35c] sm:$0xf]
      %v612 = vld [vmem:[%s170 + $0x360] sm:$0xff]
      %v613 = vld [vmem:[%s170 + $0x368] sm:$0xf]
      %v614 = vld [vmem:[%s170 + $0x36c] sm:$0xff]
      %v615 = vld [vmem:[%s170 + $0x374] sm:$0xf]
      %v616 = vld [vmem:[%s170 + $0x378] sm:$0xff]
      %v617 = vld [vmem:[%s170 + $0x380] sm:$0xf]
      %v618 = vld [vmem:[%s170 + $0x384] sm:$0xff]
      %v619 = vld [vmem:[%s170 + $0x38c] sm:$0xf]
      %v620 = vld [vmem:[%s170 + $0x390] sm:$0xff]
      %v621 = vld [vmem:[%s170 + $0x398] sm:$0xf]
      %v622 = vld [vmem:[%s170 + $0x39c] sm:$0xff]
      %v623 = vld [vmem:[%s170 + $0x3a4] sm:$0xf]
      %v624 = vld [vmem:[%s170 + $0x3a8] sm:$0xff]
      %v625 = vld [vmem:[%s170 + $0x3b0] sm:$0xf]
      %v626 = vld [vmem:[%s170 + $0x3b4] sm:$0xff]
      %v627 = vld [vmem:[%s170 + $0x3bc] sm:$0xf]
      %v628 = vld [vmem:[%s170 + $0x3c0] sm:$0xff]
      %v629 = vld [vmem:[%s170 + $0x3c8] sm:$0xf]
      %v630 = vld [vmem:[%s170 + $0x3cc] sm:$0xff]
      %v631 = vld [vmem:[%s170 + $0x3d4] sm:$0xf]
      %v632 = vld [vmem:[%s170 + $0x3d8] sm:$0xff]
      %v633 = vld [vmem:[%s170 + $0x3e0] sm:$0xf]
      %v634 = vld [vmem:[%s170 + $0x3e4] sm:$0xff]
      %v635 = vld [vmem:[%s170 + $0x3ec] sm:$0xf]
      %v636 = vld [vmem:[%s170 + $0x3f0] sm:$0xff]
      %v637 = vld [vmem:[%s170 + $0x3f8] sm:$0xf]
      %v638 = vld [vmem:[%s170 + $0x3fc] sm:$0xff]
      %v639 = vld [vmem:[%s170 + $0x404] sm:$0xf]
      %v640 = vld [vmem:[%s170 + $0x408] sm:$0xff]
      %v641 = vld [vmem:[%s170 + $0x410] sm:$0xf]
      %v642 = vld [vmem:[%s170 + $0x414] sm:$0xff]
      %v643 = vld [vmem:[%s170 + $0x41c] sm:$0xf]
      %v644 = vld [vmem:[%s170 + $0x420] sm:$0xff]
      %v645 = vld [vmem:[%s170 + $0x428] sm:$0xf]
      %v646 = vld [vmem:[%s170 + $0x42c] sm:$0xff]
      %v647 = vld [vmem:[%s170 + $0x434] sm:$0xf]
      %v648 = vld [vmem:[%s170 + $0x438] sm:$0xff]
      %v649 = vld [vmem:[%s170 + $0x440] sm:$0xf]
      %v650 = vld [vmem:[%s170 + $0x444] sm:$0xff]
      %v651 = vld [vmem:[%s170 + $0x44c] sm:$0xf]
      %v652 = vld [vmem:[%s170 + $0x450] sm:$0xff]
      %v653 = vld [vmem:[%s170 + $0x458] sm:$0xf]
      %v654 = vld [vmem:[%s170 + $0x45c] sm:$0xff]
      %v655 = vld [vmem:[%s170 + $0x464] sm:$0xf]
      %v656 = vld [vmem:[%s170 + $0x468] sm:$0xff]
      %v657 = vld [vmem:[%s170 + $0x470] sm:$0xf]
      %v658 = vld [vmem:[%s170 + $0x474] sm:$0xff]
      %v659 = vld [vmem:[%s170 + $0x47c] sm:$0xf]
      %v660 = vld [vmem:[%s170 + $0x480] sm:$0xff]
      %v661 = vld [vmem:[%s170 + $0x488] sm:$0xf]
      %v662 = vld [vmem:[%s170 + $0x48c] sm:$0xff]
      %v663 = vld [vmem:[%s170 + $0x494] sm:$0xf]
      %v664 = vld [vmem:[%s170 + $0x498] sm:$0xff]
      %v665 = vld [vmem:[%s170 + $0x4a0] sm:$0xf]
      %v666 = vld [vmem:[%s170 + $0x4a4] sm:$0xff]
      %v667 = vld [vmem:[%s170 + $0x4ac] sm:$0xf]
      %v668 = vld [vmem:[%s170 + $0x4b0] sm:$0xff]
      %v669 = vld [vmem:[%s170 + $0x4b8] sm:$0xf]
      %v670 = vld [vmem:[%s170 + $0x4bc] sm:$0xff]
      %v671 = vld [vmem:[%s170 + $0x4c4] sm:$0xf]
      %v672 = vld [vmem:[%s170 + $0x4c8] sm:$0xff]
      %v673 = vld [vmem:[%s170 + $0x4d0] sm:$0xf]
      %v674 = vld [vmem:[%s170 + $0x4d4] sm:$0xff]
      %v675 = vld [vmem:[%s170 + $0x4dc] sm:$0xf]
      %v676 = vld [vmem:[%s170 + $0x4e0] sm:$0xff]
      %v677 = vld [vmem:[%s170 + $0x4e8] sm:$0xf]
      %v678 = vld [vmem:[%s170 + $0x4ec] sm:$0xff]
      %v679 = vld [vmem:[%s170 + $0x4f4] sm:$0xf]
      %v680 = vld [vmem:[%s170 + $0x4f8] sm:$0xff]
      %v681 = vld [vmem:[%s170 + $0x500] sm:$0xf]
      %v682 = vld [vmem:[%s170 + $0x504] sm:$0xff]
      %v683 = vld [vmem:[%s170 + $0x50c] sm:$0xf]
      %v684 = vld [vmem:[%s170 + $0x510] sm:$0xff]
      %v685 = vld [vmem:[%s170 + $0x518] sm:$0xf]
      %v686 = vld [vmem:[%s170 + $0x51c] sm:$0xff]
      %v687 = vld [vmem:[%s170 + $0x524] sm:$0xf]
      %v688 = vld [vmem:[%s170 + $0x528] sm:$0xff]
      %v689 = vld [vmem:[%s170 + $0x530] sm:$0xf]
      %v690 = vld [vmem:[%s170 + $0x534] sm:$0xff]
      %v691 = vld [vmem:[%s170 + $0x53c] sm:$0xf]
      %v692 = vld [vmem:[%s170 + $0x540] sm:$0xff]
      %v693 = vld [vmem:[%s170 + $0x548] sm:$0xf]
      %v694 = vld [vmem:[%s170 + $0x54c] sm:$0xff]
      %v695 = vld [vmem:[%s170 + $0x554] sm:$0xf]
      %v696 = vld [vmem:[%s170 + $0x558] sm:$0xff]
      %v697 = vld [vmem:[%s170 + $0x560] sm:$0xf]
      %v698 = vld [vmem:[%s170 + $0x564] sm:$0xff]
      %v699 = vld [vmem:[%s170 + $0x56c] sm:$0xf]
      %v700 = vld [vmem:[%s170 + $0x570] sm:$0xff]
      %v701 = vld [vmem:[%s170 + $0x578] sm:$0xf]
      %v702 = vld [vmem:[%s170 + $0x57c] sm:$0xff]
      %v703 = vld [vmem:[%s170 + $0x584] sm:$0xf]
      %v704 = vld [vmem:[%s170 + $0x588] sm:$0xff]
      %v705 = vld [vmem:[%s170 + $0x590] sm:$0xf]
      %v706 = vld [vmem:[%s170 + $0x594] sm:$0xff]
      %v707 = vld [vmem:[%s170 + $0x59c] sm:$0xf]
      %v708 = vld [vmem:[%s170 + $0x5a0] sm:$0xff]
      %v709 = vld [vmem:[%s170 + $0x5a8] sm:$0xf]
      %v710 = vld [vmem:[%s170 + $0x5ac] sm:$0xff]
      %v711 = vld [vmem:[%s170 + $0x5b4] sm:$0xf]
      %v712 = vld [vmem:[%s170 + $0x5b8] sm:$0xff]
      %v713 = vld [vmem:[%s170 + $0x5c0] sm:$0xf]
      %v714 = vld [vmem:[%s170 + $0x5c4] sm:$0xff]
      %v715 = vld [vmem:[%s170 + $0x5cc] sm:$0xf]
      %v716 = vld [vmem:[%s170 + $0x5d0] sm:$0xff]
      %v717 = vld [vmem:[%s170 + $0x5d8] sm:$0xf]
      %v718 = vld [vmem:[%s170 + $0x5dc] sm:$0xff]
      %v719 = vld [vmem:[%s170 + $0x5e4] sm:$0xf]
      %v720 = vld [vmem:[%s170 + $0x5e8] sm:$0xff]
      %v721 = vld [vmem:[%s170 + $0x5f0] sm:$0xf]
      %v722 = vld [vmem:[%s170 + $0x5f4] sm:$0xff]
      %v723 = vld [vmem:[%s170 + $0x5fc] sm:$0xf]
      %v724 = vld [vmem:[%s170 + $0x600] sm:$0xff]
      %v725 = vld [vmem:[%s170 + $0x608] sm:$0xf]
      %v726 = vld [vmem:[%s170 + $0x60c] sm:$0xff]
      %v727 = vld [vmem:[%s170 + $0x614] sm:$0xf]
      %v728 = vld [vmem:[%s170 + $0x618] sm:$0xff]
      %v729 = vld [vmem:[%s170 + $0x620] sm:$0xf]
      %v730 = vld [vmem:[%s170 + $0x624] sm:$0xff]
      %v731 = vld [vmem:[%s170 + $0x62c] sm:$0xf]
      %v732 = vld [vmem:[%s170 + $0x630] sm:$0xff]
      %v733 = vld [vmem:[%s170 + $0x638] sm:$0xf]
      %v734 = vld [vmem:[%s170 + $0x63c] sm:$0xff]
      %v735 = vld [vmem:[%s170 + $0x644] sm:$0xf]
      %v736 = vld [vmem:[%s170 + $0x648] sm:$0xff]
      %v737 = vld [vmem:[%s170 + $0x650] sm:$0xf]
      %v738 = vld [vmem:[%s170 + $0x654] sm:$0xff]
      %v739 = vld [vmem:[%s170 + $0x65c] sm:$0xf]
      %v740 = vld [vmem:[%s170 + $0x660] sm:$0xff]
      %v741 = vld [vmem:[%s170 + $0x668] sm:$0xf]
      %v742 = vld [vmem:[%s170 + $0x66c] sm:$0xff]
      %v743 = vld [vmem:[%s170 + $0x674] sm:$0xf]
      %v744 = vld [vmem:[%s170 + $0x678] sm:$0xff]
      %v745 = vld [vmem:[%s170 + $0x680] sm:$0xf]
      %v746 = vld [vmem:[%s170 + $0x684] sm:$0xff]
      %v747 = vld [vmem:[%s170 + $0x68c] sm:$0xf]
      %v748 = vld [vmem:[%s170 + $0x690] sm:$0xff]
      %v749 = vld [vmem:[%s170 + $0x698] sm:$0xf]
      %v750 = vld [vmem:[%s170 + $0x69c] sm:$0xff]
      %v751 = vld [vmem:[%s170 + $0x6a4] sm:$0xf]
      %v752 = vld [vmem:[%s170 + $0x6a8] sm:$0xff]
      %v753 = vld [vmem:[%s170 + $0x6b0] sm:$0xf]
      %v754 = vld [vmem:[%s170 + $0x6b4] sm:$0xff]
      %v755 = vld [vmem:[%s170 + $0x6bc] sm:$0xf]
      %v756 = vld [vmem:[%s170 + $0x6c0] sm:$0xff]
      %v757 = vld [vmem:[%s170 + $0x6c8] sm:$0xf]
      %v758 = vld [vmem:[%s170 + $0x6cc] sm:$0xff]
      %v759 = vld [vmem:[%s170 + $0x6d4] sm:$0xf]
      %v760 = vld [vmem:[%s170 + $0x6d8] sm:$0xff]
      %v761 = vld [vmem:[%s170 + $0x6e0] sm:$0xf]
      %v762 = vld [vmem:[%s170 + $0x6e4] sm:$0xff]
      %v763 = vld [vmem:[%s170 + $0x6ec] sm:$0xf]
      %v764 = vld [vmem:[%s170 + $0x6f0] sm:$0xff]
      %v765 = vld [vmem:[%s170 + $0x6f8] sm:$0xf]
      %v766 = vld [vmem:[%s170 + $0x6fc] sm:$0xff]
      %v767 = vld [vmem:[%s170 + $0x704] sm:$0xf]
      %v768 = vld [vmem:[%s170 + $0x708] sm:$0xff]
      %v769 = vld [vmem:[%s170 + $0x710] sm:$0xf]
      %v770 = vld [vmem:[%s170 + $0x714] sm:$0xff]
      %v771 = vld [vmem:[%s170 + $0x71c] sm:$0xf]
      %v772 = vld [vmem:[%s170 + $0x720] sm:$0xff]
      %v773 = vld [vmem:[%s170 + $0x728] sm:$0xf]
      %v774 = vld [vmem:[%s170 + $0x72c] sm:$0xff]
      %v775 = vld [vmem:[%s170 + $0x734] sm:$0xf]
      %v776 = vld [vmem:[%s170 + $0x738] sm:$0xff]
      %v777 = vld [vmem:[%s170 + $0x740] sm:$0xf]
      %v778 = vld [vmem:[%s170 + $0x744] sm:$0xff]
      %v779 = vld [vmem:[%s170 + $0x74c] sm:$0xf]
      %v780 = vld [vmem:[%s170 + $0x750] sm:$0xff]
      %v781 = vld [vmem:[%s170 + $0x758] sm:$0xf]
      %v782 = vld [vmem:[%s170 + $0x75c] sm:$0xff]
      %v783 = vld [vmem:[%s170 + $0x764] sm:$0xf]
      %v784 = vld [vmem:[%s170 + $0x768] sm:$0xff]
      %v785 = vld [vmem:[%s170 + $0x770] sm:$0xf]
      %v786 = vld [vmem:[%s170 + $0x774] sm:$0xff]
      %v787 = vld [vmem:[%s170 + $0x77c] sm:$0xf]
      %v788 = vld [vmem:[%s170 + $0x780] sm:$0xff]
      %v789 = vld [vmem:[%s170 + $0x788] sm:$0xf]
      %v790 = vld [vmem:[%s170 + $0x78c] sm:$0xff]
      %v791 = vld [vmem:[%s170 + $0x794] sm:$0xf]
      %v792 = vld [vmem:[%s170 + $0x798] sm:$0xff]
      %v793 = vld [vmem:[%s170 + $0x7a0] sm:$0xf]
      %v794 = vld [vmem:[%s170 + $0x7a4] sm:$0xff]
      %v795 = vld [vmem:[%s170 + $0x7ac] sm:$0xf]
      %v796 = vld [vmem:[%s170 + $0x7b0] sm:$0xff]
      %v797 = vld [vmem:[%s170 + $0x7b8] sm:$0xf]
      %v798 = vld [vmem:[%s170 + $0x7bc] sm:$0xff]
      %v799 = vld [vmem:[%s170 + $0x7c4] sm:$0xf]
      %v800 = vld [vmem:[%s170 + $0x7c8] sm:$0xff]
      %v801 = vld [vmem:[%s170 + $0x7d0] sm:$0xf]
      %v802 = vld [vmem:[%s170 + $0x7d4] sm:$0xff]
      %v803 = vld [vmem:[%s170 + $0x7dc] sm:$0xf]
      %v804 = vld [vmem:[%s170 + $0x7e0] sm:$0xff]
      %v805 = vld [vmem:[%s170 + $0x7e8] sm:$0xf]
      %v806 = vld [vmem:[%s170 + $0x7ec] sm:$0xff]
      %v807 = vld [vmem:[%s170 + $0x7f4] sm:$0xf]
      %v808 = vld [vmem:[%s170 + $0x7f8] sm:$0xff]
      %v809 = vld [vmem:[%s170 + $0x800] sm:$0xf]
      %v810 = vld [vmem:[%s170 + $0x804] sm:$0xff]
      %v811 = vld [vmem:[%s170 + $0x80c] sm:$0xf]
      %v812 = vld [vmem:[%s170 + $0x810] sm:$0xff]
      %v813 = vld [vmem:[%s170 + $0x818] sm:$0xf]
      %v814 = vld [vmem:[%s170 + $0x81c] sm:$0xff]
      %v815 = vld [vmem:[%s170 + $0x824] sm:$0xf]
      %v816 = vld [vmem:[%s170 + $0x828] sm:$0xff]
      %v817 = vld [vmem:[%s170 + $0x830] sm:$0xf]
      %v818 = vld [vmem:[%s170 + $0x834] sm:$0xff]
      %v819 = vld [vmem:[%s170 + $0x83c] sm:$0xf]
      %v820 = vld [vmem:[%s170 + $0x840] sm:$0xff]
      %v821 = vld [vmem:[%s170 + $0x848] sm:$0xf]
      %v822 = vld [vmem:[%s170 + $0x84c] sm:$0xff]
      %v823 = vld [vmem:[%s170 + $0x854] sm:$0xf]
      %v824 = vld [vmem:[%s170 + $0x858] sm:$0xff]
      %v825 = vld [vmem:[%s170 + $0x860] sm:$0xf]
      %v826 = vld [vmem:[%s170 + $0x864] sm:$0xff]
      %v827 = vld [vmem:[%s170 + $0x86c] sm:$0xf]
      %v828 = vld [vmem:[%s170 + $0x870] sm:$0xff]
      %v829 = vld [vmem:[%s170 + $0x878] sm:$0xf]
      %v830 = vld [vmem:[%s170 + $0x87c] sm:$0xff]
      %v831 = vld [vmem:[%s170 + $0x884] sm:$0xf]
      %v832 = vld [vmem:[%s170 + $0x888] sm:$0xff]
      %v833 = vld [vmem:[%s170 + $0x890] sm:$0xf]
      %v834 = vld [vmem:[%s170 + $0x894] sm:$0xff]
      %v835 = vld [vmem:[%s170 + $0x89c] sm:$0xf]
      %v836 = vld [vmem:[%s170 + $0x8a0] sm:$0xff]
      %v837 = vld [vmem:[%s170 + $0x8a8] sm:$0xf]
      %v838 = vld [vmem:[%s170 + $0x8ac] sm:$0xff]
      %v839 = vld [vmem:[%s170 + $0x8b4] sm:$0xf]
      %v840 = vld [vmem:[%s170 + $0x8b8] sm:$0xff]
      %v841 = vld [vmem:[%s170 + $0x8c0] sm:$0xf]
      %v842 = vld [vmem:[%s170 + $0x8c4] sm:$0xff]
      %v843 = vld [vmem:[%s170 + $0x8cc] sm:$0xf]
      %v844 = vld [vmem:[%s170 + $0x8d0] sm:$0xff]
      %v845 = vld [vmem:[%s170 + $0x8d8] sm:$0xf]
      %v846 = vld [vmem:[%s170 + $0x8dc] sm:$0xff]
      %v847 = vld [vmem:[%s170 + $0x8e4] sm:$0xf]
      %v848 = vld [vmem:[%s170 + $0x8e8] sm:$0xff]
      %v849 = vld [vmem:[%s170 + $0x8f0] sm:$0xf]
      %v850 = vld [vmem:[%s170 + $0x8f4] sm:$0xff]
      %v851 = vld [vmem:[%s170 + $0x8fc] sm:$0xf]
      %v852 = vld [vmem:[%s170 + $0x900] sm:$0xff]
      %v853 = vld [vmem:[%s170 + $0x908] sm:$0xf]
      %v854 = vld [vmem:[%s170 + $0x90c] sm:$0xff]
      %v855 = vld [vmem:[%s170 + $0x914] sm:$0xf]
      %v856 = vld [vmem:[%s170 + $0x918] sm:$0xff]
      %v857 = vld [vmem:[%s170 + $0x920] sm:$0xf]
      %v858 = vld [vmem:[%s170 + $0x924] sm:$0xff]
      %v859 = vld [vmem:[%s170 + $0x92c] sm:$0xf]
      %v860 = vld [vmem:[%s170 + $0x930] sm:$0xff]
      %v861 = vld [vmem:[%s170 + $0x938] sm:$0xf]
      %v862 = vld [vmem:[%s170 + $0x93c] sm:$0xff]
      %v863 = vld [vmem:[%s170 + $0x944] sm:$0xf]
      %v864 = vld [vmem:[%s170 + $0x948] sm:$0xff]
      %v865 = vld [vmem:[%s170 + $0x950] sm:$0xf]
      %v866 = vld [vmem:[%s170 + $0x954] sm:$0xff]
      %v867 = vld [vmem:[%s170 + $0x95c] sm:$0xf]
      %v868 = vld [vmem:[%s170 + $0x960] sm:$0xff]
      %v869 = vld [vmem:[%s170 + $0x968] sm:$0xf]
      %v870 = vld [vmem:[%s170 + $0x96c] sm:$0xff]
      %v871 = vld [vmem:[%s170 + $0x974] sm:$0xf]
      %v872 = vld [vmem:[%s170 + $0x978] sm:$0xff]
      %v873 = vld [vmem:[%s170 + $0x980] sm:$0xf]
      %v874 = vld [vmem:[%s170 + $0x984] sm:$0xff]
      %v875 = vld [vmem:[%s170 + $0x98c] sm:$0xf]
      %v876 = vld [vmem:[%s170 + $0x990] sm:$0xff]
      %v877 = vld [vmem:[%s170 + $0x998] sm:$0xf]
      %v878 = vld [vmem:[%s170 + $0x99c] sm:$0xff]
      %v879 = vld [vmem:[%s170 + $0x9a4] sm:$0xf]
      %v880 = vld [vmem:[%s170 + $0x9a8] sm:$0xff]
      %v881 = vld [vmem:[%s170 + $0x9b0] sm:$0xf]
      %v882 = vld [vmem:[%s170 + $0x9b4] sm:$0xff]
      %v883 = vld [vmem:[%s170 + $0x9bc] sm:$0xf]
      %v884 = vld [vmem:[%s170 + $0x9c0] sm:$0xff]
      %v885 = vld [vmem:[%s170 + $0x9c8] sm:$0xf]
      %v886 = vld [vmem:[%s170 + $0x9cc] sm:$0xff]
      %v887 = vld [vmem:[%s170 + $0x9d4] sm:$0xf]
      %v888 = vld [vmem:[%s170 + $0x9d8] sm:$0xff]
      %v889 = vld [vmem:[%s170 + $0x9e0] sm:$0xf]
      %v890 = vld [vmem:[%s170 + $0x9e4] sm:$0xff]
      %v891 = vld [vmem:[%s170 + $0x9ec] sm:$0xf]
      %v892 = vld [vmem:[%s170 + $0x9f0] sm:$0xff]
      %v893 = vld [vmem:[%s170 + $0x9f8] sm:$0xf]
      %v894 = vld [vmem:[%s170 + $0x9fc] sm:$0xff]
      %v895 = vld [vmem:[%s170 + $0xa04] sm:$0xf]
      %v896 = vld [vmem:[%s170 + $0xa08] sm:$0xff]
      %v897 = vld [vmem:[%s170 + $0xa10] sm:$0xf]
      %v898 = vld [vmem:[%s170 + $0xa14] sm:$0xff]
      %v899 = vld [vmem:[%s170 + $0xa1c] sm:$0xf]
      %v900 = vld [vmem:[%s170 + $0xa20] sm:$0xff]
      %v901 = vld [vmem:[%s170 + $0xa28] sm:$0xf]
      %v902 = vld [vmem:[%s170 + $0xa2c] sm:$0xff]
      %v903 = vld [vmem:[%s170 + $0xa34] sm:$0xf]
      %v904 = vld [vmem:[%s170 + $0xa38] sm:$0xff]
      %v905 = vld [vmem:[%s170 + $0xa40] sm:$0xf]
      %v906 = vld [vmem:[%s170 + $0xa44] sm:$0xff]
      %v907 = vld [vmem:[%s170 + $0xa4c] sm:$0xf]
      %v908 = vld [vmem:[%s170 + $0xa50] sm:$0xff]
      %v909 = vld [vmem:[%s170 + $0xa58] sm:$0xf]
      %v910 = vld [vmem:[%s170 + $0xa5c] sm:$0xff]
      %v911 = vld [vmem:[%s170 + $0xa64] sm:$0xf]
      %v912 = vld [vmem:[%s170 + $0xa68] sm:$0xff]
      %v913 = vld [vmem:[%s170 + $0xa70] sm:$0xf]
      %v914 = vld [vmem:[%s170 + $0xa74] sm:$0xff]
      %v915 = vld [vmem:[%s170 + $0xa7c] sm:$0xf]
      %v916 = vld [vmem:[%s170 + $0xa80] sm:$0xff]
      %v917 = vld [vmem:[%s170 + $0xa88] sm:$0xf]
      %v918 = vld [vmem:[%s170 + $0xa8c] sm:$0xff]
      %v919 = vld [vmem:[%s170 + $0xa94] sm:$0xf]
      %v920 = vld [vmem:[%s170 + $0xa98] sm:$0xff]
      %v921 = vld [vmem:[%s170 + $0xaa0] sm:$0xf]
      %v922 = vld [vmem:[%s170 + $0xaa4] sm:$0xff]
      %v923 = vld [vmem:[%s170 + $0xaac] sm:$0xf]
      %v924 = vld [vmem:[%s170 + $0xab0] sm:$0xff]
      %v925 = vld [vmem:[%s170 + $0xab8] sm:$0xf]
      %v926 = vld [vmem:[%s170 + $0xabc] sm:$0xff]
      %v927 = vld [vmem:[%s170 + $0xac4] sm:$0xf]
      %v928 = vld [vmem:[%s170 + $0xac8] sm:$0xff]
      %v929 = vld [vmem:[%s170 + $0xad0] sm:$0xf]
      %v930 = vld [vmem:[%s170 + $0xad4] sm:$0xff]
      %v931 = vld [vmem:[%s170 + $0xadc] sm:$0xf]
      %v932 = vld [vmem:[%s170 + $0xae0] sm:$0xff]
      %v933 = vld [vmem:[%s170 + $0xae8] sm:$0xf]
      %v934 = vld [vmem:[%s170 + $0xaec] sm:$0xff]
      %v935 = vld [vmem:[%s170 + $0xaf4] sm:$0xf]
      %v936 = vld [vmem:[%s170 + $0xaf8] sm:$0xff]
      %v937 = vld [vmem:[%s170 + $0xb00] sm:$0xf]
      %v938 = vld [vmem:[%s170 + $0xb04] sm:$0xff]
      %v939 = vld [vmem:[%s170 + $0xb0c] sm:$0xf]
      %v940 = vld [vmem:[%s170 + $0xb10] sm:$0xff]
      %v941 = vld [vmem:[%s170 + $0xb18] sm:$0xf]
      %v942 = vld [vmem:[%s170 + $0xb1c] sm:$0xff]
      %v943 = vld [vmem:[%s170 + $0xb24] sm:$0xf]
      %v944 = vld [vmem:[%s170 + $0xb28] sm:$0xff]
      %v945 = vld [vmem:[%s170 + $0xb30] sm:$0xf]
      %v946 = vld [vmem:[%s170 + $0xb34] sm:$0xff]
      %v947 = vld [vmem:[%s170 + $0xb3c] sm:$0xf]
      %v948 = vld [vmem:[%s170 + $0xb40] sm:$0xff]
      %v949 = vld [vmem:[%s170 + $0xb48] sm:$0xf]
      %v950 = vld [vmem:[%s170 + $0xb4c] sm:$0xff]
      %v951 = vld [vmem:[%s170 + $0xb54] sm:$0xf]
      %v952 = vld [vmem:[%s170 + $0xb58] sm:$0xff]
      %v953 = vld [vmem:[%s170 + $0xb60] sm:$0xf]
      %v954 = vld [vmem:[%s170 + $0xb64] sm:$0xff]
      %v955 = vld [vmem:[%s170 + $0xb6c] sm:$0xf]
      %v956 = vld [vmem:[%s170 + $0xb70] sm:$0xff]
      %v957 = vld [vmem:[%s170 + $0xb78] sm:$0xf]
      %v958 = vld [vmem:[%s170 + $0xb7c] sm:$0xff]
      %v959 = vld [vmem:[%s170 + $0xb84] sm:$0xf]
      %v960 = vld [vmem:[%s170 + $0xb88] sm:$0xff]
      %v961 = vld [vmem:[%s170 + $0xb90] sm:$0xf]
      %v962 = vld [vmem:[%s170 + $0xb94] sm:$0xff]
      %v963 = vld [vmem:[%s170 + $0xb9c] sm:$0xf]
      %v964 = vld [vmem:[%s170 + $0xba0] sm:$0xff]
      %v965 = vld [vmem:[%s170 + $0xba8] sm:$0xf]
      %v966 = vld [vmem:[%s170 + $0xbac] sm:$0xff]
      %v967 = vld [vmem:[%s170 + $0xbb4] sm:$0xf]
      %v968 = vld [vmem:[%s170 + $0xbb8] sm:$0xff]
      %v969 = vld [vmem:[%s170 + $0xbc0] sm:$0xf]
      %v970 = vld [vmem:[%s170 + $0xbc4] sm:$0xff]
      %v971 = vld [vmem:[%s170 + $0xbcc] sm:$0xf]
      %v972 = vld [vmem:[%s170 + $0xbd0] sm:$0xff]
      %v973 = vld [vmem:[%s170 + $0xbd8] sm:$0xf]
      %v974 = vld [vmem:[%s170 + $0xbdc] sm:$0xff]
      %v975 = vld [vmem:[%s170 + $0xbe4] sm:$0xf]
      %v976 = vld [vmem:[%s170 + $0xbe8] sm:$0xff]
      %v977 = vld [vmem:[%s170 + $0xbf0] sm:$0xf]
      %v978 = vld [vmem:[%s170 + $0xbf4] sm:$0xff]
      %v979 = vld [vmem:[%s170 + $0xbfc] sm:$0xf]
      %v1268 = vunpack.c.l.b16 %v180
      %v1269 = vunpack.c.h.b16 %v180
      %v1270 = vunpack.c.l.b16 %v181
      %v1271 = vunpack.c.h.b16 %v181
      %v1272 = vunpack.c.l.b16 %v182
      %v1273 = vunpack.c.h.b16 %v182
      %v1274 = vunpack.c.l.b16 %v183
      %v1275 = vunpack.c.h.b16 %v183
      %v1276 = vunpack.c.l.b16 %v184
      %v1277 = vunpack.c.h.b16 %v184
      %v1278 = vunpack.c.l.b16 %v185
      %v1279 = vunpack.c.h.b16 %v185
      %v1280 = vunpack.c.l.b16 %v186
      %v1281 = vunpack.c.h.b16 %v186
      %v1282 = vunpack.c.l.b16 %v187
      %v1283 = vunpack.c.h.b16 %v187
      %v1284 = vunpack.c.l.b16 %v188
      %v1285 = vunpack.c.h.b16 %v188
      %v1286 = vunpack.c.l.b16 %v189
      %v1287 = vunpack.c.h.b16 %v189
      %v1288 = vunpack.c.l.b16 %v190
      %v1289 = vunpack.c.h.b16 %v190
      %v1290 = vunpack.c.l.b16 %v191
      %v1291 = vunpack.c.h.b16 %v191
      %v1292 = vunpack.c.l.b16 %v192
      %v1293 = vunpack.c.h.b16 %v192
      %v1294 = vunpack.c.l.b16 %v193
      %v1295 = vunpack.c.h.b16 %v193
      %v1296 = vunpack.c.l.b16 %v194
      %v1297 = vunpack.c.h.b16 %v194
      %v1298 = vunpack.c.l.b16 %v195
      %v1299 = vunpack.c.h.b16 %v195
      %v1300 = vunpack.c.l.b16 %v196
      %v1301 = vunpack.c.h.b16 %v196
      %v1302 = vunpack.c.l.b16 %v197
      %v1303 = vunpack.c.h.b16 %v197
      %v1304 = vunpack.c.l.b16 %v198
      %v1305 = vunpack.c.h.b16 %v198
      %v1306 = vunpack.c.l.b16 %v199
      %v1307 = vunpack.c.h.b16 %v199
      %v1308 = vunpack.c.l.b16 %v200
      %v1309 = vunpack.c.h.b16 %v200
      %v1310 = vunpack.c.l.b16 %v201
      %v1311 = vunpack.c.h.b16 %v201
      %v1312 = vunpack.c.l.b16 %v202
      %v1313 = vunpack.c.h.b16 %v202
      %v1314 = vunpack.c.l.b16 %v203
      %v1315 = vunpack.c.h.b16 %v203
      %v1316 = vunpack.c.l.b16 %v204
      %v1317 = vunpack.c.h.b16 %v204
      %v1318 = vunpack.c.l.b16 %v205
      %v1319 = vunpack.c.h.b16 %v205
      %v1320 = vunpack.c.l.b16 %v206
      %v1321 = vunpack.c.h.b16 %v206
      %v1322 = vunpack.c.l.b16 %v207
      %v1323 = vunpack.c.h.b16 %v207
      %v1324 = vunpack.c.l.b16 %v208
      %v1325 = vunpack.c.h.b16 %v208
      %v1326 = vunpack.c.l.b16 %v209
      %v1327 = vunpack.c.h.b16 %v209
      %v1328 = vunpack.c.l.b16 %v210
      %v1329 = vunpack.c.h.b16 %v210
      %v1330 = vunpack.c.l.b16 %v211
      %v1331 = vunpack.c.h.b16 %v211
      %v1332 = vunpack.c.l.b16 %v212
      %v1333 = vunpack.c.h.b16 %v212
      %v1334 = vunpack.c.l.b16 %v213
      %v1335 = vunpack.c.h.b16 %v213
      %v1336 = vunpack.c.l.b16 %v214
      %v1337 = vunpack.c.h.b16 %v214
      %v1338 = vunpack.c.l.b16 %v215
      %v1339 = vunpack.c.h.b16 %v215
      %v1340 = vunpack.c.l.b16 %v216
      %v1341 = vunpack.c.h.b16 %v216
      %v1342 = vunpack.c.l.b16 %v217
      %v1343 = vunpack.c.h.b16 %v217
      %v1344 = vunpack.c.l.b16 %v218
      %v1345 = vunpack.c.h.b16 %v218
      %v1346 = vunpack.c.l.b16 %v219
      %v1347 = vunpack.c.h.b16 %v219
      %v1348 = vunpack.c.l.b16 %v220
      %v1349 = vunpack.c.h.b16 %v220
      %v1350 = vunpack.c.l.b16 %v221
      %v1351 = vunpack.c.h.b16 %v221
      %v1352 = vunpack.c.l.b16 %v222
      %v1353 = vunpack.c.h.b16 %v222
      %v1354 = vunpack.c.l.b16 %v223
      %v1355 = vunpack.c.h.b16 %v223
      %v1356 = vunpack.c.l.b16 %v224
      %v1357 = vunpack.c.h.b16 %v224
      %v1358 = vunpack.c.l.b16 %v225
      %v1359 = vunpack.c.h.b16 %v225
      %v1360 = vunpack.c.l.b16 %v226
      %v1361 = vunpack.c.h.b16 %v226
      %v1362 = vunpack.c.l.b16 %v227
      %v1363 = vunpack.c.h.b16 %v227
      %v1364 = vunpack.c.l.b16 %v228
      %v1365 = vunpack.c.h.b16 %v228
      %v1366 = vunpack.c.l.b16 %v229
      %v1367 = vunpack.c.h.b16 %v229
      %v1368 = vunpack.c.l.b16 %v230
      %v1369 = vunpack.c.h.b16 %v230
      %v1370 = vunpack.c.l.b16 %v231
      %v1371 = vunpack.c.h.b16 %v231
      %v1372 = vunpack.c.l.b16 %v232
      %v1373 = vunpack.c.h.b16 %v232
      %v1374 = vunpack.c.l.b16 %v233
      %v1375 = vunpack.c.h.b16 %v233
      %v1376 = vunpack.c.l.b16 %v234
      %v1377 = vunpack.c.h.b16 %v234
      %v1378 = vunpack.c.l.b16 %v235
      %v1379 = vunpack.c.h.b16 %v235
      %v1380 = vunpack.c.l.b16 %v236
      %v1381 = vunpack.c.h.b16 %v236
      %v1382 = vunpack.c.l.b16 %v237
      %v1383 = vunpack.c.h.b16 %v237
      %v1384 = vunpack.c.l.b16 %v238
      %v1385 = vunpack.c.h.b16 %v238
      %v1386 = vunpack.c.l.b16 %v239
      %v1387 = vunpack.c.h.b16 %v239
      %v1388 = vunpack.c.l.b16 %v240
      %v1389 = vunpack.c.h.b16 %v240
      %v1390 = vunpack.c.l.b16 %v241
      %v1391 = vunpack.c.h.b16 %v241
      %v1392 = vunpack.c.l.b16 %v242
      %v1393 = vunpack.c.h.b16 %v242
      %v1394 = vunpack.c.l.b16 %v243
      %v1395 = vunpack.c.h.b16 %v243
      %v1396 = vunpack.c.l.b16 %v244
      %v1397 = vunpack.c.h.b16 %v244
      %v1398 = vunpack.c.l.b16 %v245
      %v1399 = vunpack.c.h.b16 %v245
      %v1400 = vunpack.c.l.b16 %v246
      %v1401 = vunpack.c.h.b16 %v246
      %v1402 = vunpack.c.l.b16 %v247
      %v1403 = vunpack.c.h.b16 %v247
      %v1404 = vunpack.c.l.b16 %v248
      %v1405 = vunpack.c.h.b16 %v248
      %v1406 = vunpack.c.l.b16 %v249
      %v1407 = vunpack.c.h.b16 %v249
      %v1408 = vunpack.c.l.b16 %v250
      %v1409 = vunpack.c.h.b16 %v250
      %v1410 = vunpack.c.l.b16 %v251
      %v1411 = vunpack.c.h.b16 %v251
      %v1412 = vunpack.c.l.b16 %v252
      %v1413 = vunpack.c.h.b16 %v252
      %v1414 = vunpack.c.l.b16 %v253
      %v1415 = vunpack.c.h.b16 %v253
      %v1416 = vunpack.c.l.b16 %v254
      %v1417 = vunpack.c.h.b16 %v254
      %v1418 = vunpack.c.l.b16 %v255
      %v1419 = vunpack.c.h.b16 %v255
      %v1420 = vunpack.c.l.b16 %v256
      %v1421 = vunpack.c.h.b16 %v256
      %v1422 = vunpack.c.l.b16 %v257
      %v1423 = vunpack.c.h.b16 %v257
      %v1424 = vunpack.c.l.b16 %v258
      %v1425 = vunpack.c.h.b16 %v258
      %v1426 = vunpack.c.l.b16 %v259
      %v1427 = vunpack.c.h.b16 %v259
      %v1428 = vunpack.c.l.b16 %v260
      %v1429 = vunpack.c.h.b16 %v260
      %v1430 = vunpack.c.l.b16 %v261
      %v1431 = vunpack.c.h.b16 %v261
      %v1432 = vunpack.c.l.b16 %v262
      %v1433 = vunpack.c.h.b16 %v262
      %v1434 = vunpack.c.l.b16 %v263
      %v1435 = vunpack.c.h.b16 %v263
      %v1436 = vunpack.c.l.b16 %v264
      %v1437 = vunpack.c.h.b16 %v264
      %v1438 = vunpack.c.l.b16 %v265
      %v1439 = vunpack.c.h.b16 %v265
      %v1440 = vunpack.c.l.b16 %v266
      %v1441 = vunpack.c.h.b16 %v266
      %v1442 = vunpack.c.l.b16 %v267
      %v1443 = vunpack.c.h.b16 %v267
      %v1444 = vunpack.c.l.b16 %v268
      %v1445 = vunpack.c.h.b16 %v268
      %v1446 = vunpack.c.l.b16 %v269
      %v1447 = vunpack.c.h.b16 %v269
      %v1448 = vunpack.c.l.b16 %v270
      %v1449 = vunpack.c.h.b16 %v270
      %v1450 = vunpack.c.l.b16 %v271
      %v1451 = vunpack.c.h.b16 %v271
      %v1452 = vunpack.c.l.b16 %v272
      %v1453 = vunpack.c.h.b16 %v272
      %v1454 = vunpack.c.l.b16 %v273
      %v1455 = vunpack.c.h.b16 %v273
      %v1456 = vunpack.c.l.b16 %v274
      %v1457 = vunpack.c.h.b16 %v274
      %v1458 = vunpack.c.l.b16 %v275
      %v1459 = vunpack.c.h.b16 %v275
      %v1460 = vunpack.c.l.b16 %v276
      %v1461 = vunpack.c.h.b16 %v276
      %v1462 = vunpack.c.l.b16 %v277
      %v1463 = vunpack.c.h.b16 %v277
      %v1464 = vunpack.c.l.b16 %v278
      %v1465 = vunpack.c.h.b16 %v278
      %v1466 = vunpack.c.l.b16 %v279
      %v1467 = vunpack.c.h.b16 %v279
      %v1468 = vunpack.c.l.b16 %v280
      %v1469 = vunpack.c.h.b16 %v280
      %v1470 = vunpack.c.l.b16 %v281
      %v1471 = vunpack.c.h.b16 %v281
      %v1472 = vunpack.c.l.b16 %v282
      %v1473 = vunpack.c.h.b16 %v282
      %v1474 = vunpack.c.l.b16 %v283
      %v1475 = vunpack.c.h.b16 %v283
      %v1476 = vunpack.c.l.b16 %v284
      %v1477 = vunpack.c.h.b16 %v284
      %v1478 = vunpack.c.l.b16 %v285
      %v1479 = vunpack.c.h.b16 %v285
      %v1480 = vunpack.c.l.b16 %v286
      %v1481 = vunpack.c.h.b16 %v286
      %v1482 = vunpack.c.l.b16 %v287
      %v1483 = vunpack.c.h.b16 %v287
      %v1484 = vunpack.c.l.b16 %v288
      %v1485 = vunpack.c.h.b16 %v288
      %v1486 = vunpack.c.l.b16 %v289
      %v1487 = vunpack.c.h.b16 %v289
      %v1488 = vunpack.c.l.b16 %v290
      %v1489 = vunpack.c.h.b16 %v290
      %v1490 = vunpack.c.l.b16 %v291
      %v1491 = vunpack.c.h.b16 %v291
      %v1492 = vunpack.c.l.b16 %v292
      %v1493 = vunpack.c.h.b16 %v292
      %v1494 = vunpack.c.l.b16 %v293
      %v1495 = vunpack.c.h.b16 %v293
      %v1496 = vunpack.c.l.b16 %v294
      %v1497 = vunpack.c.h.b16 %v294
      %v1498 = vunpack.c.l.b16 %v295
      %v1499 = vunpack.c.h.b16 %v295
      %v1500 = vunpack.c.l.b16 %v296
      %v1501 = vunpack.c.h.b16 %v296
      %v1502 = vunpack.c.l.b16 %v297
      %v1503 = vunpack.c.h.b16 %v297
      %v1504 = vunpack.c.l.b16 %v298
      %v1505 = vunpack.c.h.b16 %v298
      %v1506 = vunpack.c.l.b16 %v299
      %v1507 = vunpack.c.h.b16 %v299
      %v1508 = vunpack.c.l.b16 %v300
      %v1509 = vunpack.c.h.b16 %v300
      %v1510 = vunpack.c.l.b16 %v301
      %v1511 = vunpack.c.h.b16 %v301
      %v1512 = vunpack.c.l.b16 %v302
      %v1513 = vunpack.c.h.b16 %v302
      %v1514 = vunpack.c.l.b16 %v303
      %v1515 = vunpack.c.h.b16 %v303
      %v1516 = vunpack.c.l.b16 %v304
      %v1517 = vunpack.c.h.b16 %v304
      %v1518 = vunpack.c.l.b16 %v305
      %v1519 = vunpack.c.h.b16 %v305
      %v1520 = vunpack.c.l.b16 %v306
      %v1521 = vunpack.c.h.b16 %v306
      %v1522 = vunpack.c.l.b16 %v307
      %v1523 = vunpack.c.h.b16 %v307
      %v1524 = vunpack.c.l.b16 %v308
      %v1525 = vunpack.c.h.b16 %v308
      %v1526 = vunpack.c.l.b16 %v309
      %v1527 = vunpack.c.h.b16 %v309
      %v1528 = vunpack.c.l.b16 %v310
      %v1529 = vunpack.c.h.b16 %v310
      %v1530 = vunpack.c.l.b16 %v311
      %v1531 = vunpack.c.h.b16 %v311
      %v1532 = vunpack.c.l.b16 %v312
      %v1533 = vunpack.c.h.b16 %v312
      %v1534 = vunpack.c.l.b16 %v313
      %v1535 = vunpack.c.h.b16 %v313
      %v1536 = vunpack.c.l.b16 %v314
      %v1537 = vunpack.c.h.b16 %v314
      %v1538 = vunpack.c.l.b16 %v315
      %v1539 = vunpack.c.h.b16 %v315
      %v1540 = vunpack.c.l.b16 %v316
      %v1541 = vunpack.c.h.b16 %v316
      %v1542 = vunpack.c.l.b16 %v317
      %v1543 = vunpack.c.h.b16 %v317
      %v1544 = vunpack.c.l.b16 %v318
      %v1545 = vunpack.c.h.b16 %v318
      %v1546 = vunpack.c.l.b16 %v319
      %v1547 = vunpack.c.h.b16 %v319
      %v1548 = vunpack.c.l.b16 %v320
      %v1549 = vunpack.c.h.b16 %v320
      %v1550 = vunpack.c.l.b16 %v321
      %v1551 = vunpack.c.h.b16 %v321
      %v1552 = vunpack.c.l.b16 %v322
      %v1553 = vunpack.c.h.b16 %v322
      %v1554 = vunpack.c.l.b16 %v323
      %v1555 = vunpack.c.h.b16 %v323
      %v1556 = vunpack.c.l.b16 %v324
      %v1557 = vunpack.c.h.b16 %v324
      %v1558 = vunpack.c.l.b16 %v325
      %v1559 = vunpack.c.h.b16 %v325
      %v1560 = vunpack.c.l.b16 %v326
      %v1561 = vunpack.c.h.b16 %v326
      %v1562 = vunpack.c.l.b16 %v327
      %v1563 = vunpack.c.h.b16 %v327
      %v1564 = vunpack.c.l.b16 %v328
      %v1565 = vunpack.c.h.b16 %v328
      %v1566 = vunpack.c.l.b16 %v329
      %v1567 = vunpack.c.h.b16 %v329
      %v1568 = vunpack.c.l.b16 %v330
      %v1569 = vunpack.c.h.b16 %v330
      %v1570 = vunpack.c.l.b16 %v331
      %v1571 = vunpack.c.h.b16 %v331
      %v1572 = vunpack.c.l.b16 %v332
      %v1573 = vunpack.c.h.b16 %v332
      %v1574 = vunpack.c.l.b16 %v333
      %v1575 = vunpack.c.h.b16 %v333
      %v1576 = vunpack.c.l.b16 %v334
      %v1577 = vunpack.c.h.b16 %v334
      %v1578 = vunpack.c.l.b16 %v335
      %v1579 = vunpack.c.h.b16 %v335
      %v1580 = vunpack.c.l.b16 %v336
      %v1581 = vunpack.c.h.b16 %v336
      %v1582 = vunpack.c.l.b16 %v337
      %v1583 = vunpack.c.h.b16 %v337
      %v1584 = vunpack.c.l.b16 %v338
      %v1585 = vunpack.c.h.b16 %v338
      %v1586 = vunpack.c.l.b16 %v339
      %v1587 = vunpack.c.h.b16 %v339
      %v1588 = vunpack.c.l.b16 %v340
      %v1589 = vunpack.c.h.b16 %v340
      %v1590 = vunpack.c.l.b16 %v341
      %v1591 = vunpack.c.h.b16 %v341
      %v1592 = vunpack.c.l.b16 %v342
      %v1593 = vunpack.c.h.b16 %v342
      %v1594 = vunpack.c.l.b16 %v343
      %v1595 = vunpack.c.h.b16 %v343
      %v1596 = vunpack.c.l.b16 %v344
      %v1597 = vunpack.c.h.b16 %v344
      %v1598 = vunpack.c.l.b16 %v345
      %v1599 = vunpack.c.h.b16 %v345
      %v1600 = vunpack.c.l.b16 %v346
      %v1601 = vunpack.c.h.b16 %v346
      %v1602 = vunpack.c.l.b16 %v347
      %v1603 = vunpack.c.h.b16 %v347
      %v1604 = vunpack.c.l.b16 %v348
      %v1605 = vunpack.c.h.b16 %v348
      %v1606 = vunpack.c.l.b16 %v349
      %v1607 = vunpack.c.h.b16 %v349
      %v1608 = vunpack.c.l.b16 %v350
      %v1609 = vunpack.c.h.b16 %v350
      %v1610 = vunpack.c.l.b16 %v351
      %v1611 = vunpack.c.h.b16 %v351
      %v1612 = vunpack.c.l.b16 %v352
      %v1613 = vunpack.c.h.b16 %v352
      %v1614 = vunpack.c.l.b16 %v353
      %v1615 = vunpack.c.h.b16 %v353
      %v1616 = vunpack.c.l.b16 %v354
      %v1617 = vunpack.c.h.b16 %v354
      %v1618 = vunpack.c.l.b16 %v355
      %v1619 = vunpack.c.h.b16 %v355
      %v1620 = vunpack.c.l.b16 %v356
      %v1621 = vunpack.c.h.b16 %v356
      %v1622 = vunpack.c.l.b16 %v357
      %v1623 = vunpack.c.h.b16 %v357
      %v1624 = vunpack.c.l.b16 %v358
      %v1625 = vunpack.c.h.b16 %v358
      %v1626 = vunpack.c.l.b16 %v359
      %v1627 = vunpack.c.h.b16 %v359
      %v1628 = vunpack.c.l.b16 %v360
      %v1629 = vunpack.c.h.b16 %v360
      %v1630 = vunpack.c.l.b16 %v361
      %v1631 = vunpack.c.h.b16 %v361
      %v1632 = vunpack.c.l.b16 %v362
      %v1633 = vunpack.c.h.b16 %v362
      %v1634 = vunpack.c.l.b16 %v363
      %v1635 = vunpack.c.h.b16 %v363
      %v1636 = vunpack.c.l.b16 %v364
      %v1637 = vunpack.c.h.b16 %v364
      %v1638 = vunpack.c.l.b16 %v365
      %v1639 = vunpack.c.h.b16 %v365
      %v1640 = vunpack.c.l.b16 %v366
      %v1641 = vunpack.c.h.b16 %v366
      %v1642 = vunpack.c.l.b16 %v367
      %v1643 = vunpack.c.h.b16 %v367
      %v1644 = vunpack.c.l.b16 %v368
      %v1645 = vunpack.c.h.b16 %v368
      %v1646 = vunpack.c.l.b16 %v369
      %v1647 = vunpack.c.h.b16 %v369
      %v1648 = vunpack.c.l.b16 %v370
      %v1649 = vunpack.c.h.b16 %v370
      %v1650 = vunpack.c.l.b16 %v371
      %v1651 = vunpack.c.h.b16 %v371
      %v1652 = vunpack.c.l.b16 %v372
      %v1653 = vunpack.c.h.b16 %v372
      %v1654 = vunpack.c.l.b16 %v373
      %v1655 = vunpack.c.h.b16 %v373
      %v1656 = vunpack.c.l.b16 %v374
      %v1657 = vunpack.c.h.b16 %v374
      %v1658 = vunpack.c.l.b16 %v375
      %v1659 = vunpack.c.h.b16 %v375
      %v1660 = vunpack.c.l.b16 %v376
      %v1661 = vunpack.c.h.b16 %v376
      %v1662 = vunpack.c.l.b16 %v377
      %v1663 = vunpack.c.h.b16 %v377
      %v1664 = vunpack.c.l.b16 %v378
      %v1665 = vunpack.c.h.b16 %v378
      %v1666 = vunpack.c.l.b16 %v379
      %v1667 = vunpack.c.h.b16 %v379
      %v1668 = vunpack.c.l.b16 %v380
      %v1669 = vunpack.c.h.b16 %v380
      %v1670 = vunpack.c.l.b16 %v381
      %v1671 = vunpack.c.h.b16 %v381
      %v1672 = vunpack.c.l.b16 %v382
      %v1673 = vunpack.c.h.b16 %v382
      %v1674 = vunpack.c.l.b16 %v383
      %v1675 = vunpack.c.h.b16 %v383
      %v1676 = vunpack.c.l.b16 %v384
      %v1677 = vunpack.c.h.b16 %v384
      %v1678 = vunpack.c.l.b16 %v385
      %v1679 = vunpack.c.h.b16 %v385
      %v1680 = vunpack.c.l.b16 %v386
      %v1681 = vunpack.c.h.b16 %v386
      %v1682 = vunpack.c.l.b16 %v387
      %v1683 = vunpack.c.h.b16 %v387
      %v1684 = vunpack.c.l.b16 %v388
      %v1685 = vunpack.c.h.b16 %v388
      %v1686 = vunpack.c.l.b16 %v389
      %v1687 = vunpack.c.h.b16 %v389
      %v1688 = vunpack.c.l.b16 %v390
      %v1689 = vunpack.c.h.b16 %v390
      %v1690 = vunpack.c.l.b16 %v391
      %v1691 = vunpack.c.h.b16 %v391
      %v1692 = vunpack.c.l.b16 %v392
      %v1693 = vunpack.c.h.b16 %v392
      %v1694 = vunpack.c.l.b16 %v393
      %v1695 = vunpack.c.h.b16 %v393
      %v1696 = vunpack.c.l.b16 %v394
      %v1697 = vunpack.c.h.b16 %v394
      %v1698 = vunpack.c.l.b16 %v395
      %v1699 = vunpack.c.h.b16 %v395
      %v1700 = vunpack.c.l.b16 %v396
      %v1701 = vunpack.c.h.b16 %v396
      %v1702 = vunpack.c.l.b16 %v397
      %v1703 = vunpack.c.h.b16 %v397
      %v1704 = vunpack.c.l.b16 %v398
      %v1705 = vunpack.c.h.b16 %v398
      %v1706 = vunpack.c.l.b16 %v399
      %v1707 = vunpack.c.h.b16 %v399
      %v1708 = vunpack.c.l.b16 %v400
      %v1709 = vunpack.c.h.b16 %v400
      %v1710 = vunpack.c.l.b16 %v401
      %v1711 = vunpack.c.h.b16 %v401
      %v1712 = vunpack.c.l.b16 %v402
      %v1713 = vunpack.c.h.b16 %v402
      %v1714 = vunpack.c.l.b16 %v403
      %v1715 = vunpack.c.h.b16 %v403
      %v1716 = vunpack.c.l.b16 %v404
      %v1717 = vunpack.c.h.b16 %v404
      %v1718 = vunpack.c.l.b16 %v405
      %v1719 = vunpack.c.h.b16 %v405
      %v1720 = vunpack.c.l.b16 %v406
      %v1721 = vunpack.c.h.b16 %v406
      %v1722 = vunpack.c.l.b16 %v407
      %v1723 = vunpack.c.h.b16 %v407
      %v1724 = vunpack.c.l.b16 %v408
      %v1725 = vunpack.c.h.b16 %v408
      %v1726 = vunpack.c.l.b16 %v409
      %v1727 = vunpack.c.h.b16 %v409
      %v1728 = vunpack.c.l.b16 %v410
      %v1729 = vunpack.c.h.b16 %v410
      %v1730 = vunpack.c.l.b16 %v411
      %v1731 = vunpack.c.h.b16 %v411
      %v1732 = vunpack.c.l.b16 %v412
      %v1733 = vunpack.c.h.b16 %v412
      %v1734 = vunpack.c.l.b16 %v413
      %v1735 = vunpack.c.h.b16 %v413
      %v1736 = vunpack.c.l.b16 %v414
      %v1737 = vunpack.c.h.b16 %v414
      %v1738 = vunpack.c.l.b16 %v415
      %v1739 = vunpack.c.h.b16 %v415
      %v1740 = vunpack.c.l.b16 %v416
      %v1741 = vunpack.c.h.b16 %v416
      %v1742 = vunpack.c.l.b16 %v417
      %v1743 = vunpack.c.h.b16 %v417
      %v1744 = vunpack.c.l.b16 %v418
      %v1745 = vunpack.c.h.b16 %v418
      %v1746 = vunpack.c.l.b16 %v419
      %v1747 = vunpack.c.h.b16 %v419
      %v1748 = vunpack.c.l.b16 %v420
      %v1749 = vunpack.c.h.b16 %v420
      %v1750 = vunpack.c.l.b16 %v421
      %v1751 = vunpack.c.h.b16 %v421
      %v1752 = vunpack.c.l.b16 %v422
      %v1753 = vunpack.c.h.b16 %v422
      %v1754 = vunpack.c.l.b16 %v423
      %v1755 = vunpack.c.h.b16 %v423
      %v1756 = vunpack.c.l.b16 %v424
      %v1757 = vunpack.c.h.b16 %v424
      %v1758 = vunpack.c.l.b16 %v425
      %v1759 = vunpack.c.h.b16 %v425
      %v1760 = vunpack.c.l.b16 %v426
      %v1761 = vunpack.c.h.b16 %v426
      %v1762 = vunpack.c.l.b16 %v427
      %v1763 = vunpack.c.h.b16 %v427
      %v1764 = vunpack.c.l.b16 %v428
      %v1765 = vunpack.c.h.b16 %v428
      %v1766 = vunpack.c.l.b16 %v429
      %v1767 = vunpack.c.h.b16 %v429
      %v1768 = vunpack.c.l.b16 %v430
      %v1769 = vunpack.c.h.b16 %v430
      %v1770 = vunpack.c.l.b16 %v431
      %v1771 = vunpack.c.h.b16 %v431
      %v1772 = vunpack.c.l.b16 %v432
      %v1773 = vunpack.c.h.b16 %v432
      %v1774 = vunpack.c.l.b16 %v433
      %v1775 = vunpack.c.h.b16 %v433
      %v1776 = vunpack.c.l.b16 %v434
      %v1777 = vunpack.c.h.b16 %v434
      %v1778 = vunpack.c.l.b16 %v435
      %v1779 = vunpack.c.h.b16 %v435
      %v1780 = vunpack.c.l.b16 %v436
      %v1781 = vunpack.c.h.b16 %v436
      %v1782 = vunpack.c.l.b16 %v437
      %v1783 = vunpack.c.h.b16 %v437
      %v1784 = vunpack.c.l.b16 %v438
      %v1785 = vunpack.c.h.b16 %v438
      %v1786 = vunpack.c.l.b16 %v439
      %v1787 = vunpack.c.h.b16 %v439
      %v1788 = vunpack.c.l.b16 %v440
      %v1789 = vunpack.c.h.b16 %v440
      %v1790 = vunpack.c.l.b16 %v441
      %v1791 = vunpack.c.h.b16 %v441
      %v1792 = vunpack.c.l.b16 %v442
      %v1793 = vunpack.c.h.b16 %v442
      %v1794 = vunpack.c.l.b16 %v443
      %v1795 = vunpack.c.h.b16 %v443
      %v1796 = vunpack.c.l.b16 %v444
      %v1797 = vunpack.c.h.b16 %v444
      %v1798 = vunpack.c.l.b16 %v445
      %v1799 = vunpack.c.h.b16 %v445
      %v1800 = vunpack.c.l.b16 %v446
      %v1801 = vunpack.c.h.b16 %v446
      %v1802 = vunpack.c.l.b16 %v447
      %v1803 = vunpack.c.h.b16 %v447
      %v1804 = vunpack.c.l.b16 %v448
      %v1805 = vunpack.c.h.b16 %v448
      %v1806 = vunpack.c.l.b16 %v449
      %v1807 = vunpack.c.h.b16 %v449
      %v1808 = vunpack.c.l.b16 %v450
      %v1809 = vunpack.c.h.b16 %v450
      %v1810 = vunpack.c.l.b16 %v451
      %v1811 = vunpack.c.h.b16 %v451
      %v1812 = vunpack.c.l.b16 %v452
      %v1813 = vunpack.c.h.b16 %v452
      %v1814 = vunpack.c.l.b16 %v453
      %v1815 = vunpack.c.h.b16 %v453
      %v1816 = vunpack.c.l.b16 %v454
      %v1817 = vunpack.c.h.b16 %v454
      %v1818 = vunpack.c.l.b16 %v455
      %v1819 = vunpack.c.h.b16 %v455
      %v1820 = vunpack.c.l.b16 %v456
      %v1821 = vunpack.c.h.b16 %v456
      %v1822 = vunpack.c.l.b16 %v457
      %v1823 = vunpack.c.h.b16 %v457
      %v1824 = vunpack.c.l.b16 %v458
      %v1825 = vunpack.c.h.b16 %v458
      %v1826 = vunpack.c.l.b16 %v459
      %v1827 = vunpack.c.h.b16 %v459
      %v1828 = vunpack.c.l.b16 %v460
      %v1829 = vunpack.c.h.b16 %v460
      %v1830 = vunpack.c.l.b16 %v461
      %v1831 = vunpack.c.h.b16 %v461
      %v1832 = vunpack.c.l.b16 %v462
      %v1833 = vunpack.c.h.b16 %v462
      %v1834 = vunpack.c.l.b16 %v463
      %v1835 = vunpack.c.h.b16 %v463
      %v1836 = vunpack.c.l.b16 %v464
      %v1837 = vunpack.c.h.b16 %v464
      %v1838 = vunpack.c.l.b16 %v465
      %v1839 = vunpack.c.h.b16 %v465
      %v1840 = vunpack.c.l.b16 %v466
      %v1841 = vunpack.c.h.b16 %v466
      %v1842 = vunpack.c.l.b16 %v467
      %v1843 = vunpack.c.h.b16 %v467
      %v1844 = vpack.c.b16 %v1284, %v1268
      %v1845 = vpack.c.b16 %v1285, %v1269
      %v1846 = vpack.c.b16 %v1286, %v1270
      %v1847 = vpack.c.b16 %v1287, %v1271
      %v1848 = vpack.c.b16 %v1288, %v1272
      %v1849 = vpack.c.b16 %v1289, %v1273
      %v1850 = vpack.c.b16 %v1290, %v1274
      %v1851 = vpack.c.b16 %v1291, %v1275
      %v1852 = vpack.c.b16 %v1292, %v1276
      %v1853 = vpack.c.b16 %v1293, %v1277
      %v1854 = vpack.c.b16 %v1294, %v1278
      %v1855 = vpack.c.b16 %v1295, %v1279
      %v1856 = vpack.c.b16 %v1296, %v1280
      %v1857 = vpack.c.b16 %v1297, %v1281
      %v1858 = vpack.c.b16 %v1298, %v1282
      %v1859 = vpack.c.b16 %v1299, %v1283
      %v1860 = vpack.c.b16 %v1316, %v1300
      %v1861 = vpack.c.b16 %v1317, %v1301
      %v1862 = vpack.c.b16 %v1318, %v1302
      %v1863 = vpack.c.b16 %v1319, %v1303
      %v1864 = vpack.c.b16 %v1320, %v1304
      %v1865 = vpack.c.b16 %v1321, %v1305
      %v1866 = vpack.c.b16 %v1322, %v1306
      %v1867 = vpack.c.b16 %v1323, %v1307
      %v1868 = vpack.c.b16 %v1324, %v1308
      %v1869 = vpack.c.b16 %v1325, %v1309
      %v1870 = vpack.c.b16 %v1326, %v1310
      %v1871 = vpack.c.b16 %v1327, %v1311
      %v1872 = vpack.c.b16 %v1328, %v1312
      %v1873 = vpack.c.b16 %v1329, %v1313
      %v1874 = vpack.c.b16 %v1330, %v1314
      %v1875 = vpack.c.b16 %v1331, %v1315
      %v1876 = vpack.c.b16 %v1348, %v1332
      %v1877 = vpack.c.b16 %v1349, %v1333
      %v1878 = vpack.c.b16 %v1350, %v1334
      %v1879 = vpack.c.b16 %v1351, %v1335
      %v1880 = vpack.c.b16 %v1352, %v1336
      %v1881 = vpack.c.b16 %v1353, %v1337
      %v1882 = vpack.c.b16 %v1354, %v1338
      %v1883 = vpack.c.b16 %v1355, %v1339
      %v1884 = vpack.c.b16 %v1356, %v1340
      %v1885 = vpack.c.b16 %v1357, %v1341
      %v1886 = vpack.c.b16 %v1358, %v1342
      %v1887 = vpack.c.b16 %v1359, %v1343
      %v1888 = vpack.c.b16 %v1360, %v1344
      %v1889 = vpack.c.b16 %v1361, %v1345
      %v1890 = vpack.c.b16 %v1362, %v1346
      %v1891 = vpack.c.b16 %v1363, %v1347
      %v1892 = vpack.c.b16 %v1380, %v1364
      %v1893 = vpack.c.b16 %v1381, %v1365
      %v1894 = vpack.c.b16 %v1382, %v1366
      %v1895 = vpack.c.b16 %v1383, %v1367
      %v1896 = vpack.c.b16 %v1384, %v1368
      %v1897 = vpack.c.b16 %v1385, %v1369
      %v1898 = vpack.c.b16 %v1386, %v1370
      %v1899 = vpack.c.b16 %v1387, %v1371
      %v1900 = vpack.c.b16 %v1388, %v1372
      %v1901 = vpack.c.b16 %v1389, %v1373
      %v1902 = vpack.c.b16 %v1390, %v1374
      %v1903 = vpack.c.b16 %v1391, %v1375
      %v1904 = vpack.c.b16 %v1392, %v1376
      %v1905 = vpack.c.b16 %v1393, %v1377
      %v1906 = vpack.c.b16 %v1394, %v1378
      %v1907 = vpack.c.b16 %v1395, %v1379
      %v1908 = vpack.c.b16 %v1412, %v1396
      %v1909 = vpack.c.b16 %v1413, %v1397
      %v1910 = vpack.c.b16 %v1414, %v1398
      %v1911 = vpack.c.b16 %v1415, %v1399
      %v1912 = vpack.c.b16 %v1416, %v1400
      %v1913 = vpack.c.b16 %v1417, %v1401
      %v1914 = vpack.c.b16 %v1418, %v1402
      %v1915 = vpack.c.b16 %v1419, %v1403
      %v1916 = vpack.c.b16 %v1420, %v1404
      %v1917 = vpack.c.b16 %v1421, %v1405
      %v1918 = vpack.c.b16 %v1422, %v1406
      %v1919 = vpack.c.b16 %v1423, %v1407
      %v1920 = vpack.c.b16 %v1424, %v1408
      %v1921 = vpack.c.b16 %v1425, %v1409
      %v1922 = vpack.c.b16 %v1426, %v1410
      %v1923 = vpack.c.b16 %v1427, %v1411
      %v1924 = vpack.c.b16 %v1444, %v1428
      %v1925 = vpack.c.b16 %v1445, %v1429
      %v1926 = vpack.c.b16 %v1446, %v1430
      %v1927 = vpack.c.b16 %v1447, %v1431
      %v1928 = vpack.c.b16 %v1448, %v1432
      %v1929 = vpack.c.b16 %v1449, %v1433
      %v1930 = vpack.c.b16 %v1450, %v1434
      %v1931 = vpack.c.b16 %v1451, %v1435
      %v1932 = vpack.c.b16 %v1452, %v1436
      %v1933 = vpack.c.b16 %v1453, %v1437
      %v1934 = vpack.c.b16 %v1454, %v1438
      %v1935 = vpack.c.b16 %v1455, %v1439
      %v1936 = vpack.c.b16 %v1456, %v1440
      %v1937 = vpack.c.b16 %v1457, %v1441
      %v1938 = vpack.c.b16 %v1458, %v1442
      %v1939 = vpack.c.b16 %v1459, %v1443
      %v1940 = vpack.c.b16 %v1476, %v1460
      %v1941 = vpack.c.b16 %v1477, %v1461
      %v1942 = vpack.c.b16 %v1478, %v1462
      %v1943 = vpack.c.b16 %v1479, %v1463
      %v1944 = vpack.c.b16 %v1480, %v1464
      %v1945 = vpack.c.b16 %v1481, %v1465
      %v1946 = vpack.c.b16 %v1482, %v1466
      %v1947 = vpack.c.b16 %v1483, %v1467
      %v1948 = vpack.c.b16 %v1484, %v1468
      %v1949 = vpack.c.b16 %v1485, %v1469
      %v1950 = vpack.c.b16 %v1486, %v1470
      %v1951 = vpack.c.b16 %v1487, %v1471
      %v1952 = vpack.c.b16 %v1488, %v1472
      %v1953 = vpack.c.b16 %v1489, %v1473
      %v1954 = vpack.c.b16 %v1490, %v1474
      %v1955 = vpack.c.b16 %v1491, %v1475
      %v1956 = vpack.c.b16 %v1508, %v1492
      %v1957 = vpack.c.b16 %v1509, %v1493
      %v1958 = vpack.c.b16 %v1510, %v1494
      %v1959 = vpack.c.b16 %v1511, %v1495
      %v1960 = vpack.c.b16 %v1512, %v1496
      %v1961 = vpack.c.b16 %v1513, %v1497
      %v1962 = vpack.c.b16 %v1514, %v1498
      %v1963 = vpack.c.b16 %v1515, %v1499
      %v1964 = vpack.c.b16 %v1516, %v1500
      %v1965 = vpack.c.b16 %v1517, %v1501
      %v1966 = vpack.c.b16 %v1518, %v1502
      %v1967 = vpack.c.b16 %v1519, %v1503
      %v1968 = vpack.c.b16 %v1520, %v1504
      %v1969 = vpack.c.b16 %v1521, %v1505
      %v1970 = vpack.c.b16 %v1522, %v1506
      %v1971 = vpack.c.b16 %v1523, %v1507
      %v1972 = vpack.c.b16 %v1540, %v1524
      %v1973 = vpack.c.b16 %v1541, %v1525
      %v1974 = vpack.c.b16 %v1542, %v1526
      %v1975 = vpack.c.b16 %v1543, %v1527
      %v1976 = vpack.c.b16 %v1544, %v1528
      %v1977 = vpack.c.b16 %v1545, %v1529
      %v1978 = vpack.c.b16 %v1546, %v1530
      %v1979 = vpack.c.b16 %v1547, %v1531
      %v1980 = vpack.c.b16 %v1548, %v1532
      %v1981 = vpack.c.b16 %v1549, %v1533
      %v1982 = vpack.c.b16 %v1550, %v1534
      %v1983 = vpack.c.b16 %v1551, %v1535
      %v1984 = vpack.c.b16 %v1552, %v1536
      %v1985 = vpack.c.b16 %v1553, %v1537
      %v1986 = vpack.c.b16 %v1554, %v1538
      %v1987 = vpack.c.b16 %v1555, %v1539
      %v1988 = vpack.c.b16 %v1572, %v1556
      %v1989 = vpack.c.b16 %v1573, %v1557
      %v1990 = vpack.c.b16 %v1574, %v1558
      %v1991 = vpack.c.b16 %v1575, %v1559
      %v1992 = vpack.c.b16 %v1576, %v1560
      %v1993 = vpack.c.b16 %v1577, %v1561
      %v1994 = vpack.c.b16 %v1578, %v1562
      %v1995 = vpack.c.b16 %v1579, %v1563
      %v1996 = vpack.c.b16 %v1580, %v1564
      %v1997 = vpack.c.b16 %v1581, %v1565
      %v1998 = vpack.c.b16 %v1582, %v1566
      %v1999 = vpack.c.b16 %v1583, %v1567
      %v2000 = vpack.c.b16 %v1584, %v1568
      %v2001 = vpack.c.b16 %v1585, %v1569
      %v2002 = vpack.c.b16 %v1586, %v1570
      %v2003 = vpack.c.b16 %v1587, %v1571
      %v2004 = vpack.c.b16 %v1604, %v1588
      %v2005 = vpack.c.b16 %v1605, %v1589
      %v2006 = vpack.c.b16 %v1606, %v1590
      %v2007 = vpack.c.b16 %v1607, %v1591
      %v2008 = vpack.c.b16 %v1608, %v1592
      %v2009 = vpack.c.b16 %v1609, %v1593
      %v2010 = vpack.c.b16 %v1610, %v1594
      %v2011 = vpack.c.b16 %v1611, %v1595
      %v2012 = vpack.c.b16 %v1612, %v1596
      %v2013 = vpack.c.b16 %v1613, %v1597
      %v2014 = vpack.c.b16 %v1614, %v1598
      %v2015 = vpack.c.b16 %v1615, %v1599
      %v2016 = vpack.c.b16 %v1616, %v1600
      %v2017 = vpack.c.b16 %v1617, %v1601
      %v2018 = vpack.c.b16 %v1618, %v1602
      %v2019 = vpack.c.b16 %v1619, %v1603
      %v2020 = vpack.c.b16 %v1636, %v1620
      %v2021 = vpack.c.b16 %v1637, %v1621
      %v2022 = vpack.c.b16 %v1638, %v1622
      %v2023 = vpack.c.b16 %v1639, %v1623
      %v2024 = vpack.c.b16 %v1640, %v1624
      %v2025 = vpack.c.b16 %v1641, %v1625
      %v2026 = vpack.c.b16 %v1642, %v1626
      %v2027 = vpack.c.b16 %v1643, %v1627
      %v2028 = vpack.c.b16 %v1644, %v1628
      %v2029 = vpack.c.b16 %v1645, %v1629
      %v2030 = vpack.c.b16 %v1646, %v1630
      %v2031 = vpack.c.b16 %v1647, %v1631
      %v2032 = vpack.c.b16 %v1648, %v1632
      %v2033 = vpack.c.b16 %v1649, %v1633
      %v2034 = vpack.c.b16 %v1650, %v1634
      %v2035 = vpack.c.b16 %v1651, %v1635
      %v2036 = vpack.c.b16 %v1668, %v1652
      %v2037 = vpack.c.b16 %v1669, %v1653
      %v2038 = vpack.c.b16 %v1670, %v1654
      %v2039 = vpack.c.b16 %v1671, %v1655
      %v2040 = vpack.c.b16 %v1672, %v1656
      %v2041 = vpack.c.b16 %v1673, %v1657
      %v2042 = vpack.c.b16 %v1674, %v1658
      %v2043 = vpack.c.b16 %v1675, %v1659
      %v2044 = vpack.c.b16 %v1676, %v1660
      %v2045 = vpack.c.b16 %v1677, %v1661
      %v2046 = vpack.c.b16 %v1678, %v1662
      %v2047 = vpack.c.b16 %v1679, %v1663
      %v2048 = vpack.c.b16 %v1680, %v1664
      %v2049 = vpack.c.b16 %v1681, %v1665
      %v2050 = vpack.c.b16 %v1682, %v1666
      %v2051 = vpack.c.b16 %v1683, %v1667
      %v2052 = vpack.c.b16 %v1700, %v1684
      %v2053 = vpack.c.b16 %v1701, %v1685
      %v2054 = vpack.c.b16 %v1702, %v1686
      %v2055 = vpack.c.b16 %v1703, %v1687
      %v2056 = vpack.c.b16 %v1704, %v1688
      %v2057 = vpack.c.b16 %v1705, %v1689
      %v2058 = vpack.c.b16 %v1706, %v1690
      %v2059 = vpack.c.b16 %v1707, %v1691
      %v2060 = vpack.c.b16 %v1708, %v1692
      %v2061 = vpack.c.b16 %v1709, %v1693
      %v2062 = vpack.c.b16 %v1710, %v1694
      %v2063 = vpack.c.b16 %v1711, %v1695
      %v2064 = vpack.c.b16 %v1712, %v1696
      %v2065 = vpack.c.b16 %v1713, %v1697
      %v2066 = vpack.c.b16 %v1714, %v1698
      %v2067 = vpack.c.b16 %v1715, %v1699
      %v2068 = vpack.c.b16 %v1732, %v1716
      %v2069 = vpack.c.b16 %v1733, %v1717
      %v2070 = vpack.c.b16 %v1734, %v1718
      %v2071 = vpack.c.b16 %v1735, %v1719
      %v2072 = vpack.c.b16 %v1736, %v1720
      %v2073 = vpack.c.b16 %v1737, %v1721
      %v2074 = vpack.c.b16 %v1738, %v1722
      %v2075 = vpack.c.b16 %v1739, %v1723
      %v2076 = vpack.c.b16 %v1740, %v1724
      %v2077 = vpack.c.b16 %v1741, %v1725
      %v2078 = vpack.c.b16 %v1742, %v1726
      %v2079 = vpack.c.b16 %v1743, %v1727
      %v2080 = vpack.c.b16 %v1744, %v1728
      %v2081 = vpack.c.b16 %v1745, %v1729
      %v2082 = vpack.c.b16 %v1746, %v1730
      %v2083 = vpack.c.b16 %v1747, %v1731
      %v2084 = vpack.c.b16 %v1764, %v1748
      %v2085 = vpack.c.b16 %v1765, %v1749
      %v2086 = vpack.c.b16 %v1766, %v1750
      %v2087 = vpack.c.b16 %v1767, %v1751
      %v2088 = vpack.c.b16 %v1768, %v1752
      %v2089 = vpack.c.b16 %v1769, %v1753
      %v2090 = vpack.c.b16 %v1770, %v1754
      %v2091 = vpack.c.b16 %v1771, %v1755
      %v2092 = vpack.c.b16 %v1772, %v1756
      %v2093 = vpack.c.b16 %v1773, %v1757
      %v2094 = vpack.c.b16 %v1774, %v1758
      %v2095 = vpack.c.b16 %v1775, %v1759
      %v2096 = vpack.c.b16 %v1776, %v1760
      %v2097 = vpack.c.b16 %v1777, %v1761
      %v2098 = vpack.c.b16 %v1778, %v1762
      %v2099 = vpack.c.b16 %v1779, %v1763
      %v2100 = vpack.c.b16 %v1796, %v1780
      %v2101 = vpack.c.b16 %v1797, %v1781
      %v2102 = vpack.c.b16 %v1798, %v1782
      %v2103 = vpack.c.b16 %v1799, %v1783
      %v2104 = vpack.c.b16 %v1800, %v1784
      %v2105 = vpack.c.b16 %v1801, %v1785
      %v2106 = vpack.c.b16 %v1802, %v1786
      %v2107 = vpack.c.b16 %v1803, %v1787
      %v2108 = vpack.c.b16 %v1804, %v1788
      %v2109 = vpack.c.b16 %v1805, %v1789
      %v2110 = vpack.c.b16 %v1806, %v1790
      %v2111 = vpack.c.b16 %v1807, %v1791
      %v2112 = vpack.c.b16 %v1808, %v1792
      %v2113 = vpack.c.b16 %v1809, %v1793
      %v2114 = vpack.c.b16 %v1810, %v1794
      %v2115 = vpack.c.b16 %v1811, %v1795
      %v2116 = vpack.c.b16 %v1828, %v1812
      %v2117 = vpack.c.b16 %v1829, %v1813
      %v2118 = vpack.c.b16 %v1830, %v1814
      %v2119 = vpack.c.b16 %v1831, %v1815
      %v2120 = vpack.c.b16 %v1832, %v1816
      %v2121 = vpack.c.b16 %v1833, %v1817
      %v2122 = vpack.c.b16 %v1834, %v1818
      %v2123 = vpack.c.b16 %v1835, %v1819
      %v2124 = vpack.c.b16 %v1836, %v1820
      %v2125 = vpack.c.b16 %v1837, %v1821
      %v2126 = vpack.c.b16 %v1838, %v1822
      %v2127 = vpack.c.b16 %v1839, %v1823
      %v2128 = vpack.c.b16 %v1840, %v1824
      %v2129 = vpack.c.b16 %v1841, %v1825
      %v2130 = vpack.c.b16 %v1842, %v1826
      %v2131 = vpack.c.b16 %v1843, %v1827
      %v2932 = vunpack.c.l.b16 %v468
      %v2933 = vunpack.c.h.b16 %v468
      %v2934 = vunpack.c.l.b16 %v469
      %v2935 = vunpack.c.l.b16 %v470
      %v2936 = vunpack.c.h.b16 %v470
      %v2937 = vunpack.c.l.b16 %v471
      %v2938 = vunpack.c.l.b16 %v472
      %v2939 = vunpack.c.h.b16 %v472
      %v2940 = vunpack.c.l.b16 %v473
      %v2941 = vunpack.c.l.b16 %v474
      %v2942 = vunpack.c.h.b16 %v474
      %v2943 = vunpack.c.l.b16 %v475
      %v2944 = vunpack.c.l.b16 %v476
      %v2945 = vunpack.c.h.b16 %v476
      %v2946 = vunpack.c.l.b16 %v477
      %v2947 = vunpack.c.l.b16 %v478
      %v2948 = vunpack.c.h.b16 %v478
      %v2949 = vunpack.c.l.b16 %v479
      %v2950 = vunpack.c.l.b16 %v480
      %v2951 = vunpack.c.h.b16 %v480
      %v2952 = vunpack.c.l.b16 %v481
      %v2953 = vunpack.c.l.b16 %v482
      %v2954 = vunpack.c.h.b16 %v482
      %v2955 = vunpack.c.l.b16 %v483
      %v2956 = vunpack.c.l.b16 %v484
      %v2957 = vunpack.c.h.b16 %v484
      %v2958 = vunpack.c.l.b16 %v485
      %v2959 = vunpack.c.l.b16 %v486
      %v2960 = vunpack.c.h.b16 %v486
      %v2961 = vunpack.c.l.b16 %v487
      %v2962 = vunpack.c.l.b16 %v488
      %v2963 = vunpack.c.h.b16 %v488
      %v2964 = vunpack.c.l.b16 %v489
      %v2965 = vunpack.c.l.b16 %v490
      %v2966 = vunpack.c.h.b16 %v490
      %v2967 = vunpack.c.l.b16 %v491
      %v2968 = vunpack.c.l.b16 %v492
      %v2969 = vunpack.c.h.b16 %v492
      %v2970 = vunpack.c.l.b16 %v493
      %v2971 = vunpack.c.l.b16 %v494
      %v2972 = vunpack.c.h.b16 %v494
      %v2973 = vunpack.c.l.b16 %v495
      %v2974 = vunpack.c.l.b16 %v496
      %v2975 = vunpack.c.h.b16 %v496
      %v2976 = vunpack.c.l.b16 %v497
      %v2977 = vunpack.c.l.b16 %v498
      %v2978 = vunpack.c.h.b16 %v498
      %v2979 = vunpack.c.l.b16 %v499
      %v2980 = vunpack.c.l.b16 %v500
      %v2981 = vunpack.c.h.b16 %v500
      %v2982 = vunpack.c.l.b16 %v501
      %v2983 = vunpack.c.l.b16 %v502
      %v2984 = vunpack.c.h.b16 %v502
      %v2985 = vunpack.c.l.b16 %v503
      %v2986 = vunpack.c.l.b16 %v504
      %v2987 = vunpack.c.h.b16 %v504
      %v2988 = vunpack.c.l.b16 %v505
      %v2989 = vunpack.c.l.b16 %v506
      %v2990 = vunpack.c.h.b16 %v506
      %v2991 = vunpack.c.l.b16 %v507
      %v2992 = vunpack.c.l.b16 %v508
      %v2993 = vunpack.c.h.b16 %v508
      %v2994 = vunpack.c.l.b16 %v509
      %v2995 = vunpack.c.l.b16 %v510
      %v2996 = vunpack.c.h.b16 %v510
      %v2997 = vunpack.c.l.b16 %v511
      %v2998 = vunpack.c.l.b16 %v512
      %v2999 = vunpack.c.h.b16 %v512
      %v3000 = vunpack.c.l.b16 %v513
      %v3001 = vunpack.c.l.b16 %v514
      %v3002 = vunpack.c.h.b16 %v514
      %v3003 = vunpack.c.l.b16 %v515
      %v3004 = vunpack.c.l.b16 %v516
      %v3005 = vunpack.c.h.b16 %v516
      %v3006 = vunpack.c.l.b16 %v517
      %v3007 = vunpack.c.l.b16 %v518
      %v3008 = vunpack.c.h.b16 %v518
      %v3009 = vunpack.c.l.b16 %v519
      %v3010 = vunpack.c.l.b16 %v520
      %v3011 = vunpack.c.h.b16 %v520
      %v3012 = vunpack.c.l.b16 %v521
      %v3013 = vunpack.c.l.b16 %v522
      %v3014 = vunpack.c.h.b16 %v522
      %v3015 = vunpack.c.l.b16 %v523
      %v3016 = vunpack.c.l.b16 %v524
      %v3017 = vunpack.c.h.b16 %v524
      %v3018 = vunpack.c.l.b16 %v525
      %v3019 = vunpack.c.l.b16 %v526
      %v3020 = vunpack.c.h.b16 %v526
      %v3021 = vunpack.c.l.b16 %v527
      %v3022 = vunpack.c.l.b16 %v528
      %v3023 = vunpack.c.h.b16 %v528
      %v3024 = vunpack.c.l.b16 %v529
      %v3025 = vunpack.c.l.b16 %v530
      %v3026 = vunpack.c.h.b16 %v530
      %v3027 = vunpack.c.l.b16 %v531
      %v3028 = vunpack.c.l.b16 %v532
      %v3029 = vunpack.c.h.b16 %v532
      %v3030 = vunpack.c.l.b16 %v533
      %v3031 = vunpack.c.l.b16 %v534
      %v3032 = vunpack.c.h.b16 %v534
      %v3033 = vunpack.c.l.b16 %v535
      %v3034 = vunpack.c.l.b16 %v536
      %v3035 = vunpack.c.h.b16 %v536
      %v3036 = vunpack.c.l.b16 %v537
      %v3037 = vunpack.c.l.b16 %v538
      %v3038 = vunpack.c.h.b16 %v538
      %v3039 = vunpack.c.l.b16 %v539
      %v3040 = vunpack.c.l.b16 %v540
      %v3041 = vunpack.c.h.b16 %v540
      %v3042 = vunpack.c.l.b16 %v541
      %v3043 = vunpack.c.l.b16 %v542
      %v3044 = vunpack.c.h.b16 %v542
      %v3045 = vunpack.c.l.b16 %v543
      %v3046 = vunpack.c.l.b16 %v544
      %v3047 = vunpack.c.h.b16 %v544
      %v3048 = vunpack.c.l.b16 %v545
      %v3049 = vunpack.c.l.b16 %v546
      %v3050 = vunpack.c.h.b16 %v546
      %v3051 = vunpack.c.l.b16 %v547
      %v3052 = vunpack.c.l.b16 %v548
      %v3053 = vunpack.c.h.b16 %v548
      %v3054 = vunpack.c.l.b16 %v549
      %v3055 = vunpack.c.l.b16 %v550
      %v3056 = vunpack.c.h.b16 %v550
      %v3057 = vunpack.c.l.b16 %v551
      %v3058 = vunpack.c.l.b16 %v552
      %v3059 = vunpack.c.h.b16 %v552
      %v3060 = vunpack.c.l.b16 %v553
      %v3061 = vunpack.c.l.b16 %v554
      %v3062 = vunpack.c.h.b16 %v554
      %v3063 = vunpack.c.l.b16 %v555
      %v3064 = vunpack.c.l.b16 %v556
      %v3065 = vunpack.c.h.b16 %v556
      %v3066 = vunpack.c.l.b16 %v557
      %v3067 = vunpack.c.l.b16 %v558
      %v3068 = vunpack.c.h.b16 %v558
      %v3069 = vunpack.c.l.b16 %v559
      %v3070 = vunpack.c.l.b16 %v560
      %v3071 = vunpack.c.h.b16 %v560
      %v3072 = vunpack.c.l.b16 %v561
      %v3073 = vunpack.c.l.b16 %v562
      %v3074 = vunpack.c.h.b16 %v562
      %v3075 = vunpack.c.l.b16 %v563
      %v3076 = vunpack.c.l.b16 %v564
      %v3077 = vunpack.c.h.b16 %v564
      %v3078 = vunpack.c.l.b16 %v565
      %v3079 = vunpack.c.l.b16 %v566
      %v3080 = vunpack.c.h.b16 %v566
      %v3081 = vunpack.c.l.b16 %v567
      %v3082 = vunpack.c.l.b16 %v568
      %v3083 = vunpack.c.h.b16 %v568
      %v3084 = vunpack.c.l.b16 %v569
      %v3085 = vunpack.c.l.b16 %v570
      %v3086 = vunpack.c.h.b16 %v570
      %v3087 = vunpack.c.l.b16 %v571
      %v3088 = vunpack.c.l.b16 %v572
      %v3089 = vunpack.c.h.b16 %v572
      %v3090 = vunpack.c.l.b16 %v573
      %v3091 = vunpack.c.l.b16 %v574
      %v3092 = vunpack.c.h.b16 %v574
      %v3093 = vunpack.c.l.b16 %v575
      %v3094 = vunpack.c.l.b16 %v576
      %v3095 = vunpack.c.h.b16 %v576
      %v3096 = vunpack.c.l.b16 %v577
      %v3097 = vunpack.c.l.b16 %v578
      %v3098 = vunpack.c.h.b16 %v578
      %v3099 = vunpack.c.l.b16 %v579
      %v3100 = vunpack.c.l.b16 %v580
      %v3101 = vunpack.c.h.b16 %v580
      %v3102 = vunpack.c.l.b16 %v581
      %v3103 = vunpack.c.l.b16 %v582
      %v3104 = vunpack.c.h.b16 %v582
      %v3105 = vunpack.c.l.b16 %v583
      %v3106 = vunpack.c.l.b16 %v584
      %v3107 = vunpack.c.h.b16 %v584
      %v3108 = vunpack.c.l.b16 %v585
      %v3109 = vunpack.c.l.b16 %v586
      %v3110 = vunpack.c.h.b16 %v586
      %v3111 = vunpack.c.l.b16 %v587
      %v3112 = vunpack.c.l.b16 %v588
      %v3113 = vunpack.c.h.b16 %v588
      %v3114 = vunpack.c.l.b16 %v589
      %v3115 = vunpack.c.l.b16 %v590
      %v3116 = vunpack.c.h.b16 %v590
      %v3117 = vunpack.c.l.b16 %v591
      %v3118 = vunpack.c.l.b16 %v592
      %v3119 = vunpack.c.h.b16 %v592
      %v3120 = vunpack.c.l.b16 %v593
      %v3121 = vunpack.c.l.b16 %v594
      %v3122 = vunpack.c.h.b16 %v594
      %v3123 = vunpack.c.l.b16 %v595
      %v3124 = vunpack.c.l.b16 %v596
      %v3125 = vunpack.c.h.b16 %v596
      %v3126 = vunpack.c.l.b16 %v597
      %v3127 = vunpack.c.l.b16 %v598
      %v3128 = vunpack.c.h.b16 %v598
      %v3129 = vunpack.c.l.b16 %v599
      %v3130 = vunpack.c.l.b16 %v600
      %v3131 = vunpack.c.h.b16 %v600
      %v3132 = vunpack.c.l.b16 %v601
      %v3133 = vunpack.c.l.b16 %v602
      %v3134 = vunpack.c.h.b16 %v602
      %v3135 = vunpack.c.l.b16 %v603
      %v3136 = vunpack.c.l.b16 %v604
      %v3137 = vunpack.c.h.b16 %v604
      %v3138 = vunpack.c.l.b16 %v605
      %v3139 = vunpack.c.l.b16 %v606
      %v3140 = vunpack.c.h.b16 %v606
      %v3141 = vunpack.c.l.b16 %v607
      %v3142 = vunpack.c.l.b16 %v608
      %v3143 = vunpack.c.h.b16 %v608
      %v3144 = vunpack.c.l.b16 %v609
      %v3145 = vunpack.c.l.b16 %v610
      %v3146 = vunpack.c.h.b16 %v610
      %v3147 = vunpack.c.l.b16 %v611
      %v3148 = vunpack.c.l.b16 %v612
      %v3149 = vunpack.c.h.b16 %v612
      %v3150 = vunpack.c.l.b16 %v613
      %v3151 = vunpack.c.l.b16 %v614
      %v3152 = vunpack.c.h.b16 %v614
      %v3153 = vunpack.c.l.b16 %v615
      %v3154 = vunpack.c.l.b16 %v616
      %v3155 = vunpack.c.h.b16 %v616
      %v3156 = vunpack.c.l.b16 %v617
      %v3157 = vunpack.c.l.b16 %v618
      %v3158 = vunpack.c.h.b16 %v618
      %v3159 = vunpack.c.l.b16 %v619
      %v3160 = vunpack.c.l.b16 %v620
      %v3161 = vunpack.c.h.b16 %v620
      %v3162 = vunpack.c.l.b16 %v621
      %v3163 = vunpack.c.l.b16 %v622
      %v3164 = vunpack.c.h.b16 %v622
      %v3165 = vunpack.c.l.b16 %v623
      %v3166 = vunpack.c.l.b16 %v624
      %v3167 = vunpack.c.h.b16 %v624
      %v3168 = vunpack.c.l.b16 %v625
      %v3169 = vunpack.c.l.b16 %v626
      %v3170 = vunpack.c.h.b16 %v626
      %v3171 = vunpack.c.l.b16 %v627
      %v3172 = vunpack.c.l.b16 %v628
      %v3173 = vunpack.c.h.b16 %v628
      %v3174 = vunpack.c.l.b16 %v629
      %v3175 = vunpack.c.l.b16 %v630
      %v3176 = vunpack.c.h.b16 %v630
      %v3177 = vunpack.c.l.b16 %v631
      %v3178 = vunpack.c.l.b16 %v632
      %v3179 = vunpack.c.h.b16 %v632
      %v3180 = vunpack.c.l.b16 %v633
      %v3181 = vunpack.c.l.b16 %v634
      %v3182 = vunpack.c.h.b16 %v634
      %v3183 = vunpack.c.l.b16 %v635
      %v3184 = vunpack.c.l.b16 %v636
      %v3185 = vunpack.c.h.b16 %v636
      %v3186 = vunpack.c.l.b16 %v637
      %v3187 = vunpack.c.l.b16 %v638
      %v3188 = vunpack.c.h.b16 %v638
      %v3189 = vunpack.c.l.b16 %v639
      %v3190 = vunpack.c.l.b16 %v640
      %v3191 = vunpack.c.h.b16 %v640
      %v3192 = vunpack.c.l.b16 %v641
      %v3193 = vunpack.c.l.b16 %v642
      %v3194 = vunpack.c.h.b16 %v642
      %v3195 = vunpack.c.l.b16 %v643
      %v3196 = vunpack.c.l.b16 %v644
      %v3197 = vunpack.c.h.b16 %v644
      %v3198 = vunpack.c.l.b16 %v645
      %v3199 = vunpack.c.l.b16 %v646
      %v3200 = vunpack.c.h.b16 %v646
      %v3201 = vunpack.c.l.b16 %v647
      %v3202 = vunpack.c.l.b16 %v648
      %v3203 = vunpack.c.h.b16 %v648
      %v3204 = vunpack.c.l.b16 %v649
      %v3205 = vunpack.c.l.b16 %v650
      %v3206 = vunpack.c.h.b16 %v650
      %v3207 = vunpack.c.l.b16 %v651
      %v3208 = vunpack.c.l.b16 %v652
      %v3209 = vunpack.c.h.b16 %v652
      %v3210 = vunpack.c.l.b16 %v653
      %v3211 = vunpack.c.l.b16 %v654
      %v3212 = vunpack.c.h.b16 %v654
      %v3213 = vunpack.c.l.b16 %v655
      %v3214 = vunpack.c.l.b16 %v656
      %v3215 = vunpack.c.h.b16 %v656
      %v3216 = vunpack.c.l.b16 %v657
      %v3217 = vunpack.c.l.b16 %v658
      %v3218 = vunpack.c.h.b16 %v658
      %v3219 = vunpack.c.l.b16 %v659
      %v3220 = vunpack.c.l.b16 %v660
      %v3221 = vunpack.c.h.b16 %v660
      %v3222 = vunpack.c.l.b16 %v661
      %v3223 = vunpack.c.l.b16 %v662
      %v3224 = vunpack.c.h.b16 %v662
      %v3225 = vunpack.c.l.b16 %v663
      %v3226 = vunpack.c.l.b16 %v664
      %v3227 = vunpack.c.h.b16 %v664
      %v3228 = vunpack.c.l.b16 %v665
      %v3229 = vunpack.c.l.b16 %v666
      %v3230 = vunpack.c.h.b16 %v666
      %v3231 = vunpack.c.l.b16 %v667
      %v3232 = vunpack.c.l.b16 %v668
      %v3233 = vunpack.c.h.b16 %v668
      %v3234 = vunpack.c.l.b16 %v669
      %v3235 = vunpack.c.l.b16 %v670
      %v3236 = vunpack.c.h.b16 %v670
      %v3237 = vunpack.c.l.b16 %v671
      %v3238 = vunpack.c.l.b16 %v672
      %v3239 = vunpack.c.h.b16 %v672
      %v3240 = vunpack.c.l.b16 %v673
      %v3241 = vunpack.c.l.b16 %v674
      %v3242 = vunpack.c.h.b16 %v674
      %v3243 = vunpack.c.l.b16 %v675
      %v3244 = vunpack.c.l.b16 %v676
      %v3245 = vunpack.c.h.b16 %v676
      %v3246 = vunpack.c.l.b16 %v677
      %v3247 = vunpack.c.l.b16 %v678
      %v3248 = vunpack.c.h.b16 %v678
      %v3249 = vunpack.c.l.b16 %v679
      %v3250 = vunpack.c.l.b16 %v680
      %v3251 = vunpack.c.h.b16 %v680
      %v3252 = vunpack.c.l.b16 %v681
      %v3253 = vunpack.c.l.b16 %v682
      %v3254 = vunpack.c.h.b16 %v682
      %v3255 = vunpack.c.l.b16 %v683
      %v3256 = vunpack.c.l.b16 %v684
      %v3257 = vunpack.c.h.b16 %v684
      %v3258 = vunpack.c.l.b16 %v685
      %v3259 = vunpack.c.l.b16 %v686
      %v3260 = vunpack.c.h.b16 %v686
      %v3261 = vunpack.c.l.b16 %v687
      %v3262 = vunpack.c.l.b16 %v688
      %v3263 = vunpack.c.h.b16 %v688
      %v3264 = vunpack.c.l.b16 %v689
      %v3265 = vunpack.c.l.b16 %v690
      %v3266 = vunpack.c.h.b16 %v690
      %v3267 = vunpack.c.l.b16 %v691
      %v3268 = vunpack.c.l.b16 %v692
      %v3269 = vunpack.c.h.b16 %v692
      %v3270 = vunpack.c.l.b16 %v693
      %v3271 = vunpack.c.l.b16 %v694
      %v3272 = vunpack.c.h.b16 %v694
      %v3273 = vunpack.c.l.b16 %v695
      %v3274 = vunpack.c.l.b16 %v696
      %v3275 = vunpack.c.h.b16 %v696
      %v3276 = vunpack.c.l.b16 %v697
      %v3277 = vunpack.c.l.b16 %v698
      %v3278 = vunpack.c.h.b16 %v698
      %v3279 = vunpack.c.l.b16 %v699
      %v3280 = vunpack.c.l.b16 %v700
      %v3281 = vunpack.c.h.b16 %v700
      %v3282 = vunpack.c.l.b16 %v701
      %v3283 = vunpack.c.l.b16 %v702
      %v3284 = vunpack.c.h.b16 %v702
      %v3285 = vunpack.c.l.b16 %v703
      %v3286 = vunpack.c.l.b16 %v704
      %v3287 = vunpack.c.h.b16 %v704
      %v3288 = vunpack.c.l.b16 %v705
      %v3289 = vunpack.c.l.b16 %v706
      %v3290 = vunpack.c.h.b16 %v706
      %v3291 = vunpack.c.l.b16 %v707
      %v3292 = vunpack.c.l.b16 %v708
      %v3293 = vunpack.c.h.b16 %v708
      %v3294 = vunpack.c.l.b16 %v709
      %v3295 = vunpack.c.l.b16 %v710
      %v3296 = vunpack.c.h.b16 %v710
      %v3297 = vunpack.c.l.b16 %v711
      %v3298 = vunpack.c.l.b16 %v712
      %v3299 = vunpack.c.h.b16 %v712
      %v3300 = vunpack.c.l.b16 %v713
      %v3301 = vunpack.c.l.b16 %v714
      %v3302 = vunpack.c.h.b16 %v714
      %v3303 = vunpack.c.l.b16 %v715
      %v3304 = vunpack.c.l.b16 %v716
      %v3305 = vunpack.c.h.b16 %v716
      %v3306 = vunpack.c.l.b16 %v717
      %v3307 = vunpack.c.l.b16 %v718
      %v3308 = vunpack.c.h.b16 %v718
      %v3309 = vunpack.c.l.b16 %v719
      %v3310 = vunpack.c.l.b16 %v720
      %v3311 = vunpack.c.h.b16 %v720
      %v3312 = vunpack.c.l.b16 %v721
      %v3313 = vunpack.c.l.b16 %v722
      %v3314 = vunpack.c.h.b16 %v722
      %v3315 = vunpack.c.l.b16 %v723
      %v3316 = vunpack.c.l.b16 %v724
      %v3317 = vunpack.c.h.b16 %v724
      %v3318 = vunpack.c.l.b16 %v725
      %v3319 = vunpack.c.l.b16 %v726
      %v3320 = vunpack.c.h.b16 %v726
      %v3321 = vunpack.c.l.b16 %v727
      %v3322 = vunpack.c.l.b16 %v728
      %v3323 = vunpack.c.h.b16 %v728
      %v3324 = vunpack.c.l.b16 %v729
      %v3325 = vunpack.c.l.b16 %v730
      %v3326 = vunpack.c.h.b16 %v730
      %v3327 = vunpack.c.l.b16 %v731
      %v3328 = vunpack.c.l.b16 %v732
      %v3329 = vunpack.c.h.b16 %v732
      %v3330 = vunpack.c.l.b16 %v733
      %v3331 = vunpack.c.l.b16 %v734
      %v3332 = vunpack.c.h.b16 %v734
      %v3333 = vunpack.c.l.b16 %v735
      %v3334 = vunpack.c.l.b16 %v736
      %v3335 = vunpack.c.h.b16 %v736
      %v3336 = vunpack.c.l.b16 %v737
      %v3337 = vunpack.c.l.b16 %v738
      %v3338 = vunpack.c.h.b16 %v738
      %v3339 = vunpack.c.l.b16 %v739
      %v3340 = vunpack.c.l.b16 %v740
      %v3341 = vunpack.c.h.b16 %v740
      %v3342 = vunpack.c.l.b16 %v741
      %v3343 = vunpack.c.l.b16 %v742
      %v3344 = vunpack.c.h.b16 %v742
      %v3345 = vunpack.c.l.b16 %v743
      %v3346 = vunpack.c.l.b16 %v744
      %v3347 = vunpack.c.h.b16 %v744
      %v3348 = vunpack.c.l.b16 %v745
      %v3349 = vunpack.c.l.b16 %v746
      %v3350 = vunpack.c.h.b16 %v746
      %v3351 = vunpack.c.l.b16 %v747
      %v3352 = vunpack.c.l.b16 %v748
      %v3353 = vunpack.c.h.b16 %v748
      %v3354 = vunpack.c.l.b16 %v749
      %v3355 = vunpack.c.l.b16 %v750
      %v3356 = vunpack.c.h.b16 %v750
      %v3357 = vunpack.c.l.b16 %v751
      %v3358 = vunpack.c.l.b16 %v752
      %v3359 = vunpack.c.h.b16 %v752
      %v3360 = vunpack.c.l.b16 %v753
      %v3361 = vunpack.c.l.b16 %v754
      %v3362 = vunpack.c.h.b16 %v754
      %v3363 = vunpack.c.l.b16 %v755
      %v3364 = vunpack.c.l.b16 %v756
      %v3365 = vunpack.c.h.b16 %v756
      %v3366 = vunpack.c.l.b16 %v757
      %v3367 = vunpack.c.l.b16 %v758
      %v3368 = vunpack.c.h.b16 %v758
      %v3369 = vunpack.c.l.b16 %v759
      %v3370 = vunpack.c.l.b16 %v760
      %v3371 = vunpack.c.h.b16 %v760
      %v3372 = vunpack.c.l.b16 %v761
      %v3373 = vunpack.c.l.b16 %v762
      %v3374 = vunpack.c.h.b16 %v762
      %v3375 = vunpack.c.l.b16 %v763
      %v3376 = vunpack.c.l.b16 %v764
      %v3377 = vunpack.c.h.b16 %v764
      %v3378 = vunpack.c.l.b16 %v765
      %v3379 = vunpack.c.l.b16 %v766
      %v3380 = vunpack.c.h.b16 %v766
      %v3381 = vunpack.c.l.b16 %v767
      %v3382 = vunpack.c.l.b16 %v768
      %v3383 = vunpack.c.h.b16 %v768
      %v3384 = vunpack.c.l.b16 %v769
      %v3385 = vunpack.c.l.b16 %v770
      %v3386 = vunpack.c.h.b16 %v770
      %v3387 = vunpack.c.l.b16 %v771
      %v3388 = vunpack.c.l.b16 %v772
      %v3389 = vunpack.c.h.b16 %v772
      %v3390 = vunpack.c.l.b16 %v773
      %v3391 = vunpack.c.l.b16 %v774
      %v3392 = vunpack.c.h.b16 %v774
      %v3393 = vunpack.c.l.b16 %v775
      %v3394 = vunpack.c.l.b16 %v776
      %v3395 = vunpack.c.h.b16 %v776
      %v3396 = vunpack.c.l.b16 %v777
      %v3397 = vunpack.c.l.b16 %v778
      %v3398 = vunpack.c.h.b16 %v778
      %v3399 = vunpack.c.l.b16 %v779
      %v3400 = vunpack.c.l.b16 %v780
      %v3401 = vunpack.c.h.b16 %v780
      %v3402 = vunpack.c.l.b16 %v781
      %v3403 = vunpack.c.l.b16 %v782
      %v3404 = vunpack.c.h.b16 %v782
      %v3405 = vunpack.c.l.b16 %v783
      %v3406 = vunpack.c.l.b16 %v784
      %v3407 = vunpack.c.h.b16 %v784
      %v3408 = vunpack.c.l.b16 %v785
      %v3409 = vunpack.c.l.b16 %v786
      %v3410 = vunpack.c.h.b16 %v786
      %v3411 = vunpack.c.l.b16 %v787
      %v3412 = vunpack.c.l.b16 %v788
      %v3413 = vunpack.c.h.b16 %v788
      %v3414 = vunpack.c.l.b16 %v789
      %v3415 = vunpack.c.l.b16 %v790
      %v3416 = vunpack.c.h.b16 %v790
      %v3417 = vunpack.c.l.b16 %v791
      %v3418 = vunpack.c.l.b16 %v792
      %v3419 = vunpack.c.h.b16 %v792
      %v3420 = vunpack.c.l.b16 %v793
      %v3421 = vunpack.c.l.b16 %v794
      %v3422 = vunpack.c.h.b16 %v794
      %v3423 = vunpack.c.l.b16 %v795
      %v3424 = vunpack.c.l.b16 %v796
      %v3425 = vunpack.c.h.b16 %v796
      %v3426 = vunpack.c.l.b16 %v797
      %v3427 = vunpack.c.l.b16 %v798
      %v3428 = vunpack.c.h.b16 %v798
      %v3429 = vunpack.c.l.b16 %v799
      %v3430 = vunpack.c.l.b16 %v800
      %v3431 = vunpack.c.h.b16 %v800
      %v3432 = vunpack.c.l.b16 %v801
      %v3433 = vunpack.c.l.b16 %v802
      %v3434 = vunpack.c.h.b16 %v802
      %v3435 = vunpack.c.l.b16 %v803
      %v3436 = vunpack.c.l.b16 %v804
      %v3437 = vunpack.c.h.b16 %v804
      %v3438 = vunpack.c.l.b16 %v805
      %v3439 = vunpack.c.l.b16 %v806
      %v3440 = vunpack.c.h.b16 %v806
      %v3441 = vunpack.c.l.b16 %v807
      %v3442 = vunpack.c.l.b16 %v808
      %v3443 = vunpack.c.h.b16 %v808
      %v3444 = vunpack.c.l.b16 %v809
      %v3445 = vunpack.c.l.b16 %v810
      %v3446 = vunpack.c.h.b16 %v810
      %v3447 = vunpack.c.l.b16 %v811
      %v3448 = vunpack.c.l.b16 %v812
      %v3449 = vunpack.c.h.b16 %v812
      %v3450 = vunpack.c.l.b16 %v813
      %v3451 = vunpack.c.l.b16 %v814
      %v3452 = vunpack.c.h.b16 %v814
      %v3453 = vunpack.c.l.b16 %v815
      %v3454 = vunpack.c.l.b16 %v816
      %v3455 = vunpack.c.h.b16 %v816
      %v3456 = vunpack.c.l.b16 %v817
      %v3457 = vunpack.c.l.b16 %v818
      %v3458 = vunpack.c.h.b16 %v818
      %v3459 = vunpack.c.l.b16 %v819
      %v3460 = vunpack.c.l.b16 %v820
      %v3461 = vunpack.c.h.b16 %v820
      %v3462 = vunpack.c.l.b16 %v821
      %v3463 = vunpack.c.l.b16 %v822
      %v3464 = vunpack.c.h.b16 %v822
      %v3465 = vunpack.c.l.b16 %v823
      %v3466 = vunpack.c.l.b16 %v824
      %v3467 = vunpack.c.h.b16 %v824
      %v3468 = vunpack.c.l.b16 %v825
      %v3469 = vunpack.c.l.b16 %v826
      %v3470 = vunpack.c.h.b16 %v826
      %v3471 = vunpack.c.l.b16 %v827
      %v3472 = vunpack.c.l.b16 %v828
      %v3473 = vunpack.c.h.b16 %v828
      %v3474 = vunpack.c.l.b16 %v829
      %v3475 = vunpack.c.l.b16 %v830
      %v3476 = vunpack.c.h.b16 %v830
      %v3477 = vunpack.c.l.b16 %v831
      %v3478 = vunpack.c.l.b16 %v832
      %v3479 = vunpack.c.h.b16 %v832
      %v3480 = vunpack.c.l.b16 %v833
      %v3481 = vunpack.c.l.b16 %v834
      %v3482 = vunpack.c.h.b16 %v834
      %v3483 = vunpack.c.l.b16 %v835
      %v3484 = vunpack.c.l.b16 %v836
      %v3485 = vunpack.c.h.b16 %v836
      %v3486 = vunpack.c.l.b16 %v837
      %v3487 = vunpack.c.l.b16 %v838
      %v3488 = vunpack.c.h.b16 %v838
      %v3489 = vunpack.c.l.b16 %v839
      %v3490 = vunpack.c.l.b16 %v840
      %v3491 = vunpack.c.h.b16 %v840
      %v3492 = vunpack.c.l.b16 %v841
      %v3493 = vunpack.c.l.b16 %v842
      %v3494 = vunpack.c.h.b16 %v842
      %v3495 = vunpack.c.l.b16 %v843
      %v3496 = vunpack.c.l.b16 %v844
      %v3497 = vunpack.c.h.b16 %v844
      %v3498 = vunpack.c.l.b16 %v845
      %v3499 = vunpack.c.l.b16 %v846
      %v3500 = vunpack.c.h.b16 %v846
      %v3501 = vunpack.c.l.b16 %v847
      %v3502 = vunpack.c.l.b16 %v848
      %v3503 = vunpack.c.h.b16 %v848
      %v3504 = vunpack.c.l.b16 %v849
      %v3505 = vunpack.c.l.b16 %v850
      %v3506 = vunpack.c.h.b16 %v850
      %v3507 = vunpack.c.l.b16 %v851
      %v3508 = vunpack.c.l.b16 %v852
      %v3509 = vunpack.c.h.b16 %v852
      %v3510 = vunpack.c.l.b16 %v853
      %v3511 = vunpack.c.l.b16 %v854
      %v3512 = vunpack.c.h.b16 %v854
      %v3513 = vunpack.c.l.b16 %v855
      %v3514 = vunpack.c.l.b16 %v856
      %v3515 = vunpack.c.h.b16 %v856
      %v3516 = vunpack.c.l.b16 %v857
      %v3517 = vunpack.c.l.b16 %v858
      %v3518 = vunpack.c.h.b16 %v858
      %v3519 = vunpack.c.l.b16 %v859
      %v3520 = vunpack.c.l.b16 %v860
      %v3521 = vunpack.c.h.b16 %v860
      %v3522 = vunpack.c.l.b16 %v861
      %v3523 = vunpack.c.l.b16 %v862
      %v3524 = vunpack.c.h.b16 %v862
      %v3525 = vunpack.c.l.b16 %v863
      %v3526 = vunpack.c.l.b16 %v864
      %v3527 = vunpack.c.h.b16 %v864
      %v3528 = vunpack.c.l.b16 %v865
      %v3529 = vunpack.c.l.b16 %v866
      %v3530 = vunpack.c.h.b16 %v866
      %v3531 = vunpack.c.l.b16 %v867
      %v3532 = vunpack.c.l.b16 %v868
      %v3533 = vunpack.c.h.b16 %v868
      %v3534 = vunpack.c.l.b16 %v869
      %v3535 = vunpack.c.l.b16 %v870
      %v3536 = vunpack.c.h.b16 %v870
      %v3537 = vunpack.c.l.b16 %v871
      %v3538 = vunpack.c.l.b16 %v872
      %v3539 = vunpack.c.h.b16 %v872
      %v3540 = vunpack.c.l.b16 %v873
      %v3541 = vunpack.c.l.b16 %v874
      %v3542 = vunpack.c.h.b16 %v874
      %v3543 = vunpack.c.l.b16 %v875
      %v3544 = vunpack.c.l.b16 %v876
      %v3545 = vunpack.c.h.b16 %v876
      %v3546 = vunpack.c.l.b16 %v877
      %v3547 = vunpack.c.l.b16 %v878
      %v3548 = vunpack.c.h.b16 %v878
      %v3549 = vunpack.c.l.b16 %v879
      %v3550 = vunpack.c.l.b16 %v880
      %v3551 = vunpack.c.h.b16 %v880
      %v3552 = vunpack.c.l.b16 %v881
      %v3553 = vunpack.c.l.b16 %v882
      %v3554 = vunpack.c.h.b16 %v882
      %v3555 = vunpack.c.l.b16 %v883
      %v3556 = vunpack.c.l.b16 %v884
      %v3557 = vunpack.c.h.b16 %v884
      %v3558 = vunpack.c.l.b16 %v885
      %v3559 = vunpack.c.l.b16 %v886
      %v3560 = vunpack.c.h.b16 %v886
      %v3561 = vunpack.c.l.b16 %v887
      %v3562 = vunpack.c.l.b16 %v888
      %v3563 = vunpack.c.h.b16 %v888
      %v3564 = vunpack.c.l.b16 %v889
      %v3565 = vunpack.c.l.b16 %v890
      %v3566 = vunpack.c.h.b16 %v890
      %v3567 = vunpack.c.l.b16 %v891
      %v3568 = vunpack.c.l.b16 %v892
      %v3569 = vunpack.c.h.b16 %v892
      %v3570 = vunpack.c.l.b16 %v893
      %v3571 = vunpack.c.l.b16 %v894
      %v3572 = vunpack.c.h.b16 %v894
      %v3573 = vunpack.c.l.b16 %v895
      %v3574 = vunpack.c.l.b16 %v896
      %v3575 = vunpack.c.h.b16 %v896
      %v3576 = vunpack.c.l.b16 %v897
      %v3577 = vunpack.c.l.b16 %v898
      %v3578 = vunpack.c.h.b16 %v898
      %v3579 = vunpack.c.l.b16 %v899
      %v3580 = vunpack.c.l.b16 %v900
      %v3581 = vunpack.c.h.b16 %v900
      %v3582 = vunpack.c.l.b16 %v901
      %v3583 = vunpack.c.l.b16 %v902
      %v3584 = vunpack.c.h.b16 %v902
      %v3585 = vunpack.c.l.b16 %v903
      %v3586 = vunpack.c.l.b16 %v904
      %v3587 = vunpack.c.h.b16 %v904
      %v3588 = vunpack.c.l.b16 %v905
      %v3589 = vunpack.c.l.b16 %v906
      %v3590 = vunpack.c.h.b16 %v906
      %v3591 = vunpack.c.l.b16 %v907
      %v3592 = vunpack.c.l.b16 %v908
      %v3593 = vunpack.c.h.b16 %v908
      %v3594 = vunpack.c.l.b16 %v909
      %v3595 = vunpack.c.l.b16 %v910
      %v3596 = vunpack.c.h.b16 %v910
      %v3597 = vunpack.c.l.b16 %v911
      %v3598 = vunpack.c.l.b16 %v912
      %v3599 = vunpack.c.h.b16 %v912
      %v3600 = vunpack.c.l.b16 %v913
      %v3601 = vunpack.c.l.b16 %v914
      %v3602 = vunpack.c.h.b16 %v914
      %v3603 = vunpack.c.l.b16 %v915
      %v3604 = vunpack.c.l.b16 %v916
      %v3605 = vunpack.c.h.b16 %v916
      %v3606 = vunpack.c.l.b16 %v917
      %v3607 = vunpack.c.l.b16 %v918
      %v3608 = vunpack.c.h.b16 %v918
      %v3609 = vunpack.c.l.b16 %v919
      %v3610 = vunpack.c.l.b16 %v920
      %v3611 = vunpack.c.h.b16 %v920
      %v3612 = vunpack.c.l.b16 %v921
      %v3613 = vunpack.c.l.b16 %v922
      %v3614 = vunpack.c.h.b16 %v922
      %v3615 = vunpack.c.l.b16 %v923
      %v3616 = vunpack.c.l.b16 %v924
      %v3617 = vunpack.c.h.b16 %v924
      %v3618 = vunpack.c.l.b16 %v925
      %v3619 = vunpack.c.l.b16 %v926
      %v3620 = vunpack.c.h.b16 %v926
      %v3621 = vunpack.c.l.b16 %v927
      %v3622 = vunpack.c.l.b16 %v928
      %v3623 = vunpack.c.h.b16 %v928
      %v3624 = vunpack.c.l.b16 %v929
      %v3625 = vunpack.c.l.b16 %v930
      %v3626 = vunpack.c.h.b16 %v930
      %v3627 = vunpack.c.l.b16 %v931
      %v3628 = vunpack.c.l.b16 %v932
      %v3629 = vunpack.c.h.b16 %v932
      %v3630 = vunpack.c.l.b16 %v933
      %v3631 = vunpack.c.l.b16 %v934
      %v3632 = vunpack.c.h.b16 %v934
      %v3633 = vunpack.c.l.b16 %v935
      %v3634 = vunpack.c.l.b16 %v936
      %v3635 = vunpack.c.h.b16 %v936
      %v3636 = vunpack.c.l.b16 %v937
      %v3637 = vunpack.c.l.b16 %v938
      %v3638 = vunpack.c.h.b16 %v938
      %v3639 = vunpack.c.l.b16 %v939
      %v3640 = vunpack.c.l.b16 %v940
      %v3641 = vunpack.c.h.b16 %v940
      %v3642 = vunpack.c.l.b16 %v941
      %v3643 = vunpack.c.l.b16 %v942
      %v3644 = vunpack.c.h.b16 %v942
      %v3645 = vunpack.c.l.b16 %v943
      %v3646 = vunpack.c.l.b16 %v944
      %v3647 = vunpack.c.h.b16 %v944
      %v3648 = vunpack.c.l.b16 %v945
      %v3649 = vunpack.c.l.b16 %v946
      %v3650 = vunpack.c.h.b16 %v946
      %v3651 = vunpack.c.l.b16 %v947
      %v3652 = vunpack.c.l.b16 %v948
      %v3653 = vunpack.c.h.b16 %v948
      %v3654 = vunpack.c.l.b16 %v949
      %v3655 = vunpack.c.l.b16 %v950
      %v3656 = vunpack.c.h.b16 %v950
      %v3657 = vunpack.c.l.b16 %v951
      %v3658 = vunpack.c.l.b16 %v952
      %v3659 = vunpack.c.h.b16 %v952
      %v3660 = vunpack.c.l.b16 %v953
      %v3661 = vunpack.c.l.b16 %v954
      %v3662 = vunpack.c.h.b16 %v954
      %v3663 = vunpack.c.l.b16 %v955
      %v3664 = vunpack.c.l.b16 %v956
      %v3665 = vunpack.c.h.b16 %v956
      %v3666 = vunpack.c.l.b16 %v957
      %v3667 = vunpack.c.l.b16 %v958
      %v3668 = vunpack.c.h.b16 %v958
      %v3669 = vunpack.c.l.b16 %v959
      %v3670 = vunpack.c.l.b16 %v960
      %v3671 = vunpack.c.h.b16 %v960
      %v3672 = vunpack.c.l.b16 %v961
      %v3673 = vunpack.c.l.b16 %v962
      %v3674 = vunpack.c.h.b16 %v962
      %v3675 = vunpack.c.l.b16 %v963
      %v3676 = vunpack.c.l.b16 %v964
      %v3677 = vunpack.c.h.b16 %v964
      %v3678 = vunpack.c.l.b16 %v965
      %v3679 = vunpack.c.l.b16 %v966
      %v3680 = vunpack.c.h.b16 %v966
      %v3681 = vunpack.c.l.b16 %v967
      %v3682 = vunpack.c.l.b16 %v968
      %v3683 = vunpack.c.h.b16 %v968
      %v3684 = vunpack.c.l.b16 %v969
      %v3685 = vunpack.c.l.b16 %v970
      %v3686 = vunpack.c.h.b16 %v970
      %v3687 = vunpack.c.l.b16 %v971
      %v3688 = vunpack.c.l.b16 %v972
      %v3689 = vunpack.c.h.b16 %v972
      %v3690 = vunpack.c.l.b16 %v973
      %v3691 = vunpack.c.l.b16 %v974
      %v3692 = vunpack.c.h.b16 %v974
      %v3693 = vunpack.c.l.b16 %v975
      %v3694 = vunpack.c.l.b16 %v976
      %v3695 = vunpack.c.h.b16 %v976
      %v3696 = vunpack.c.l.b16 %v977
      %v3697 = vunpack.c.l.b16 %v978
      %v3698 = vunpack.c.h.b16 %v978
      %v3699 = vunpack.c.l.b16 %v979
      %v3700 = vpack.c.b16 %v2935, %v2932
      %v3701 = vpack.c.b16 %v2936, %v2933
      %v3702 = vpack.c.b16 %v2937, %v2934
      %v3703 = vpack.c.b16 %v2941, %v2938
      %v3704 = vpack.c.b16 %v2942, %v2939
      %v3705 = vpack.c.b16 %v2943, %v2940
      %v3706 = vpack.c.b16 %v2947, %v2944
      %v3707 = vpack.c.b16 %v2948, %v2945
      %v3708 = vpack.c.b16 %v2949, %v2946
      %v3709 = vpack.c.b16 %v2953, %v2950
      %v3710 = vpack.c.b16 %v2954, %v2951
      %v3711 = vpack.c.b16 %v2955, %v2952
      %v3712 = vpack.c.b16 %v2959, %v2956
      %v3713 = vpack.c.b16 %v2960, %v2957
      %v3714 = vpack.c.b16 %v2961, %v2958
      %v3715 = vpack.c.b16 %v2965, %v2962
      %v3716 = vpack.c.b16 %v2966, %v2963
      %v3717 = vpack.c.b16 %v2967, %v2964
      %v3718 = vpack.c.b16 %v2971, %v2968
      %v3719 = vpack.c.b16 %v2972, %v2969
      %v3720 = vpack.c.b16 %v2973, %v2970
      %v3721 = vpack.c.b16 %v2977, %v2974
      %v3722 = vpack.c.b16 %v2978, %v2975
      %v3723 = vpack.c.b16 %v2979, %v2976
      %v3724 = vpack.c.b16 %v2983, %v2980
      %v3725 = vpack.c.b16 %v2984, %v2981
      %v3726 = vpack.c.b16 %v2985, %v2982
      %v3727 = vpack.c.b16 %v2989, %v2986
      %v3728 = vpack.c.b16 %v2990, %v2987
      %v3729 = vpack.c.b16 %v2991, %v2988
      %v3730 = vpack.c.b16 %v2995, %v2992
      %v3731 = vpack.c.b16 %v2996, %v2993
      %v3732 = vpack.c.b16 %v2997, %v2994
      %v3733 = vpack.c.b16 %v3001, %v2998
      %v3734 = vpack.c.b16 %v3002, %v2999
      %v3735 = vpack.c.b16 %v3003, %v3000
      %v3736 = vpack.c.b16 %v3007, %v3004
      %v3737 = vpack.c.b16 %v3008, %v3005
      %v3738 = vpack.c.b16 %v3009, %v3006
      %v3739 = vpack.c.b16 %v3013, %v3010
      %v3740 = vpack.c.b16 %v3014, %v3011
      %v3741 = vpack.c.b16 %v3015, %v3012
      %v3742 = vpack.c.b16 %v3019, %v3016
      %v3743 = vpack.c.b16 %v3020, %v3017
      %v3744 = vpack.c.b16 %v3021, %v3018
      %v3745 = vpack.c.b16 %v3025, %v3022
      %v3746 = vpack.c.b16 %v3026, %v3023
      %v3747 = vpack.c.b16 %v3027, %v3024
      %v3748 = vpack.c.b16 %v3031, %v3028
      %v3749 = vpack.c.b16 %v3032, %v3029
      %v3750 = vpack.c.b16 %v3033, %v3030
      %v3751 = vpack.c.b16 %v3037, %v3034
      %v3752 = vpack.c.b16 %v3038, %v3035
      %v3753 = vpack.c.b16 %v3039, %v3036
      %v3754 = vpack.c.b16 %v3043, %v3040
      %v3755 = vpack.c.b16 %v3044, %v3041
      %v3756 = vpack.c.b16 %v3045, %v3042
      %v3757 = vpack.c.b16 %v3049, %v3046
      %v3758 = vpack.c.b16 %v3050, %v3047
      %v3759 = vpack.c.b16 %v3051, %v3048
      %v3760 = vpack.c.b16 %v3055, %v3052
      %v3761 = vpack.c.b16 %v3056, %v3053
      %v3762 = vpack.c.b16 %v3057, %v3054
      %v3763 = vpack.c.b16 %v3061, %v3058
      %v3764 = vpack.c.b16 %v3062, %v3059
      %v3765 = vpack.c.b16 %v3063, %v3060
      %v3766 = vpack.c.b16 %v3067, %v3064
      %v3767 = vpack.c.b16 %v3068, %v3065
      %v3768 = vpack.c.b16 %v3069, %v3066
      %v3769 = vpack.c.b16 %v3073, %v3070
      %v3770 = vpack.c.b16 %v3074, %v3071
      %v3771 = vpack.c.b16 %v3075, %v3072
      %v3772 = vpack.c.b16 %v3079, %v3076
      %v3773 = vpack.c.b16 %v3080, %v3077
      %v3774 = vpack.c.b16 %v3081, %v3078
      %v3775 = vpack.c.b16 %v3085, %v3082
      %v3776 = vpack.c.b16 %v3086, %v3083
      %v3777 = vpack.c.b16 %v3087, %v3084
      %v3778 = vpack.c.b16 %v3091, %v3088
      %v3779 = vpack.c.b16 %v3092, %v3089
      %v3780 = vpack.c.b16 %v3093, %v3090
      %v3781 = vpack.c.b16 %v3097, %v3094
      %v3782 = vpack.c.b16 %v3098, %v3095
      %v3783 = vpack.c.b16 %v3099, %v3096
      %v3784 = vpack.c.b16 %v3103, %v3100
      %v3785 = vpack.c.b16 %v3104, %v3101
      %v3786 = vpack.c.b16 %v3105, %v3102
      %v3787 = vpack.c.b16 %v3109, %v3106
      %v3788 = vpack.c.b16 %v3110, %v3107
      %v3789 = vpack.c.b16 %v3111, %v3108
      %v3790 = vpack.c.b16 %v3115, %v3112
      %v3791 = vpack.c.b16 %v3116, %v3113
      %v3792 = vpack.c.b16 %v3117, %v3114
      %v3793 = vpack.c.b16 %v3121, %v3118
      %v3794 = vpack.c.b16 %v3122, %v3119
      %v3795 = vpack.c.b16 %v3123, %v3120
      %v3796 = vpack.c.b16 %v3127, %v3124
      %v3797 = vpack.c.b16 %v3128, %v3125
      %v3798 = vpack.c.b16 %v3129, %v3126
      %v3799 = vpack.c.b16 %v3133, %v3130
      %v3800 = vpack.c.b16 %v3134, %v3131
      %v3801 = vpack.c.b16 %v3135, %v3132
      %v3802 = vpack.c.b16 %v3139, %v3136
      %v3803 = vpack.c.b16 %v3140, %v3137
      %v3804 = vpack.c.b16 %v3141, %v3138
      %v3805 = vpack.c.b16 %v3145, %v3142
      %v3806 = vpack.c.b16 %v3146, %v3143
      %v3807 = vpack.c.b16 %v3147, %v3144
      %v3808 = vpack.c.b16 %v3151, %v3148
      %v3809 = vpack.c.b16 %v3152, %v3149
      %v3810 = vpack.c.b16 %v3153, %v3150
      %v3811 = vpack.c.b16 %v3157, %v3154
      %v3812 = vpack.c.b16 %v3158, %v3155
      %v3813 = vpack.c.b16 %v3159, %v3156
      %v3814 = vpack.c.b16 %v3163, %v3160
      %v3815 = vpack.c.b16 %v3164, %v3161
      %v3816 = vpack.c.b16 %v3165, %v3162
      %v3817 = vpack.c.b16 %v3169, %v3166
      %v3818 = vpack.c.b16 %v3170, %v3167
      %v3819 = vpack.c.b16 %v3171, %v3168
      %v3820 = vpack.c.b16 %v3175, %v3172
      %v3821 = vpack.c.b16 %v3176, %v3173
      %v3822 = vpack.c.b16 %v3177, %v3174
      %v3823 = vpack.c.b16 %v3181, %v3178
      %v3824 = vpack.c.b16 %v3182, %v3179
      %v3825 = vpack.c.b16 %v3183, %v3180
      %v3826 = vpack.c.b16 %v3187, %v3184
      %v3827 = vpack.c.b16 %v3188, %v3185
      %v3828 = vpack.c.b16 %v3189, %v3186
      %v3829 = vpack.c.b16 %v3193, %v3190
      %v3830 = vpack.c.b16 %v3194, %v3191
      %v3831 = vpack.c.b16 %v3195, %v3192
      %v3832 = vpack.c.b16 %v3199, %v3196
      %v3833 = vpack.c.b16 %v3200, %v3197
      %v3834 = vpack.c.b16 %v3201, %v3198
      %v3835 = vpack.c.b16 %v3205, %v3202
      %v3836 = vpack.c.b16 %v3206, %v3203
      %v3837 = vpack.c.b16 %v3207, %v3204
      %v3838 = vpack.c.b16 %v3211, %v3208
      %v3839 = vpack.c.b16 %v3212, %v3209
      %v3840 = vpack.c.b16 %v3213, %v3210
      %v3841 = vpack.c.b16 %v3217, %v3214
      %v3842 = vpack.c.b16 %v3218, %v3215
      %v3843 = vpack.c.b16 %v3219, %v3216
      %v3844 = vpack.c.b16 %v3223, %v3220
      %v3845 = vpack.c.b16 %v3224, %v3221
      %v3846 = vpack.c.b16 %v3225, %v3222
      %v3847 = vpack.c.b16 %v3229, %v3226
      %v3848 = vpack.c.b16 %v3230, %v3227
      %v3849 = vpack.c.b16 %v3231, %v3228
      %v3850 = vpack.c.b16 %v3235, %v3232
      %v3851 = vpack.c.b16 %v3236, %v3233
      %v3852 = vpack.c.b16 %v3237, %v3234
      %v3853 = vpack.c.b16 %v3241, %v3238
      %v3854 = vpack.c.b16 %v3242, %v3239
      %v3855 = vpack.c.b16 %v3243, %v3240
      %v3856 = vpack.c.b16 %v3247, %v3244
      %v3857 = vpack.c.b16 %v3248, %v3245
      %v3858 = vpack.c.b16 %v3249, %v3246
      %v3859 = vpack.c.b16 %v3253, %v3250
      %v3860 = vpack.c.b16 %v3254, %v3251
      %v3861 = vpack.c.b16 %v3255, %v3252
      %v3862 = vpack.c.b16 %v3259, %v3256
      %v3863 = vpack.c.b16 %v3260, %v3257
      %v3864 = vpack.c.b16 %v3261, %v3258
      %v3865 = vpack.c.b16 %v3265, %v3262
      %v3866 = vpack.c.b16 %v3266, %v3263
      %v3867 = vpack.c.b16 %v3267, %v3264
      %v3868 = vpack.c.b16 %v3271, %v3268
      %v3869 = vpack.c.b16 %v3272, %v3269
      %v3870 = vpack.c.b16 %v3273, %v3270
      %v3871 = vpack.c.b16 %v3277, %v3274
      %v3872 = vpack.c.b16 %v3278, %v3275
      %v3873 = vpack.c.b16 %v3279, %v3276
      %v3874 = vpack.c.b16 %v3283, %v3280
      %v3875 = vpack.c.b16 %v3284, %v3281
      %v3876 = vpack.c.b16 %v3285, %v3282
      %v3877 = vpack.c.b16 %v3289, %v3286
      %v3878 = vpack.c.b16 %v3290, %v3287
      %v3879 = vpack.c.b16 %v3291, %v3288
      %v3880 = vpack.c.b16 %v3295, %v3292
      %v3881 = vpack.c.b16 %v3296, %v3293
      %v3882 = vpack.c.b16 %v3297, %v3294
      %v3883 = vpack.c.b16 %v3301, %v3298
      %v3884 = vpack.c.b16 %v3302, %v3299
      %v3885 = vpack.c.b16 %v3303, %v3300
      %v3886 = vpack.c.b16 %v3307, %v3304
      %v3887 = vpack.c.b16 %v3308, %v3305
      %v3888 = vpack.c.b16 %v3309, %v3306
      %v3889 = vpack.c.b16 %v3313, %v3310
      %v3890 = vpack.c.b16 %v3314, %v3311
      %v3891 = vpack.c.b16 %v3315, %v3312
      %v3892 = vpack.c.b16 %v3319, %v3316
      %v3893 = vpack.c.b16 %v3320, %v3317
      %v3894 = vpack.c.b16 %v3321, %v3318
      %v3895 = vpack.c.b16 %v3325, %v3322
      %v3896 = vpack.c.b16 %v3326, %v3323
      %v3897 = vpack.c.b16 %v3327, %v3324
      %v3898 = vpack.c.b16 %v3331, %v3328
      %v3899 = vpack.c.b16 %v3332, %v3329
      %v3900 = vpack.c.b16 %v3333, %v3330
      %v3901 = vpack.c.b16 %v3337, %v3334
      %v3902 = vpack.c.b16 %v3338, %v3335
      %v3903 = vpack.c.b16 %v3339, %v3336
      %v3904 = vpack.c.b16 %v3343, %v3340
      %v3905 = vpack.c.b16 %v3344, %v3341
      %v3906 = vpack.c.b16 %v3345, %v3342
      %v3907 = vpack.c.b16 %v3349, %v3346
      %v3908 = vpack.c.b16 %v3350, %v3347
      %v3909 = vpack.c.b16 %v3351, %v3348
      %v3910 = vpack.c.b16 %v3355, %v3352
      %v3911 = vpack.c.b16 %v3356, %v3353
      %v3912 = vpack.c.b16 %v3357, %v3354
      %v3913 = vpack.c.b16 %v3361, %v3358
      %v3914 = vpack.c.b16 %v3362, %v3359
      %v3915 = vpack.c.b16 %v3363, %v3360
      %v3916 = vpack.c.b16 %v3367, %v3364
      %v3917 = vpack.c.b16 %v3368, %v3365
      %v3918 = vpack.c.b16 %v3369, %v3366
      %v3919 = vpack.c.b16 %v3373, %v3370
      %v3920 = vpack.c.b16 %v3374, %v3371
      %v3921 = vpack.c.b16 %v3375, %v3372
      %v3922 = vpack.c.b16 %v3379, %v3376
      %v3923 = vpack.c.b16 %v3380, %v3377
      %v3924 = vpack.c.b16 %v3381, %v3378
      %v3925 = vpack.c.b16 %v3385, %v3382
      %v3926 = vpack.c.b16 %v3386, %v3383
      %v3927 = vpack.c.b16 %v3387, %v3384
      %v3928 = vpack.c.b16 %v3391, %v3388
      %v3929 = vpack.c.b16 %v3392, %v3389
      %v3930 = vpack.c.b16 %v3393, %v3390
      %v3931 = vpack.c.b16 %v3397, %v3394
      %v3932 = vpack.c.b16 %v3398, %v3395
      %v3933 = vpack.c.b16 %v3399, %v3396
      %v3934 = vpack.c.b16 %v3403, %v3400
      %v3935 = vpack.c.b16 %v3404, %v3401
      %v3936 = vpack.c.b16 %v3405, %v3402
      %v3937 = vpack.c.b16 %v3409, %v3406
      %v3938 = vpack.c.b16 %v3410, %v3407
      %v3939 = vpack.c.b16 %v3411, %v3408
      %v3940 = vpack.c.b16 %v3415, %v3412
      %v3941 = vpack.c.b16 %v3416, %v3413
      %v3942 = vpack.c.b16 %v3417, %v3414
      %v3943 = vpack.c.b16 %v3421, %v3418
      %v3944 = vpack.c.b16 %v3422, %v3419
      %v3945 = vpack.c.b16 %v3423, %v3420
      %v3946 = vpack.c.b16 %v3427, %v3424
      %v3947 = vpack.c.b16 %v3428, %v3425
      %v3948 = vpack.c.b16 %v3429, %v3426
      %v3949 = vpack.c.b16 %v3433, %v3430
      %v3950 = vpack.c.b16 %v3434, %v3431
      %v3951 = vpack.c.b16 %v3435, %v3432
      %v3952 = vpack.c.b16 %v3439, %v3436
      %v3953 = vpack.c.b16 %v3440, %v3437
      %v3954 = vpack.c.b16 %v3441, %v3438
      %v3955 = vpack.c.b16 %v3445, %v3442
      %v3956 = vpack.c.b16 %v3446, %v3443
      %v3957 = vpack.c.b16 %v3447, %v3444
      %v3958 = vpack.c.b16 %v3451, %v3448
      %v3959 = vpack.c.b16 %v3452, %v3449
      %v3960 = vpack.c.b16 %v3453, %v3450
      %v3961 = vpack.c.b16 %v3457, %v3454
      %v3962 = vpack.c.b16 %v3458, %v3455
      %v3963 = vpack.c.b16 %v3459, %v3456
      %v3964 = vpack.c.b16 %v3463, %v3460
      %v3965 = vpack.c.b16 %v3464, %v3461
      %v3966 = vpack.c.b16 %v3465, %v3462
      %v3967 = vpack.c.b16 %v3469, %v3466
      %v3968 = vpack.c.b16 %v3470, %v3467
      %v3969 = vpack.c.b16 %v3471, %v3468
      %v3970 = vpack.c.b16 %v3475, %v3472
      %v3971 = vpack.c.b16 %v3476, %v3473
      %v3972 = vpack.c.b16 %v3477, %v3474
      %v3973 = vpack.c.b16 %v3481, %v3478
      %v3974 = vpack.c.b16 %v3482, %v3479
      %v3975 = vpack.c.b16 %v3483, %v3480
      %v3976 = vpack.c.b16 %v3487, %v3484
      %v3977 = vpack.c.b16 %v3488, %v3485
      %v3978 = vpack.c.b16 %v3489, %v3486
      %v3979 = vpack.c.b16 %v3493, %v3490
      %v3980 = vpack.c.b16 %v3494, %v3491
      %v3981 = vpack.c.b16 %v3495, %v3492
      %v3982 = vpack.c.b16 %v3499, %v3496
      %v3983 = vpack.c.b16 %v3500, %v3497
      %v3984 = vpack.c.b16 %v3501, %v3498
      %v3985 = vpack.c.b16 %v3505, %v3502
      %v3986 = vpack.c.b16 %v3506, %v3503
      %v3987 = vpack.c.b16 %v3507, %v3504
      %v3988 = vpack.c.b16 %v3511, %v3508
      %v3989 = vpack.c.b16 %v3512, %v3509
      %v3990 = vpack.c.b16 %v3513, %v3510
      %v3991 = vpack.c.b16 %v3517, %v3514
      %v3992 = vpack.c.b16 %v3518, %v3515
      %v3993 = vpack.c.b16 %v3519, %v3516
      %v3994 = vpack.c.b16 %v3523, %v3520
      %v3995 = vpack.c.b16 %v3524, %v3521
      %v3996 = vpack.c.b16 %v3525, %v3522
      %v3997 = vpack.c.b16 %v3529, %v3526
      %v3998 = vpack.c.b16 %v3530, %v3527
      %v3999 = vpack.c.b16 %v3531, %v3528
      %v4000 = vpack.c.b16 %v3535, %v3532
      %v4001 = vpack.c.b16 %v3536, %v3533
      %v4002 = vpack.c.b16 %v3537, %v3534
      %v4003 = vpack.c.b16 %v3541, %v3538
      %v4004 = vpack.c.b16 %v3542, %v3539
      %v4005 = vpack.c.b16 %v3543, %v3540
      %v4006 = vpack.c.b16 %v3547, %v3544
      %v4007 = vpack.c.b16 %v3548, %v3545
      %v4008 = vpack.c.b16 %v3549, %v3546
      %v4009 = vpack.c.b16 %v3553, %v3550
      %v4010 = vpack.c.b16 %v3554, %v3551
      %v4011 = vpack.c.b16 %v3555, %v3552
      %v4012 = vpack.c.b16 %v3559, %v3556
      %v4013 = vpack.c.b16 %v3560, %v3557
      %v4014 = vpack.c.b16 %v3561, %v3558
      %v4015 = vpack.c.b16 %v3565, %v3562
      %v4016 = vpack.c.b16 %v3566, %v3563
      %v4017 = vpack.c.b16 %v3567, %v3564
      %v4018 = vpack.c.b16 %v3571, %v3568
      %v4019 = vpack.c.b16 %v3572, %v3569
      %v4020 = vpack.c.b16 %v3573, %v3570
      %v4021 = vpack.c.b16 %v3577, %v3574
      %v4022 = vpack.c.b16 %v3578, %v3575
      %v4023 = vpack.c.b16 %v3579, %v3576
      %v4024 = vpack.c.b16 %v3583, %v3580
      %v4025 = vpack.c.b16 %v3584, %v3581
      %v4026 = vpack.c.b16 %v3585, %v3582
      %v4027 = vpack.c.b16 %v3589, %v3586
      %v4028 = vpack.c.b16 %v3590, %v3587
      %v4029 = vpack.c.b16 %v3591, %v3588
      %v4030 = vpack.c.b16 %v3595, %v3592
      %v4031 = vpack.c.b16 %v3596, %v3593
      %v4032 = vpack.c.b16 %v3597, %v3594
      %v4033 = vpack.c.b16 %v3601, %v3598
      %v4034 = vpack.c.b16 %v3602, %v3599
      %v4035 = vpack.c.b16 %v3603, %v3600
      %v4036 = vpack.c.b16 %v3607, %v3604
      %v4037 = vpack.c.b16 %v3608, %v3605
      %v4038 = vpack.c.b16 %v3609, %v3606
      %v4039 = vpack.c.b16 %v3613, %v3610
      %v4040 = vpack.c.b16 %v3614, %v3611
      %v4041 = vpack.c.b16 %v3615, %v3612
      %v4042 = vpack.c.b16 %v3619, %v3616
      %v4043 = vpack.c.b16 %v3620, %v3617
      %v4044 = vpack.c.b16 %v3621, %v3618
      %v4045 = vpack.c.b16 %v3625, %v3622
      %v4046 = vpack.c.b16 %v3626, %v3623
      %v4047 = vpack.c.b16 %v3627, %v3624
      %v4048 = vpack.c.b16 %v3631, %v3628
      %v4049 = vpack.c.b16 %v3632, %v3629
      %v4050 = vpack.c.b16 %v3633, %v3630
      %v4051 = vpack.c.b16 %v3637, %v3634
      %v4052 = vpack.c.b16 %v3638, %v3635
      %v4053 = vpack.c.b16 %v3639, %v3636
      %v4054 = vpack.c.b16 %v3643, %v3640
      %v4055 = vpack.c.b16 %v3644, %v3641
      %v4056 = vpack.c.b16 %v3645, %v3642
      %v4057 = vpack.c.b16 %v3649, %v3646
      %v4058 = vpack.c.b16 %v3650, %v3647
      %v4059 = vpack.c.b16 %v3651, %v3648
      %v4060 = vpack.c.b16 %v3655, %v3652
      %v4061 = vpack.c.b16 %v3656, %v3653
      %v4062 = vpack.c.b16 %v3657, %v3654
      %v4063 = vpack.c.b16 %v3661, %v3658
      %v4064 = vpack.c.b16 %v3662, %v3659
      %v4065 = vpack.c.b16 %v3663, %v3660
      %v4066 = vpack.c.b16 %v3667, %v3664
      %v4067 = vpack.c.b16 %v3668, %v3665
      %v4068 = vpack.c.b16 %v3669, %v3666
      %v4069 = vpack.c.b16 %v3673, %v3670
      %v4070 = vpack.c.b16 %v3674, %v3671
      %v4071 = vpack.c.b16 %v3675, %v3672
      %v4072 = vpack.c.b16 %v3679, %v3676
      %v4073 = vpack.c.b16 %v3680, %v3677
      %v4074 = vpack.c.b16 %v3681, %v3678
      %v4075 = vpack.c.b16 %v3685, %v3682
      %v4076 = vpack.c.b16 %v3686, %v3683
      %v4077 = vpack.c.b16 %v3687, %v3684
      %v4078 = vpack.c.b16 %v3691, %v3688
      %v4079 = vpack.c.b16 %v3692, %v3689
      %v4080 = vpack.c.b16 %v3693, %v3690
      %v4081 = vpack.c.b16 %v3697, %v3694
      %v4082 = vpack.c.b16 %v3698, %v3695
      %v4083 = vpack.c.b16 %v3699, %v3696
      %4468 = vmatprep.subr.bf16.mxu0 %v3701
      %4469 = vmatpush1.bf16.msra.mxu0 %v3700
      %4470 = vmatprep.subr.bf16.mxu0 %v3704
      %4471 = vmatpush1.bf16.msra.mxu0 %v3703
      %4472 = vmatprep.subr.bf16.mxu0 %v3707
      %4473 = vmatpush1.bf16.msra.mxu0 %v3706
      %4474 = vmatprep.subr.bf16.mxu0 %v3710
      %4475 = vmatpush1.bf16.msra.mxu0 %v3709
      %4476 = vmatprep.subr.bf16.mxu0 %v3713
      %4477 = vmatpush1.bf16.msra.mxu0 %v3712
      %4478 = vmatprep.subr.bf16.mxu0 %v3716
      %4479 = vmatpush1.bf16.msra.mxu0 %v3715
      %4480 = vmatprep.subr.bf16.mxu0 %v3719
      %4481 = vmatpush1.bf16.msra.mxu0 %v3718
      %4482 = vmatprep.subr.bf16.mxu0 %v3722
      %4483 = vmatpush1.bf16.msra.mxu0 %v3721
      %4484 = vmatprep.subr.bf16.mxu0 %v3725
      %4485 = vmatpush1.bf16.msra.mxu0 %v3724
      %4486 = vmatprep.subr.bf16.mxu0 %v3728
      %4487 = vmatpush1.bf16.msra.mxu0 %v3727
      %4488 = vmatprep.subr.bf16.mxu0 %v3731
      %4489 = vmatpush1.bf16.msra.mxu0 %v3730
      %4490 = vmatprep.subr.bf16.mxu0 %v3734
      %4491 = vmatpush1.bf16.msra.mxu0 %v3733
      %4492 = vmatprep.subr.bf16.mxu0 %v3737
      %4493 = vmatpush1.bf16.msra.mxu0 %v3736
      %4494 = vmatprep.subr.bf16.mxu0 %v3740
      %4495 = vmatpush1.bf16.msra.mxu0 %v3739
      %4496 = vmatprep.subr.bf16.mxu0 %v3743
      %4497 = vmatpush1.bf16.msra.mxu0 %v3742
      %4498 = vmatprep.subr.bf16.mxu0 %v3746
      %4499 = vmatpush1.bf16.msra.mxu0 %v3745
      %4500 = vmatprep.mubr.bf16.mxu0 %v1845
      %4501 = vmatmul.mubr.bf16.gmra.mrb[0].mxu0 %v1844
      %v4502 = vpop.f32.mrb[0].mxu0
      %v4503 = vadd.f32 0.0, %v4502
      %v4504 = vpop.f32.mrb[0].mxu0
      %v4505 = vadd.f32 0.0, %v4504
      %v4506 = vpop.f32.mrb[0].mxu0
      %v4507 = vadd.f32 0.0, %v4506
      %v4508 = vpop.f32.mrb[0].mxu0
      %v4509 = vadd.f32 0.0, %v4508
      %4510 = vmatprep.mubr.bf16.mxu0 %v1861
      %4511 = vmatmul.mubr.bf16.gmra.mrb[0].mxu0 %v1860
      %v4512 = vpop.f32.mrb[0].mxu0
      %v4513 = vadd.f32 0.0, %v4512
      %v4514 = vpop.f32.mrb[0].mxu0
      %v4515 = vadd.f32 0.0, %v4514
      %v4516 = vpop.f32.mrb[0].mxu0
      %v4517 = vadd.f32 0.0, %v4516
      %v4518 = vpop.f32.mrb[0].mxu0
      %v4519 = vadd.f32 0.0, %v4518
      %4520 = vmatprep.mubr.bf16.mxu0 %v1877
      %4521 = vmatmul.mubr.bf16.gmra.mrb[0].mxu0 %v1876
      %v4522 = vpop.f32.mrb[0].mxu0
      %v4523 = vadd.f32 0.0, %v4522
      %v4524 = vpop.f32.mrb[0].mxu0
      %v4525 = vadd.f32 0.0, %v4524
      %v4526 = vpop.f32.mrb[0].mxu0
      %v4527 = vadd.f32 0.0, %v4526
      %v4528 = vpop.f32.mrb[0].mxu0
      %v4529 = vadd.f32 0.0, %v4528
      %4530 = vmatprep.mubr.bf16.mxu0 %v1893
      %4531 = vmatmul.mubr.bf16.gmra.mrb[0].mxu0 %v1892
      %v4532 = vpop.f32.mrb[0].mxu0
      %v4533 = vadd.f32 0.0, %v4532
      %v4534 = vpop.f32.mrb[0].mxu0
      %v4535 = vadd.f32 0.0, %v4534
      %v4536 = vpop.f32.mrb[0].mxu0
      %v4537 = vadd.f32 0.0, %v4536
      %v4538 = vpop.f32.mrb[0].mxu0
      %v4539 = vadd.f32 0.0, %v4538
      %4540 = vmatprep.mubr.bf16.mxu0 %v1909
      %4541 = vmatmul.mubr.bf16.gmra.mrb[0].mxu0 %v1908
      %v4542 = vpop.f32.mrb[0].mxu0
      %v4543 = vadd.f32 0.0, %v4542
      %v4544 = vpop.f32.mrb[0].mxu0
      %v4545 = vadd.f32 0.0, %v4544
      %v4546 = vpop.f32.mrb[0].mxu0
      %v4547 = vadd.f32 0.0, %v4546
      %v4548 = vpop.f32.mrb[0].mxu0
      %v4549 = vadd.f32 0.0, %v4548
      %4550 = vmatprep.mubr.bf16.mxu0 %v1925
      %4551 = vmatmul.mubr.bf16.gmra.mrb[0].mxu0 %v1924
      %v4552 = vpop.f32.mrb[0].mxu0
      %v4553 = vadd.f32 0.0, %v4552
      %v4554 = vpop.f32.mrb[0].mxu0
      %v4555 = vadd.f32 0.0, %v4554
      %v4556 = vpop.f32.mrb[0].mxu0
      %v4557 = vadd.f32 0.0, %v4556
      %v4558 = vpop.f32.mrb[0].mxu0
      %v4559 = vadd.f32 0.0, %v4558
      %4560 = vmatprep.mubr.bf16.mxu0 %v1941
      %4561 = vmatmul.mubr.bf16.gmra.mrb[0].mxu0 %v1940
      %v4562 = vpop.f32.mrb[0].mxu0
      %v4563 = vadd.f32 0.0, %v4562
      %v4564 = vpop.f32.mrb[0].mxu0
      %v4565 = vadd.f32 0.0, %v4564
      %v4566 = vpop.f32.mrb[0].mxu0
      %v4567 = vadd.f32 0.0, %v4566
      %v4568 = vpop.f32.mrb[0].mxu0
      %v4569 = vadd.f32 0.0, %v4568
      %4570 = vmatprep.mubr.bf16.mxu0 %v1957
      %4571 = vmatmul.mubr.bf16.gmra.mrb[0].mxu0 %v1956
      %v4572 = vpop.f32.mrb[0].mxu0
      %v4573 = vadd.f32 0.0, %v4572
      %v4574 = vpop.f32.mrb[0].mxu0
      %v4575 = vadd.f32 0.0, %v4574
      %v4576 = vpop.f32.mrb[0].mxu0
      %v4577 = vadd.f32 0.0, %v4576
      %v4578 = vpop.f32.mrb[0].mxu0
      %v4579 = vadd.f32 0.0, %v4578
      %4580 = vmatprep.mubr.bf16.mxu0 %v1973
      %4581 = vmatmul.mubr.bf16.gmra.mrb[0].mxu0 %v1972
      %v4582 = vpop.f32.mrb[0].mxu0
      %v4583 = vadd.f32 0.0, %v4582
      %v4584 = vpop.f32.mrb[0].mxu0
      %v4585 = vadd.f32 0.0, %v4584
      %v4586 = vpop.f32.mrb[0].mxu0
      %v4587 = vadd.f32 0.0, %v4586
      %v4588 = vpop.f32.mrb[0].mxu0
      %v4589 = vadd.f32 0.0, %v4588
      %4590 = vmatprep.mubr.bf16.mxu0 %v1989
      %4591 = vmatmul.mubr.bf16.gmra.mrb[0].mxu0 %v1988
      %v4592 = vpop.f32.mrb[0].mxu0
      %v4593 = vadd.f32 0.0, %v4592
      %v4594 = vpop.f32.mrb[0].mxu0
      %v4595 = vadd.f32 0.0, %v4594
      %v4596 = vpop.f32.mrb[0].mxu0
      %v4597 = vadd.f32 0.0, %v4596
      %v4598 = vpop.f32.mrb[0].mxu0
      %v4599 = vadd.f32 0.0, %v4598
      %4600 = vmatprep.mubr.bf16.mxu0 %v2005
      %4601 = vmatmul.mubr.bf16.gmra.mrb[0].mxu0 %v2004
      %v4602 = vpop.f32.mrb[0].mxu0
      %v4603 = vadd.f32 0.0, %v4602
      %v4604 = vpop.f32.mrb[0].mxu0
      %v4605 = vadd.f32 0.0, %v4604
      %v4606 = vpop.f32.mrb[0].mxu0
      %v4607 = vadd.f32 0.0, %v4606
      %v4608 = vpop.f32.mrb[0].mxu0
      %v4609 = vadd.f32 0.0, %v4608
      %4610 = vmatprep.mubr.bf16.mxu0 %v2021
      %4611 = vmatmul.mubr.bf16.gmra.mrb[0].mxu0 %v2020
      %v4612 = vpop.f32.mrb[0].mxu0
      %v4613 = vadd.f32 0.0, %v4612
      %v4614 = vpop.f32.mrb[0].mxu0
      %v4615 = vadd.f32 0.0, %v4614
      %v4616 = vpop.f32.mrb[0].mxu0
      %v4617 = vadd.f32 0.0, %v4616
      %v4618 = vpop.f32.mrb[0].mxu0
      %v4619 = vadd.f32 0.0, %v4618
      %4620 = vmatprep.mubr.bf16.mxu0 %v2037
      %4621 = vmatmul.mubr.bf16.gmra.mrb[0].mxu0 %v2036
      %v4622 = vpop.f32.mrb[0].mxu0
      %v4623 = vadd.f32 0.0, %v4622
      %v4624 = vpop.f32.mrb[0].mxu0
      %v4625 = vadd.f32 0.0, %v4624
      %v4626 = vpop.f32.mrb[0].mxu0
      %v4627 = vadd.f32 0.0, %v4626
      %v4628 = vpop.f32.mrb[0].mxu0
      %v4629 = vadd.f32 0.0, %v4628
      %4630 = vmatprep.mubr.bf16.mxu0 %v2053
      %4631 = vmatmul.mubr.bf16.gmra.mrb[0].mxu0 %v2052
      %v4632 = vpop.f32.mrb[0].mxu0
      %v4633 = vadd.f32 0.0, %v4632
      %v4634 = vpop.f32.mrb[0].mxu0
      %v4635 = vadd.f32 0.0, %v4634
      %v4636 = vpop.f32.mrb[0].mxu0
      %v4637 = vadd.f32 0.0, %v4636
      %v4638 = vpop.f32.mrb[0].mxu0
      %v4639 = vadd.f32 0.0, %v4638
      %4640 = vmatprep.mubr.bf16.mxu0 %v2069
      %4641 = vmatmul.mubr.bf16.gmra.mrb[0].mxu0 %v2068
      %v4642 = vpop.f32.mrb[0].mxu0
      %v4643 = vadd.f32 0.0, %v4642
      %v4644 = vpop.f32.mrb[0].mxu0
      %v4645 = vadd.f32 0.0, %v4644
      %v4646 = vpop.f32.mrb[0].mxu0
      %v4647 = vadd.f32 0.0, %v4646
      %v4648 = vpop.f32.mrb[0].mxu0
      %v4649 = vadd.f32 0.0, %v4648
      %4650 = vmatprep.mubr.bf16.mxu0 %v2085
      %4651 = vmatmul.mubr.bf16.gmra.mrb[0].mxu0 %v2084
      %v4652 = vpop.f32.mrb[0].mxu0
      %v4653 = vadd.f32 0.0, %v4652
      %v4654 = vpop.f32.mrb[0].mxu0
      %v4655 = vadd.f32 0.0, %v4654
      %v4656 = vpop.f32.mrb[0].mxu0
      %v4657 = vadd.f32 0.0, %v4656
      %v4658 = vpop.f32.mrb[0].mxu0
      %v4659 = vadd.f32 0.0, %v4658
      %4660 = vmatprep.mubr.bf16.mxu0 %v2101
      %4661 = vmatmul.mubr.bf16.gmra.mrb[0].mxu0 %v2100
      %v4662 = vpop.f32.mrb[0].mxu0
      %v4663 = vadd.f32 0.0, %v4662
      %v4664 = vpop.f32.mrb[0].mxu0
      %v4665 = vadd.f32 0.0, %v4664
      %v4666 = vpop.f32.mrb[0].mxu0
      %v4667 = vadd.f32 0.0, %v4666
      %v4668 = vpop.f32.mrb[0].mxu0
      %v4669 = vadd.f32 0.0, %v4668
      %4670 = vmatprep.mubr.bf16.mxu0 %v2117
      %4671 = vmatmul.mubr.bf16.gmra.mrb[0].mxu0 %v2116
      %v4672 = vpop.f32.mrb[0].mxu0
      %v4673 = vadd.f32 0.0, %v4672
      %v4674 = vpop.f32.mrb[0].mxu0
      %v4675 = vadd.f32 0.0, %v4674
      %v4676 = vpop.f32.mrb[0].mxu0
      %v4677 = vadd.f32 0.0, %v4676
      %v4678 = vpop.f32.mrb[0].mxu0
      %v4679 = vadd.f32 0.0, %v4678
      %4680 = vdwg.mxu0
      %4681 = vmatprep.subr.bf16.mxu0 %v3749
      %4682 = vmatpush1.bf16.msra.mxu0 %v3748
      %4683 = vmatprep.subr.bf16.mxu0 %v3752
      %4684 = vmatpush1.bf16.msra.mxu0 %v3751
      %4685 = vmatprep.subr.bf16.mxu0 %v3755
      %4686 = vmatpush1.bf16.msra.mxu0 %v3754
      %4687 = vmatprep.subr.bf16.mxu0 %v3758
      %4688 = vmatpush1.bf16.msra.mxu0 %v3757
      %4689 = vmatprep.subr.bf16.mxu0 %v3761
      %4690 = vmatpush1.bf16.msra.mxu0 %v3760
      %4691 = vmatprep.subr.bf16.mxu0 %v3764
      %4692 = vmatpush1.bf16.msra.mxu0 %v3763
      %4693 = vmatprep.subr.bf16.mxu0 %v3767
      %4694 = vmatpush1.bf16.msra.mxu0 %v3766
      %4695 = vmatprep.subr.bf16.mxu0 %v3770
      %4696 = vmatpush1.bf16.msra.mxu0 %v3769
      %4697 = vmatprep.subr.bf16.mxu0 %v3773
      %4698 = vmatpush1.bf16.msra.mxu0 %v3772
      %4699 = vmatprep.subr.bf16.mxu0 %v3776
      %4700 = vmatpush1.bf16.msra.mxu0 %v3775
      %4701 = vmatprep.subr.bf16.mxu0 %v3779
      %4702 = vmatpush1.bf16.msra.mxu0 %v3778
      %4703 = vmatprep.subr.bf16.mxu0 %v3782
      %4704 = vmatpush1.bf16.msra.mxu0 %v3781
      %4705 = vmatprep.subr.bf16.mxu0 %v3785
      %4706 = vmatpush1.bf16.msra.mxu0 %v3784
      %4707 = vmatprep.subr.bf16.mxu0 %v3788
      %4708 = vmatpush1.bf16.msra.mxu0 %v3787
      %4709 = vmatprep.subr.bf16.mxu0 %v3791
      %4710 = vmatpush1.bf16.msra.mxu0 %v3790
      %4711 = vmatprep.subr.bf16.mxu0 %v3794
      %4712 = vmatpush1.bf16.msra.mxu0 %v3793
      %4713 = vmatprep.mubr.bf16.mxu0 %v1847
      %4714 = vmatmul.mubr.bf16.gmra.mrb[0].mxu0 %v1846
      %v4715 = vpop.f32.mrb[0].mxu0
      %v4716 = vadd.f32 %v4503, %v4715
      %v4717 = vpop.f32.mrb[0].mxu0
      %v4718 = vadd.f32 %v4505, %v4717
      %v4719 = vpop.f32.mrb[0].mxu0
      %v4720 = vadd.f32 %v4507, %v4719
      %v4721 = vpop.f32.mrb[0].mxu0
      %v4722 = vadd.f32 %v4509, %v4721
      %4723 = vmatprep.mubr.bf16.mxu0 %v1863
      %4724 = vmatmul.mubr.bf16.gmra.mrb[0].mxu0 %v1862
      %v4725 = vpop.f32.mrb[0].mxu0
      %v4726 = vadd.f32 %v4513, %v4725
      %v4727 = vpop.f32.mrb[0].mxu0
      %v4728 = vadd.f32 %v4515, %v4727
      %v4729 = vpop.f32.mrb[0].mxu0
      %v4730 = vadd.f32 %v4517, %v4729
      %v4731 = vpop.f32.mrb[0].mxu0
      %v4732 = vadd.f32 %v4519, %v4731
      %4733 = vmatprep.mubr.bf16.mxu0 %v1879
      %4734 = vmatmul.mubr.bf16.gmra.mrb[0].mxu0 %v1878
      %v4735 = vpop.f32.mrb[0].mxu0
      %v4736 = vadd.f32 %v4523, %v4735
      %v4737 = vpop.f32.mrb[0].mxu0
      %v4738 = vadd.f32 %v4525, %v4737
      %v4739 = vpop.f32.mrb[0].mxu0
      %v4740 = vadd.f32 %v4527, %v4739
      %v4741 = vpop.f32.mrb[0].mxu0
      %v4742 = vadd.f32 %v4529, %v4741
      %4743 = vmatprep.mubr.bf16.mxu0 %v1895
      %4744 = vmatmul.mubr.bf16.gmra.mrb[0].mxu0 %v1894
      %v4745 = vpop.f32.mrb[0].mxu0
      %v4746 = vadd.f32 %v4533, %v4745
      %v4747 = vpop.f32.mrb[0].mxu0
      %v4748 = vadd.f32 %v4535, %v4747
      %v4749 = vpop.f32.mrb[0].mxu0
      %v4750 = vadd.f32 %v4537, %v4749
      %v4751 = vpop.f32.mrb[0].mxu0
      %v4752 = vadd.f32 %v4539, %v4751
      %4753 = vmatprep.mubr.bf16.mxu0 %v1911
      %4754 = vmatmul.mubr.bf16.gmra.mrb[0].mxu0 %v1910
      %v4755 = vpop.f32.mrb[0].mxu0
      %v4756 = vadd.f32 %v4543, %v4755
      %v4757 = vpop.f32.mrb[0].mxu0
      %v4758 = vadd.f32 %v4545, %v4757
      %v4759 = vpop.f32.mrb[0].mxu0
      %v4760 = vadd.f32 %v4547, %v4759
      %v4761 = vpop.f32.mrb[0].mxu0
      %v4762 = vadd.f32 %v4549, %v4761
      %4763 = vmatprep.mubr.bf16.mxu0 %v1927
      %4764 = vmatmul.mubr.bf16.gmra.mrb[0].mxu0 %v1926
      %v4765 = vpop.f32.mrb[0].mxu0
      %v4766 = vadd.f32 %v4553, %v4765
      %v4767 = vpop.f32.mrb[0].mxu0
      %v4768 = vadd.f32 %v4555, %v4767
      %v4769 = vpop.f32.mrb[0].mxu0
      %v4770 = vadd.f32 %v4557, %v4769
      %v4771 = vpop.f32.mrb[0].mxu0
      %v4772 = vadd.f32 %v4559, %v4771
      %4773 = vmatprep.mubr.bf16.mxu0 %v1943
      %4774 = vmatmul.mubr.bf16.gmra.mrb[0].mxu0 %v1942
      %v4775 = vpop.f32.mrb[0].mxu0
      %v4776 = vadd.f32 %v4563, %v4775
      %v4777 = vpop.f32.mrb[0].mxu0
      %v4778 = vadd.f32 %v4565, %v4777
      %v4779 = vpop.f32.mrb[0].mxu0
      %v4780 = vadd.f32 %v4567, %v4779
      %v4781 = vpop.f32.mrb[0].mxu0
      %v4782 = vadd.f32 %v4569, %v4781
      %4783 = vmatprep.mubr.bf16.mxu0 %v1959
      %4784 = vmatmul.mubr.bf16.gmra.mrb[0].mxu0 %v1958
      %v4785 = vpop.f32.mrb[0].mxu0
      %v4786 = vadd.f32 %v4573, %v4785
      %v4787 = vpop.f32.mrb[0].mxu0
      %v4788 = vadd.f32 %v4575, %v4787
      %v4789 = vpop.f32.mrb[0].mxu0
      %v4790 = vadd.f32 %v4577, %v4789
      %v4791 = vpop.f32.mrb[0].mxu0
      %v4792 = vadd.f32 %v4579, %v4791
      %4793 = vmatprep.mubr.bf16.mxu0 %v1975
      %4794 = vmatmul.mubr.bf16.gmra.mrb[0].mxu0 %v1974
      %v4795 = vpop.f32.mrb[0].mxu0
      %v4796 = vadd.f32 %v4583, %v4795
      %v4797 = vpop.f32.mrb[0].mxu0
      %v4798 = vadd.f32 %v4585, %v4797
      %v4799 = vpop.f32.mrb[0].mxu0
      %v4800 = vadd.f32 %v4587, %v4799
      %v4801 = vpop.f32.mrb[0].mxu0
      %v4802 = vadd.f32 %v4589, %v4801
      %4803 = vmatprep.mubr.bf16.mxu0 %v1991
      %4804 = vmatmul.mubr.bf16.gmra.mrb[0].mxu0 %v1990
      %v4805 = vpop.f32.mrb[0].mxu0
      %v4806 = vadd.f32 %v4593, %v4805
      %v4807 = vpop.f32.mrb[0].mxu0
      %v4808 = vadd.f32 %v4595, %v4807
      %v4809 = vpop.f32.mrb[0].mxu0
      %v4810 = vadd.f32 %v4597, %v4809
      %v4811 = vpop.f32.mrb[0].mxu0
      %v4812 = vadd.f32 %v4599, %v4811
      %4813 = vmatprep.mubr.bf16.mxu0 %v2007
      %4814 = vmatmul.mubr.bf16.gmra.mrb[0].mxu0 %v2006
      %v4815 = vpop.f32.mrb[0].mxu0
      %v4816 = vadd.f32 %v4603, %v4815
      %v4817 = vpop.f32.mrb[0].mxu0
      %v4818 = vadd.f32 %v4605, %v4817
      %v4819 = vpop.f32.mrb[0].mxu0
      %v4820 = vadd.f32 %v4607, %v4819
      %v4821 = vpop.f32.mrb[0].mxu0
      %v4822 = vadd.f32 %v4609, %v4821
      %4823 = vmatprep.mubr.bf16.mxu0 %v2023
      %4824 = vmatmul.mubr.bf16.gmra.mrb[0].mxu0 %v2022
      %v4825 = vpop.f32.mrb[0].mxu0
      %v4826 = vadd.f32 %v4613, %v4825
      %v4827 = vpop.f32.mrb[0].mxu0
      %v4828 = vadd.f32 %v4615, %v4827
      %v4829 = vpop.f32.mrb[0].mxu0
      %v4830 = vadd.f32 %v4617, %v4829
      %v4831 = vpop.f32.mrb[0].mxu0
      %v4832 = vadd.f32 %v4619, %v4831
      %4833 = vmatprep.mubr.bf16.mxu0 %v2039
      %4834 = vmatmul.mubr.bf16.gmra.mrb[0].mxu0 %v2038
      %v4835 = vpop.f32.mrb[0].mxu0
      %v4836 = vadd.f32 %v4623, %v4835
      %v4837 = vpop.f32.mrb[0].mxu0
      %v4838 = vadd.f32 %v4625, %v4837
      %v4839 = vpop.f32.mrb[0].mxu0
      %v4840 = vadd.f32 %v4627, %v4839
      %v4841 = vpop.f32.mrb[0].mxu0
      %v4842 = vadd.f32 %v4629, %v4841
      %4843 = vmatprep.mubr.bf16.mxu0 %v2055
      %4844 = vmatmul.mubr.bf16.gmra.mrb[0].mxu0 %v2054
      %v4845 = vpop.f32.mrb[0].mxu0
      %v4846 = vadd.f32 %v4633, %v4845
      %v4847 = vpop.f32.mrb[0].mxu0
      %v4848 = vadd.f32 %v4635, %v4847
      %v4849 = vpop.f32.mrb[0].mxu0
      %v4850 = vadd.f32 %v4637, %v4849
      %v4851 = vpop.f32.mrb[0].mxu0
      %v4852 = vadd.f32 %v4639, %v4851
      %4853 = vmatprep.mubr.bf16.mxu0 %v2071
      %4854 = vmatmul.mubr.bf16.gmra.mrb[0].mxu0 %v2070
      %v4855 = vpop.f32.mrb[0].mxu0
      %v4856 = vadd.f32 %v4643, %v4855
      %v4857 = vpop.f32.mrb[0].mxu0
      %v4858 = vadd.f32 %v4645, %v4857
      %v4859 = vpop.f32.mrb[0].mxu0
      %v4860 = vadd.f32 %v4647, %v4859
      %v4861 = vpop.f32.mrb[0].mxu0
      %v4862 = vadd.f32 %v4649, %v4861
      %4863 = vmatprep.mubr.bf16.mxu0 %v2087
      %4864 = vmatmul.mubr.bf16.gmra.mrb[0].mxu0 %v2086
      %v4865 = vpop.f32.mrb[0].mxu0
      %v4866 = vadd.f32 %v4653, %v4865
      %v4867 = vpop.f32.mrb[0].mxu0
      %v4868 = vadd.f32 %v4655, %v4867
      %v4869 = vpop.f32.mrb[0].mxu0
      %v4870 = vadd.f32 %v4657, %v4869
      %v4871 = vpop.f32.mrb[0].mxu0
      %v4872 = vadd.f32 %v4659, %v4871
      %4873 = vmatprep.mubr.bf16.mxu0 %v2103
      %4874 = vmatmul.mubr.bf16.gmra.mrb[0].mxu0 %v2102
      %v4875 = vpop.f32.mrb[0].mxu0
      %v4876 = vadd.f32 %v4663, %v4875
      %v4877 = vpop.f32.mrb[0].mxu0
      %v4878 = vadd.f32 %v4665, %v4877
      %v4879 = vpop.f32.mrb[0].mxu0
      %v4880 = vadd.f32 %v4667, %v4879
      %v4881 = vpop.f32.mrb[0].mxu0
      %v4882 = vadd.f32 %v4669, %v4881
      %4883 = vmatprep.mubr.bf16.mxu0 %v2119
      %4884 = vmatmul.mubr.bf16.gmra.mrb[0].mxu0 %v2118
      %v4885 = vpop.f32.mrb[0].mxu0
      %v4886 = vadd.f32 %v4673, %v4885
      %v4887 = vpop.f32.mrb[0].mxu0
      %v4888 = vadd.f32 %v4675, %v4887
      %v4889 = vpop.f32.mrb[0].mxu0
      %v4890 = vadd.f32 %v4677, %v4889
      %v4891 = vpop.f32.mrb[0].mxu0
      %v4892 = vadd.f32 %v4679, %v4891
      %4893 = vdwg.mxu0
      %4894 = vmatprep.subr.bf16.mxu0 %v3797
      %4895 = vmatpush1.bf16.msra.mxu0 %v3796
      %4896 = vmatprep.subr.bf16.mxu0 %v3800
      %4897 = vmatpush1.bf16.msra.mxu0 %v3799
      %4898 = vmatprep.subr.bf16.mxu0 %v3803
      %4899 = vmatpush1.bf16.msra.mxu0 %v3802
      %4900 = vmatprep.subr.bf16.mxu0 %v3806
      %4901 = vmatpush1.bf16.msra.mxu0 %v3805
      %4902 = vmatprep.subr.bf16.mxu0 %v3809
      %4903 = vmatpush1.bf16.msra.mxu0 %v3808
      %4904 = vmatprep.subr.bf16.mxu0 %v3812
      %4905 = vmatpush1.bf16.msra.mxu0 %v3811
      %4906 = vmatprep.subr.bf16.mxu0 %v3815
      %4907 = vmatpush1.bf16.msra.mxu0 %v3814
      %4908 = vmatprep.subr.bf16.mxu0 %v3818
      %4909 = vmatpush1.bf16.msra.mxu0 %v3817
      %4910 = vmatprep.subr.bf16.mxu0 %v3821
      %4911 = vmatpush1.bf16.msra.mxu0 %v3820
      %4912 = vmatprep.subr.bf16.mxu0 %v3824
      %4913 = vmatpush1.bf16.msra.mxu0 %v3823
      %4914 = vmatprep.subr.bf16.mxu0 %v3827
      %4915 = vmatpush1.bf16.msra.mxu0 %v3826
      %4916 = vmatprep.subr.bf16.mxu0 %v3830
      %4917 = vmatpush1.bf16.msra.mxu0 %v3829
      %4918 = vmatprep.subr.bf16.mxu0 %v3833
      %4919 = vmatpush1.bf16.msra.mxu0 %v3832
      %4920 = vmatprep.subr.bf16.mxu0 %v3836
      %4921 = vmatpush1.bf16.msra.mxu0 %v3835
      %4922 = vmatprep.subr.bf16.mxu0 %v3839
      %4923 = vmatpush1.bf16.msra.mxu0 %v3838
      %4924 = vmatprep.subr.bf16.mxu0 %v3842
      %4925 = vmatpush1.bf16.msra.mxu0 %v3841
      %4926 = vmatprep.mubr.bf16.mxu0 %v1849
      %4927 = vmatmul.mubr.bf16.gmra.mrb[0].mxu0 %v1848
      %v4928 = vpop.f32.mrb[0].mxu0
      %v4929 = vadd.f32 %v4716, %v4928
      %v4930 = vpop.f32.mrb[0].mxu0
      %v4931 = vadd.f32 %v4718, %v4930
      %v4932 = vpop.f32.mrb[0].mxu0
      %v4933 = vadd.f32 %v4720, %v4932
      %v4934 = vpop.f32.mrb[0].mxu0
      %v4935 = vadd.f32 %v4722, %v4934
      %4936 = vmatprep.mubr.bf16.mxu0 %v1865
      %4937 = vmatmul.mubr.bf16.gmra.mrb[0].mxu0 %v1864
      %v4938 = vpop.f32.mrb[0].mxu0
      %v4939 = vadd.f32 %v4726, %v4938
      %v4940 = vpop.f32.mrb[0].mxu0
      %v4941 = vadd.f32 %v4728, %v4940
      %v4942 = vpop.f32.mrb[0].mxu0
      %v4943 = vadd.f32 %v4730, %v4942
      %v4944 = vpop.f32.mrb[0].mxu0
      %v4945 = vadd.f32 %v4732, %v4944
      %4946 = vmatprep.mubr.bf16.mxu0 %v1881
      %4947 = vmatmul.mubr.bf16.gmra.mrb[0].mxu0 %v1880
      %v4948 = vpop.f32.mrb[0].mxu0
      %v4949 = vadd.f32 %v4736, %v4948
      %v4950 = vpop.f32.mrb[0].mxu0
      %v4951 = vadd.f32 %v4738, %v4950
      %v4952 = vpop.f32.mrb[0].mxu0
      %v4953 = vadd.f32 %v4740, %v4952
      %v4954 = vpop.f32.mrb[0].mxu0
      %v4955 = vadd.f32 %v4742, %v4954
      %4956 = vmatprep.mubr.bf16.mxu0 %v1897
      %4957 = vmatmul.mubr.bf16.gmra.mrb[0].mxu0 %v1896
      %v4958 = vpop.f32.mrb[0].mxu0
      %v4959 = vadd.f32 %v4746, %v4958
      %v4960 = vpop.f32.mrb[0].mxu0
      %v4961 = vadd.f32 %v4748, %v4960
      %v4962 = vpop.f32.mrb[0].mxu0
      %v4963 = vadd.f32 %v4750, %v4962
      %v4964 = vpop.f32.mrb[0].mxu0
      %v4965 = vadd.f32 %v4752, %v4964
      %4966 = vmatprep.mubr.bf16.mxu0 %v1913
      %4967 = vmatmul.mubr.bf16.gmra.mrb[0].mxu0 %v1912
      %v4968 = vpop.f32.mrb[0].mxu0
      %v4969 = vadd.f32 %v4756, %v4968
      %v4970 = vpop.f32.mrb[0].mxu0
      %v4971 = vadd.f32 %v4758, %v4970
      %v4972 = vpop.f32.mrb[0].mxu0
      %v4973 = vadd.f32 %v4760, %v4972
      %v4974 = vpop.f32.mrb[0].mxu0
      %v4975 = vadd.f32 %v4762, %v4974
      %4976 = vmatprep.mubr.bf16.mxu0 %v1929
      %4977 = vmatmul.mubr.bf16.gmra.mrb[0].mxu0 %v1928
      %v4978 = vpop.f32.mrb[0].mxu0
      %v4979 = vadd.f32 %v4766, %v4978
      %v4980 = vpop.f32.mrb[0].mxu0
      %v4981 = vadd.f32 %v4768, %v4980
      %v4982 = vpop.f32.mrb[0].mxu0
      %v4983 = vadd.f32 %v4770, %v4982
      %v4984 = vpop.f32.mrb[0].mxu0
      %v4985 = vadd.f32 %v4772, %v4984
      %4986 = vmatprep.mubr.bf16.mxu0 %v1945
      %4987 = vmatmul.mubr.bf16.gmra.mrb[0].mxu0 %v1944
      %v4988 = vpop.f32.mrb[0].mxu0
      %v4989 = vadd.f32 %v4776, %v4988
      %v4990 = vpop.f32.mrb[0].mxu0
      %v4991 = vadd.f32 %v4778, %v4990
      %v4992 = vpop.f32.mrb[0].mxu0
      %v4993 = vadd.f32 %v4780, %v4992
      %v4994 = vpop.f32.mrb[0].mxu0
      %v4995 = vadd.f32 %v4782, %v4994
      %4996 = vmatprep.mubr.bf16.mxu0 %v1961
      %4997 = vmatmul.mubr.bf16.gmra.mrb[0].mxu0 %v1960
      %v4998 = vpop.f32.mrb[0].mxu0
      %v4999 = vadd.f32 %v4786, %v4998
      %v5000 = vpop.f32.mrb[0].mxu0
      %v5001 = vadd.f32 %v4788, %v5000
      %v5002 = vpop.f32.mrb[0].mxu0
      %v5003 = vadd.f32 %v4790, %v5002
      %v5004 = vpop.f32.mrb[0].mxu0
      %v5005 = vadd.f32 %v4792, %v5004
      %5006 = vmatprep.mubr.bf16.mxu0 %v1977
      %5007 = vmatmul.mubr.bf16.gmra.mrb[0].mxu0 %v1976
      %v5008 = vpop.f32.mrb[0].mxu0
      %v5009 = vadd.f32 %v4796, %v5008
      %v5010 = vpop.f32.mrb[0].mxu0
      %v5011 = vadd.f32 %v4798, %v5010
      %v5012 = vpop.f32.mrb[0].mxu0
      %v5013 = vadd.f32 %v4800, %v5012
      %v5014 = vpop.f32.mrb[0].mxu0
      %v5015 = vadd.f32 %v4802, %v5014
      %5016 = vmatprep.mubr.bf16.mxu0 %v1993
      %5017 = vmatmul.mubr.bf16.gmra.mrb[0].mxu0 %v1992
      %v5018 = vpop.f32.mrb[0].mxu0
      %v5019 = vadd.f32 %v4806, %v5018
      %v5020 = vpop.f32.mrb[0].mxu0
      %v5021 = vadd.f32 %v4808, %v5020
      %v5022 = vpop.f32.mrb[0].mxu0
      %v5023 = vadd.f32 %v4810, %v5022
      %v5024 = vpop.f32.mrb[0].mxu0
      %v5025 = vadd.f32 %v4812, %v5024
      %5026 = vmatprep.mubr.bf16.mxu0 %v2009
      %5027 = vmatmul.mubr.bf16.gmra.mrb[0].mxu0 %v2008
      %v5028 = vpop.f32.mrb[0].mxu0
      %v5029 = vadd.f32 %v4816, %v5028
      %v5030 = vpop.f32.mrb[0].mxu0
      %v5031 = vadd.f32 %v4818, %v5030
      %v5032 = vpop.f32.mrb[0].mxu0
      %v5033 = vadd.f32 %v4820, %v5032
      %v5034 = vpop.f32.mrb[0].mxu0
      %v5035 = vadd.f32 %v4822, %v5034
      %5036 = vmatprep.mubr.bf16.mxu0 %v2025
      %5037 = vmatmul.mubr.bf16.gmra.mrb[0].mxu0 %v2024
      %v5038 = vpop.f32.mrb[0].mxu0
      %v5039 = vadd.f32 %v4826, %v5038
      %v5040 = vpop.f32.mrb[0].mxu0
      %v5041 = vadd.f32 %v4828, %v5040
      %v5042 = vpop.f32.mrb[0].mxu0
      %v5043 = vadd.f32 %v4830, %v5042
      %v5044 = vpop.f32.mrb[0].mxu0
      %v5045 = vadd.f32 %v4832, %v5044
      %5046 = vmatprep.mubr.bf16.mxu0 %v2041
      %5047 = vmatmul.mubr.bf16.gmra.mrb[0].mxu0 %v2040
      %v5048 = vpop.f32.mrb[0].mxu0
      %v5049 = vadd.f32 %v4836, %v5048
      %v5050 = vpop.f32.mrb[0].mxu0
      %v5051 = vadd.f32 %v4838, %v5050
      %v5052 = vpop.f32.mrb[0].mxu0
      %v5053 = vadd.f32 %v4840, %v5052
      %v5054 = vpop.f32.mrb[0].mxu0
      %v5055 = vadd.f32 %v4842, %v5054
      %5056 = vmatprep.mubr.bf16.mxu0 %v2057
      %5057 = vmatmul.mubr.bf16.gmra.mrb[0].mxu0 %v2056
      %v5058 = vpop.f32.mrb[0].mxu0
      %v5059 = vadd.f32 %v4846, %v5058
      %v5060 = vpop.f32.mrb[0].mxu0
      %v5061 = vadd.f32 %v4848, %v5060
      %v5062 = vpop.f32.mrb[0].mxu0
      %v5063 = vadd.f32 %v4850, %v5062
      %v5064 = vpop.f32.mrb[0].mxu0
      %v5065 = vadd.f32 %v4852, %v5064
      %5066 = vmatprep.mubr.bf16.mxu0 %v2073
      %5067 = vmatmul.mubr.bf16.gmra.mrb[0].mxu0 %v2072
      %v5068 = vpop.f32.mrb[0].mxu0
      %v5069 = vadd.f32 %v4856, %v5068
      %v5070 = vpop.f32.mrb[0].mxu0
      %v5071 = vadd.f32 %v4858, %v5070
      %v5072 = vpop.f32.mrb[0].mxu0
      %v5073 = vadd.f32 %v4860, %v5072
      %v5074 = vpop.f32.mrb[0].mxu0
      %v5075 = vadd.f32 %v4862, %v5074
      %5076 = vmatprep.mubr.bf16.mxu0 %v2089
      %5077 = vmatmul.mubr.bf16.gmra.mrb[0].mxu0 %v2088
      %v5078 = vpop.f32.mrb[0].mxu0
      %v5079 = vadd.f32 %v4866, %v5078
      %v5080 = vpop.f32.mrb[0].mxu0
      %v5081 = vadd.f32 %v4868, %v5080
      %v5082 = vpop.f32.mrb[0].mxu0
      %v5083 = vadd.f32 %v4870, %v5082
      %v5084 = vpop.f32.mrb[0].mxu0
      %v5085 = vadd.f32 %v4872, %v5084
      %5086 = vmatprep.mubr.bf16.mxu0 %v2105
      %5087 = vmatmul.mubr.bf16.gmra.mrb[0].mxu0 %v2104
      %v5088 = vpop.f32.mrb[0].mxu0
      %v5089 = vadd.f32 %v4876, %v5088
      %v5090 = vpop.f32.mrb[0].mxu0
      %v5091 = vadd.f32 %v4878, %v5090
      %v5092 = vpop.f32.mrb[0].mxu0
      %v5093 = vadd.f32 %v4880, %v5092
      %v5094 = vpop.f32.mrb[0].mxu0
      %v5095 = vadd.f32 %v4882, %v5094
      %5096 = vmatprep.mubr.bf16.mxu0 %v2121
      %5097 = vmatmul.mubr.bf16.gmra.mrb[0].mxu0 %v2120
      %v5098 = vpop.f32.mrb[0].mxu0
      %v5099 = vadd.f32 %v4886, %v5098
      %v5100 = vpop.f32.mrb[0].mxu0
      %v5101 = vadd.f32 %v4888, %v5100
      %v5102 = vpop.f32.mrb[0].mxu0
      %v5103 = vadd.f32 %v4890, %v5102
      %v5104 = vpop.f32.mrb[0].mxu0
      %v5105 = vadd.f32 %v4892, %v5104
      %5106 = vdwg.mxu0
      %5107 = vmatprep.subr.bf16.mxu0 %v3845
      %5108 = vmatpush1.bf16.msra.mxu0 %v3844
      %5109 = vmatprep.subr.bf16.mxu0 %v3848
      %5110 = vmatpush1.bf16.msra.mxu0 %v3847
      %5111 = vmatprep.subr.bf16.mxu0 %v3851
      %5112 = vmatpush1.bf16.msra.mxu0 %v3850
      %5113 = vmatprep.subr.bf16.mxu0 %v3854
      %5114 = vmatpush1.bf16.msra.mxu0 %v3853
      %5115 = vmatprep.subr.bf16.mxu0 %v3857
      %5116 = vmatpush1.bf16.msra.mxu0 %v3856
      %5117 = vmatprep.subr.bf16.mxu0 %v3860
      %5118 = vmatpush1.bf16.msra.mxu0 %v3859
      %5119 = vmatprep.subr.bf16.mxu0 %v3863
      %5120 = vmatpush1.bf16.msra.mxu0 %v3862
      %5121 = vmatprep.subr.bf16.mxu0 %v3866
      %5122 = vmatpush1.bf16.msra.mxu0 %v3865
      %5123 = vmatprep.subr.bf16.mxu0 %v3869
      %5124 = vmatpush1.bf16.msra.mxu0 %v3868
      %5125 = vmatprep.subr.bf16.mxu0 %v3872
      %5126 = vmatpush1.bf16.msra.mxu0 %v3871
      %5127 = vmatprep.subr.bf16.mxu0 %v3875
      %5128 = vmatpush1.bf16.msra.mxu0 %v3874
      %5129 = vmatprep.subr.bf16.mxu0 %v3878
      %5130 = vmatpush1.bf16.msra.mxu0 %v3877
      %5131 = vmatprep.subr.bf16.mxu0 %v3881
      %5132 = vmatpush1.bf16.msra.mxu0 %v3880
      %5133 = vmatprep.subr.bf16.mxu0 %v3884
      %5134 = vmatpush1.bf16.msra.mxu0 %v3883
      %5135 = vmatprep.subr.bf16.mxu0 %v3887
      %5136 = vmatpush1.bf16.msra.mxu0 %v3886
      %5137 = vmatprep.subr.bf16.mxu0 %v3890
      %5138 = vmatpush1.bf16.msra.mxu0 %v3889
      %5139 = vmatprep.mubr.bf16.mxu0 %v1851
      %5140 = vmatmul.mubr.bf16.gmra.mrb[0].mxu0 %v1850
      %v5141 = vpop.f32.mrb[0].mxu0
      %v5142 = vadd.f32 %v4929, %v5141
      %v5143 = vpop.f32.mrb[0].mxu0
      %v5144 = vadd.f32 %v4931, %v5143
      %v5145 = vpop.f32.mrb[0].mxu0
      %v5146 = vadd.f32 %v4933, %v5145
      %v5147 = vpop.f32.mrb[0].mxu0
      %v5148 = vadd.f32 %v4935, %v5147
      %5149 = vmatprep.mubr.bf16.mxu0 %v1867
      %5150 = vmatmul.mubr.bf16.gmra.mrb[0].mxu0 %v1866
      %v5151 = vpop.f32.mrb[0].mxu0
      %v5152 = vadd.f32 %v4939, %v5151
      %v5153 = vpop.f32.mrb[0].mxu0
      %v5154 = vadd.f32 %v4941, %v5153
      %v5155 = vpop.f32.mrb[0].mxu0
      %v5156 = vadd.f32 %v4943, %v5155
      %v5157 = vpop.f32.mrb[0].mxu0
      %v5158 = vadd.f32 %v4945, %v5157
      %5159 = vmatprep.mubr.bf16.mxu0 %v1883
      %5160 = vmatmul.mubr.bf16.gmra.mrb[0].mxu0 %v1882
      %v5161 = vpop.f32.mrb[0].mxu0
      %v5162 = vadd.f32 %v4949, %v5161
      %v5163 = vpop.f32.mrb[0].mxu0
      %v5164 = vadd.f32 %v4951, %v5163
      %v5165 = vpop.f32.mrb[0].mxu0
      %v5166 = vadd.f32 %v4953, %v5165
      %v5167 = vpop.f32.mrb[0].mxu0
      %v5168 = vadd.f32 %v4955, %v5167
      %5169 = vmatprep.mubr.bf16.mxu0 %v1899
      %5170 = vmatmul.mubr.bf16.gmra.mrb[0].mxu0 %v1898
      %v5171 = vpop.f32.mrb[0].mxu0
      %v5172 = vadd.f32 %v4959, %v5171
      %v5173 = vpop.f32.mrb[0].mxu0
      %v5174 = vadd.f32 %v4961, %v5173
      %v5175 = vpop.f32.mrb[0].mxu0
      %v5176 = vadd.f32 %v4963, %v5175
      %v5177 = vpop.f32.mrb[0].mxu0
      %v5178 = vadd.f32 %v4965, %v5177
      %5179 = vmatprep.mubr.bf16.mxu0 %v1915
      %5180 = vmatmul.mubr.bf16.gmra.mrb[0].mxu0 %v1914
      %v5181 = vpop.f32.mrb[0].mxu0
      %v5182 = vadd.f32 %v4969, %v5181
      %v5183 = vpop.f32.mrb[0].mxu0
      %v5184 = vadd.f32 %v4971, %v5183
      %v5185 = vpop.f32.mrb[0].mxu0
      %v5186 = vadd.f32 %v4973, %v5185
      %v5187 = vpop.f32.mrb[0].mxu0
      %v5188 = vadd.f32 %v4975, %v5187
      %5189 = vmatprep.mubr.bf16.mxu0 %v1931
      %5190 = vmatmul.mubr.bf16.gmra.mrb[0].mxu0 %v1930
      %v5191 = vpop.f32.mrb[0].mxu0
      %v5192 = vadd.f32 %v4979, %v5191
      %v5193 = vpop.f32.mrb[0].mxu0
      %v5194 = vadd.f32 %v4981, %v5193
      %v5195 = vpop.f32.mrb[0].mxu0
      %v5196 = vadd.f32 %v4983, %v5195
      %v5197 = vpop.f32.mrb[0].mxu0
      %v5198 = vadd.f32 %v4985, %v5197
      %5199 = vmatprep.mubr.bf16.mxu0 %v1947
      %5200 = vmatmul.mubr.bf16.gmra.mrb[0].mxu0 %v1946
      %v5201 = vpop.f32.mrb[0].mxu0
      %v5202 = vadd.f32 %v4989, %v5201
      %v5203 = vpop.f32.mrb[0].mxu0
      %v5204 = vadd.f32 %v4991, %v5203
      %v5205 = vpop.f32.mrb[0].mxu0
      %v5206 = vadd.f32 %v4993, %v5205
      %v5207 = vpop.f32.mrb[0].mxu0
      %v5208 = vadd.f32 %v4995, %v5207
      %5209 = vmatprep.mubr.bf16.mxu0 %v1963
      %5210 = vmatmul.mubr.bf16.gmra.mrb[0].mxu0 %v1962
      %v5211 = vpop.f32.mrb[0].mxu0
      %v5212 = vadd.f32 %v4999, %v5211
      %v5213 = vpop.f32.mrb[0].mxu0
      %v5214 = vadd.f32 %v5001, %v5213
      %v5215 = vpop.f32.mrb[0].mxu0
      %v5216 = vadd.f32 %v5003, %v5215
      %v5217 = vpop.f32.mrb[0].mxu0
      %v5218 = vadd.f32 %v5005, %v5217
      %5219 = vmatprep.mubr.bf16.mxu0 %v1979
      %5220 = vmatmul.mubr.bf16.gmra.mrb[0].mxu0 %v1978
      %v5221 = vpop.f32.mrb[0].mxu0
      %v5222 = vadd.f32 %v5009, %v5221
      %v5223 = vpop.f32.mrb[0].mxu0
      %v5224 = vadd.f32 %v5011, %v5223
      %v5225 = vpop.f32.mrb[0].mxu0
      %v5226 = vadd.f32 %v5013, %v5225
      %v5227 = vpop.f32.mrb[0].mxu0
      %v5228 = vadd.f32 %v5015, %v5227
      %5229 = vmatprep.mubr.bf16.mxu0 %v1995
      %5230 = vmatmul.mubr.bf16.gmra.mrb[0].mxu0 %v1994
      %v5231 = vpop.f32.mrb[0].mxu0
      %v5232 = vadd.f32 %v5019, %v5231
      %v5233 = vpop.f32.mrb[0].mxu0
      %v5234 = vadd.f32 %v5021, %v5233
      %v5235 = vpop.f32.mrb[0].mxu0
      %v5236 = vadd.f32 %v5023, %v5235
      %v5237 = vpop.f32.mrb[0].mxu0
      %v5238 = vadd.f32 %v5025, %v5237
      %5239 = vmatprep.mubr.bf16.mxu0 %v2011
      %5240 = vmatmul.mubr.bf16.gmra.mrb[0].mxu0 %v2010
      %v5241 = vpop.f32.mrb[0].mxu0
      %v5242 = vadd.f32 %v5029, %v5241
      %v5243 = vpop.f32.mrb[0].mxu0
      %v5244 = vadd.f32 %v5031, %v5243
      %v5245 = vpop.f32.mrb[0].mxu0
      %v5246 = vadd.f32 %v5033, %v5245
      %v5247 = vpop.f32.mrb[0].mxu0
      %v5248 = vadd.f32 %v5035, %v5247
      %5249 = vmatprep.mubr.bf16.mxu0 %v2027
      %5250 = vmatmul.mubr.bf16.gmra.mrb[0].mxu0 %v2026
      %v5251 = vpop.f32.mrb[0].mxu0
      %v5252 = vadd.f32 %v5039, %v5251
      %v5253 = vpop.f32.mrb[0].mxu0
      %v5254 = vadd.f32 %v5041, %v5253
      %v5255 = vpop.f32.mrb[0].mxu0
      %v5256 = vadd.f32 %v5043, %v5255
      %v5257 = vpop.f32.mrb[0].mxu0
      %v5258 = vadd.f32 %v5045, %v5257
      %5259 = vmatprep.mubr.bf16.mxu0 %v2043
      %5260 = vmatmul.mubr.bf16.gmra.mrb[0].mxu0 %v2042
      %v5261 = vpop.f32.mrb[0].mxu0
      %v5262 = vadd.f32 %v5049, %v5261
      %v5263 = vpop.f32.mrb[0].mxu0
      %v5264 = vadd.f32 %v5051, %v5263
      %v5265 = vpop.f32.mrb[0].mxu0
      %v5266 = vadd.f32 %v5053, %v5265
      %v5267 = vpop.f32.mrb[0].mxu0
      %v5268 = vadd.f32 %v5055, %v5267
      %5269 = vmatprep.mubr.bf16.mxu0 %v2059
      %5270 = vmatmul.mubr.bf16.gmra.mrb[0].mxu0 %v2058
      %v5271 = vpop.f32.mrb[0].mxu0
      %v5272 = vadd.f32 %v5059, %v5271
      %v5273 = vpop.f32.mrb[0].mxu0
      %v5274 = vadd.f32 %v5061, %v5273
      %v5275 = vpop.f32.mrb[0].mxu0
      %v5276 = vadd.f32 %v5063, %v5275
      %v5277 = vpop.f32.mrb[0].mxu0
      %v5278 = vadd.f32 %v5065, %v5277
      %5279 = vmatprep.mubr.bf16.mxu0 %v2075
      %5280 = vmatmul.mubr.bf16.gmra.mrb[0].mxu0 %v2074
      %v5281 = vpop.f32.mrb[0].mxu0
      %v5282 = vadd.f32 %v5069, %v5281
      %v5283 = vpop.f32.mrb[0].mxu0
      %v5284 = vadd.f32 %v5071, %v5283
      %v5285 = vpop.f32.mrb[0].mxu0
      %v5286 = vadd.f32 %v5073, %v5285
      %v5287 = vpop.f32.mrb[0].mxu0
      %v5288 = vadd.f32 %v5075, %v5287
      %5289 = vmatprep.mubr.bf16.mxu0 %v2091
      %5290 = vmatmul.mubr.bf16.gmra.mrb[0].mxu0 %v2090
      %v5291 = vpop.f32.mrb[0].mxu0
      %v5292 = vadd.f32 %v5079, %v5291
      %v5293 = vpop.f32.mrb[0].mxu0
      %v5294 = vadd.f32 %v5081, %v5293
      %v5295 = vpop.f32.mrb[0].mxu0
      %v5296 = vadd.f32 %v5083, %v5295
      %v5297 = vpop.f32.mrb[0].mxu0
      %v5298 = vadd.f32 %v5085, %v5297
      %5299 = vmatprep.mubr.bf16.mxu0 %v2107
      %5300 = vmatmul.mubr.bf16.gmra.mrb[0].mxu0 %v2106
      %v5301 = vpop.f32.mrb[0].mxu0
      %v5302 = vadd.f32 %v5089, %v5301
      %v5303 = vpop.f32.mrb[0].mxu0
      %v5304 = vadd.f32 %v5091, %v5303
      %v5305 = vpop.f32.mrb[0].mxu0
      %v5306 = vadd.f32 %v5093, %v5305
      %v5307 = vpop.f32.mrb[0].mxu0
      %v5308 = vadd.f32 %v5095, %v5307
      %5309 = vmatprep.mubr.bf16.mxu0 %v2123
      %5310 = vmatmul.mubr.bf16.gmra.mrb[0].mxu0 %v2122
      %v5311 = vpop.f32.mrb[0].mxu0
      %v5312 = vadd.f32 %v5099, %v5311
      %v5313 = vpop.f32.mrb[0].mxu0
      %v5314 = vadd.f32 %v5101, %v5313
      %v5315 = vpop.f32.mrb[0].mxu0
      %v5316 = vadd.f32 %v5103, %v5315
      %v5317 = vpop.f32.mrb[0].mxu0
      %v5318 = vadd.f32 %v5105, %v5317
      %5319 = vdwg.mxu0
      %5320 = vmatprep.subr.bf16.mxu0 %v3893
      %5321 = vmatpush1.bf16.msra.mxu0 %v3892
      %5322 = vmatprep.subr.bf16.mxu0 %v3896
      %5323 = vmatpush1.bf16.msra.mxu0 %v3895
      %5324 = vmatprep.subr.bf16.mxu0 %v3899
      %5325 = vmatpush1.bf16.msra.mxu0 %v3898
      %5326 = vmatprep.subr.bf16.mxu0 %v3902
      %5327 = vmatpush1.bf16.msra.mxu0 %v3901
      %5328 = vmatprep.subr.bf16.mxu0 %v3905
      %5329 = vmatpush1.bf16.msra.mxu0 %v3904
      %5330 = vmatprep.subr.bf16.mxu0 %v3908
      %5331 = vmatpush1.bf16.msra.mxu0 %v3907
      %5332 = vmatprep.subr.bf16.mxu0 %v3911
      %5333 = vmatpush1.bf16.msra.mxu0 %v3910
      %5334 = vmatprep.subr.bf16.mxu0 %v3914
      %5335 = vmatpush1.bf16.msra.mxu0 %v3913
      %5336 = vmatprep.subr.bf16.mxu0 %v3917
      %5337 = vmatpush1.bf16.msra.mxu0 %v3916
      %5338 = vmatprep.subr.bf16.mxu0 %v3920
      %5339 = vmatpush1.bf16.msra.mxu0 %v3919
      %5340 = vmatprep.subr.bf16.mxu0 %v3923
      %5341 = vmatpush1.bf16.msra.mxu0 %v3922
      %5342 = vmatprep.subr.bf16.mxu0 %v3926
      %5343 = vmatpush1.bf16.msra.mxu0 %v3925
      %5344 = vmatprep.subr.bf16.mxu0 %v3929
      %5345 = vmatpush1.bf16.msra.mxu0 %v3928
      %5346 = vmatprep.subr.bf16.mxu0 %v3932
      %5347 = vmatpush1.bf16.msra.mxu0 %v3931
      %5348 = vmatprep.subr.bf16.mxu0 %v3935
      %5349 = vmatpush1.bf16.msra.mxu0 %v3934
      %5350 = vmatprep.subr.bf16.mxu0 %v3938
      %5351 = vmatpush1.bf16.msra.mxu0 %v3937
      %5352 = vmatprep.mubr.bf16.mxu0 %v1853
      %5353 = vmatmul.mubr.bf16.gmra.mrb[0].mxu0 %v1852
      %v5354 = vpop.f32.mrb[0].mxu0
      %v5355 = vadd.f32 %v5142, %v5354
      %v5356 = vpop.f32.mrb[0].mxu0
      %v5357 = vadd.f32 %v5144, %v5356
      %v5358 = vpop.f32.mrb[0].mxu0
      %v5359 = vadd.f32 %v5146, %v5358
      %v5360 = vpop.f32.mrb[0].mxu0
      %v5361 = vadd.f32 %v5148, %v5360
      %5362 = vmatprep.mubr.bf16.mxu0 %v1869
      %5363 = vmatmul.mubr.bf16.gmra.mrb[0].mxu0 %v1868
      %v5364 = vpop.f32.mrb[0].mxu0
      %v5365 = vadd.f32 %v5152, %v5364
      %v5366 = vpop.f32.mrb[0].mxu0
      %v5367 = vadd.f32 %v5154, %v5366
      %v5368 = vpop.f32.mrb[0].mxu0
      %v5369 = vadd.f32 %v5156, %v5368
      %v5370 = vpop.f32.mrb[0].mxu0
      %v5371 = vadd.f32 %v5158, %v5370
      %5372 = vmatprep.mubr.bf16.mxu0 %v1885
      %5373 = vmatmul.mubr.bf16.gmra.mrb[0].mxu0 %v1884
      %v5374 = vpop.f32.mrb[0].mxu0
      %v5375 = vadd.f32 %v5162, %v5374
      %v5376 = vpop.f32.mrb[0].mxu0
      %v5377 = vadd.f32 %v5164, %v5376
      %v5378 = vpop.f32.mrb[0].mxu0
      %v5379 = vadd.f32 %v5166, %v5378
      %v5380 = vpop.f32.mrb[0].mxu0
      %v5381 = vadd.f32 %v5168, %v5380
      %5382 = vmatprep.mubr.bf16.mxu0 %v1901
      %5383 = vmatmul.mubr.bf16.gmra.mrb[0].mxu0 %v1900
      %v5384 = vpop.f32.mrb[0].mxu0
      %v5385 = vadd.f32 %v5172, %v5384
      %v5386 = vpop.f32.mrb[0].mxu0
      %v5387 = vadd.f32 %v5174, %v5386
      %v5388 = vpop.f32.mrb[0].mxu0
      %v5389 = vadd.f32 %v5176, %v5388
      %v5390 = vpop.f32.mrb[0].mxu0
      %v5391 = vadd.f32 %v5178, %v5390
      %5392 = vmatprep.mubr.bf16.mxu0 %v1917
      %5393 = vmatmul.mubr.bf16.gmra.mrb[0].mxu0 %v1916
      %v5394 = vpop.f32.mrb[0].mxu0
      %v5395 = vadd.f32 %v5182, %v5394
      %v5396 = vpop.f32.mrb[0].mxu0
      %v5397 = vadd.f32 %v5184, %v5396
      %v5398 = vpop.f32.mrb[0].mxu0
      %v5399 = vadd.f32 %v5186, %v5398
      %v5400 = vpop.f32.mrb[0].mxu0
      %v5401 = vadd.f32 %v5188, %v5400
      %5402 = vmatprep.mubr.bf16.mxu0 %v1933
      %5403 = vmatmul.mubr.bf16.gmra.mrb[0].mxu0 %v1932
      %v5404 = vpop.f32.mrb[0].mxu0
      %v5405 = vadd.f32 %v5192, %v5404
      %v5406 = vpop.f32.mrb[0].mxu0
      %v5407 = vadd.f32 %v5194, %v5406
      %v5408 = vpop.f32.mrb[0].mxu0
      %v5409 = vadd.f32 %v5196, %v5408
      %v5410 = vpop.f32.mrb[0].mxu0
      %v5411 = vadd.f32 %v5198, %v5410
      %5412 = vmatprep.mubr.bf16.mxu0 %v1949
      %5413 = vmatmul.mubr.bf16.gmra.mrb[0].mxu0 %v1948
      %v5414 = vpop.f32.mrb[0].mxu0
      %v5415 = vadd.f32 %v5202, %v5414
      %v5416 = vpop.f32.mrb[0].mxu0
      %v5417 = vadd.f32 %v5204, %v5416
      %v5418 = vpop.f32.mrb[0].mxu0
      %v5419 = vadd.f32 %v5206, %v5418
      %v5420 = vpop.f32.mrb[0].mxu0
      %v5421 = vadd.f32 %v5208, %v5420
      %5422 = vmatprep.mubr.bf16.mxu0 %v1965
      %5423 = vmatmul.mubr.bf16.gmra.mrb[0].mxu0 %v1964
      %v5424 = vpop.f32.mrb[0].mxu0
      %v5425 = vadd.f32 %v5212, %v5424
      %v5426 = vpop.f32.mrb[0].mxu0
      %v5427 = vadd.f32 %v5214, %v5426
      %v5428 = vpop.f32.mrb[0].mxu0
      %v5429 = vadd.f32 %v5216, %v5428
      %v5430 = vpop.f32.mrb[0].mxu0
      %v5431 = vadd.f32 %v5218, %v5430
      %5432 = vmatprep.mubr.bf16.mxu0 %v1981
      %5433 = vmatmul.mubr.bf16.gmra.mrb[0].mxu0 %v1980
      %v5434 = vpop.f32.mrb[0].mxu0
      %v5435 = vadd.f32 %v5222, %v5434
      %v5436 = vpop.f32.mrb[0].mxu0
      %v5437 = vadd.f32 %v5224, %v5436
      %v5438 = vpop.f32.mrb[0].mxu0
      %v5439 = vadd.f32 %v5226, %v5438
      %v5440 = vpop.f32.mrb[0].mxu0
      %v5441 = vadd.f32 %v5228, %v5440
      %5442 = vmatprep.mubr.bf16.mxu0 %v1997
      %5443 = vmatmul.mubr.bf16.gmra.mrb[0].mxu0 %v1996
      %v5444 = vpop.f32.mrb[0].mxu0
      %v5445 = vadd.f32 %v5232, %v5444
      %v5446 = vpop.f32.mrb[0].mxu0
      %v5447 = vadd.f32 %v5234, %v5446
      %v5448 = vpop.f32.mrb[0].mxu0
      %v5449 = vadd.f32 %v5236, %v5448
      %v5450 = vpop.f32.mrb[0].mxu0
      %v5451 = vadd.f32 %v5238, %v5450
      %5452 = vmatprep.mubr.bf16.mxu0 %v2013
      %5453 = vmatmul.mubr.bf16.gmra.mrb[0].mxu0 %v2012
      %v5454 = vpop.f32.mrb[0].mxu0
      %v5455 = vadd.f32 %v5242, %v5454
      %v5456 = vpop.f32.mrb[0].mxu0
      %v5457 = vadd.f32 %v5244, %v5456
      %v5458 = vpop.f32.mrb[0].mxu0
      %v5459 = vadd.f32 %v5246, %v5458
      %v5460 = vpop.f32.mrb[0].mxu0
      %v5461 = vadd.f32 %v5248, %v5460
      %5462 = vmatprep.mubr.bf16.mxu0 %v2029
      %5463 = vmatmul.mubr.bf16.gmra.mrb[0].mxu0 %v2028
      %v5464 = vpop.f32.mrb[0].mxu0
      %v5465 = vadd.f32 %v5252, %v5464
      %v5466 = vpop.f32.mrb[0].mxu0
      %v5467 = vadd.f32 %v5254, %v5466
      %v5468 = vpop.f32.mrb[0].mxu0
      %v5469 = vadd.f32 %v5256, %v5468
      %v5470 = vpop.f32.mrb[0].mxu0
      %v5471 = vadd.f32 %v5258, %v5470
      %5472 = vmatprep.mubr.bf16.mxu0 %v2045
      %5473 = vmatmul.mubr.bf16.gmra.mrb[0].mxu0 %v2044
      %v5474 = vpop.f32.mrb[0].mxu0
      %v5475 = vadd.f32 %v5262, %v5474
      %v5476 = vpop.f32.mrb[0].mxu0
      %v5477 = vadd.f32 %v5264, %v5476
      %v5478 = vpop.f32.mrb[0].mxu0
      %v5479 = vadd.f32 %v5266, %v5478
      %v5480 = vpop.f32.mrb[0].mxu0
      %v5481 = vadd.f32 %v5268, %v5480
      %5482 = vmatprep.mubr.bf16.mxu0 %v2061
      %5483 = vmatmul.mubr.bf16.gmra.mrb[0].mxu0 %v2060
      %v5484 = vpop.f32.mrb[0].mxu0
      %v5485 = vadd.f32 %v5272, %v5484
      %v5486 = vpop.f32.mrb[0].mxu0
      %v5487 = vadd.f32 %v5274, %v5486
      %v5488 = vpop.f32.mrb[0].mxu0
      %v5489 = vadd.f32 %v5276, %v5488
      %v5490 = vpop.f32.mrb[0].mxu0
      %v5491 = vadd.f32 %v5278, %v5490
      %5492 = vmatprep.mubr.bf16.mxu0 %v2077
      %5493 = vmatmul.mubr.bf16.gmra.mrb[0].mxu0 %v2076
      %v5494 = vpop.f32.mrb[0].mxu0
      %v5495 = vadd.f32 %v5282, %v5494
      %v5496 = vpop.f32.mrb[0].mxu0
      %v5497 = vadd.f32 %v5284, %v5496
      %v5498 = vpop.f32.mrb[0].mxu0
      %v5499 = vadd.f32 %v5286, %v5498
      %v5500 = vpop.f32.mrb[0].mxu0
      %v5501 = vadd.f32 %v5288, %v5500
      %5502 = vmatprep.mubr.bf16.mxu0 %v2093
      %5503 = vmatmul.mubr.bf16.gmra.mrb[0].mxu0 %v2092
      %v5504 = vpop.f32.mrb[0].mxu0
      %v5505 = vadd.f32 %v5292, %v5504
      %v5506 = vpop.f32.mrb[0].mxu0
      %v5507 = vadd.f32 %v5294, %v5506
      %v5508 = vpop.f32.mrb[0].mxu0
      %v5509 = vadd.f32 %v5296, %v5508
      %v5510 = vpop.f32.mrb[0].mxu0
      %v5511 = vadd.f32 %v5298, %v5510
      %5512 = vmatprep.mubr.bf16.mxu0 %v2109
      %5513 = vmatmul.mubr.bf16.gmra.mrb[0].mxu0 %v2108
      %v5514 = vpop.f32.mrb[0].mxu0
      %v5515 = vadd.f32 %v5302, %v5514
      %v5516 = vpop.f32.mrb[0].mxu0
      %v5517 = vadd.f32 %v5304, %v5516
      %v5518 = vpop.f32.mrb[0].mxu0
      %v5519 = vadd.f32 %v5306, %v5518
      %v5520 = vpop.f32.mrb[0].mxu0
      %v5521 = vadd.f32 %v5308, %v5520
      %5522 = vmatprep.mubr.bf16.mxu0 %v2125
      %5523 = vmatmul.mubr.bf16.gmra.mrb[0].mxu0 %v2124
      %v5524 = vpop.f32.mrb[0].mxu0
      %v5525 = vadd.f32 %v5312, %v5524
      %v5526 = vpop.f32.mrb[0].mxu0
      %v5527 = vadd.f32 %v5314, %v5526
      %v5528 = vpop.f32.mrb[0].mxu0
      %v5529 = vadd.f32 %v5316, %v5528
      %v5530 = vpop.f32.mrb[0].mxu0
      %v5531 = vadd.f32 %v5318, %v5530
      %5532 = vdwg.mxu0
      %5533 = vmatprep.subr.bf16.mxu0 %v3941
      %5534 = vmatpush1.bf16.msra.mxu0 %v3940
      %5535 = vmatprep.subr.bf16.mxu0 %v3944
      %5536 = vmatpush1.bf16.msra.mxu0 %v3943
      %5537 = vmatprep.subr.bf16.mxu0 %v3947
      %5538 = vmatpush1.bf16.msra.mxu0 %v3946
      %5539 = vmatprep.subr.bf16.mxu0 %v3950
      %5540 = vmatpush1.bf16.msra.mxu0 %v3949
      %5541 = vmatprep.subr.bf16.mxu0 %v3953
      %5542 = vmatpush1.bf16.msra.mxu0 %v3952
      %5543 = vmatprep.subr.bf16.mxu0 %v3956
      %5544 = vmatpush1.bf16.msra.mxu0 %v3955
      %5545 = vmatprep.subr.bf16.mxu0 %v3959
      %5546 = vmatpush1.bf16.msra.mxu0 %v3958
      %5547 = vmatprep.subr.bf16.mxu0 %v3962
      %5548 = vmatpush1.bf16.msra.mxu0 %v3961
      %5549 = vmatprep.subr.bf16.mxu0 %v3965
      %5550 = vmatpush1.bf16.msra.mxu0 %v3964
      %5551 = vmatprep.subr.bf16.mxu0 %v3968
      %5552 = vmatpush1.bf16.msra.mxu0 %v3967
      %5553 = vmatprep.subr.bf16.mxu0 %v3971
      %5554 = vmatpush1.bf16.msra.mxu0 %v3970
      %5555 = vmatprep.subr.bf16.mxu0 %v3974
      %5556 = vmatpush1.bf16.msra.mxu0 %v3973
      %5557 = vmatprep.subr.bf16.mxu0 %v3977
      %5558 = vmatpush1.bf16.msra.mxu0 %v3976
      %5559 = vmatprep.subr.bf16.mxu0 %v3980
      %5560 = vmatpush1.bf16.msra.mxu0 %v3979
      %5561 = vmatprep.subr.bf16.mxu0 %v3983
      %5562 = vmatpush1.bf16.msra.mxu0 %v3982
      %5563 = vmatprep.subr.bf16.mxu0 %v3986
      %5564 = vmatpush1.bf16.msra.mxu0 %v3985
      %5565 = vmatprep.mubr.bf16.mxu0 %v1855
      %5566 = vmatmul.mubr.bf16.gmra.mrb[0].mxu0 %v1854
      %v5567 = vpop.f32.mrb[0].mxu0
      %v5568 = vadd.f32 %v5355, %v5567
      %v5569 = vpop.f32.mrb[0].mxu0
      %v5570 = vadd.f32 %v5357, %v5569
      %v5571 = vpop.f32.mrb[0].mxu0
      %v5572 = vadd.f32 %v5359, %v5571
      %v5573 = vpop.f32.mrb[0].mxu0
      %v5574 = vadd.f32 %v5361, %v5573
      %5575 = vmatprep.mubr.bf16.mxu0 %v1871
      %5576 = vmatmul.mubr.bf16.gmra.mrb[0].mxu0 %v1870
      %v5577 = vpop.f32.mrb[0].mxu0
      %v5578 = vadd.f32 %v5365, %v5577
      %v5579 = vpop.f32.mrb[0].mxu0
      %v5580 = vadd.f32 %v5367, %v5579
      %v5581 = vpop.f32.mrb[0].mxu0
      %v5582 = vadd.f32 %v5369, %v5581
      %v5583 = vpop.f32.mrb[0].mxu0
      %v5584 = vadd.f32 %v5371, %v5583
      %5585 = vmatprep.mubr.bf16.mxu0 %v1887
      %5586 = vmatmul.mubr.bf16.gmra.mrb[0].mxu0 %v1886
      %v5587 = vpop.f32.mrb[0].mxu0
      %v5588 = vadd.f32 %v5375, %v5587
      %v5589 = vpop.f32.mrb[0].mxu0
      %v5590 = vadd.f32 %v5377, %v5589
      %v5591 = vpop.f32.mrb[0].mxu0
      %v5592 = vadd.f32 %v5379, %v5591
      %v5593 = vpop.f32.mrb[0].mxu0
      %v5594 = vadd.f32 %v5381, %v5593
      %5595 = vmatprep.mubr.bf16.mxu0 %v1903
      %5596 = vmatmul.mubr.bf16.gmra.mrb[0].mxu0 %v1902
      %v5597 = vpop.f32.mrb[0].mxu0
      %v5598 = vadd.f32 %v5385, %v5597
      %v5599 = vpop.f32.mrb[0].mxu0
      %v5600 = vadd.f32 %v5387, %v5599
      %v5601 = vpop.f32.mrb[0].mxu0
      %v5602 = vadd.f32 %v5389, %v5601
      %v5603 = vpop.f32.mrb[0].mxu0
      %v5604 = vadd.f32 %v5391, %v5603
      %5605 = vmatprep.mubr.bf16.mxu0 %v1919
      %5606 = vmatmul.mubr.bf16.gmra.mrb[0].mxu0 %v1918
      %v5607 = vpop.f32.mrb[0].mxu0
      %v5608 = vadd.f32 %v5395, %v5607
      %v5609 = vpop.f32.mrb[0].mxu0
      %v5610 = vadd.f32 %v5397, %v5609
      %v5611 = vpop.f32.mrb[0].mxu0
      %v5612 = vadd.f32 %v5399, %v5611
      %v5613 = vpop.f32.mrb[0].mxu0
      %v5614 = vadd.f32 %v5401, %v5613
      %5615 = vmatprep.mubr.bf16.mxu0 %v1935
      %5616 = vmatmul.mubr.bf16.gmra.mrb[0].mxu0 %v1934
      %v5617 = vpop.f32.mrb[0].mxu0
      %v5618 = vadd.f32 %v5405, %v5617
      %v5619 = vpop.f32.mrb[0].mxu0
      %v5620 = vadd.f32 %v5407, %v5619
      %v5621 = vpop.f32.mrb[0].mxu0
      %v5622 = vadd.f32 %v5409, %v5621
      %v5623 = vpop.f32.mrb[0].mxu0
      %v5624 = vadd.f32 %v5411, %v5623
      %5625 = vmatprep.mubr.bf16.mxu0 %v1951
      %5626 = vmatmul.mubr.bf16.gmra.mrb[0].mxu0 %v1950
      %v5627 = vpop.f32.mrb[0].mxu0
      %v5628 = vadd.f32 %v5415, %v5627
      %v5629 = vpop.f32.mrb[0].mxu0
      %v5630 = vadd.f32 %v5417, %v5629
      %v5631 = vpop.f32.mrb[0].mxu0
      %v5632 = vadd.f32 %v5419, %v5631
      %v5633 = vpop.f32.mrb[0].mxu0
      %v5634 = vadd.f32 %v5421, %v5633
      %5635 = vmatprep.mubr.bf16.mxu0 %v1967
      %5636 = vmatmul.mubr.bf16.gmra.mrb[0].mxu0 %v1966
      %v5637 = vpop.f32.mrb[0].mxu0
      %v5638 = vadd.f32 %v5425, %v5637
      %v5639 = vpop.f32.mrb[0].mxu0
      %v5640 = vadd.f32 %v5427, %v5639
      %v5641 = vpop.f32.mrb[0].mxu0
      %v5642 = vadd.f32 %v5429, %v5641
      %v5643 = vpop.f32.mrb[0].mxu0
      %v5644 = vadd.f32 %v5431, %v5643
      %5645 = vmatprep.mubr.bf16.mxu0 %v1983
      %5646 = vmatmul.mubr.bf16.gmra.mrb[0].mxu0 %v1982
      %v5647 = vpop.f32.mrb[0].mxu0
      %v5648 = vadd.f32 %v5435, %v5647
      %v5649 = vpop.f32.mrb[0].mxu0
      %v5650 = vadd.f32 %v5437, %v5649
      %v5651 = vpop.f32.mrb[0].mxu0
      %v5652 = vadd.f32 %v5439, %v5651
      %v5653 = vpop.f32.mrb[0].mxu0
      %v5654 = vadd.f32 %v5441, %v5653
      %5655 = vmatprep.mubr.bf16.mxu0 %v1999
      %5656 = vmatmul.mubr.bf16.gmra.mrb[0].mxu0 %v1998
      %v5657 = vpop.f32.mrb[0].mxu0
      %v5658 = vadd.f32 %v5445, %v5657
      %v5659 = vpop.f32.mrb[0].mxu0
      %v5660 = vadd.f32 %v5447, %v5659
      %v5661 = vpop.f32.mrb[0].mxu0
      %v5662 = vadd.f32 %v5449, %v5661
      %v5663 = vpop.f32.mrb[0].mxu0
      %v5664 = vadd.f32 %v5451, %v5663
      %5665 = vmatprep.mubr.bf16.mxu0 %v2015
      %5666 = vmatmul.mubr.bf16.gmra.mrb[0].mxu0 %v2014
      %v5667 = vpop.f32.mrb[0].mxu0
      %v5668 = vadd.f32 %v5455, %v5667
      %v5669 = vpop.f32.mrb[0].mxu0
      %v5670 = vadd.f32 %v5457, %v5669
      %v5671 = vpop.f32.mrb[0].mxu0
      %v5672 = vadd.f32 %v5459, %v5671
      %v5673 = vpop.f32.mrb[0].mxu0
      %v5674 = vadd.f32 %v5461, %v5673
      %5675 = vmatprep.mubr.bf16.mxu0 %v2031
      %5676 = vmatmul.mubr.bf16.gmra.mrb[0].mxu0 %v2030
      %v5677 = vpop.f32.mrb[0].mxu0
      %v5678 = vadd.f32 %v5465, %v5677
      %v5679 = vpop.f32.mrb[0].mxu0
      %v5680 = vadd.f32 %v5467, %v5679
      %v5681 = vpop.f32.mrb[0].mxu0
      %v5682 = vadd.f32 %v5469, %v5681
      %v5683 = vpop.f32.mrb[0].mxu0
      %v5684 = vadd.f32 %v5471, %v5683
      %5685 = vmatprep.mubr.bf16.mxu0 %v2047
      %5686 = vmatmul.mubr.bf16.gmra.mrb[0].mxu0 %v2046
      %v5687 = vpop.f32.mrb[0].mxu0
      %v5688 = vadd.f32 %v5475, %v5687
      %v5689 = vpop.f32.mrb[0].mxu0
      %v5690 = vadd.f32 %v5477, %v5689
      %v5691 = vpop.f32.mrb[0].mxu0
      %v5692 = vadd.f32 %v5479, %v5691
      %v5693 = vpop.f32.mrb[0].mxu0
      %v5694 = vadd.f32 %v5481, %v5693
      %5695 = vmatprep.mubr.bf16.mxu0 %v2063
      %5696 = vmatmul.mubr.bf16.gmra.mrb[0].mxu0 %v2062
      %v5697 = vpop.f32.mrb[0].mxu0
      %v5698 = vadd.f32 %v5485, %v5697
      %v5699 = vpop.f32.mrb[0].mxu0
      %v5700 = vadd.f32 %v5487, %v5699
      %v5701 = vpop.f32.mrb[0].mxu0
      %v5702 = vadd.f32 %v5489, %v5701
      %v5703 = vpop.f32.mrb[0].mxu0
      %v5704 = vadd.f32 %v5491, %v5703
      %5705 = vmatprep.mubr.bf16.mxu0 %v2079
      %5706 = vmatmul.mubr.bf16.gmra.mrb[0].mxu0 %v2078
      %v5707 = vpop.f32.mrb[0].mxu0
      %v5708 = vadd.f32 %v5495, %v5707
      %v5709 = vpop.f32.mrb[0].mxu0
      %v5710 = vadd.f32 %v5497, %v5709
      %v5711 = vpop.f32.mrb[0].mxu0
      %v5712 = vadd.f32 %v5499, %v5711
      %v5713 = vpop.f32.mrb[0].mxu0
      %v5714 = vadd.f32 %v5501, %v5713
      %5715 = vmatprep.mubr.bf16.mxu0 %v2095
      %5716 = vmatmul.mubr.bf16.gmra.mrb[0].mxu0 %v2094
      %v5717 = vpop.f32.mrb[0].mxu0
      %v5718 = vadd.f32 %v5505, %v5717
      %v5719 = vpop.f32.mrb[0].mxu0
      %v5720 = vadd.f32 %v5507, %v5719
      %v5721 = vpop.f32.mrb[0].mxu0
      %v5722 = vadd.f32 %v5509, %v5721
      %v5723 = vpop.f32.mrb[0].mxu0
      %v5724 = vadd.f32 %v5511, %v5723
      %5725 = vmatprep.mubr.bf16.mxu0 %v2111
      %5726 = vmatmul.mubr.bf16.gmra.mrb[0].mxu0 %v2110
      %v5727 = vpop.f32.mrb[0].mxu0
      %v5728 = vadd.f32 %v5515, %v5727
      %v5729 = vpop.f32.mrb[0].mxu0
      %v5730 = vadd.f32 %v5517, %v5729
      %v5731 = vpop.f32.mrb[0].mxu0
      %v5732 = vadd.f32 %v5519, %v5731
      %v5733 = vpop.f32.mrb[0].mxu0
      %v5734 = vadd.f32 %v5521, %v5733
      %5735 = vmatprep.mubr.bf16.mxu0 %v2127
      %5736 = vmatmul.mubr.bf16.gmra.mrb[0].mxu0 %v2126
      %v5737 = vpop.f32.mrb[0].mxu0
      %v5738 = vadd.f32 %v5525, %v5737
      %v5739 = vpop.f32.mrb[0].mxu0
      %v5740 = vadd.f32 %v5527, %v5739
      %v5741 = vpop.f32.mrb[0].mxu0
      %v5742 = vadd.f32 %v5529, %v5741
      %v5743 = vpop.f32.mrb[0].mxu0
      %v5744 = vadd.f32 %v5531, %v5743
      %5745 = vdwg.mxu0
      %5746 = vmatprep.subr.bf16.mxu0 %v3989
      %5747 = vmatpush1.bf16.msra.mxu0 %v3988
      %5748 = vmatprep.subr.bf16.mxu0 %v3992
      %5749 = vmatpush1.bf16.msra.mxu0 %v3991
      %5750 = vmatprep.subr.bf16.mxu0 %v3995
      %5751 = vmatpush1.bf16.msra.mxu0 %v3994
      %5752 = vmatprep.subr.bf16.mxu0 %v3998
      %5753 = vmatpush1.bf16.msra.mxu0 %v3997
      %5754 = vmatprep.subr.bf16.mxu0 %v4001
      %5755 = vmatpush1.bf16.msra.mxu0 %v4000
      %5756 = vmatprep.subr.bf16.mxu0 %v4004
      %5757 = vmatpush1.bf16.msra.mxu0 %v4003
      %5758 = vmatprep.subr.bf16.mxu0 %v4007
      %5759 = vmatpush1.bf16.msra.mxu0 %v4006
      %5760 = vmatprep.subr.bf16.mxu0 %v4010
      %5761 = vmatpush1.bf16.msra.mxu0 %v4009
      %5762 = vmatprep.subr.bf16.mxu0 %v4013
      %5763 = vmatpush1.bf16.msra.mxu0 %v4012
      %5764 = vmatprep.subr.bf16.mxu0 %v4016
      %5765 = vmatpush1.bf16.msra.mxu0 %v4015
      %5766 = vmatprep.subr.bf16.mxu0 %v4019
      %5767 = vmatpush1.bf16.msra.mxu0 %v4018
      %5768 = vmatprep.subr.bf16.mxu0 %v4022
      %5769 = vmatpush1.bf16.msra.mxu0 %v4021
      %5770 = vmatprep.subr.bf16.mxu0 %v4025
      %5771 = vmatpush1.bf16.msra.mxu0 %v4024
      %5772 = vmatprep.subr.bf16.mxu0 %v4028
      %5773 = vmatpush1.bf16.msra.mxu0 %v4027
      %5774 = vmatprep.subr.bf16.mxu0 %v4031
      %5775 = vmatpush1.bf16.msra.mxu0 %v4030
      %5776 = vmatprep.subr.bf16.mxu0 %v4034
      %5777 = vmatpush1.bf16.msra.mxu0 %v4033
      %5778 = vmatprep.mubr.bf16.mxu0 %v1857
      %5779 = vmatmul.mubr.bf16.gmra.mrb[0].mxu0 %v1856
      %v5780 = vpop.f32.mrb[0].mxu0
      %v5781 = vadd.f32 %v5568, %v5780
      %v5782 = vpop.f32.mrb[0].mxu0
      %v5783 = vadd.f32 %v5570, %v5782
      %v5784 = vpop.f32.mrb[0].mxu0
      %v5785 = vadd.f32 %v5572, %v5784
      %v5786 = vpop.f32.mrb[0].mxu0
      %v5787 = vadd.f32 %v5574, %v5786
      %5788 = vmatprep.mubr.bf16.mxu0 %v1873
      %5789 = vmatmul.mubr.bf16.gmra.mrb[0].mxu0 %v1872
      %v5790 = vpop.f32.mrb[0].mxu0
      %v5791 = vadd.f32 %v5578, %v5790
      %v5792 = vpop.f32.mrb[0].mxu0
      %v5793 = vadd.f32 %v5580, %v5792
      %v5794 = vpop.f32.mrb[0].mxu0
      %v5795 = vadd.f32 %v5582, %v5794
      %v5796 = vpop.f32.mrb[0].mxu0
      %v5797 = vadd.f32 %v5584, %v5796
      %5798 = vmatprep.mubr.bf16.mxu0 %v1889
      %5799 = vmatmul.mubr.bf16.gmra.mrb[0].mxu0 %v1888
      %v5800 = vpop.f32.mrb[0].mxu0
      %v5801 = vadd.f32 %v5588, %v5800
      %v5802 = vpop.f32.mrb[0].mxu0
      %v5803 = vadd.f32 %v5590, %v5802
      %v5804 = vpop.f32.mrb[0].mxu0
      %v5805 = vadd.f32 %v5592, %v5804
      %v5806 = vpop.f32.mrb[0].mxu0
      %v5807 = vadd.f32 %v5594, %v5806
      %5808 = vmatprep.mubr.bf16.mxu0 %v1905
      %5809 = vmatmul.mubr.bf16.gmra.mrb[0].mxu0 %v1904
      %v5810 = vpop.f32.mrb[0].mxu0
      %v5811 = vadd.f32 %v5598, %v5810
      %v5812 = vpop.f32.mrb[0].mxu0
      %v5813 = vadd.f32 %v5600, %v5812
      %v5814 = vpop.f32.mrb[0].mxu0
      %v5815 = vadd.f32 %v5602, %v5814
      %v5816 = vpop.f32.mrb[0].mxu0
      %v5817 = vadd.f32 %v5604, %v5816
      %5818 = vmatprep.mubr.bf16.mxu0 %v1921
      %5819 = vmatmul.mubr.bf16.gmra.mrb[0].mxu0 %v1920
      %v5820 = vpop.f32.mrb[0].mxu0
      %v5821 = vadd.f32 %v5608, %v5820
      %v5822 = vpop.f32.mrb[0].mxu0
      %v5823 = vadd.f32 %v5610, %v5822
      %v5824 = vpop.f32.mrb[0].mxu0
      %v5825 = vadd.f32 %v5612, %v5824
      %v5826 = vpop.f32.mrb[0].mxu0
      %v5827 = vadd.f32 %v5614, %v5826
      %5828 = vmatprep.mubr.bf16.mxu0 %v1937
      %5829 = vmatmul.mubr.bf16.gmra.mrb[0].mxu0 %v1936
      %v5830 = vpop.f32.mrb[0].mxu0
      %v5831 = vadd.f32 %v5618, %v5830
      %v5832 = vpop.f32.mrb[0].mxu0
      %v5833 = vadd.f32 %v5620, %v5832
      %v5834 = vpop.f32.mrb[0].mxu0
      %v5835 = vadd.f32 %v5622, %v5834
      %v5836 = vpop.f32.mrb[0].mxu0
      %v5837 = vadd.f32 %v5624, %v5836
      %5838 = vmatprep.mubr.bf16.mxu0 %v1953
      %5839 = vmatmul.mubr.bf16.gmra.mrb[0].mxu0 %v1952
      %v5840 = vpop.f32.mrb[0].mxu0
      %v5841 = vadd.f32 %v5628, %v5840
      %v5842 = vpop.f32.mrb[0].mxu0
      %v5843 = vadd.f32 %v5630, %v5842
      %v5844 = vpop.f32.mrb[0].mxu0
      %v5845 = vadd.f32 %v5632, %v5844
      %v5846 = vpop.f32.mrb[0].mxu0
      %v5847 = vadd.f32 %v5634, %v5846
      %5848 = vmatprep.mubr.bf16.mxu0 %v1969
      %5849 = vmatmul.mubr.bf16.gmra.mrb[0].mxu0 %v1968
      %v5850 = vpop.f32.mrb[0].mxu0
      %v5851 = vadd.f32 %v5638, %v5850
      %v5852 = vpop.f32.mrb[0].mxu0
      %v5853 = vadd.f32 %v5640, %v5852
      %v5854 = vpop.f32.mrb[0].mxu0
      %v5855 = vadd.f32 %v5642, %v5854
      %v5856 = vpop.f32.mrb[0].mxu0
      %v5857 = vadd.f32 %v5644, %v5856
      %5858 = vmatprep.mubr.bf16.mxu0 %v1985
      %5859 = vmatmul.mubr.bf16.gmra.mrb[0].mxu0 %v1984
      %v5860 = vpop.f32.mrb[0].mxu0
      %v5861 = vadd.f32 %v5648, %v5860
      %v5862 = vpop.f32.mrb[0].mxu0
      %v5863 = vadd.f32 %v5650, %v5862
      %v5864 = vpop.f32.mrb[0].mxu0
      %v5865 = vadd.f32 %v5652, %v5864
      %v5866 = vpop.f32.mrb[0].mxu0
      %v5867 = vadd.f32 %v5654, %v5866
      %5868 = vmatprep.mubr.bf16.mxu0 %v2001
      %5869 = vmatmul.mubr.bf16.gmra.mrb[0].mxu0 %v2000
      %v5870 = vpop.f32.mrb[0].mxu0
      %v5871 = vadd.f32 %v5658, %v5870
      %v5872 = vpop.f32.mrb[0].mxu0
      %v5873 = vadd.f32 %v5660, %v5872
      %v5874 = vpop.f32.mrb[0].mxu0
      %v5875 = vadd.f32 %v5662, %v5874
      %v5876 = vpop.f32.mrb[0].mxu0
      %v5877 = vadd.f32 %v5664, %v5876
      %5878 = vmatprep.mubr.bf16.mxu0 %v2017
      %5879 = vmatmul.mubr.bf16.gmra.mrb[0].mxu0 %v2016
      %v5880 = vpop.f32.mrb[0].mxu0
      %v5881 = vadd.f32 %v5668, %v5880
      %v5882 = vpop.f32.mrb[0].mxu0
      %v5883 = vadd.f32 %v5670, %v5882
      %v5884 = vpop.f32.mrb[0].mxu0
      %v5885 = vadd.f32 %v5672, %v5884
      %v5886 = vpop.f32.mrb[0].mxu0
      %v5887 = vadd.f32 %v5674, %v5886
      %5888 = vmatprep.mubr.bf16.mxu0 %v2033
      %5889 = vmatmul.mubr.bf16.gmra.mrb[0].mxu0 %v2032
      %v5890 = vpop.f32.mrb[0].mxu0
      %v5891 = vadd.f32 %v5678, %v5890
      %v5892 = vpop.f32.mrb[0].mxu0
      %v5893 = vadd.f32 %v5680, %v5892
      %v5894 = vpop.f32.mrb[0].mxu0
      %v5895 = vadd.f32 %v5682, %v5894
      %v5896 = vpop.f32.mrb[0].mxu0
      %v5897 = vadd.f32 %v5684, %v5896
      %5898 = vmatprep.mubr.bf16.mxu0 %v2049
      %5899 = vmatmul.mubr.bf16.gmra.mrb[0].mxu0 %v2048
      %v5900 = vpop.f32.mrb[0].mxu0
      %v5901 = vadd.f32 %v5688, %v5900
      %v5902 = vpop.f32.mrb[0].mxu0
      %v5903 = vadd.f32 %v5690, %v5902
      %v5904 = vpop.f32.mrb[0].mxu0
      %v5905 = vadd.f32 %v5692, %v5904
      %v5906 = vpop.f32.mrb[0].mxu0
      %v5907 = vadd.f32 %v5694, %v5906
      %5908 = vmatprep.mubr.bf16.mxu0 %v2065
      %5909 = vmatmul.mubr.bf16.gmra.mrb[0].mxu0 %v2064
      %v5910 = vpop.f32.mrb[0].mxu0
      %v5911 = vadd.f32 %v5698, %v5910
      %v5912 = vpop.f32.mrb[0].mxu0
      %v5913 = vadd.f32 %v5700, %v5912
      %v5914 = vpop.f32.mrb[0].mxu0
      %v5915 = vadd.f32 %v5702, %v5914
      %v5916 = vpop.f32.mrb[0].mxu0
      %v5917 = vadd.f32 %v5704, %v5916
      %5918 = vmatprep.mubr.bf16.mxu0 %v2081
      %5919 = vmatmul.mubr.bf16.gmra.mrb[0].mxu0 %v2080
      %v5920 = vpop.f32.mrb[0].mxu0
      %v5921 = vadd.f32 %v5708, %v5920
      %v5922 = vpop.f32.mrb[0].mxu0
      %v5923 = vadd.f32 %v5710, %v5922
      %v5924 = vpop.f32.mrb[0].mxu0
      %v5925 = vadd.f32 %v5712, %v5924
      %v5926 = vpop.f32.mrb[0].mxu0
      %v5927 = vadd.f32 %v5714, %v5926
      %5928 = vmatprep.mubr.bf16.mxu0 %v2097
      %5929 = vmatmul.mubr.bf16.gmra.mrb[0].mxu0 %v2096
      %v5930 = vpop.f32.mrb[0].mxu0
      %v5931 = vadd.f32 %v5718, %v5930
      %v5932 = vpop.f32.mrb[0].mxu0
      %v5933 = vadd.f32 %v5720, %v5932
      %v5934 = vpop.f32.mrb[0].mxu0
      %v5935 = vadd.f32 %v5722, %v5934
      %v5936 = vpop.f32.mrb[0].mxu0
      %v5937 = vadd.f32 %v5724, %v5936
      %5938 = vmatprep.mubr.bf16.mxu0 %v2113
      %5939 = vmatmul.mubr.bf16.gmra.mrb[0].mxu0 %v2112
      %v5940 = vpop.f32.mrb[0].mxu0
      %v5941 = vadd.f32 %v5728, %v5940
      %v5942 = vpop.f32.mrb[0].mxu0
      %v5943 = vadd.f32 %v5730, %v5942
      %v5944 = vpop.f32.mrb[0].mxu0
      %v5945 = vadd.f32 %v5732, %v5944
      %v5946 = vpop.f32.mrb[0].mxu0
      %v5947 = vadd.f32 %v5734, %v5946
      %5948 = vmatprep.mubr.bf16.mxu0 %v2129
      %5949 = vmatmul.mubr.bf16.gmra.mrb[0].mxu0 %v2128
      %v5950 = vpop.f32.mrb[0].mxu0
      %v5951 = vadd.f32 %v5738, %v5950
      %v5952 = vpop.f32.mrb[0].mxu0
      %v5953 = vadd.f32 %v5740, %v5952
      %v5954 = vpop.f32.mrb[0].mxu0
      %v5955 = vadd.f32 %v5742, %v5954
      %v5956 = vpop.f32.mrb[0].mxu0
      %v5957 = vadd.f32 %v5744, %v5956
      %5958 = vdwg.mxu0
      %5959 = vmatprep.subr.bf16.mxu0 %v4037
      %5960 = vmatpush1.bf16.msra.mxu0 %v4036
      %5961 = vmatprep.subr.bf16.mxu0 %v4040
      %5962 = vmatpush1.bf16.msra.mxu0 %v4039
      %5963 = vmatprep.subr.bf16.mxu0 %v4043
      %5964 = vmatpush1.bf16.msra.mxu0 %v4042
      %5965 = vmatprep.subr.bf16.mxu0 %v4046
      %5966 = vmatpush1.bf16.msra.mxu0 %v4045
      %5967 = vmatprep.subr.bf16.mxu0 %v4049
      %5968 = vmatpush1.bf16.msra.mxu0 %v4048
      %5969 = vmatprep.subr.bf16.mxu0 %v4052
      %5970 = vmatpush1.bf16.msra.mxu0 %v4051
      %5971 = vmatprep.subr.bf16.mxu0 %v4055
      %5972 = vmatpush1.bf16.msra.mxu0 %v4054
      %5973 = vmatprep.subr.bf16.mxu0 %v4058
      %5974 = vmatpush1.bf16.msra.mxu0 %v4057
      %5975 = vmatprep.subr.bf16.mxu0 %v4061
      %5976 = vmatpush1.bf16.msra.mxu0 %v4060
      %5977 = vmatprep.subr.bf16.mxu0 %v4064
      %5978 = vmatpush1.bf16.msra.mxu0 %v4063
      %5979 = vmatprep.subr.bf16.mxu0 %v4067
      %5980 = vmatpush1.bf16.msra.mxu0 %v4066
      %5981 = vmatprep.subr.bf16.mxu0 %v4070
      %5982 = vmatpush1.bf16.msra.mxu0 %v4069
      %5983 = vmatprep.subr.bf16.mxu0 %v4073
      %5984 = vmatpush1.bf16.msra.mxu0 %v4072
      %5985 = vmatprep.subr.bf16.mxu0 %v4076
      %5986 = vmatpush1.bf16.msra.mxu0 %v4075
      %5987 = vmatprep.subr.bf16.mxu0 %v4079
      %5988 = vmatpush1.bf16.msra.mxu0 %v4078
      %5989 = vmatprep.subr.bf16.mxu0 %v4082
      %5990 = vmatpush1.bf16.msra.mxu0 %v4081
      %5991 = vmatprep.mubr.bf16.mxu0 %v1859
      %5992 = vmatmul.mubr.bf16.gmra.mrb[0].mxu0 %v1858
      %v5993 = vpop.f32.mrb[0].mxu0
      %v5994 = vadd.f32 %v5781, %v5993
      %v5995 = vpop.f32.mrb[0].mxu0
      %v5996 = vadd.f32 %v5783, %v5995
      %v5997 = vpop.f32.mrb[0].mxu0
      %v5998 = vadd.f32 %v5785, %v5997
      %v5999 = vpop.f32.mrb[0].mxu0
      %v6000 = vadd.f32 %v5787, %v5999
      %6001 = vmatprep.mubr.bf16.mxu0 %v1875
      %6002 = vmatmul.mubr.bf16.gmra.mrb[0].mxu0 %v1874
      %v6003 = vpop.f32.mrb[0].mxu0
      %v6004 = vadd.f32 %v5791, %v6003
      %v6005 = vpop.f32.mrb[0].mxu0
      %v6006 = vadd.f32 %v5793, %v6005
      %v6007 = vpop.f32.mrb[0].mxu0
      %v6008 = vadd.f32 %v5795, %v6007
      %v6009 = vpop.f32.mrb[0].mxu0
      %v6010 = vadd.f32 %v5797, %v6009
      %6011 = vmatprep.mubr.bf16.mxu0 %v1891
      %6012 = vmatmul.mubr.bf16.gmra.mrb[0].mxu0 %v1890
      %v6013 = vpop.f32.mrb[0].mxu0
      %v6014 = vadd.f32 %v5801, %v6013
      %v6015 = vpop.f32.mrb[0].mxu0
      %v6016 = vadd.f32 %v5803, %v6015
      %v6017 = vpop.f32.mrb[0].mxu0
      %v6018 = vadd.f32 %v5805, %v6017
      %v6019 = vpop.f32.mrb[0].mxu0
      %v6020 = vadd.f32 %v5807, %v6019
      %6021 = vmatprep.mubr.bf16.mxu0 %v1907
      %6022 = vmatmul.mubr.bf16.gmra.mrb[0].mxu0 %v1906
      %v6023 = vpop.f32.mrb[0].mxu0
      %v6024 = vadd.f32 %v5811, %v6023
      %v6025 = vpop.f32.mrb[0].mxu0
      %v6026 = vadd.f32 %v5813, %v6025
      %v6027 = vpop.f32.mrb[0].mxu0
      %v6028 = vadd.f32 %v5815, %v6027
      %v6029 = vpop.f32.mrb[0].mxu0
      %v6030 = vadd.f32 %v5817, %v6029
      %6031 = vmatprep.mubr.bf16.mxu0 %v1923
      %6032 = vmatmul.mubr.bf16.gmra.mrb[0].mxu0 %v1922
      %v6033 = vpop.f32.mrb[0].mxu0
      %v6034 = vadd.f32 %v5821, %v6033
      %v6035 = vpop.f32.mrb[0].mxu0
      %v6036 = vadd.f32 %v5823, %v6035
      %v6037 = vpop.f32.mrb[0].mxu0
      %v6038 = vadd.f32 %v5825, %v6037
      %v6039 = vpop.f32.mrb[0].mxu0
      %v6040 = vadd.f32 %v5827, %v6039
      %6041 = vmatprep.mubr.bf16.mxu0 %v1939
      %6042 = vmatmul.mubr.bf16.gmra.mrb[0].mxu0 %v1938
      %v6043 = vpop.f32.mrb[0].mxu0
      %v6044 = vadd.f32 %v5831, %v6043
      %v6045 = vpop.f32.mrb[0].mxu0
      %v6046 = vadd.f32 %v5833, %v6045
      %v6047 = vpop.f32.mrb[0].mxu0
      %v6048 = vadd.f32 %v5835, %v6047
      %v6049 = vpop.f32.mrb[0].mxu0
      %v6050 = vadd.f32 %v5837, %v6049
      %6051 = vmatprep.mubr.bf16.mxu0 %v1955
      %6052 = vmatmul.mubr.bf16.gmra.mrb[0].mxu0 %v1954
      %v6053 = vpop.f32.mrb[0].mxu0
      %v6054 = vadd.f32 %v5841, %v6053
      %v6055 = vpop.f32.mrb[0].mxu0
      %v6056 = vadd.f32 %v5843, %v6055
      %v6057 = vpop.f32.mrb[0].mxu0
      %v6058 = vadd.f32 %v5845, %v6057
      %v6059 = vpop.f32.mrb[0].mxu0
      %v6060 = vadd.f32 %v5847, %v6059
      %6061 = vmatprep.mubr.bf16.mxu0 %v1971
      %6062 = vmatmul.mubr.bf16.gmra.mrb[0].mxu0 %v1970
      %v6063 = vpop.f32.mrb[0].mxu0
      %v6064 = vadd.f32 %v5851, %v6063
      %v6065 = vpop.f32.mrb[0].mxu0
      %v6066 = vadd.f32 %v5853, %v6065
      %v6067 = vpop.f32.mrb[0].mxu0
      %v6068 = vadd.f32 %v5855, %v6067
      %v6069 = vpop.f32.mrb[0].mxu0
      %v6070 = vadd.f32 %v5857, %v6069
      %6071 = vmatprep.mubr.bf16.mxu0 %v1987
      %6072 = vmatmul.mubr.bf16.gmra.mrb[0].mxu0 %v1986
      %v6073 = vpop.f32.mrb[0].mxu0
      %v6074 = vadd.f32 %v5861, %v6073
      %v6075 = vpop.f32.mrb[0].mxu0
      %v6076 = vadd.f32 %v5863, %v6075
      %v6077 = vpop.f32.mrb[0].mxu0
      %v6078 = vadd.f32 %v5865, %v6077
      %v6079 = vpop.f32.mrb[0].mxu0
      %v6080 = vadd.f32 %v5867, %v6079
      %6081 = vmatprep.mubr.bf16.mxu0 %v2003
      %6082 = vmatmul.mubr.bf16.gmra.mrb[0].mxu0 %v2002
      %v6083 = vpop.f32.mrb[0].mxu0
      %v6084 = vadd.f32 %v5871, %v6083
      %v6085 = vpop.f32.mrb[0].mxu0
      %v6086 = vadd.f32 %v5873, %v6085
      %v6087 = vpop.f32.mrb[0].mxu0
      %v6088 = vadd.f32 %v5875, %v6087
      %v6089 = vpop.f32.mrb[0].mxu0
      %v6090 = vadd.f32 %v5877, %v6089
      %6091 = vmatprep.mubr.bf16.mxu0 %v2019
      %6092 = vmatmul.mubr.bf16.gmra.mrb[0].mxu0 %v2018
      %v6093 = vpop.f32.mrb[0].mxu0
      %v6094 = vadd.f32 %v5881, %v6093
      %v6095 = vpop.f32.mrb[0].mxu0
      %v6096 = vadd.f32 %v5883, %v6095
      %v6097 = vpop.f32.mrb[0].mxu0
      %v6098 = vadd.f32 %v5885, %v6097
      %v6099 = vpop.f32.mrb[0].mxu0
      %v6100 = vadd.f32 %v5887, %v6099
      %6101 = vmatprep.mubr.bf16.mxu0 %v2035
      %6102 = vmatmul.mubr.bf16.gmra.mrb[0].mxu0 %v2034
      %v6103 = vpop.f32.mrb[0].mxu0
      %v6104 = vadd.f32 %v5891, %v6103
      %v6105 = vpop.f32.mrb[0].mxu0
      %v6106 = vadd.f32 %v5893, %v6105
      %v6107 = vpop.f32.mrb[0].mxu0
      %v6108 = vadd.f32 %v5895, %v6107
      %v6109 = vpop.f32.mrb[0].mxu0
      %v6110 = vadd.f32 %v5897, %v6109
      %6111 = vmatprep.mubr.bf16.mxu0 %v2051
      %6112 = vmatmul.mubr.bf16.gmra.mrb[0].mxu0 %v2050
      %v6113 = vpop.f32.mrb[0].mxu0
      %v6114 = vadd.f32 %v5901, %v6113
      %v6115 = vpop.f32.mrb[0].mxu0
      %v6116 = vadd.f32 %v5903, %v6115
      %v6117 = vpop.f32.mrb[0].mxu0
      %v6118 = vadd.f32 %v5905, %v6117
      %v6119 = vpop.f32.mrb[0].mxu0
      %v6120 = vadd.f32 %v5907, %v6119
      %6121 = vmatprep.mubr.bf16.mxu0 %v2067
      %6122 = vmatmul.mubr.bf16.gmra.mrb[0].mxu0 %v2066
      %v6123 = vpop.f32.mrb[0].mxu0
      %v6124 = vadd.f32 %v5911, %v6123
      %v6125 = vpop.f32.mrb[0].mxu0
      %v6126 = vadd.f32 %v5913, %v6125
      %v6127 = vpop.f32.mrb[0].mxu0
      %v6128 = vadd.f32 %v5915, %v6127
      %v6129 = vpop.f32.mrb[0].mxu0
      %v6130 = vadd.f32 %v5917, %v6129
      %6131 = vmatprep.mubr.bf16.mxu0 %v2083
      %6132 = vmatmul.mubr.bf16.gmra.mrb[0].mxu0 %v2082
      %v6133 = vpop.f32.mrb[0].mxu0
      %v6134 = vadd.f32 %v5921, %v6133
      %v6135 = vpop.f32.mrb[0].mxu0
      %v6136 = vadd.f32 %v5923, %v6135
      %v6137 = vpop.f32.mrb[0].mxu0
      %v6138 = vadd.f32 %v5925, %v6137
      %v6139 = vpop.f32.mrb[0].mxu0
      %v6140 = vadd.f32 %v5927, %v6139
      %6141 = vmatprep.mubr.bf16.mxu0 %v2099
      %6142 = vmatmul.mubr.bf16.gmra.mrb[0].mxu0 %v2098
      %v6143 = vpop.f32.mrb[0].mxu0
      %v6144 = vadd.f32 %v5931, %v6143
      %v6145 = vpop.f32.mrb[0].mxu0
      %v6146 = vadd.f32 %v5933, %v6145
      %v6147 = vpop.f32.mrb[0].mxu0
      %v6148 = vadd.f32 %v5935, %v6147
      %v6149 = vpop.f32.mrb[0].mxu0
      %v6150 = vadd.f32 %v5937, %v6149
      %6151 = vmatprep.mubr.bf16.mxu0 %v2115
      %6152 = vmatmul.mubr.bf16.gmra.mrb[0].mxu0 %v2114
      %v6153 = vpop.f32.mrb[0].mxu0
      %v6154 = vadd.f32 %v5941, %v6153
      %v6155 = vpop.f32.mrb[0].mxu0
      %v6156 = vadd.f32 %v5943, %v6155
      %v6157 = vpop.f32.mrb[0].mxu0
      %v6158 = vadd.f32 %v5945, %v6157
      %v6159 = vpop.f32.mrb[0].mxu0
      %v6160 = vadd.f32 %v5947, %v6159
      %6161 = vmatprep.mubr.bf16.mxu0 %v2131
      %6162 = vmatmul.mubr.bf16.gmra.mrb[0].mxu0 %v2130
      %v6163 = vpop.f32.mrb[0].mxu0
      %v6164 = vadd.f32 %v5951, %v6163
      %v6165 = vpop.f32.mrb[0].mxu0
      %v6166 = vadd.f32 %v5953, %v6165
      %v6167 = vpop.f32.mrb[0].mxu0
      %v6168 = vadd.f32 %v5955, %v6167
      %v6169 = vpop.f32.mrb[0].mxu0
      %v6170 = vadd.f32 %v5957, %v6169
      %6171 = vdwg.mxu0
      %6172 = vmatprep.subr.bf16.mxu0 0
      %6173 = vmatpush1.bf16.msra.mxu0 %v3702
      %6174 = vmatprep.subr.bf16.mxu0 0
      %6175 = vmatpush1.bf16.msra.mxu0 %v3705
      %6176 = vmatprep.subr.bf16.mxu0 0
      %6177 = vmatpush1.bf16.msra.mxu0 %v3708
      %6178 = vmatprep.subr.bf16.mxu0 0
      %6179 = vmatpush1.bf16.msra.mxu0 %v3711
      %6180 = vmatprep.subr.bf16.mxu0 0
      %6181 = vmatpush1.bf16.msra.mxu0 %v3714
      %6182 = vmatprep.subr.bf16.mxu0 0
      %6183 = vmatpush1.bf16.msra.mxu0 %v3717
      %6184 = vmatprep.subr.bf16.mxu0 0
      %6185 = vmatpush1.bf16.msra.mxu0 %v3720
      %6186 = vmatprep.subr.bf16.mxu0 0
      %6187 = vmatpush1.bf16.msra.mxu0 %v3723
      %6188 = vmatprep.subr.bf16.mxu0 0
      %6189 = vmatpush1.bf16.msra.mxu0 %v3726
      %6190 = vmatprep.subr.bf16.mxu0 0
      %6191 = vmatpush1.bf16.msra.mxu0 %v3729
      %6192 = vmatprep.subr.bf16.mxu0 0
      %6193 = vmatpush1.bf16.msra.mxu0 %v3732
      %6194 = vmatprep.subr.bf16.mxu0 0
      %6195 = vmatpush1.bf16.msra.mxu0 %v3735
      %6196 = vmatprep.subr.bf16.mxu0 0
      %6197 = vmatpush1.bf16.msra.mxu0 %v3738
      %6198 = vmatprep.subr.bf16.mxu0 0
      %6199 = vmatpush1.bf16.msra.mxu0 %v3741
      %6200 = vmatprep.subr.bf16.mxu0 0
      %6201 = vmatpush1.bf16.msra.mxu0 %v3744
      %6202 = vmatprep.subr.bf16.mxu0 0
      %6203 = vmatpush1.bf16.msra.mxu0 %v3747
      %6204 = vmatprep.mubr.bf16.mxu0 %v1845
      %6205 = vmatmul.mubr.bf16.gmra.mrb[0].mxu0 %v1844
      %v6206 = vpop.f32.mrb[0].mxu0
      %v6207 = vadd.f32 0.0, %v6206
      %v6208 = vpop.f32.mrb[0].mxu0
      %v6209 = vpop.f32.mrb[0].mxu0
      %v6210 = vadd.f32 0.0, %v6209
      %v6211 = vpop.f32.mrb[0].mxu0
      %6212 = vmatprep.mubr.bf16.mxu0 %v1861
      %6213 = vmatmul.mubr.bf16.gmra.mrb[0].mxu0 %v1860
      %v6214 = vpop.f32.mrb[0].mxu0
      %v6215 = vadd.f32 0.0, %v6214
      %v6216 = vpop.f32.mrb[0].mxu0
      %v6217 = vpop.f32.mrb[0].mxu0
      %v6218 = vadd.f32 0.0, %v6217
      %v6219 = vpop.f32.mrb[0].mxu0
      %6220 = vmatprep.mubr.bf16.mxu0 %v1877
      %6221 = vmatmul.mubr.bf16.gmra.mrb[0].mxu0 %v1876
      %v6222 = vpop.f32.mrb[0].mxu0
      %v6223 = vadd.f32 0.0, %v6222
      %v6224 = vpop.f32.mrb[0].mxu0
      %v6225 = vpop.f32.mrb[0].mxu0
      %v6226 = vadd.f32 0.0, %v6225
      %v6227 = vpop.f32.mrb[0].mxu0
      %6228 = vmatprep.mubr.bf16.mxu0 %v1893
      %6229 = vmatmul.mubr.bf16.gmra.mrb[0].mxu0 %v1892
      %v6230 = vpop.f32.mrb[0].mxu0
      %v6231 = vadd.f32 0.0, %v6230
      %v6232 = vpop.f32.mrb[0].mxu0
      %v6233 = vpop.f32.mrb[0].mxu0
      %v6234 = vadd.f32 0.0, %v6233
      %v6235 = vpop.f32.mrb[0].mxu0
      %6236 = vmatprep.mubr.bf16.mxu0 %v1909
      %6237 = vmatmul.mubr.bf16.gmra.mrb[0].mxu0 %v1908
      %v6238 = vpop.f32.mrb[0].mxu0
      %v6239 = vadd.f32 0.0, %v6238
      %v6240 = vpop.f32.mrb[0].mxu0
      %v6241 = vpop.f32.mrb[0].mxu0
      %v6242 = vadd.f32 0.0, %v6241
      %v6243 = vpop.f32.mrb[0].mxu0
      %6244 = vmatprep.mubr.bf16.mxu0 %v1925
      %6245 = vmatmul.mubr.bf16.gmra.mrb[0].mxu0 %v1924
      %v6246 = vpop.f32.mrb[0].mxu0
      %v6247 = vadd.f32 0.0, %v6246
      %v6248 = vpop.f32.mrb[0].mxu0
      %v6249 = vpop.f32.mrb[0].mxu0
      %v6250 = vadd.f32 0.0, %v6249
      %v6251 = vpop.f32.mrb[0].mxu0
      %6252 = vmatprep.mubr.bf16.mxu0 %v1941
      %6253 = vmatmul.mubr.bf16.gmra.mrb[0].mxu0 %v1940
      %v6254 = vpop.f32.mrb[0].mxu0
      %v6255 = vadd.f32 0.0, %v6254
      %v6256 = vpop.f32.mrb[0].mxu0
      %v6257 = vpop.f32.mrb[0].mxu0
      %v6258 = vadd.f32 0.0, %v6257
      %v6259 = vpop.f32.mrb[0].mxu0
      %6260 = vmatprep.mubr.bf16.mxu0 %v1957
      %6261 = vmatmul.mubr.bf16.gmra.mrb[0].mxu0 %v1956
      %v6262 = vpop.f32.mrb[0].mxu0
      %v6263 = vadd.f32 0.0, %v6262
      %v6264 = vpop.f32.mrb[0].mxu0
      %v6265 = vpop.f32.mrb[0].mxu0
      %v6266 = vadd.f32 0.0, %v6265
      %v6267 = vpop.f32.mrb[0].mxu0
      %6268 = vmatprep.mubr.bf16.mxu0 %v1973
      %6269 = vmatmul.mubr.bf16.gmra.mrb[0].mxu0 %v1972
      %v6270 = vpop.f32.mrb[0].mxu0
      %v6271 = vadd.f32 0.0, %v6270
      %v6272 = vpop.f32.mrb[0].mxu0
      %v6273 = vpop.f32.mrb[0].mxu0
      %v6274 = vadd.f32 0.0, %v6273
      %v6275 = vpop.f32.mrb[0].mxu0
      %6276 = vmatprep.mubr.bf16.mxu0 %v1989
      %6277 = vmatmul.mubr.bf16.gmra.mrb[0].mxu0 %v1988
      %v6278 = vpop.f32.mrb[0].mxu0
      %v6279 = vadd.f32 0.0, %v6278
      %v6280 = vpop.f32.mrb[0].mxu0
      %v6281 = vpop.f32.mrb[0].mxu0
      %v6282 = vadd.f32 0.0, %v6281
      %v6283 = vpop.f32.mrb[0].mxu0
      %6284 = vmatprep.mubr.bf16.mxu0 %v2005
      %6285 = vmatmul.mubr.bf16.gmra.mrb[0].mxu0 %v2004
      %v6286 = vpop.f32.mrb[0].mxu0
      %v6287 = vadd.f32 0.0, %v6286
      %v6288 = vpop.f32.mrb[0].mxu0
      %v6289 = vpop.f32.mrb[0].mxu0
      %v6290 = vadd.f32 0.0, %v6289
      %v6291 = vpop.f32.mrb[0].mxu0
      %6292 = vmatprep.mubr.bf16.mxu0 %v2021
      %6293 = vmatmul.mubr.bf16.gmra.mrb[0].mxu0 %v2020
      %v6294 = vpop.f32.mrb[0].mxu0
      %v6295 = vadd.f32 0.0, %v6294
      %v6296 = vpop.f32.mrb[0].mxu0
      %v6297 = vpop.f32.mrb[0].mxu0
      %v6298 = vadd.f32 0.0, %v6297
      %v6299 = vpop.f32.mrb[0].mxu0
      %6300 = vmatprep.mubr.bf16.mxu0 %v2037
      %6301 = vmatmul.mubr.bf16.gmra.mrb[0].mxu0 %v2036
      %v6302 = vpop.f32.mrb[0].mxu0
      %v6303 = vadd.f32 0.0, %v6302
      %v6304 = vpop.f32.mrb[0].mxu0
      %v6305 = vpop.f32.mrb[0].mxu0
      %v6306 = vadd.f32 0.0, %v6305
      %v6307 = vpop.f32.mrb[0].mxu0
      %6308 = vmatprep.mubr.bf16.mxu0 %v2053
      %6309 = vmatmul.mubr.bf16.gmra.mrb[0].mxu0 %v2052
      %v6310 = vpop.f32.mrb[0].mxu0
      %v6311 = vadd.f32 0.0, %v6310
      %v6312 = vpop.f32.mrb[0].mxu0
      %v6313 = vpop.f32.mrb[0].mxu0
      %v6314 = vadd.f32 0.0, %v6313
      %v6315 = vpop.f32.mrb[0].mxu0
      %6316 = vmatprep.mubr.bf16.mxu0 %v2069
      %6317 = vmatmul.mubr.bf16.gmra.mrb[0].mxu0 %v2068
      %v6318 = vpop.f32.mrb[0].mxu0
      %v6319 = vadd.f32 0.0, %v6318
      %v6320 = vpop.f32.mrb[0].mxu0
      %v6321 = vpop.f32.mrb[0].mxu0
      %v6322 = vadd.f32 0.0, %v6321
      %v6323 = vpop.f32.mrb[0].mxu0
      %6324 = vmatprep.mubr.bf16.mxu0 %v2085
      %6325 = vmatmul.mubr.bf16.gmra.mrb[0].mxu0 %v2084
      %v6326 = vpop.f32.mrb[0].mxu0
      %v6327 = vadd.f32 0.0, %v6326
      %v6328 = vpop.f32.mrb[0].mxu0
      %v6329 = vpop.f32.mrb[0].mxu0
      %v6330 = vadd.f32 0.0, %v6329
      %v6331 = vpop.f32.mrb[0].mxu0
      %6332 = vmatprep.mubr.bf16.mxu0 %v2101
      %6333 = vmatmul.mubr.bf16.gmra.mrb[0].mxu0 %v2100
      %v6334 = vpop.f32.mrb[0].mxu0
      %v6335 = vadd.f32 0.0, %v6334
      %v6336 = vpop.f32.mrb[0].mxu0
      %v6337 = vpop.f32.mrb[0].mxu0
      %v6338 = vadd.f32 0.0, %v6337
      %v6339 = vpop.f32.mrb[0].mxu0
      %6340 = vmatprep.mubr.bf16.mxu0 %v2117
      %6341 = vmatmul.mubr.bf16.gmra.mrb[0].mxu0 %v2116
      %v6342 = vpop.f32.mrb[0].mxu0
      %v6343 = vadd.f32 0.0, %v6342
      %v6344 = vpop.f32.mrb[0].mxu0
      %v6345 = vpop.f32.mrb[0].mxu0
      %v6346 = vadd.f32 0.0, %v6345
      %v6347 = vpop.f32.mrb[0].mxu0
      %6348 = vdwg.mxu0
      %6349 = vmatprep.subr.bf16.mxu0 0
      %6350 = vmatpush1.bf16.msra.mxu0 %v3750
      %6351 = vmatprep.subr.bf16.mxu0 0
      %6352 = vmatpush1.bf16.msra.mxu0 %v3753
      %6353 = vmatprep.subr.bf16.mxu0 0
      %6354 = vmatpush1.bf16.msra.mxu0 %v3756
      %6355 = vmatprep.subr.bf16.mxu0 0
      %6356 = vmatpush1.bf16.msra.mxu0 %v3759
      %6357 = vmatprep.subr.bf16.mxu0 0
      %6358 = vmatpush1.bf16.msra.mxu0 %v3762
      %6359 = vmatprep.subr.bf16.mxu0 0
      %6360 = vmatpush1.bf16.msra.mxu0 %v3765
      %6361 = vmatprep.subr.bf16.mxu0 0
      %6362 = vmatpush1.bf16.msra.mxu0 %v3768
      %6363 = vmatprep.subr.bf16.mxu0 0
      %6364 = vmatpush1.bf16.msra.mxu0 %v3771
      %6365 = vmatprep.subr.bf16.mxu0 0
      %6366 = vmatpush1.bf16.msra.mxu0 %v3774
      %6367 = vmatprep.subr.bf16.mxu0 0
      %6368 = vmatpush1.bf16.msra.mxu0 %v3777
      %6369 = vmatprep.subr.bf16.mxu0 0
      %6370 = vmatpush1.bf16.msra.mxu0 %v3780
      %6371 = vmatprep.subr.bf16.mxu0 0
      %6372 = vmatpush1.bf16.msra.mxu0 %v3783
      %6373 = vmatprep.subr.bf16.mxu0 0
      %6374 = vmatpush1.bf16.msra.mxu0 %v3786
      %6375 = vmatprep.subr.bf16.mxu0 0
      %6376 = vmatpush1.bf16.msra.mxu0 %v3789
      %6377 = vmatprep.subr.bf16.mxu0 0
      %6378 = vmatpush1.bf16.msra.mxu0 %v3792
      %6379 = vmatprep.subr.bf16.mxu0 0
      %6380 = vmatpush1.bf16.msra.mxu0 %v3795
      %6381 = vmatprep.mubr.bf16.mxu0 %v1847
      %6382 = vmatmul.mubr.bf16.gmra.mrb[0].mxu0 %v1846
      %v6383 = vpop.f32.mrb[0].mxu0
      %v6384 = vadd.f32 %v6207, %v6383
      %v6385 = vpop.f32.mrb[0].mxu0
      %v6386 = vpop.f32.mrb[0].mxu0
      %v6387 = vadd.f32 %v6210, %v6386
      %v6388 = vpop.f32.mrb[0].mxu0
      %6389 = vmatprep.mubr.bf16.mxu0 %v1863
      %6390 = vmatmul.mubr.bf16.gmra.mrb[0].mxu0 %v1862
      %v6391 = vpop.f32.mrb[0].mxu0
      %v6392 = vadd.f32 %v6215, %v6391
      %v6393 = vpop.f32.mrb[0].mxu0
      %v6394 = vpop.f32.mrb[0].mxu0
      %v6395 = vadd.f32 %v6218, %v6394
      %v6396 = vpop.f32.mrb[0].mxu0
      %6397 = vmatprep.mubr.bf16.mxu0 %v1879
      %6398 = vmatmul.mubr.bf16.gmra.mrb[0].mxu0 %v1878
      %v6399 = vpop.f32.mrb[0].mxu0
      %v6400 = vadd.f32 %v6223, %v6399
      %v6401 = vpop.f32.mrb[0].mxu0
      %v6402 = vpop.f32.mrb[0].mxu0
      %v6403 = vadd.f32 %v6226, %v6402
      %v6404 = vpop.f32.mrb[0].mxu0
      %6405 = vmatprep.mubr.bf16.mxu0 %v1895
      %6406 = vmatmul.mubr.bf16.gmra.mrb[0].mxu0 %v1894
      %v6407 = vpop.f32.mrb[0].mxu0
      %v6408 = vadd.f32 %v6231, %v6407
      %v6409 = vpop.f32.mrb[0].mxu0
      %v6410 = vpop.f32.mrb[0].mxu0
      %v6411 = vadd.f32 %v6234, %v6410
      %v6412 = vpop.f32.mrb[0].mxu0
      %6413 = vmatprep.mubr.bf16.mxu0 %v1911
      %6414 = vmatmul.mubr.bf16.gmra.mrb[0].mxu0 %v1910
      %v6415 = vpop.f32.mrb[0].mxu0
      %v6416 = vadd.f32 %v6239, %v6415
      %v6417 = vpop.f32.mrb[0].mxu0
      %v6418 = vpop.f32.mrb[0].mxu0
      %v6419 = vadd.f32 %v6242, %v6418
      %v6420 = vpop.f32.mrb[0].mxu0
      %6421 = vmatprep.mubr.bf16.mxu0 %v1927
      %6422 = vmatmul.mubr.bf16.gmra.mrb[0].mxu0 %v1926
      %v6423 = vpop.f32.mrb[0].mxu0
      %v6424 = vadd.f32 %v6247, %v6423
      %v6425 = vpop.f32.mrb[0].mxu0
      %v6426 = vpop.f32.mrb[0].mxu0
      %v6427 = vadd.f32 %v6250, %v6426
      %v6428 = vpop.f32.mrb[0].mxu0
      %6429 = vmatprep.mubr.bf16.mxu0 %v1943
      %6430 = vmatmul.mubr.bf16.gmra.mrb[0].mxu0 %v1942
      %v6431 = vpop.f32.mrb[0].mxu0
      %v6432 = vadd.f32 %v6255, %v6431
      %v6433 = vpop.f32.mrb[0].mxu0
      %v6434 = vpop.f32.mrb[0].mxu0
      %v6435 = vadd.f32 %v6258, %v6434
      %v6436 = vpop.f32.mrb[0].mxu0
      %6437 = vmatprep.mubr.bf16.mxu0 %v1959
      %6438 = vmatmul.mubr.bf16.gmra.mrb[0].mxu0 %v1958
      %v6439 = vpop.f32.mrb[0].mxu0
      %v6440 = vadd.f32 %v6263, %v6439
      %v6441 = vpop.f32.mrb[0].mxu0
      %v6442 = vpop.f32.mrb[0].mxu0
      %v6443 = vadd.f32 %v6266, %v6442
      %v6444 = vpop.f32.mrb[0].mxu0
      %6445 = vmatprep.mubr.bf16.mxu0 %v1975
      %6446 = vmatmul.mubr.bf16.gmra.mrb[0].mxu0 %v1974
      %v6447 = vpop.f32.mrb[0].mxu0
      %v6448 = vadd.f32 %v6271, %v6447
      %v6449 = vpop.f32.mrb[0].mxu0
      %v6450 = vpop.f32.mrb[0].mxu0
      %v6451 = vadd.f32 %v6274, %v6450
      %v6452 = vpop.f32.mrb[0].mxu0
      %6453 = vmatprep.mubr.bf16.mxu0 %v1991
      %6454 = vmatmul.mubr.bf16.gmra.mrb[0].mxu0 %v1990
      %v6455 = vpop.f32.mrb[0].mxu0
      %v6456 = vadd.f32 %v6279, %v6455
      %v6457 = vpop.f32.mrb[0].mxu0
      %v6458 = vpop.f32.mrb[0].mxu0
      %v6459 = vadd.f32 %v6282, %v6458
      %v6460 = vpop.f32.mrb[0].mxu0
      %6461 = vmatprep.mubr.bf16.mxu0 %v2007
      %6462 = vmatmul.mubr.bf16.gmra.mrb[0].mxu0 %v2006
      %v6463 = vpop.f32.mrb[0].mxu0
      %v6464 = vadd.f32 %v6287, %v6463
      %v6465 = vpop.f32.mrb[0].mxu0
      %v6466 = vpop.f32.mrb[0].mxu0
      %v6467 = vadd.f32 %v6290, %v6466
      %v6468 = vpop.f32.mrb[0].mxu0
      %6469 = vmatprep.mubr.bf16.mxu0 %v2023
      %6470 = vmatmul.mubr.bf16.gmra.mrb[0].mxu0 %v2022
      %v6471 = vpop.f32.mrb[0].mxu0
      %v6472 = vadd.f32 %v6295, %v6471
      %v6473 = vpop.f32.mrb[0].mxu0
      %v6474 = vpop.f32.mrb[0].mxu0
      %v6475 = vadd.f32 %v6298, %v6474
      %v6476 = vpop.f32.mrb[0].mxu0
      %6477 = vmatprep.mubr.bf16.mxu0 %v2039
      %6478 = vmatmul.mubr.bf16.gmra.mrb[0].mxu0 %v2038
      %v6479 = vpop.f32.mrb[0].mxu0
      %v6480 = vadd.f32 %v6303, %v6479
      %v6481 = vpop.f32.mrb[0].mxu0
      %v6482 = vpop.f32.mrb[0].mxu0
      %v6483 = vadd.f32 %v6306, %v6482
      %v6484 = vpop.f32.mrb[0].mxu0
      %6485 = vmatprep.mubr.bf16.mxu0 %v2055
      %6486 = vmatmul.mubr.bf16.gmra.mrb[0].mxu0 %v2054
      %v6487 = vpop.f32.mrb[0].mxu0
      %v6488 = vadd.f32 %v6311, %v6487
      %v6489 = vpop.f32.mrb[0].mxu0
      %v6490 = vpop.f32.mrb[0].mxu0
      %v6491 = vadd.f32 %v6314, %v6490
      %v6492 = vpop.f32.mrb[0].mxu0
      %6493 = vmatprep.mubr.bf16.mxu0 %v2071
      %6494 = vmatmul.mubr.bf16.gmra.mrb[0].mxu0 %v2070
      %v6495 = vpop.f32.mrb[0].mxu0
      %v6496 = vadd.f32 %v6319, %v6495
      %v6497 = vpop.f32.mrb[0].mxu0
      %v6498 = vpop.f32.mrb[0].mxu0
      %v6499 = vadd.f32 %v6322, %v6498
      %v6500 = vpop.f32.mrb[0].mxu0
      %6501 = vmatprep.mubr.bf16.mxu0 %v2087
      %6502 = vmatmul.mubr.bf16.gmra.mrb[0].mxu0 %v2086
      %v6503 = vpop.f32.mrb[0].mxu0
      %v6504 = vadd.f32 %v6327, %v6503
      %v6505 = vpop.f32.mrb[0].mxu0
      %v6506 = vpop.f32.mrb[0].mxu0
      %v6507 = vadd.f32 %v6330, %v6506
      %v6508 = vpop.f32.mrb[0].mxu0
      %6509 = vmatprep.mubr.bf16.mxu0 %v2103
      %6510 = vmatmul.mubr.bf16.gmra.mrb[0].mxu0 %v2102
      %v6511 = vpop.f32.mrb[0].mxu0
      %v6512 = vadd.f32 %v6335, %v6511
      %v6513 = vpop.f32.mrb[0].mxu0
      %v6514 = vpop.f32.mrb[0].mxu0
      %v6515 = vadd.f32 %v6338, %v6514
      %v6516 = vpop.f32.mrb[0].mxu0
      %6517 = vmatprep.mubr.bf16.mxu0 %v2119
      %6518 = vmatmul.mubr.bf16.gmra.mrb[0].mxu0 %v2118
      %v6519 = vpop.f32.mrb[0].mxu0
      %v6520 = vadd.f32 %v6343, %v6519
      %v6521 = vpop.f32.mrb[0].mxu0
      %v6522 = vpop.f32.mrb[0].mxu0
      %v6523 = vadd.f32 %v6346, %v6522
      %v6524 = vpop.f32.mrb[0].mxu0
      %6525 = vdwg.mxu0
      %6526 = vmatprep.subr.bf16.mxu0 0
      %6527 = vmatpush1.bf16.msra.mxu0 %v3798
      %6528 = vmatprep.subr.bf16.mxu0 0
      %6529 = vmatpush1.bf16.msra.mxu0 %v3801
      %6530 = vmatprep.subr.bf16.mxu0 0
      %6531 = vmatpush1.bf16.msra.mxu0 %v3804
      %6532 = vmatprep.subr.bf16.mxu0 0
      %6533 = vmatpush1.bf16.msra.mxu0 %v3807
      %6534 = vmatprep.subr.bf16.mxu0 0
      %6535 = vmatpush1.bf16.msra.mxu0 %v3810
      %6536 = vmatprep.subr.bf16.mxu0 0
      %6537 = vmatpush1.bf16.msra.mxu0 %v3813
      %6538 = vmatprep.subr.bf16.mxu0 0
      %6539 = vmatpush1.bf16.msra.mxu0 %v3816
      %6540 = vmatprep.subr.bf16.mxu0 0
      %6541 = vmatpush1.bf16.msra.mxu0 %v3819
      %6542 = vmatprep.subr.bf16.mxu0 0
      %6543 = vmatpush1.bf16.msra.mxu0 %v3822
      %6544 = vmatprep.subr.bf16.mxu0 0
      %6545 = vmatpush1.bf16.msra.mxu0 %v3825
      %6546 = vmatprep.subr.bf16.mxu0 0
      %6547 = vmatpush1.bf16.msra.mxu0 %v3828
      %6548 = vmatprep.subr.bf16.mxu0 0
      %6549 = vmatpush1.bf16.msra.mxu0 %v3831
      %6550 = vmatprep.subr.bf16.mxu0 0
      %6551 = vmatpush1.bf16.msra.mxu0 %v3834
      %6552 = vmatprep.subr.bf16.mxu0 0
      %6553 = vmatpush1.bf16.msra.mxu0 %v3837
      %6554 = vmatprep.subr.bf16.mxu0 0
      %6555 = vmatpush1.bf16.msra.mxu0 %v3840
      %6556 = vmatprep.subr.bf16.mxu0 0
      %6557 = vmatpush1.bf16.msra.mxu0 %v3843
      %6558 = vmatprep.mubr.bf16.mxu0 %v1849
      %6559 = vmatmul.mubr.bf16.gmra.mrb[0].mxu0 %v1848
      %v6560 = vpop.f32.mrb[0].mxu0
      %v6561 = vadd.f32 %v6384, %v6560
      %v6562 = vpop.f32.mrb[0].mxu0
      %v6563 = vpop.f32.mrb[0].mxu0
      %v6564 = vadd.f32 %v6387, %v6563
      %v6565 = vpop.f32.mrb[0].mxu0
      %6566 = vmatprep.mubr.bf16.mxu0 %v1865
      %6567 = vmatmul.mubr.bf16.gmra.mrb[0].mxu0 %v1864
      %v6568 = vpop.f32.mrb[0].mxu0
      %v6569 = vadd.f32 %v6392, %v6568
      %v6570 = vpop.f32.mrb[0].mxu0
      %v6571 = vpop.f32.mrb[0].mxu0
      %v6572 = vadd.f32 %v6395, %v6571
      %v6573 = vpop.f32.mrb[0].mxu0
      %6574 = vmatprep.mubr.bf16.mxu0 %v1881
      %6575 = vmatmul.mubr.bf16.gmra.mrb[0].mxu0 %v1880
      %v6576 = vpop.f32.mrb[0].mxu0
      %v6577 = vadd.f32 %v6400, %v6576
      %v6578 = vpop.f32.mrb[0].mxu0
      %v6579 = vpop.f32.mrb[0].mxu0
      %v6580 = vadd.f32 %v6403, %v6579
      %v6581 = vpop.f32.mrb[0].mxu0
      %6582 = vmatprep.mubr.bf16.mxu0 %v1897
      %6583 = vmatmul.mubr.bf16.gmra.mrb[0].mxu0 %v1896
      %v6584 = vpop.f32.mrb[0].mxu0
      %v6585 = vadd.f32 %v6408, %v6584
      %v6586 = vpop.f32.mrb[0].mxu0
      %v6587 = vpop.f32.mrb[0].mxu0
      %v6588 = vadd.f32 %v6411, %v6587
      %v6589 = vpop.f32.mrb[0].mxu0
      %6590 = vmatprep.mubr.bf16.mxu0 %v1913
      %6591 = vmatmul.mubr.bf16.gmra.mrb[0].mxu0 %v1912
      %v6592 = vpop.f32.mrb[0].mxu0
      %v6593 = vadd.f32 %v6416, %v6592
      %v6594 = vpop.f32.mrb[0].mxu0
      %v6595 = vpop.f32.mrb[0].mxu0
      %v6596 = vadd.f32 %v6419, %v6595
      %v6597 = vpop.f32.mrb[0].mxu0
      %6598 = vmatprep.mubr.bf16.mxu0 %v1929
      %6599 = vmatmul.mubr.bf16.gmra.mrb[0].mxu0 %v1928
      %v6600 = vpop.f32.mrb[0].mxu0
      %v6601 = vadd.f32 %v6424, %v6600
      %v6602 = vpop.f32.mrb[0].mxu0
      %v6603 = vpop.f32.mrb[0].mxu0
      %v6604 = vadd.f32 %v6427, %v6603
      %v6605 = vpop.f32.mrb[0].mxu0
      %6606 = vmatprep.mubr.bf16.mxu0 %v1945
      %6607 = vmatmul.mubr.bf16.gmra.mrb[0].mxu0 %v1944
      %v6608 = vpop.f32.mrb[0].mxu0
      %v6609 = vadd.f32 %v6432, %v6608
      %v6610 = vpop.f32.mrb[0].mxu0
      %v6611 = vpop.f32.mrb[0].mxu0
      %v6612 = vadd.f32 %v6435, %v6611
      %v6613 = vpop.f32.mrb[0].mxu0
      %6614 = vmatprep.mubr.bf16.mxu0 %v1961
      %6615 = vmatmul.mubr.bf16.gmra.mrb[0].mxu0 %v1960
      %v6616 = vpop.f32.mrb[0].mxu0
      %v6617 = vadd.f32 %v6440, %v6616
      %v6618 = vpop.f32.mrb[0].mxu0
      %v6619 = vpop.f32.mrb[0].mxu0
      %v6620 = vadd.f32 %v6443, %v6619
      %v6621 = vpop.f32.mrb[0].mxu0
      %6622 = vmatprep.mubr.bf16.mxu0 %v1977
      %6623 = vmatmul.mubr.bf16.gmra.mrb[0].mxu0 %v1976
      %v6624 = vpop.f32.mrb[0].mxu0
      %v6625 = vadd.f32 %v6448, %v6624
      %v6626 = vpop.f32.mrb[0].mxu0
      %v6627 = vpop.f32.mrb[0].mxu0
      %v6628 = vadd.f32 %v6451, %v6627
      %v6629 = vpop.f32.mrb[0].mxu0
      %6630 = vmatprep.mubr.bf16.mxu0 %v1993
      %6631 = vmatmul.mubr.bf16.gmra.mrb[0].mxu0 %v1992
      %v6632 = vpop.f32.mrb[0].mxu0
      %v6633 = vadd.f32 %v6456, %v6632
      %v6634 = vpop.f32.mrb[0].mxu0
      %v6635 = vpop.f32.mrb[0].mxu0
      %v6636 = vadd.f32 %v6459, %v6635
      %v6637 = vpop.f32.mrb[0].mxu0
      %6638 = vmatprep.mubr.bf16.mxu0 %v2009
      %6639 = vmatmul.mubr.bf16.gmra.mrb[0].mxu0 %v2008
      %v6640 = vpop.f32.mrb[0].mxu0
      %v6641 = vadd.f32 %v6464, %v6640
      %v6642 = vpop.f32.mrb[0].mxu0
      %v6643 = vpop.f32.mrb[0].mxu0
      %v6644 = vadd.f32 %v6467, %v6643
      %v6645 = vpop.f32.mrb[0].mxu0
      %6646 = vmatprep.mubr.bf16.mxu0 %v2025
      %6647 = vmatmul.mubr.bf16.gmra.mrb[0].mxu0 %v2024
      %v6648 = vpop.f32.mrb[0].mxu0
      %v6649 = vadd.f32 %v6472, %v6648
      %v6650 = vpop.f32.mrb[0].mxu0
      %v6651 = vpop.f32.mrb[0].mxu0
      %v6652 = vadd.f32 %v6475, %v6651
      %v6653 = vpop.f32.mrb[0].mxu0
      %6654 = vmatprep.mubr.bf16.mxu0 %v2041
      %6655 = vmatmul.mubr.bf16.gmra.mrb[0].mxu0 %v2040
      %v6656 = vpop.f32.mrb[0].mxu0
      %v6657 = vadd.f32 %v6480, %v6656
      %v6658 = vpop.f32.mrb[0].mxu0
      %v6659 = vpop.f32.mrb[0].mxu0
      %v6660 = vadd.f32 %v6483, %v6659
      %v6661 = vpop.f32.mrb[0].mxu0
      %6662 = vmatprep.mubr.bf16.mxu0 %v2057
      %6663 = vmatmul.mubr.bf16.gmra.mrb[0].mxu0 %v2056
      %v6664 = vpop.f32.mrb[0].mxu0
      %v6665 = vadd.f32 %v6488, %v6664
      %v6666 = vpop.f32.mrb[0].mxu0
      %v6667 = vpop.f32.mrb[0].mxu0
      %v6668 = vadd.f32 %v6491, %v6667
      %v6669 = vpop.f32.mrb[0].mxu0
      %6670 = vmatprep.mubr.bf16.mxu0 %v2073
      %6671 = vmatmul.mubr.bf16.gmra.mrb[0].mxu0 %v2072
      %v6672 = vpop.f32.mrb[0].mxu0
      %v6673 = vadd.f32 %v6496, %v6672
      %v6674 = vpop.f32.mrb[0].mxu0
      %v6675 = vpop.f32.mrb[0].mxu0
      %v6676 = vadd.f32 %v6499, %v6675
      %v6677 = vpop.f32.mrb[0].mxu0
      %6678 = vmatprep.mubr.bf16.mxu0 %v2089
      %6679 = vmatmul.mubr.bf16.gmra.mrb[0].mxu0 %v2088
      %v6680 = vpop.f32.mrb[0].mxu0
      %v6681 = vadd.f32 %v6504, %v6680
      %v6682 = vpop.f32.mrb[0].mxu0
      %v6683 = vpop.f32.mrb[0].mxu0
      %v6684 = vadd.f32 %v6507, %v6683
      %v6685 = vpop.f32.mrb[0].mxu0
      %6686 = vmatprep.mubr.bf16.mxu0 %v2105
      %6687 = vmatmul.mubr.bf16.gmra.mrb[0].mxu0 %v2104
      %v6688 = vpop.f32.mrb[0].mxu0
      %v6689 = vadd.f32 %v6512, %v6688
      %v6690 = vpop.f32.mrb[0].mxu0
      %v6691 = vpop.f32.mrb[0].mxu0
      %v6692 = vadd.f32 %v6515, %v6691
      %v6693 = vpop.f32.mrb[0].mxu0
      %6694 = vmatprep.mubr.bf16.mxu0 %v2121
      %6695 = vmatmul.mubr.bf16.gmra.mrb[0].mxu0 %v2120
      %v6696 = vpop.f32.mrb[0].mxu0
      %v6697 = vadd.f32 %v6520, %v6696
      %v6698 = vpop.f32.mrb[0].mxu0
      %v6699 = vpop.f32.mrb[0].mxu0
      %v6700 = vadd.f32 %v6523, %v6699
      %v6701 = vpop.f32.mrb[0].mxu0
      %6702 = vdwg.mxu0
      %6703 = vmatprep.subr.bf16.mxu0 0
      %6704 = vmatpush1.bf16.msra.mxu0 %v3846
      %6705 = vmatprep.subr.bf16.mxu0 0
      %6706 = vmatpush1.bf16.msra.mxu0 %v3849
      %6707 = vmatprep.subr.bf16.mxu0 0
      %6708 = vmatpush1.bf16.msra.mxu0 %v3852
      %6709 = vmatprep.subr.bf16.mxu0 0
      %6710 = vmatpush1.bf16.msra.mxu0 %v3855
      %6711 = vmatprep.subr.bf16.mxu0 0
      %6712 = vmatpush1.bf16.msra.mxu0 %v3858
      %6713 = vmatprep.subr.bf16.mxu0 0
      %6714 = vmatpush1.bf16.msra.mxu0 %v3861
      %6715 = vmatprep.subr.bf16.mxu0 0
      %6716 = vmatpush1.bf16.msra.mxu0 %v3864
      %6717 = vmatprep.subr.bf16.mxu0 0
      %6718 = vmatpush1.bf16.msra.mxu0 %v3867
      %6719 = vmatprep.subr.bf16.mxu0 0
      %6720 = vmatpush1.bf16.msra.mxu0 %v3870
      %6721 = vmatprep.subr.bf16.mxu0 0
      %6722 = vmatpush1.bf16.msra.mxu0 %v3873
      %6723 = vmatprep.subr.bf16.mxu0 0
      %6724 = vmatpush1.bf16.msra.mxu0 %v3876
      %6725 = vmatprep.subr.bf16.mxu0 0
      %6726 = vmatpush1.bf16.msra.mxu0 %v3879
      %6727 = vmatprep.subr.bf16.mxu0 0
      %6728 = vmatpush1.bf16.msra.mxu0 %v3882
      %6729 = vmatprep.subr.bf16.mxu0 0
      %6730 = vmatpush1.bf16.msra.mxu0 %v3885
      %6731 = vmatprep.subr.bf16.mxu0 0
      %6732 = vmatpush1.bf16.msra.mxu0 %v3888
      %6733 = vmatprep.subr.bf16.mxu0 0
      %6734 = vmatpush1.bf16.msra.mxu0 %v3891
      %6735 = vmatprep.mubr.bf16.mxu0 %v1851
      %6736 = vmatmul.mubr.bf16.gmra.mrb[0].mxu0 %v1850
      %v6737 = vpop.f32.mrb[0].mxu0
      %v6738 = vadd.f32 %v6561, %v6737
      %v6739 = vpop.f32.mrb[0].mxu0
      %v6740 = vpop.f32.mrb[0].mxu0
      %v6741 = vadd.f32 %v6564, %v6740
      %v6742 = vpop.f32.mrb[0].mxu0
      %6743 = vmatprep.mubr.bf16.mxu0 %v1867
      %6744 = vmatmul.mubr.bf16.gmra.mrb[0].mxu0 %v1866
      %v6745 = vpop.f32.mrb[0].mxu0
      %v6746 = vadd.f32 %v6569, %v6745
      %v6747 = vpop.f32.mrb[0].mxu0
      %v6748 = vpop.f32.mrb[0].mxu0
      %v6749 = vadd.f32 %v6572, %v6748
      %v6750 = vpop.f32.mrb[0].mxu0
      %6751 = vmatprep.mubr.bf16.mxu0 %v1883
      %6752 = vmatmul.mubr.bf16.gmra.mrb[0].mxu0 %v1882
      %v6753 = vpop.f32.mrb[0].mxu0
      %v6754 = vadd.f32 %v6577, %v6753
      %v6755 = vpop.f32.mrb[0].mxu0
      %v6756 = vpop.f32.mrb[0].mxu0
      %v6757 = vadd.f32 %v6580, %v6756
      %v6758 = vpop.f32.mrb[0].mxu0
      %6759 = vmatprep.mubr.bf16.mxu0 %v1899
      %6760 = vmatmul.mubr.bf16.gmra.mrb[0].mxu0 %v1898
      %v6761 = vpop.f32.mrb[0].mxu0
      %v6762 = vadd.f32 %v6585, %v6761
      %v6763 = vpop.f32.mrb[0].mxu0
      %v6764 = vpop.f32.mrb[0].mxu0
      %v6765 = vadd.f32 %v6588, %v6764
      %v6766 = vpop.f32.mrb[0].mxu0
      %6767 = vmatprep.mubr.bf16.mxu0 %v1915
      %6768 = vmatmul.mubr.bf16.gmra.mrb[0].mxu0 %v1914
      %v6769 = vpop.f32.mrb[0].mxu0
      %v6770 = vadd.f32 %v6593, %v6769
      %v6771 = vpop.f32.mrb[0].mxu0
      %v6772 = vpop.f32.mrb[0].mxu0
      %v6773 = vadd.f32 %v6596, %v6772
      %v6774 = vpop.f32.mrb[0].mxu0
      %6775 = vmatprep.mubr.bf16.mxu0 %v1931
      %6776 = vmatmul.mubr.bf16.gmra.mrb[0].mxu0 %v1930
      %v6777 = vpop.f32.mrb[0].mxu0
      %v6778 = vadd.f32 %v6601, %v6777
      %v6779 = vpop.f32.mrb[0].mxu0
      %v6780 = vpop.f32.mrb[0].mxu0
      %v6781 = vadd.f32 %v6604, %v6780
      %v6782 = vpop.f32.mrb[0].mxu0
      %6783 = vmatprep.mubr.bf16.mxu0 %v1947
      %6784 = vmatmul.mubr.bf16.gmra.mrb[0].mxu0 %v1946
      %v6785 = vpop.f32.mrb[0].mxu0
      %v6786 = vadd.f32 %v6609, %v6785
      %v6787 = vpop.f32.mrb[0].mxu0
      %v6788 = vpop.f32.mrb[0].mxu0
      %v6789 = vadd.f32 %v6612, %v6788
      %v6790 = vpop.f32.mrb[0].mxu0
      %6791 = vmatprep.mubr.bf16.mxu0 %v1963
      %6792 = vmatmul.mubr.bf16.gmra.mrb[0].mxu0 %v1962
      %v6793 = vpop.f32.mrb[0].mxu0
      %v6794 = vadd.f32 %v6617, %v6793
      %v6795 = vpop.f32.mrb[0].mxu0
      %v6796 = vpop.f32.mrb[0].mxu0
      %v6797 = vadd.f32 %v6620, %v6796
      %v6798 = vpop.f32.mrb[0].mxu0
      %6799 = vmatprep.mubr.bf16.mxu0 %v1979
      %6800 = vmatmul.mubr.bf16.gmra.mrb[0].mxu0 %v1978
      %v6801 = vpop.f32.mrb[0].mxu0
      %v6802 = vadd.f32 %v6625, %v6801
      %v6803 = vpop.f32.mrb[0].mxu0
      %v6804 = vpop.f32.mrb[0].mxu0
      %v6805 = vadd.f32 %v6628, %v6804
      %v6806 = vpop.f32.mrb[0].mxu0
      %6807 = vmatprep.mubr.bf16.mxu0 %v1995
      %6808 = vmatmul.mubr.bf16.gmra.mrb[0].mxu0 %v1994
      %v6809 = vpop.f32.mrb[0].mxu0
      %v6810 = vadd.f32 %v6633, %v6809
      %v6811 = vpop.f32.mrb[0].mxu0
      %v6812 = vpop.f32.mrb[0].mxu0
      %v6813 = vadd.f32 %v6636, %v6812
      %v6814 = vpop.f32.mrb[0].mxu0
      %6815 = vmatprep.mubr.bf16.mxu0 %v2011
      %6816 = vmatmul.mubr.bf16.gmra.mrb[0].mxu0 %v2010
      %v6817 = vpop.f32.mrb[0].mxu0
      %v6818 = vadd.f32 %v6641, %v6817
      %v6819 = vpop.f32.mrb[0].mxu0
      %v6820 = vpop.f32.mrb[0].mxu0
      %v6821 = vadd.f32 %v6644, %v6820
      %v6822 = vpop.f32.mrb[0].mxu0
      %6823 = vmatprep.mubr.bf16.mxu0 %v2027
      %6824 = vmatmul.mubr.bf16.gmra.mrb[0].mxu0 %v2026
      %v6825 = vpop.f32.mrb[0].mxu0
      %v6826 = vadd.f32 %v6649, %v6825
      %v6827 = vpop.f32.mrb[0].mxu0
      %v6828 = vpop.f32.mrb[0].mxu0
      %v6829 = vadd.f32 %v6652, %v6828
      %v6830 = vpop.f32.mrb[0].mxu0
      %6831 = vmatprep.mubr.bf16.mxu0 %v2043
      %6832 = vmatmul.mubr.bf16.gmra.mrb[0].mxu0 %v2042
      %v6833 = vpop.f32.mrb[0].mxu0
      %v6834 = vadd.f32 %v6657, %v6833
      %v6835 = vpop.f32.mrb[0].mxu0
      %v6836 = vpop.f32.mrb[0].mxu0
      %v6837 = vadd.f32 %v6660, %v6836
      %v6838 = vpop.f32.mrb[0].mxu0
      %6839 = vmatprep.mubr.bf16.mxu0 %v2059
      %6840 = vmatmul.mubr.bf16.gmra.mrb[0].mxu0 %v2058
      %v6841 = vpop.f32.mrb[0].mxu0
      %v6842 = vadd.f32 %v6665, %v6841
      %v6843 = vpop.f32.mrb[0].mxu0
      %v6844 = vpop.f32.mrb[0].mxu0
      %v6845 = vadd.f32 %v6668, %v6844
      %v6846 = vpop.f32.mrb[0].mxu0
      %6847 = vmatprep.mubr.bf16.mxu0 %v2075
      %6848 = vmatmul.mubr.bf16.gmra.mrb[0].mxu0 %v2074
      %v6849 = vpop.f32.mrb[0].mxu0
      %v6850 = vadd.f32 %v6673, %v6849
      %v6851 = vpop.f32.mrb[0].mxu0
      %v6852 = vpop.f32.mrb[0].mxu0
      %v6853 = vadd.f32 %v6676, %v6852
      %v6854 = vpop.f32.mrb[0].mxu0
      %6855 = vmatprep.mubr.bf16.mxu0 %v2091
      %6856 = vmatmul.mubr.bf16.gmra.mrb[0].mxu0 %v2090
      %v6857 = vpop.f32.mrb[0].mxu0
      %v6858 = vadd.f32 %v6681, %v6857
      %v6859 = vpop.f32.mrb[0].mxu0
      %v6860 = vpop.f32.mrb[0].mxu0
      %v6861 = vadd.f32 %v6684, %v6860
      %v6862 = vpop.f32.mrb[0].mxu0
      %6863 = vmatprep.mubr.bf16.mxu0 %v2107
      %6864 = vmatmul.mubr.bf16.gmra.mrb[0].mxu0 %v2106
      %v6865 = vpop.f32.mrb[0].mxu0
      %v6866 = vadd.f32 %v6689, %v6865
      %v6867 = vpop.f32.mrb[0].mxu0
      %v6868 = vpop.f32.mrb[0].mxu0
      %v6869 = vadd.f32 %v6692, %v6868
      %v6870 = vpop.f32.mrb[0].mxu0
      %6871 = vmatprep.mubr.bf16.mxu0 %v2123
      %6872 = vmatmul.mubr.bf16.gmra.mrb[0].mxu0 %v2122
      %v6873 = vpop.f32.mrb[0].mxu0
      %v6874 = vadd.f32 %v6697, %v6873
      %v6875 = vpop.f32.mrb[0].mxu0
      %v6876 = vpop.f32.mrb[0].mxu0
      %v6877 = vadd.f32 %v6700, %v6876
      %v6878 = vpop.f32.mrb[0].mxu0
      %6879 = vdwg.mxu0
      %6880 = vmatprep.subr.bf16.mxu0 0
      %6881 = vmatpush1.bf16.msra.mxu0 %v3894
      %6882 = vmatprep.subr.bf16.mxu0 0
      %6883 = vmatpush1.bf16.msra.mxu0 %v3897
      %6884 = vmatprep.subr.bf16.mxu0 0
      %6885 = vmatpush1.bf16.msra.mxu0 %v3900
      %6886 = vmatprep.subr.bf16.mxu0 0
      %6887 = vmatpush1.bf16.msra.mxu0 %v3903
      %6888 = vmatprep.subr.bf16.mxu0 0
      %6889 = vmatpush1.bf16.msra.mxu0 %v3906
      %6890 = vmatprep.subr.bf16.mxu0 0
      %6891 = vmatpush1.bf16.msra.mxu0 %v3909
      %6892 = vmatprep.subr.bf16.mxu0 0
      %6893 = vmatpush1.bf16.msra.mxu0 %v3912
      %6894 = vmatprep.subr.bf16.mxu0 0
      %6895 = vmatpush1.bf16.msra.mxu0 %v3915
      %6896 = vmatprep.subr.bf16.mxu0 0
      %6897 = vmatpush1.bf16.msra.mxu0 %v3918
      %6898 = vmatprep.subr.bf16.mxu0 0
      %6899 = vmatpush1.bf16.msra.mxu0 %v3921
      %6900 = vmatprep.subr.bf16.mxu0 0
      %6901 = vmatpush1.bf16.msra.mxu0 %v3924
      %6902 = vmatprep.subr.bf16.mxu0 0
      %6903 = vmatpush1.bf16.msra.mxu0 %v3927
      %6904 = vmatprep.subr.bf16.mxu0 0
      %6905 = vmatpush1.bf16.msra.mxu0 %v3930
      %6906 = vmatprep.subr.bf16.mxu0 0
      %6907 = vmatpush1.bf16.msra.mxu0 %v3933
      %6908 = vmatprep.subr.bf16.mxu0 0
      %6909 = vmatpush1.bf16.msra.mxu0 %v3936
      %6910 = vmatprep.subr.bf16.mxu0 0
      %6911 = vmatpush1.bf16.msra.mxu0 %v3939
      %6912 = vmatprep.mubr.bf16.mxu0 %v1853
      %6913 = vmatmul.mubr.bf16.gmra.mrb[0].mxu0 %v1852
      %v6914 = vpop.f32.mrb[0].mxu0
      %v6915 = vadd.f32 %v6738, %v6914
      %v6916 = vpop.f32.mrb[0].mxu0
      %v6917 = vpop.f32.mrb[0].mxu0
      %v6918 = vadd.f32 %v6741, %v6917
      %v6919 = vpop.f32.mrb[0].mxu0
      %6920 = vmatprep.mubr.bf16.mxu0 %v1869
      %6921 = vmatmul.mubr.bf16.gmra.mrb[0].mxu0 %v1868
      %v6922 = vpop.f32.mrb[0].mxu0
      %v6923 = vadd.f32 %v6746, %v6922
      %v6924 = vpop.f32.mrb[0].mxu0
      %v6925 = vpop.f32.mrb[0].mxu0
      %v6926 = vadd.f32 %v6749, %v6925
      %v6927 = vpop.f32.mrb[0].mxu0
      %6928 = vmatprep.mubr.bf16.mxu0 %v1885
      %6929 = vmatmul.mubr.bf16.gmra.mrb[0].mxu0 %v1884
      %v6930 = vpop.f32.mrb[0].mxu0
      %v6931 = vadd.f32 %v6754, %v6930
      %v6932 = vpop.f32.mrb[0].mxu0
      %v6933 = vpop.f32.mrb[0].mxu0
      %v6934 = vadd.f32 %v6757, %v6933
      %v6935 = vpop.f32.mrb[0].mxu0
      %6936 = vmatprep.mubr.bf16.mxu0 %v1901
      %6937 = vmatmul.mubr.bf16.gmra.mrb[0].mxu0 %v1900
      %v6938 = vpop.f32.mrb[0].mxu0
      %v6939 = vadd.f32 %v6762, %v6938
      %v6940 = vpop.f32.mrb[0].mxu0
      %v6941 = vpop.f32.mrb[0].mxu0
      %v6942 = vadd.f32 %v6765, %v6941
      %v6943 = vpop.f32.mrb[0].mxu0
      %6944 = vmatprep.mubr.bf16.mxu0 %v1917
      %6945 = vmatmul.mubr.bf16.gmra.mrb[0].mxu0 %v1916
      %v6946 = vpop.f32.mrb[0].mxu0
      %v6947 = vadd.f32 %v6770, %v6946
      %v6948 = vpop.f32.mrb[0].mxu0
      %v6949 = vpop.f32.mrb[0].mxu0
      %v6950 = vadd.f32 %v6773, %v6949
      %v6951 = vpop.f32.mrb[0].mxu0
      %6952 = vmatprep.mubr.bf16.mxu0 %v1933
      %6953 = vmatmul.mubr.bf16.gmra.mrb[0].mxu0 %v1932
      %v6954 = vpop.f32.mrb[0].mxu0
      %v6955 = vadd.f32 %v6778, %v6954
      %v6956 = vpop.f32.mrb[0].mxu0
      %v6957 = vpop.f32.mrb[0].mxu0
      %v6958 = vadd.f32 %v6781, %v6957
      %v6959 = vpop.f32.mrb[0].mxu0
      %6960 = vmatprep.mubr.bf16.mxu0 %v1949
      %6961 = vmatmul.mubr.bf16.gmra.mrb[0].mxu0 %v1948
      %v6962 = vpop.f32.mrb[0].mxu0
      %v6963 = vadd.f32 %v6786, %v6962
      %v6964 = vpop.f32.mrb[0].mxu0
      %v6965 = vpop.f32.mrb[0].mxu0
      %v6966 = vadd.f32 %v6789, %v6965
      %v6967 = vpop.f32.mrb[0].mxu0
      %6968 = vmatprep.mubr.bf16.mxu0 %v1965
      %6969 = vmatmul.mubr.bf16.gmra.mrb[0].mxu0 %v1964
      %v6970 = vpop.f32.mrb[0].mxu0
      %v6971 = vadd.f32 %v6794, %v6970
      %v6972 = vpop.f32.mrb[0].mxu0
      %v6973 = vpop.f32.mrb[0].mxu0
      %v6974 = vadd.f32 %v6797, %v6973
      %v6975 = vpop.f32.mrb[0].mxu0
      %6976 = vmatprep.mubr.bf16.mxu0 %v1981
      %6977 = vmatmul.mubr.bf16.gmra.mrb[0].mxu0 %v1980
      %v6978 = vpop.f32.mrb[0].mxu0
      %v6979 = vadd.f32 %v6802, %v6978
      %v6980 = vpop.f32.mrb[0].mxu0
      %v6981 = vpop.f32.mrb[0].mxu0
      %v6982 = vadd.f32 %v6805, %v6981
      %v6983 = vpop.f32.mrb[0].mxu0
      %6984 = vmatprep.mubr.bf16.mxu0 %v1997
      %6985 = vmatmul.mubr.bf16.gmra.mrb[0].mxu0 %v1996
      %v6986 = vpop.f32.mrb[0].mxu0
      %v6987 = vadd.f32 %v6810, %v6986
      %v6988 = vpop.f32.mrb[0].mxu0
      %v6989 = vpop.f32.mrb[0].mxu0
      %v6990 = vadd.f32 %v6813, %v6989
      %v6991 = vpop.f32.mrb[0].mxu0
      %6992 = vmatprep.mubr.bf16.mxu0 %v2013
      %6993 = vmatmul.mubr.bf16.gmra.mrb[0].mxu0 %v2012
      %v6994 = vpop.f32.mrb[0].mxu0
      %v6995 = vadd.f32 %v6818, %v6994
      %v6996 = vpop.f32.mrb[0].mxu0
      %v6997 = vpop.f32.mrb[0].mxu0
      %v6998 = vadd.f32 %v6821, %v6997
      %v6999 = vpop.f32.mrb[0].mxu0
      %7000 = vmatprep.mubr.bf16.mxu0 %v2029
      %7001 = vmatmul.mubr.bf16.gmra.mrb[0].mxu0 %v2028
      %v7002 = vpop.f32.mrb[0].mxu0
      %v7003 = vadd.f32 %v6826, %v7002
      %v7004 = vpop.f32.mrb[0].mxu0
      %v7005 = vpop.f32.mrb[0].mxu0
      %v7006 = vadd.f32 %v6829, %v7005
      %v7007 = vpop.f32.mrb[0].mxu0
      %7008 = vmatprep.mubr.bf16.mxu0 %v2045
      %7009 = vmatmul.mubr.bf16.gmra.mrb[0].mxu0 %v2044
      %v7010 = vpop.f32.mrb[0].mxu0
      %v7011 = vadd.f32 %v6834, %v7010
      %v7012 = vpop.f32.mrb[0].mxu0
      %v7013 = vpop.f32.mrb[0].mxu0
      %v7014 = vadd.f32 %v6837, %v7013
      %v7015 = vpop.f32.mrb[0].mxu0
      %7016 = vmatprep.mubr.bf16.mxu0 %v2061
      %7017 = vmatmul.mubr.bf16.gmra.mrb[0].mxu0 %v2060
      %v7018 = vpop.f32.mrb[0].mxu0
      %v7019 = vadd.f32 %v6842, %v7018
      %v7020 = vpop.f32.mrb[0].mxu0
      %v7021 = vpop.f32.mrb[0].mxu0
      %v7022 = vadd.f32 %v6845, %v7021
      %v7023 = vpop.f32.mrb[0].mxu0
      %7024 = vmatprep.mubr.bf16.mxu0 %v2077
      %7025 = vmatmul.mubr.bf16.gmra.mrb[0].mxu0 %v2076
      %v7026 = vpop.f32.mrb[0].mxu0
      %v7027 = vadd.f32 %v6850, %v7026
      %v7028 = vpop.f32.mrb[0].mxu0
      %v7029 = vpop.f32.mrb[0].mxu0
      %v7030 = vadd.f32 %v6853, %v7029
      %v7031 = vpop.f32.mrb[0].mxu0
      %7032 = vmatprep.mubr.bf16.mxu0 %v2093
      %7033 = vmatmul.mubr.bf16.gmra.mrb[0].mxu0 %v2092
      %v7034 = vpop.f32.mrb[0].mxu0
      %v7035 = vadd.f32 %v6858, %v7034
      %v7036 = vpop.f32.mrb[0].mxu0
      %v7037 = vpop.f32.mrb[0].mxu0
      %v7038 = vadd.f32 %v6861, %v7037
      %v7039 = vpop.f32.mrb[0].mxu0
      %7040 = vmatprep.mubr.bf16.mxu0 %v2109
      %7041 = vmatmul.mubr.bf16.gmra.mrb[0].mxu0 %v2108
      %v7042 = vpop.f32.mrb[0].mxu0
      %v7043 = vadd.f32 %v6866, %v7042
      %v7044 = vpop.f32.mrb[0].mxu0
      %v7045 = vpop.f32.mrb[0].mxu0
      %v7046 = vadd.f32 %v6869, %v7045
      %v7047 = vpop.f32.mrb[0].mxu0
      %7048 = vmatprep.mubr.bf16.mxu0 %v2125
      %7049 = vmatmul.mubr.bf16.gmra.mrb[0].mxu0 %v2124
      %v7050 = vpop.f32.mrb[0].mxu0
      %v7051 = vadd.f32 %v6874, %v7050
      %v7052 = vpop.f32.mrb[0].mxu0
      %v7053 = vpop.f32.mrb[0].mxu0
      %v7054 = vadd.f32 %v6877, %v7053
      %v7055 = vpop.f32.mrb[0].mxu0
      %7056 = vdwg.mxu0
      %7057 = vmatprep.subr.bf16.mxu0 0
      %7058 = vmatpush1.bf16.msra.mxu0 %v3942
      %7059 = vmatprep.subr.bf16.mxu0 0
      %7060 = vmatpush1.bf16.msra.mxu0 %v3945
      %7061 = vmatprep.subr.bf16.mxu0 0
      %7062 = vmatpush1.bf16.msra.mxu0 %v3948
      %7063 = vmatprep.subr.bf16.mxu0 0
      %7064 = vmatpush1.bf16.msra.mxu0 %v3951
      %7065 = vmatprep.subr.bf16.mxu0 0
      %7066 = vmatpush1.bf16.msra.mxu0 %v3954
      %7067 = vmatprep.subr.bf16.mxu0 0
      %7068 = vmatpush1.bf16.msra.mxu0 %v3957
      %7069 = vmatprep.subr.bf16.mxu0 0
      %7070 = vmatpush1.bf16.msra.mxu0 %v3960
      %7071 = vmatprep.subr.bf16.mxu0 0
      %7072 = vmatpush1.bf16.msra.mxu0 %v3963
      %7073 = vmatprep.subr.bf16.mxu0 0
      %7074 = vmatpush1.bf16.msra.mxu0 %v3966
      %7075 = vmatprep.subr.bf16.mxu0 0
      %7076 = vmatpush1.bf16.msra.mxu0 %v3969
      %7077 = vmatprep.subr.bf16.mxu0 0
      %7078 = vmatpush1.bf16.msra.mxu0 %v3972
      %7079 = vmatprep.subr.bf16.mxu0 0
      %7080 = vmatpush1.bf16.msra.mxu0 %v3975
      %7081 = vmatprep.subr.bf16.mxu0 0
      %7082 = vmatpush1.bf16.msra.mxu0 %v3978
      %7083 = vmatprep.subr.bf16.mxu0 0
      %7084 = vmatpush1.bf16.msra.mxu0 %v3981
      %7085 = vmatprep.subr.bf16.mxu0 0
      %7086 = vmatpush1.bf16.msra.mxu0 %v3984
      %7087 = vmatprep.subr.bf16.mxu0 0
      %7088 = vmatpush1.bf16.msra.mxu0 %v3987
      %7089 = vmatprep.mubr.bf16.mxu0 %v1855
      %7090 = vmatmul.mubr.bf16.gmra.mrb[0].mxu0 %v1854
      %v7091 = vpop.f32.mrb[0].mxu0
      %v7092 = vadd.f32 %v6915, %v7091
      %v7093 = vpop.f32.mrb[0].mxu0
      %v7094 = vpop.f32.mrb[0].mxu0
      %v7095 = vadd.f32 %v6918, %v7094
      %v7096 = vpop.f32.mrb[0].mxu0
      %7097 = vmatprep.mubr.bf16.mxu0 %v1871
      %7098 = vmatmul.mubr.bf16.gmra.mrb[0].mxu0 %v1870
      %v7099 = vpop.f32.mrb[0].mxu0
      %v7100 = vadd.f32 %v6923, %v7099
      %v7101 = vpop.f32.mrb[0].mxu0
      %v7102 = vpop.f32.mrb[0].mxu0
      %v7103 = vadd.f32 %v6926, %v7102
      %v7104 = vpop.f32.mrb[0].mxu0
      %7105 = vmatprep.mubr.bf16.mxu0 %v1887
      %7106 = vmatmul.mubr.bf16.gmra.mrb[0].mxu0 %v1886
      %v7107 = vpop.f32.mrb[0].mxu0
      %v7108 = vadd.f32 %v6931, %v7107
      %v7109 = vpop.f32.mrb[0].mxu0
      %v7110 = vpop.f32.mrb[0].mxu0
      %v7111 = vadd.f32 %v6934, %v7110
      %v7112 = vpop.f32.mrb[0].mxu0
      %7113 = vmatprep.mubr.bf16.mxu0 %v1903
      %7114 = vmatmul.mubr.bf16.gmra.mrb[0].mxu0 %v1902
      %v7115 = vpop.f32.mrb[0].mxu0
      %v7116 = vadd.f32 %v6939, %v7115
      %v7117 = vpop.f32.mrb[0].mxu0
      %v7118 = vpop.f32.mrb[0].mxu0
      %v7119 = vadd.f32 %v6942, %v7118
      %v7120 = vpop.f32.mrb[0].mxu0
      %7121 = vmatprep.mubr.bf16.mxu0 %v1919
      %7122 = vmatmul.mubr.bf16.gmra.mrb[0].mxu0 %v1918
      %v7123 = vpop.f32.mrb[0].mxu0
      %v7124 = vadd.f32 %v6947, %v7123
      %v7125 = vpop.f32.mrb[0].mxu0
      %v7126 = vpop.f32.mrb[0].mxu0
      %v7127 = vadd.f32 %v6950, %v7126
      %v7128 = vpop.f32.mrb[0].mxu0
      %7129 = vmatprep.mubr.bf16.mxu0 %v1935
      %7130 = vmatmul.mubr.bf16.gmra.mrb[0].mxu0 %v1934
      %v7131 = vpop.f32.mrb[0].mxu0
      %v7132 = vadd.f32 %v6955, %v7131
      %v7133 = vpop.f32.mrb[0].mxu0
      %v7134 = vpop.f32.mrb[0].mxu0
      %v7135 = vadd.f32 %v6958, %v7134
      %v7136 = vpop.f32.mrb[0].mxu0
      %7137 = vmatprep.mubr.bf16.mxu0 %v1951
      %7138 = vmatmul.mubr.bf16.gmra.mrb[0].mxu0 %v1950
      %v7139 = vpop.f32.mrb[0].mxu0
      %v7140 = vadd.f32 %v6963, %v7139
      %v7141 = vpop.f32.mrb[0].mxu0
      %v7142 = vpop.f32.mrb[0].mxu0
      %v7143 = vadd.f32 %v6966, %v7142
      %v7144 = vpop.f32.mrb[0].mxu0
      %7145 = vmatprep.mubr.bf16.mxu0 %v1967
      %7146 = vmatmul.mubr.bf16.gmra.mrb[0].mxu0 %v1966
      %v7147 = vpop.f32.mrb[0].mxu0
      %v7148 = vadd.f32 %v6971, %v7147
      %v7149 = vpop.f32.mrb[0].mxu0
      %v7150 = vpop.f32.mrb[0].mxu0
      %v7151 = vadd.f32 %v6974, %v7150
      %v7152 = vpop.f32.mrb[0].mxu0
      %7153 = vmatprep.mubr.bf16.mxu0 %v1983
      %7154 = vmatmul.mubr.bf16.gmra.mrb[0].mxu0 %v1982
      %v7155 = vpop.f32.mrb[0].mxu0
      %v7156 = vadd.f32 %v6979, %v7155
      %v7157 = vpop.f32.mrb[0].mxu0
      %v7158 = vpop.f32.mrb[0].mxu0
      %v7159 = vadd.f32 %v6982, %v7158
      %v7160 = vpop.f32.mrb[0].mxu0
      %7161 = vmatprep.mubr.bf16.mxu0 %v1999
      %7162 = vmatmul.mubr.bf16.gmra.mrb[0].mxu0 %v1998
      %v7163 = vpop.f32.mrb[0].mxu0
      %v7164 = vadd.f32 %v6987, %v7163
      %v7165 = vpop.f32.mrb[0].mxu0
      %v7166 = vpop.f32.mrb[0].mxu0
      %v7167 = vadd.f32 %v6990, %v7166
      %v7168 = vpop.f32.mrb[0].mxu0
      %7169 = vmatprep.mubr.bf16.mxu0 %v2015
      %7170 = vmatmul.mubr.bf16.gmra.mrb[0].mxu0 %v2014
      %v7171 = vpop.f32.mrb[0].mxu0
      %v7172 = vadd.f32 %v6995, %v7171
      %v7173 = vpop.f32.mrb[0].mxu0
      %v7174 = vpop.f32.mrb[0].mxu0
      %v7175 = vadd.f32 %v6998, %v7174
      %v7176 = vpop.f32.mrb[0].mxu0
      %7177 = vmatprep.mubr.bf16.mxu0 %v2031
      %7178 = vmatmul.mubr.bf16.gmra.mrb[0].mxu0 %v2030
      %v7179 = vpop.f32.mrb[0].mxu0
      %v7180 = vadd.f32 %v7003, %v7179
      %v7181 = vpop.f32.mrb[0].mxu0
      %v7182 = vpop.f32.mrb[0].mxu0
      %v7183 = vadd.f32 %v7006, %v7182
      %v7184 = vpop.f32.mrb[0].mxu0
      %7185 = vmatprep.mubr.bf16.mxu0 %v2047
      %7186 = vmatmul.mubr.bf16.gmra.mrb[0].mxu0 %v2046
      %v7187 = vpop.f32.mrb[0].mxu0
      %v7188 = vadd.f32 %v7011, %v7187
      %v7189 = vpop.f32.mrb[0].mxu0
      %v7190 = vpop.f32.mrb[0].mxu0
      %v7191 = vadd.f32 %v7014, %v7190
      %v7192 = vpop.f32.mrb[0].mxu0
      %7193 = vmatprep.mubr.bf16.mxu0 %v2063
      %7194 = vmatmul.mubr.bf16.gmra.mrb[0].mxu0 %v2062
      %v7195 = vpop.f32.mrb[0].mxu0
      %v7196 = vadd.f32 %v7019, %v7195
      %v7197 = vpop.f32.mrb[0].mxu0
      %v7198 = vpop.f32.mrb[0].mxu0
      %v7199 = vadd.f32 %v7022, %v7198
      %v7200 = vpop.f32.mrb[0].mxu0
      %7201 = vmatprep.mubr.bf16.mxu0 %v2079
      %7202 = vmatmul.mubr.bf16.gmra.mrb[0].mxu0 %v2078
      %v7203 = vpop.f32.mrb[0].mxu0
      %v7204 = vadd.f32 %v7027, %v7203
      %v7205 = vpop.f32.mrb[0].mxu0
      %v7206 = vpop.f32.mrb[0].mxu0
      %v7207 = vadd.f32 %v7030, %v7206
      %v7208 = vpop.f32.mrb[0].mxu0
      %7209 = vmatprep.mubr.bf16.mxu0 %v2095
      %7210 = vmatmul.mubr.bf16.gmra.mrb[0].mxu0 %v2094
      %v7211 = vpop.f32.mrb[0].mxu0
      %v7212 = vadd.f32 %v7035, %v7211
      %v7213 = vpop.f32.mrb[0].mxu0
      %v7214 = vpop.f32.mrb[0].mxu0
      %v7215 = vadd.f32 %v7038, %v7214
      %v7216 = vpop.f32.mrb[0].mxu0
      %7217 = vmatprep.mubr.bf16.mxu0 %v2111
      %7218 = vmatmul.mubr.bf16.gmra.mrb[0].mxu0 %v2110
      %v7219 = vpop.f32.mrb[0].mxu0
      %v7220 = vadd.f32 %v7043, %v7219
      %v7221 = vpop.f32.mrb[0].mxu0
      %v7222 = vpop.f32.mrb[0].mxu0
      %v7223 = vadd.f32 %v7046, %v7222
      %v7224 = vpop.f32.mrb[0].mxu0
      %7225 = vmatprep.mubr.bf16.mxu0 %v2127
      %7226 = vmatmul.mubr.bf16.gmra.mrb[0].mxu0 %v2126
      %v7227 = vpop.f32.mrb[0].mxu0
      %v7228 = vadd.f32 %v7051, %v7227
      %v7229 = vpop.f32.mrb[0].mxu0
      %v7230 = vpop.f32.mrb[0].mxu0
      %v7231 = vadd.f32 %v7054, %v7230
      %v7232 = vpop.f32.mrb[0].mxu0
      %7233 = vdwg.mxu0
      %7234 = vmatprep.subr.bf16.mxu0 0
      %7235 = vmatpush1.bf16.msra.mxu0 %v3990
      %7236 = vmatprep.subr.bf16.mxu0 0
      %7237 = vmatpush1.bf16.msra.mxu0 %v3993
      %7238 = vmatprep.subr.bf16.mxu0 0
      %7239 = vmatpush1.bf16.msra.mxu0 %v3996
      %7240 = vmatprep.subr.bf16.mxu0 0
      %7241 = vmatpush1.bf16.msra.mxu0 %v3999
      %7242 = vmatprep.subr.bf16.mxu0 0
      %7243 = vmatpush1.bf16.msra.mxu0 %v4002
      %7244 = vmatprep.subr.bf16.mxu0 0
      %7245 = vmatpush1.bf16.msra.mxu0 %v4005
      %7246 = vmatprep.subr.bf16.mxu0 0
      %7247 = vmatpush1.bf16.msra.mxu0 %v4008
      %7248 = vmatprep.subr.bf16.mxu0 0
      %7249 = vmatpush1.bf16.msra.mxu0 %v4011
      %7250 = vmatprep.subr.bf16.mxu0 0
      %7251 = vmatpush1.bf16.msra.mxu0 %v4014
      %7252 = vmatprep.subr.bf16.mxu0 0
      %7253 = vmatpush1.bf16.msra.mxu0 %v4017
      %7254 = vmatprep.subr.bf16.mxu0 0
      %7255 = vmatpush1.bf16.msra.mxu0 %v4020
      %7256 = vmatprep.subr.bf16.mxu0 0
      %7257 = vmatpush1.bf16.msra.mxu0 %v4023
      %7258 = vmatprep.subr.bf16.mxu0 0
      %7259 = vmatpush1.bf16.msra.mxu0 %v4026
      %7260 = vmatprep.subr.bf16.mxu0 0
      %7261 = vmatpush1.bf16.msra.mxu0 %v4029
      %7262 = vmatprep.subr.bf16.mxu0 0
      %7263 = vmatpush1.bf16.msra.mxu0 %v4032
      %7264 = vmatprep.subr.bf16.mxu0 0
      %7265 = vmatpush1.bf16.msra.mxu0 %v4035
      %7266 = vmatprep.mubr.bf16.mxu0 %v1857
      %7267 = vmatmul.mubr.bf16.gmra.mrb[0].mxu0 %v1856
      %v7268 = vpop.f32.mrb[0].mxu0
      %v7269 = vadd.f32 %v7092, %v7268
      %v7270 = vpop.f32.mrb[0].mxu0
      %v7271 = vpop.f32.mrb[0].mxu0
      %v7272 = vadd.f32 %v7095, %v7271
      %v7273 = vpop.f32.mrb[0].mxu0
      %7274 = vmatprep.mubr.bf16.mxu0 %v1873
      %7275 = vmatmul.mubr.bf16.gmra.mrb[0].mxu0 %v1872
      %v7276 = vpop.f32.mrb[0].mxu0
      %v7277 = vadd.f32 %v7100, %v7276
      %v7278 = vpop.f32.mrb[0].mxu0
      %v7279 = vpop.f32.mrb[0].mxu0
      %v7280 = vadd.f32 %v7103, %v7279
      %v7281 = vpop.f32.mrb[0].mxu0
      %7282 = vmatprep.mubr.bf16.mxu0 %v1889
      %7283 = vmatmul.mubr.bf16.gmra.mrb[0].mxu0 %v1888
      %v7284 = vpop.f32.mrb[0].mxu0
      %v7285 = vadd.f32 %v7108, %v7284
      %v7286 = vpop.f32.mrb[0].mxu0
      %v7287 = vpop.f32.mrb[0].mxu0
      %v7288 = vadd.f32 %v7111, %v7287
      %v7289 = vpop.f32.mrb[0].mxu0
      %7290 = vmatprep.mubr.bf16.mxu0 %v1905
      %7291 = vmatmul.mubr.bf16.gmra.mrb[0].mxu0 %v1904
      %v7292 = vpop.f32.mrb[0].mxu0
      %v7293 = vadd.f32 %v7116, %v7292
      %v7294 = vpop.f32.mrb[0].mxu0
      %v7295 = vpop.f32.mrb[0].mxu0
      %v7296 = vadd.f32 %v7119, %v7295
      %v7297 = vpop.f32.mrb[0].mxu0
      %7298 = vmatprep.mubr.bf16.mxu0 %v1921
      %7299 = vmatmul.mubr.bf16.gmra.mrb[0].mxu0 %v1920
      %v7300 = vpop.f32.mrb[0].mxu0
      %v7301 = vadd.f32 %v7124, %v7300
      %v7302 = vpop.f32.mrb[0].mxu0
      %v7303 = vpop.f32.mrb[0].mxu0
      %v7304 = vadd.f32 %v7127, %v7303
      %v7305 = vpop.f32.mrb[0].mxu0
      %7306 = vmatprep.mubr.bf16.mxu0 %v1937
      %7307 = vmatmul.mubr.bf16.gmra.mrb[0].mxu0 %v1936
      %v7308 = vpop.f32.mrb[0].mxu0
      %v7309 = vadd.f32 %v7132, %v7308
      %v7310 = vpop.f32.mrb[0].mxu0
      %v7311 = vpop.f32.mrb[0].mxu0
      %v7312 = vadd.f32 %v7135, %v7311
      %v7313 = vpop.f32.mrb[0].mxu0
      %7314 = vmatprep.mubr.bf16.mxu0 %v1953
      %7315 = vmatmul.mubr.bf16.gmra.mrb[0].mxu0 %v1952
      %v7316 = vpop.f32.mrb[0].mxu0
      %v7317 = vadd.f32 %v7140, %v7316
      %v7318 = vpop.f32.mrb[0].mxu0
      %v7319 = vpop.f32.mrb[0].mxu0
      %v7320 = vadd.f32 %v7143, %v7319
      %v7321 = vpop.f32.mrb[0].mxu0
      %7322 = vmatprep.mubr.bf16.mxu0 %v1969
      %7323 = vmatmul.mubr.bf16.gmra.mrb[0].mxu0 %v1968
      %v7324 = vpop.f32.mrb[0].mxu0
      %v7325 = vadd.f32 %v7148, %v7324
      %v7326 = vpop.f32.mrb[0].mxu0
      %v7327 = vpop.f32.mrb[0].mxu0
      %v7328 = vadd.f32 %v7151, %v7327
      %v7329 = vpop.f32.mrb[0].mxu0
      %7330 = vmatprep.mubr.bf16.mxu0 %v1985
      %7331 = vmatmul.mubr.bf16.gmra.mrb[0].mxu0 %v1984
      %v7332 = vpop.f32.mrb[0].mxu0
      %v7333 = vadd.f32 %v7156, %v7332
      %v7334 = vpop.f32.mrb[0].mxu0
      %v7335 = vpop.f32.mrb[0].mxu0
      %v7336 = vadd.f32 %v7159, %v7335
      %v7337 = vpop.f32.mrb[0].mxu0
      %7338 = vmatprep.mubr.bf16.mxu0 %v2001
      %7339 = vmatmul.mubr.bf16.gmra.mrb[0].mxu0 %v2000
      %v7340 = vpop.f32.mrb[0].mxu0
      %v7341 = vadd.f32 %v7164, %v7340
      %v7342 = vpop.f32.mrb[0].mxu0
      %v7343 = vpop.f32.mrb[0].mxu0
      %v7344 = vadd.f32 %v7167, %v7343
      %v7345 = vpop.f32.mrb[0].mxu0
      %7346 = vmatprep.mubr.bf16.mxu0 %v2017
      %7347 = vmatmul.mubr.bf16.gmra.mrb[0].mxu0 %v2016
      %v7348 = vpop.f32.mrb[0].mxu0
      %v7349 = vadd.f32 %v7172, %v7348
      %v7350 = vpop.f32.mrb[0].mxu0
      %v7351 = vpop.f32.mrb[0].mxu0
      %v7352 = vadd.f32 %v7175, %v7351
      %v7353 = vpop.f32.mrb[0].mxu0
      %7354 = vmatprep.mubr.bf16.mxu0 %v2033
      %7355 = vmatmul.mubr.bf16.gmra.mrb[0].mxu0 %v2032
      %v7356 = vpop.f32.mrb[0].mxu0
      %v7357 = vadd.f32 %v7180, %v7356
      %v7358 = vpop.f32.mrb[0].mxu0
      %v7359 = vpop.f32.mrb[0].mxu0
      %v7360 = vadd.f32 %v7183, %v7359
      %v7361 = vpop.f32.mrb[0].mxu0
      %7362 = vmatprep.mubr.bf16.mxu0 %v2049
      %7363 = vmatmul.mubr.bf16.gmra.mrb[0].mxu0 %v2048
      %v7364 = vpop.f32.mrb[0].mxu0
      %v7365 = vadd.f32 %v7188, %v7364
      %v7366 = vpop.f32.mrb[0].mxu0
      %v7367 = vpop.f32.mrb[0].mxu0
      %v7368 = vadd.f32 %v7191, %v7367
      %v7369 = vpop.f32.mrb[0].mxu0
      %7370 = vmatprep.mubr.bf16.mxu0 %v2065
      %7371 = vmatmul.mubr.bf16.gmra.mrb[0].mxu0 %v2064
      %v7372 = vpop.f32.mrb[0].mxu0
      %v7373 = vadd.f32 %v7196, %v7372
      %v7374 = vpop.f32.mrb[0].mxu0
      %v7375 = vpop.f32.mrb[0].mxu0
      %v7376 = vadd.f32 %v7199, %v7375
      %v7377 = vpop.f32.mrb[0].mxu0
      %7378 = vmatprep.mubr.bf16.mxu0 %v2081
      %7379 = vmatmul.mubr.bf16.gmra.mrb[0].mxu0 %v2080
      %v7380 = vpop.f32.mrb[0].mxu0
      %v7381 = vadd.f32 %v7204, %v7380
      %v7382 = vpop.f32.mrb[0].mxu0
      %v7383 = vpop.f32.mrb[0].mxu0
      %v7384 = vadd.f32 %v7207, %v7383
      %v7385 = vpop.f32.mrb[0].mxu0
      %7386 = vmatprep.mubr.bf16.mxu0 %v2097
      %7387 = vmatmul.mubr.bf16.gmra.mrb[0].mxu0 %v2096
      %v7388 = vpop.f32.mrb[0].mxu0
      %v7389 = vadd.f32 %v7212, %v7388
      %v7390 = vpop.f32.mrb[0].mxu0
      %v7391 = vpop.f32.mrb[0].mxu0
      %v7392 = vadd.f32 %v7215, %v7391
      %v7393 = vpop.f32.mrb[0].mxu0
      %7394 = vmatprep.mubr.bf16.mxu0 %v2113
      %7395 = vmatmul.mubr.bf16.gmra.mrb[0].mxu0 %v2112
      %v7396 = vpop.f32.mrb[0].mxu0
      %v7397 = vadd.f32 %v7220, %v7396
      %v7398 = vpop.f32.mrb[0].mxu0
      %v7399 = vpop.f32.mrb[0].mxu0
      %v7400 = vadd.f32 %v7223, %v7399
      %v7401 = vpop.f32.mrb[0].mxu0
      %7402 = vmatprep.mubr.bf16.mxu0 %v2129
      %7403 = vmatmul.mubr.bf16.gmra.mrb[0].mxu0 %v2128
      %v7404 = vpop.f32.mrb[0].mxu0
      %v7405 = vadd.f32 %v7228, %v7404
      %v7406 = vpop.f32.mrb[0].mxu0
      %v7407 = vpop.f32.mrb[0].mxu0
      %v7408 = vadd.f32 %v7231, %v7407
      %v7409 = vpop.f32.mrb[0].mxu0
      %7410 = vdwg.mxu0
      %7411 = vmatprep.subr.bf16.mxu0 0
      %7412 = vmatpush1.bf16.msra.mxu0 %v4038
      %7413 = vmatprep.subr.bf16.mxu0 0
      %7414 = vmatpush1.bf16.msra.mxu0 %v4041
      %7415 = vmatprep.subr.bf16.mxu0 0
      %7416 = vmatpush1.bf16.msra.mxu0 %v4044
      %7417 = vmatprep.subr.bf16.mxu0 0
      %7418 = vmatpush1.bf16.msra.mxu0 %v4047
      %7419 = vmatprep.subr.bf16.mxu0 0
      %7420 = vmatpush1.bf16.msra.mxu0 %v4050
      %7421 = vmatprep.subr.bf16.mxu0 0
      %7422 = vmatpush1.bf16.msra.mxu0 %v4053
      %7423 = vmatprep.subr.bf16.mxu0 0
      %7424 = vmatpush1.bf16.msra.mxu0 %v4056
      %7425 = vmatprep.subr.bf16.mxu0 0
      %7426 = vmatpush1.bf16.msra.mxu0 %v4059
      %7427 = vmatprep.subr.bf16.mxu0 0
      %7428 = vmatpush1.bf16.msra.mxu0 %v4062
      %7429 = vmatprep.subr.bf16.mxu0 0
      %7430 = vmatpush1.bf16.msra.mxu0 %v4065
      %7431 = vmatprep.subr.bf16.mxu0 0
      %7432 = vmatpush1.bf16.msra.mxu0 %v4068
      %7433 = vmatprep.subr.bf16.mxu0 0
      %7434 = vmatpush1.bf16.msra.mxu0 %v4071
      %7435 = vmatprep.subr.bf16.mxu0 0
      %7436 = vmatpush1.bf16.msra.mxu0 %v4074
      %7437 = vmatprep.subr.bf16.mxu0 0
      %7438 = vmatpush1.bf16.msra.mxu0 %v4077
      %7439 = vmatprep.subr.bf16.mxu0 0
      %7440 = vmatpush1.bf16.msra.mxu0 %v4080
      %7441 = vmatprep.subr.bf16.mxu0 0
      %7442 = vmatpush1.bf16.msra.mxu0 %v4083
      %7443 = vmatprep.mubr.bf16.mxu0 %v1859
      %7444 = vmatmul.mubr.bf16.gmra.mrb[0].mxu0 %v1858
      %v7445 = vpop.f32.mrb[0].mxu0
      %v7446 = vadd.f32 %v7269, %v7445
      %v7447 = vpop.f32.mrb[0].mxu0
      %v7448 = vpop.f32.mrb[0].mxu0
      %v7449 = vadd.f32 %v7272, %v7448
      %v7450 = vpop.f32.mrb[0].mxu0
      %7451 = vmatprep.mubr.bf16.mxu0 %v1875
      %7452 = vmatmul.mubr.bf16.gmra.mrb[0].mxu0 %v1874
      %v7453 = vpop.f32.mrb[0].mxu0
      %v7454 = vadd.f32 %v7277, %v7453
      %v7455 = vpop.f32.mrb[0].mxu0
      %v7456 = vpop.f32.mrb[0].mxu0
      %v7457 = vadd.f32 %v7280, %v7456
      %v7458 = vpop.f32.mrb[0].mxu0
      %7459 = vmatprep.mubr.bf16.mxu0 %v1891
      %7460 = vmatmul.mubr.bf16.gmra.mrb[0].mxu0 %v1890
      %v7461 = vpop.f32.mrb[0].mxu0
      %v7462 = vadd.f32 %v7285, %v7461
      %v7463 = vpop.f32.mrb[0].mxu0
      %v7464 = vpop.f32.mrb[0].mxu0
      %v7465 = vadd.f32 %v7288, %v7464
      %v7466 = vpop.f32.mrb[0].mxu0
      %7467 = vmatprep.mubr.bf16.mxu0 %v1907
      %7468 = vmatmul.mubr.bf16.gmra.mrb[0].mxu0 %v1906
      %v7469 = vpop.f32.mrb[0].mxu0
      %v7470 = vadd.f32 %v7293, %v7469
      %v7471 = vpop.f32.mrb[0].mxu0
      %v7472 = vpop.f32.mrb[0].mxu0
      %v7473 = vadd.f32 %v7296, %v7472
      %v7474 = vpop.f32.mrb[0].mxu0
      %7475 = vmatprep.mubr.bf16.mxu0 %v1923
      %7476 = vmatmul.mubr.bf16.gmra.mrb[0].mxu0 %v1922
      %v7477 = vpop.f32.mrb[0].mxu0
      %v7478 = vadd.f32 %v7301, %v7477
      %v7479 = vpop.f32.mrb[0].mxu0
      %v7480 = vpop.f32.mrb[0].mxu0
      %v7481 = vadd.f32 %v7304, %v7480
      %v7482 = vpop.f32.mrb[0].mxu0
      %7483 = vmatprep.mubr.bf16.mxu0 %v1939
      %7484 = vmatmul.mubr.bf16.gmra.mrb[0].mxu0 %v1938
      %v7485 = vpop.f32.mrb[0].mxu0
      %v7486 = vadd.f32 %v7309, %v7485
      %v7487 = vpop.f32.mrb[0].mxu0
      %v7488 = vpop.f32.mrb[0].mxu0
      %v7489 = vadd.f32 %v7312, %v7488
      %v7490 = vpop.f32.mrb[0].mxu0
      %7491 = vmatprep.mubr.bf16.mxu0 %v1955
      %7492 = vmatmul.mubr.bf16.gmra.mrb[0].mxu0 %v1954
      %v7493 = vpop.f32.mrb[0].mxu0
      %v7494 = vadd.f32 %v7317, %v7493
      %v7495 = vpop.f32.mrb[0].mxu0
      %v7496 = vpop.f32.mrb[0].mxu0
      %v7497 = vadd.f32 %v7320, %v7496
      %v7498 = vpop.f32.mrb[0].mxu0
      %7499 = vmatprep.mubr.bf16.mxu0 %v1971
      %7500 = vmatmul.mubr.bf16.gmra.mrb[0].mxu0 %v1970
      %v7501 = vpop.f32.mrb[0].mxu0
      %v7502 = vadd.f32 %v7325, %v7501
      %v7503 = vpop.f32.mrb[0].mxu0
      %v7504 = vpop.f32.mrb[0].mxu0
      %v7505 = vadd.f32 %v7328, %v7504
      %v7506 = vpop.f32.mrb[0].mxu0
      %7507 = vmatprep.mubr.bf16.mxu0 %v1987
      %7508 = vmatmul.mubr.bf16.gmra.mrb[0].mxu0 %v1986
      %v7509 = vpop.f32.mrb[0].mxu0
      %v7510 = vadd.f32 %v7333, %v7509
      %v7511 = vpop.f32.mrb[0].mxu0
      %v7512 = vpop.f32.mrb[0].mxu0
      %v7513 = vadd.f32 %v7336, %v7512
      %v7514 = vpop.f32.mrb[0].mxu0
      %7515 = vmatprep.mubr.bf16.mxu0 %v2003
      %7516 = vmatmul.mubr.bf16.gmra.mrb[0].mxu0 %v2002
      %v7517 = vpop.f32.mrb[0].mxu0
      %v7518 = vadd.f32 %v7341, %v7517
      %v7519 = vpop.f32.mrb[0].mxu0
      %v7520 = vpop.f32.mrb[0].mxu0
      %v7521 = vadd.f32 %v7344, %v7520
      %v7522 = vpop.f32.mrb[0].mxu0
      %7523 = vmatprep.mubr.bf16.mxu0 %v2019
      %7524 = vmatmul.mubr.bf16.gmra.mrb[0].mxu0 %v2018
      %v7525 = vpop.f32.mrb[0].mxu0
      %v7526 = vadd.f32 %v7349, %v7525
      %v7527 = vpop.f32.mrb[0].mxu0
      %v7528 = vpop.f32.mrb[0].mxu0
      %v7529 = vadd.f32 %v7352, %v7528
      %v7530 = vpop.f32.mrb[0].mxu0
      %7531 = vmatprep.mubr.bf16.mxu0 %v2035
      %7532 = vmatmul.mubr.bf16.gmra.mrb[0].mxu0 %v2034
      %v7533 = vpop.f32.mrb[0].mxu0
      %v7534 = vadd.f32 %v7357, %v7533
      %v7535 = vpop.f32.mrb[0].mxu0
      %v7536 = vpop.f32.mrb[0].mxu0
      %v7537 = vadd.f32 %v7360, %v7536
      %v7538 = vpop.f32.mrb[0].mxu0
      %7539 = vmatprep.mubr.bf16.mxu0 %v2051
      %7540 = vmatmul.mubr.bf16.gmra.mrb[0].mxu0 %v2050
      %v7541 = vpop.f32.mrb[0].mxu0
      %v7542 = vadd.f32 %v7365, %v7541
      %v7543 = vpop.f32.mrb[0].mxu0
      %v7544 = vpop.f32.mrb[0].mxu0
      %v7545 = vadd.f32 %v7368, %v7544
      %v7546 = vpop.f32.mrb[0].mxu0
      %7547 = vmatprep.mubr.bf16.mxu0 %v2067
      %7548 = vmatmul.mubr.bf16.gmra.mrb[0].mxu0 %v2066
      %v7549 = vpop.f32.mrb[0].mxu0
      %v7550 = vadd.f32 %v7373, %v7549
      %v7551 = vpop.f32.mrb[0].mxu0
      %v7552 = vpop.f32.mrb[0].mxu0
      %v7553 = vadd.f32 %v7376, %v7552
      %v7554 = vpop.f32.mrb[0].mxu0
      %7555 = vmatprep.mubr.bf16.mxu0 %v2083
      %7556 = vmatmul.mubr.bf16.gmra.mrb[0].mxu0 %v2082
      %v7557 = vpop.f32.mrb[0].mxu0
      %v7558 = vadd.f32 %v7381, %v7557
      %v7559 = vpop.f32.mrb[0].mxu0
      %v7560 = vpop.f32.mrb[0].mxu0
      %v7561 = vadd.f32 %v7384, %v7560
      %v7562 = vpop.f32.mrb[0].mxu0
      %7563 = vmatprep.mubr.bf16.mxu0 %v2099
      %7564 = vmatmul.mubr.bf16.gmra.mrb[0].mxu0 %v2098
      %v7565 = vpop.f32.mrb[0].mxu0
      %v7566 = vadd.f32 %v7389, %v7565
      %v7567 = vpop.f32.mrb[0].mxu0
      %v7568 = vpop.f32.mrb[0].mxu0
      %v7569 = vadd.f32 %v7392, %v7568
      %v7570 = vpop.f32.mrb[0].mxu0
      %7571 = vmatprep.mubr.bf16.mxu0 %v2115
      %7572 = vmatmul.mubr.bf16.gmra.mrb[0].mxu0 %v2114
      %v7573 = vpop.f32.mrb[0].mxu0
      %v7574 = vadd.f32 %v7397, %v7573
      %v7575 = vpop.f32.mrb[0].mxu0
      %v7576 = vpop.f32.mrb[0].mxu0
      %v7577 = vadd.f32 %v7400, %v7576
      %v7578 = vpop.f32.mrb[0].mxu0
      %7579 = vmatprep.mubr.bf16.mxu0 %v2131
      %7580 = vmatmul.mubr.bf16.gmra.mrb[0].mxu0 %v2130
      %v7581 = vpop.f32.mrb[0].mxu0
      %v7582 = vadd.f32 %v7405, %v7581
      %v7583 = vpop.f32.mrb[0].mxu0
      %v7584 = vpop.f32.mrb[0].mxu0
      %v7585 = vadd.f32 %v7408, %v7584
      %v7586 = vpop.f32.mrb[0].mxu0
      %7587 = vdwg.mxu0
      %7600 = vrot.lane.b32.xlu0 %v6014, 127
      %v7601 = vpop.permute.xlu0 %7600
      %7602 = vrot.lane.b32.xlu0 %v6016, 127
      %v7603 = vpop.permute.xlu0 %7602
      %7604 = vrot.lane.b32.xlu0 %v7462, 127
      %v7605 = vpop.permute.xlu0 %7604
      %7606 = vrot.lane.b32.xlu0 %v6018, 127
      %v7607 = vpop.permute.xlu0 %7606
      %7608 = vrot.lane.b32.xlu0 %v6020, 127
      %v7609 = vpop.permute.xlu0 %7608
      %7610 = vrot.lane.b32.xlu0 %v7465, 127
      %v7611 = vpop.permute.xlu0 %7610
      %7612 = vrot.lane.b32.xlu0 %v6024, 127
      %v7613 = vpop.permute.xlu0 %7612
      %7614 = vrot.lane.b32.xlu0 %v6026, 127
      %v7615 = vpop.permute.xlu0 %7614
      %7616 = vrot.lane.b32.xlu0 %v7470, 127
      %v7617 = vpop.permute.xlu0 %7616
      %7618 = vrot.lane.b32.xlu0 %v6028, 127
      %v7619 = vpop.permute.xlu0 %7618
      %7620 = vrot.lane.b32.xlu0 %v6030, 127
      %v7621 = vpop.permute.xlu0 %7620
      %7622 = vrot.lane.b32.xlu0 %v7473, 127
      %v7623 = vpop.permute.xlu0 %7622
      %vm7624 = vcmask 1039360
      %v7625 = vsel %vm7624, %v7601, %v7603
      %v7626 = vsel %vm7624, %v7603, %v7605
      %v7627 = vsel %vm7624, %v7607, %v7609
      %v7628 = vsel %vm7624, %v7609, %v7611
      %v7629 = vsel %vm7624, %v7613, %v7615
      %v7630 = vsel %vm7624, %v7615, %v7617
      %v7631 = vsel %vm7624, %v7619, %v7621
      %v7632 = vsel %vm7624, %v7621, %v7623
      %v7645 = vadd.f32 %v5994, %v7625
      %v7646 = vadd.f32 %v5996, %v7626
      %v7647 = vadd.f32 %v7446, %v7605
      %v7648 = vadd.f32 %v5998, %v7627
      %v7649 = vadd.f32 %v6000, %v7628
      %v7650 = vadd.f32 %v7449, %v7611
      %v7651 = vadd.f32 %v6004, %v7629
      %v7652 = vadd.f32 %v6006, %v7630
      %v7653 = vadd.f32 %v7454, %v7617
      %v7654 = vadd.f32 %v6008, %v7631
      %v7655 = vadd.f32 %v6010, %v7632
      %v7656 = vadd.f32 %v7457, %v7623
      %7669 = vrot.lane.b32.xlu0 %v6034, 126
      %v7670 = vpop.permute.xlu0 %7669
      %7671 = vrot.lane.b32.xlu0 %v6036, 126
      %v7672 = vpop.permute.xlu0 %7671
      %7673 = vrot.lane.b32.xlu0 %v7478, 126
      %v7674 = vpop.permute.xlu0 %7673
      %7675 = vrot.lane.b32.xlu0 %v6038, 126
      %v7676 = vpop.permute.xlu0 %7675
      %7677 = vrot.lane.b32.xlu0 %v6040, 126
      %v7678 = vpop.permute.xlu0 %7677
      %7679 = vrot.lane.b32.xlu0 %v7481, 126
      %v7680 = vpop.permute.xlu0 %7679
      %7681 = vrot.lane.b32.xlu0 %v6044, 126
      %v7682 = vpop.permute.xlu0 %7681
      %7683 = vrot.lane.b32.xlu0 %v6046, 126
      %v7684 = vpop.permute.xlu0 %7683
      %7685 = vrot.lane.b32.xlu0 %v7486, 126
      %v7686 = vpop.permute.xlu0 %7685
      %7687 = vrot.lane.b32.xlu0 %v6048, 126
      %v7688 = vpop.permute.xlu0 %7687
      %7689 = vrot.lane.b32.xlu0 %v6050, 126
      %v7690 = vpop.permute.xlu0 %7689
      %7691 = vrot.lane.b32.xlu0 %v7489, 126
      %v7692 = vpop.permute.xlu0 %7691
      %vm7693 = vcmask 1031168
      %v7694 = vsel %vm7693, %v7670, %v7672
      %v7695 = vsel %vm7693, %v7672, %v7674
      %v7696 = vsel %vm7693, %v7676, %v7678
      %v7697 = vsel %vm7693, %v7678, %v7680
      %v7698 = vsel %vm7693, %v7682, %v7684
      %v7699 = vsel %vm7693, %v7684, %v7686
      %v7700 = vsel %vm7693, %v7688, %v7690
      %v7701 = vsel %vm7693, %v7690, %v7692
      %v7714 = vadd.f32 %v7645, %v7694
      %v7715 = vadd.f32 %v7646, %v7695
      %v7716 = vadd.f32 %v7647, %v7674
      %v7717 = vadd.f32 %v7648, %v7696
      %v7718 = vadd.f32 %v7649, %v7697
      %v7719 = vadd.f32 %v7650, %v7680
      %v7720 = vadd.f32 %v7651, %v7698
      %v7721 = vadd.f32 %v7652, %v7699
      %v7722 = vadd.f32 %v7653, %v7686
      %v7723 = vadd.f32 %v7654, %v7700
      %v7724 = vadd.f32 %v7655, %v7701
      %v7725 = vadd.f32 %v7656, %v7692
      %7738 = vrot.lane.b32.xlu0 %v6054, 110
      %v7739 = vpop.permute.xlu0 %7738
      %7740 = vrot.lane.b32.xlu0 %v6056, 110
      %v7741 = vpop.permute.xlu0 %7740
      %7742 = vrot.lane.b32.xlu0 %v7494, 110
      %v7743 = vpop.permute.xlu0 %7742
      %7744 = vrot.lane.b32.xlu0 %v6058, 110
      %v7745 = vpop.permute.xlu0 %7744
      %7746 = vrot.lane.b32.xlu0 %v6060, 110
      %v7747 = vpop.permute.xlu0 %7746
      %7748 = vrot.lane.b32.xlu0 %v7497, 110
      %v7749 = vpop.permute.xlu0 %7748
      %7750 = vrot.lane.b32.xlu0 %v6064, 110
      %v7751 = vpop.permute.xlu0 %7750
      %7752 = vrot.lane.b32.xlu0 %v6066, 110
      %v7753 = vpop.permute.xlu0 %7752
      %7754 = vrot.lane.b32.xlu0 %v7502, 110
      %v7755 = vpop.permute.xlu0 %7754
      %7756 = vrot.lane.b32.xlu0 %v6068, 110
      %v7757 = vpop.permute.xlu0 %7756
      %7758 = vrot.lane.b32.xlu0 %v6070, 110
      %v7759 = vpop.permute.xlu0 %7758
      %7760 = vrot.lane.b32.xlu0 %v7505, 110
      %v7761 = vpop.permute.xlu0 %7760
      %vm7762 = vcmask 900096
      %v7763 = vsel %vm7762, %v7739, %v7741
      %v7764 = vsel %vm7762, %v7741, %v7743
      %v7765 = vsel %vm7762, %v7745, %v7747
      %v7766 = vsel %vm7762, %v7747, %v7749
      %v7767 = vsel %vm7762, %v7751, %v7753
      %v7768 = vsel %vm7762, %v7753, %v7755
      %v7769 = vsel %vm7762, %v7757, %v7759
      %v7770 = vsel %vm7762, %v7759, %v7761
      %v7783 = vadd.f32 %v7714, %v7763
      %v7784 = vadd.f32 %v7715, %v7764
      %v7785 = vadd.f32 %v7716, %v7743
      %v7786 = vadd.f32 %v7717, %v7765
      %v7787 = vadd.f32 %v7718, %v7766
      %v7788 = vadd.f32 %v7719, %v7749
      %v7789 = vadd.f32 %v7720, %v7767
      %v7790 = vadd.f32 %v7721, %v7768
      %v7791 = vadd.f32 %v7722, %v7755
      %v7792 = vadd.f32 %v7723, %v7769
      %v7793 = vadd.f32 %v7724, %v7770
      %v7794 = vadd.f32 %v7725, %v7761
      %7807 = vrot.lane.b32.xlu0 %v6074, 109
      %v7808 = vpop.permute.xlu0 %7807
      %7809 = vrot.lane.b32.xlu0 %v6076, 109
      %v7810 = vpop.permute.xlu0 %7809
      %7811 = vrot.lane.b32.xlu0 %v7510, 109
      %v7812 = vpop.permute.xlu0 %7811
      %7813 = vrot.lane.b32.xlu0 %v6078, 109
      %v7814 = vpop.permute.xlu0 %7813
      %7815 = vrot.lane.b32.xlu0 %v6080, 109
      %v7816 = vpop.permute.xlu0 %7815
      %7817 = vrot.lane.b32.xlu0 %v7513, 109
      %v7818 = vpop.permute.xlu0 %7817
      %7819 = vrot.lane.b32.xlu0 %v6084, 109
      %v7820 = vpop.permute.xlu0 %7819
      %7821 = vrot.lane.b32.xlu0 %v6086, 109
      %v7822 = vpop.permute.xlu0 %7821
      %7823 = vrot.lane.b32.xlu0 %v7518, 109
      %v7824 = vpop.permute.xlu0 %7823
      %7825 = vrot.lane.b32.xlu0 %v6088, 109
      %v7826 = vpop.permute.xlu0 %7825
      %7827 = vrot.lane.b32.xlu0 %v6090, 109
      %v7828 = vpop.permute.xlu0 %7827
      %7829 = vrot.lane.b32.xlu0 %v7521, 109
      %v7830 = vpop.permute.xlu0 %7829
      %vm7831 = vcmask 891904
      %v7832 = vsel %vm7831, %v7808, %v7810
      %v7833 = vsel %vm7831, %v7810, %v7812
      %v7834 = vsel %vm7831, %v7814, %v7816
      %v7835 = vsel %vm7831, %v7816, %v7818
      %v7836 = vsel %vm7831, %v7820, %v7822
      %v7837 = vsel %vm7831, %v7822, %v7824
      %v7838 = vsel %vm7831, %v7826, %v7828
      %v7839 = vsel %vm7831, %v7828, %v7830
      %v7852 = vadd.f32 %v7783, %v7832
      %v7853 = vadd.f32 %v7784, %v7833
      %v7854 = vadd.f32 %v7785, %v7812
      %v7855 = vadd.f32 %v7786, %v7834
      %v7856 = vadd.f32 %v7787, %v7835
      %v7857 = vadd.f32 %v7788, %v7818
      %v7858 = vadd.f32 %v7789, %v7836
      %v7859 = vadd.f32 %v7790, %v7837
      %v7860 = vadd.f32 %v7791, %v7824
      %v7861 = vadd.f32 %v7792, %v7838
      %v7862 = vadd.f32 %v7793, %v7839
      %v7863 = vadd.f32 %v7794, %v7830
      %7876 = vrot.lane.b32.xlu0 %v6094, 108
      %v7877 = vpop.permute.xlu0 %7876
      %7878 = vrot.lane.b32.xlu0 %v6096, 108
      %v7879 = vpop.permute.xlu0 %7878
      %7880 = vrot.lane.b32.xlu0 %v7526, 108
      %v7881 = vpop.permute.xlu0 %7880
      %7882 = vrot.lane.b32.xlu0 %v6098, 108
      %v7883 = vpop.permute.xlu0 %7882
      %7884 = vrot.lane.b32.xlu0 %v6100, 108
      %v7885 = vpop.permute.xlu0 %7884
      %7886 = vrot.lane.b32.xlu0 %v7529, 108
      %v7887 = vpop.permute.xlu0 %7886
      %7888 = vrot.lane.b32.xlu0 %v6104, 108
      %v7889 = vpop.permute.xlu0 %7888
      %7890 = vrot.lane.b32.xlu0 %v6106, 108
      %v7891 = vpop.permute.xlu0 %7890
      %7892 = vrot.lane.b32.xlu0 %v7534, 108
      %v7893 = vpop.permute.xlu0 %7892
      %7894 = vrot.lane.b32.xlu0 %v6108, 108
      %v7895 = vpop.permute.xlu0 %7894
      %7896 = vrot.lane.b32.xlu0 %v6110, 108
      %v7897 = vpop.permute.xlu0 %7896
      %7898 = vrot.lane.b32.xlu0 %v7537, 108
      %v7899 = vpop.permute.xlu0 %7898
      %vm7900 = vcmask 883712
      %v7901 = vsel %vm7900, %v7877, %v7879
      %v7902 = vsel %vm7900, %v7879, %v7881
      %v7903 = vsel %vm7900, %v7883, %v7885
      %v7904 = vsel %vm7900, %v7885, %v7887
      %v7905 = vsel %vm7900, %v7889, %v7891
      %v7906 = vsel %vm7900, %v7891, %v7893
      %v7907 = vsel %vm7900, %v7895, %v7897
      %v7908 = vsel %vm7900, %v7897, %v7899
      %v7921 = vadd.f32 %v7852, %v7901
      %v7922 = vadd.f32 %v7853, %v7902
      %v7923 = vadd.f32 %v7854, %v7881
      %v7924 = vadd.f32 %v7855, %v7903
      %v7925 = vadd.f32 %v7856, %v7904
      %v7926 = vadd.f32 %v7857, %v7887
      %v7927 = vadd.f32 %v7858, %v7905
      %v7928 = vadd.f32 %v7859, %v7906
      %v7929 = vadd.f32 %v7860, %v7893
      %v7930 = vadd.f32 %v7861, %v7907
      %v7931 = vadd.f32 %v7862, %v7908
      %v7932 = vadd.f32 %v7863, %v7899
      %7945 = vrot.lane.b32.xlu0 %v6114, 92
      %v7946 = vpop.permute.xlu0 %7945
      %7947 = vrot.lane.b32.xlu0 %v6116, 92
      %v7948 = vpop.permute.xlu0 %7947
      %7949 = vrot.lane.b32.xlu0 %v7542, 92
      %v7950 = vpop.permute.xlu0 %7949
      %7951 = vrot.lane.b32.xlu0 %v6118, 92
      %v7952 = vpop.permute.xlu0 %7951
      %7953 = vrot.lane.b32.xlu0 %v6120, 92
      %v7954 = vpop.permute.xlu0 %7953
      %7955 = vrot.lane.b32.xlu0 %v7545, 92
      %v7956 = vpop.permute.xlu0 %7955
      %7957 = vrot.lane.b32.xlu0 %v6124, 92
      %v7958 = vpop.permute.xlu0 %7957
      %7959 = vrot.lane.b32.xlu0 %v6126, 92
      %v7960 = vpop.permute.xlu0 %7959
      %7961 = vrot.lane.b32.xlu0 %v7550, 92
      %v7962 = vpop.permute.xlu0 %7961
      %7963 = vrot.lane.b32.xlu0 %v6128, 92
      %v7964 = vpop.permute.xlu0 %7963
      %7965 = vrot.lane.b32.xlu0 %v6130, 92
      %v7966 = vpop.permute.xlu0 %7965
      %7967 = vrot.lane.b32.xlu0 %v7553, 92
      %v7968 = vpop.permute.xlu0 %7967
      %vm7969 = vcmask 752640
      %v7970 = vsel %vm7969, %v7946, %v7948
      %v7971 = vsel %vm7969, %v7948, %v7950
      %v7972 = vsel %vm7969, %v7952, %v7954
      %v7973 = vsel %vm7969, %v7954, %v7956
      %v7974 = vsel %vm7969, %v7958, %v7960
      %v7975 = vsel %vm7969, %v7960, %v7962
      %v7976 = vsel %vm7969, %v7964, %v7966
      %v7977 = vsel %vm7969, %v7966, %v7968
      %v7990 = vadd.f32 %v7921, %v7970
      %v7991 = vadd.f32 %v7922, %v7971
      %v7992 = vadd.f32 %v7923, %v7950
      %v7993 = vadd.f32 %v7924, %v7972
      %v7994 = vadd.f32 %v7925, %v7973
      %v7995 = vadd.f32 %v7926, %v7956
      %v7996 = vadd.f32 %v7927, %v7974
      %v7997 = vadd.f32 %v7928, %v7975
      %v7998 = vadd.f32 %v7929, %v7962
      %v7999 = vadd.f32 %v7930, %v7976
      %v8000 = vadd.f32 %v7931, %v7977
      %v8001 = vadd.f32 %v7932, %v7968
      %8014 = vrot.lane.b32.xlu0 %v6134, 91
      %v8015 = vpop.permute.xlu0 %8014
      %8016 = vrot.lane.b32.xlu0 %v6136, 91
      %v8017 = vpop.permute.xlu0 %8016
      %8018 = vrot.lane.b32.xlu0 %v7558, 91
      %v8019 = vpop.permute.xlu0 %8018
      %8020 = vrot.lane.b32.xlu0 %v6138, 91
      %v8021 = vpop.permute.xlu0 %8020
      %8022 = vrot.lane.b32.xlu0 %v6140, 91
      %v8023 = vpop.permute.xlu0 %8022
      %8024 = vrot.lane.b32.xlu0 %v7561, 91
      %v8025 = vpop.permute.xlu0 %8024
      %8026 = vrot.lane.b32.xlu0 %v6144, 91
      %v8027 = vpop.permute.xlu0 %8026
      %8028 = vrot.lane.b32.xlu0 %v6146, 91
      %v8029 = vpop.permute.xlu0 %8028
      %8030 = vrot.lane.b32.xlu0 %v7566, 91
      %v8031 = vpop.permute.xlu0 %8030
      %8032 = vrot.lane.b32.xlu0 %v6148, 91
      %v8033 = vpop.permute.xlu0 %8032
      %8034 = vrot.lane.b32.xlu0 %v6150, 91
      %v8035 = vpop.permute.xlu0 %8034
      %8036 = vrot.lane.b32.xlu0 %v7569, 91
      %v8037 = vpop.permute.xlu0 %8036
      %vm8038 = vcmask 744448
      %v8039 = vsel %vm8038, %v8015, %v8017
      %v8040 = vsel %vm8038, %v8017, %v8019
      %v8041 = vsel %vm8038, %v8021, %v8023
      %v8042 = vsel %vm8038, %v8023, %v8025
      %v8043 = vsel %vm8038, %v8027, %v8029
      %v8044 = vsel %vm8038, %v8029, %v8031
      %v8045 = vsel %vm8038, %v8033, %v8035
      %v8046 = vsel %vm8038, %v8035, %v8037
      %v8059 = vadd.f32 %v7990, %v8039
      %v8060 = vadd.f32 %v7991, %v8040
      %v8061 = vadd.f32 %v7992, %v8019
      %v8062 = vadd.f32 %v7993, %v8041
      %v8063 = vadd.f32 %v7994, %v8042
      %v8064 = vadd.f32 %v7995, %v8025
      %v8065 = vadd.f32 %v7996, %v8043
      %v8066 = vadd.f32 %v7997, %v8044
      %v8067 = vadd.f32 %v7998, %v8031
      %v8068 = vadd.f32 %v7999, %v8045
      %v8069 = vadd.f32 %v8000, %v8046
      %v8070 = vadd.f32 %v8001, %v8037
      %8083 = vrot.lane.b32.xlu0 %v6154, 90
      %v8084 = vpop.permute.xlu0 %8083
      %8085 = vrot.lane.b32.xlu0 %v6156, 90
      %v8086 = vpop.permute.xlu0 %8085
      %8087 = vrot.lane.b32.xlu0 %v7574, 90
      %v8088 = vpop.permute.xlu0 %8087
      %8089 = vrot.lane.b32.xlu0 %v6158, 90
      %v8090 = vpop.permute.xlu0 %8089
      %8091 = vrot.lane.b32.xlu0 %v6160, 90
      %v8092 = vpop.permute.xlu0 %8091
      %8093 = vrot.lane.b32.xlu0 %v7577, 90
      %v8094 = vpop.permute.xlu0 %8093
      %8095 = vrot.lane.b32.xlu0 %v6164, 90
      %v8096 = vpop.permute.xlu0 %8095
      %8097 = vrot.lane.b32.xlu0 %v6166, 90
      %v8098 = vpop.permute.xlu0 %8097
      %8099 = vrot.lane.b32.xlu0 %v7582, 90
      %v8100 = vpop.permute.xlu0 %8099
      %8101 = vrot.lane.b32.xlu0 %v6168, 90
      %v8102 = vpop.permute.xlu0 %8101
      %8103 = vrot.lane.b32.xlu0 %v6170, 90
      %v8104 = vpop.permute.xlu0 %8103
      %8105 = vrot.lane.b32.xlu0 %v7585, 90
      %v8106 = vpop.permute.xlu0 %8105
      %vm8107 = vcmask 736256
      %v8108 = vsel %vm8107, %v8084, %v8086
      %v8109 = vsel %vm8107, %v8086, %v8088
      %v8110 = vsel %vm8107, %v8090, %v8092
      %v8111 = vsel %vm8107, %v8092, %v8094
      %v8112 = vsel %vm8107, %v8096, %v8098
      %v8113 = vsel %vm8107, %v8098, %v8100
      %v8114 = vsel %vm8107, %v8102, %v8104
      %v8115 = vsel %vm8107, %v8104, %v8106
      %v8128 = vadd.f32 %v8059, %v8108
      %v8129 = vadd.f32 %v8060, %v8109
      %v8130 = vadd.f32 %v8061, %v8088
      %v8131 = vadd.f32 %v8062, %v8110
      %v8132 = vadd.f32 %v8063, %v8111
      %v8133 = vadd.f32 %v8064, %v8094
      %v8134 = vadd.f32 %v8065, %v8112
      %v8135 = vadd.f32 %v8066, %v8113
      %v8136 = vadd.f32 %v8067, %v8100
      %v8137 = vadd.f32 %v8068, %v8114
      %v8138 = vadd.f32 %v8069, %v8115
      %v8139 = vadd.f32 %v8070, %v8106
      %v8140 = vld [vmem:[%s2] sm:$0xff]
      %v8141 = vld [vmem:[%s2 + $0x8] sm:$0xff]
      %v8142 = vld [vmem:[%s2 + $0x10] sm:$0xff]
      %v8143 = vld [vmem:[%s2 + $0x18] sm:$0xff]
      %8145 = vset.pattern.permute.xlu0 0
      %8146 = vperm.xlu0 %8145, %v8140
      %v8147 = vpop.permute.xlu0 %8146
      %8150 = vset.pattern.permute.xlu0 0
      %8151 = vperm.xlu0 %8150, %v8141
      %v8152 = vpop.permute.xlu0 %8151
      %8155 = vset.pattern.permute.xlu0 0
      %8156 = vperm.xlu0 %8155, %v8142
      %v8157 = vpop.permute.xlu0 %8156
      %8160 = vset.pattern.permute.xlu0 0
      %8161 = vperm.xlu0 %8160, %v8143
      %v8162 = vpop.permute.xlu0 %8161
      %v8164 = vmul.f32 %v8128, %v8147
      %v8165 = vmul.f32 %v8129, %v8147
      %v8166 = vmul.f32 %v8130, %v8147
      %v8167 = vmul.f32 %v8131, %v8152
      %v8168 = vmul.f32 %v8132, %v8152
      %v8169 = vmul.f32 %v8133, %v8152
      %v8170 = vmul.f32 %v8134, %v8157
      %v8171 = vmul.f32 %v8135, %v8157
      %v8172 = vmul.f32 %v8136, %v8157
      %v8173 = vmul.f32 %v8137, %v8162
      %v8174 = vmul.f32 %v8138, %v8162
      %v8175 = vmul.f32 %v8139, %v8162
      %8176 = vset.pattern.permute.xlu0 1
      %8177 = vperm.xlu0 %8176, %v8140
      %v8178 = vpop.permute.xlu0 %8177
      %8180 = vset.pattern.permute.xlu0 1
      %8181 = vperm.xlu0 %8180, %v8141
      %v8182 = vpop.permute.xlu0 %8181
      %8184 = vset.pattern.permute.xlu0 1
      %8185 = vperm.xlu0 %8184, %v8142
      %v8186 = vpop.permute.xlu0 %8185
      %8188 = vset.pattern.permute.xlu0 1
      %8189 = vperm.xlu0 %8188, %v8143
      %v8190 = vpop.permute.xlu0 %8189
      %v8192 = vadd.f32 %v8164, %v8178
      %v8193 = vadd.f32 %v8165, %v8178
      %v8194 = vadd.f32 %v8166, %v8178
      %v8195 = vadd.f32 %v8167, %v8182
      %v8196 = vadd.f32 %v8168, %v8182
      %v8197 = vadd.f32 %v8169, %v8182
      %v8198 = vadd.f32 %v8170, %v8186
      %v8199 = vadd.f32 %v8171, %v8186
      %v8200 = vadd.f32 %v8172, %v8186
      %v8201 = vadd.f32 %v8173, %v8190
      %v8202 = vadd.f32 %v8174, %v8190
      %v8203 = vadd.f32 %v8175, %v8190
      %vm8204 = vcmp.ge.f32.partialorder %v8192, 0.0
      %vm8205 = vcmp.ge.f32.partialorder %v8193, 0.0
      %vm8206 = vcmp.ge.f32.partialorder %v8194, 0.0
      %vm8207 = vcmp.ge.f32.partialorder %v8195, 0.0
      %vm8208 = vcmp.ge.f32.partialorder %v8196, 0.0
      %vm8209 = vcmp.ge.f32.partialorder %v8197, 0.0
      %vm8210 = vcmp.ge.f32.partialorder %v8198, 0.0
      %vm8211 = vcmp.ge.f32.partialorder %v8199, 0.0
      %vm8212 = vcmp.ge.f32.partialorder %v8200, 0.0
      %vm8213 = vcmp.ge.f32.partialorder %v8201, 0.0
      %vm8214 = vcmp.ge.f32.partialorder %v8202, 0.0
      %vm8215 = vcmp.ge.f32.partialorder %v8203, 0.0
      %8216 = vset.pattern.permute.xlu0 2
      %8217 = vperm.xlu0 %8216, %v8140
      %v8218 = vpop.permute.xlu0 %8217
      %8220 = vset.pattern.permute.xlu0 2
      %8221 = vperm.xlu0 %8220, %v8141
      %v8222 = vpop.permute.xlu0 %8221
      %8224 = vset.pattern.permute.xlu0 2
      %8225 = vperm.xlu0 %8224, %v8142
      %v8226 = vpop.permute.xlu0 %8225
      %8228 = vset.pattern.permute.xlu0 2
      %8229 = vperm.xlu0 %8228, %v8143
      %v8230 = vpop.permute.xlu0 %8229
      %v8232 = vmul.f32 %v8218, %v8192
      %v8233 = vmul.f32 %v8218, %v8193
      %v8234 = vmul.f32 %v8218, %v8194
      %v8235 = vmul.f32 %v8222, %v8195
      %v8236 = vmul.f32 %v8222, %v8196
      %v8237 = vmul.f32 %v8222, %v8197
      %v8238 = vmul.f32 %v8226, %v8198
      %v8239 = vmul.f32 %v8226, %v8199
      %v8240 = vmul.f32 %v8226, %v8200
      %v8241 = vmul.f32 %v8230, %v8201
      %v8242 = vmul.f32 %v8230, %v8202
      %v8243 = vmul.f32 %v8230, %v8203
      %v8244 = vsel %vm8204, %v8192, %v8232
      %v8245 = vsel %vm8205, %v8193, %v8233
      %v8246 = vsel %vm8206, %v8194, %v8234
      %v8247 = vsel %vm8207, %v8195, %v8235
      %v8248 = vsel %vm8208, %v8196, %v8236
      %v8249 = vsel %vm8209, %v8197, %v8237
      %v8250 = vsel %vm8210, %v8198, %v8238
      %v8251 = vsel %vm8211, %v8199, %v8239
      %v8252 = vsel %vm8212, %v8200, %v8240
      %v8253 = vsel %vm8213, %v8201, %v8241
      %v8254 = vsel %vm8214, %v8202, %v8242
      %v8255 = vsel %vm8215, %v8203, %v8243
      %8256 = vst [vmem:[%s177] sm:$0xff] %v8244
      %8257 = vst [vmem:[%s177 + $0x8] sm:$0xff] %v8245
      %vm8258 = vcmask 261120
      %8259 = vst.msk [vmem:[%s177 + $0x10] sm:$0xff] %vm8258, %v8246
      %8260 = vst [vmem:[%s177 + $0x18] sm:$0xff] %v8247
      %8261 = vst [vmem:[%s177 + $0x20] sm:$0xff] %v8248
      %8262 = vst.msk [vmem:[%s177 + $0x28] sm:$0xff] %vm8258, %v8249
      %8263 = vst [vmem:[%s177 + $0x30] sm:$0xff] %v8250
      %8264 = vst [vmem:[%s177 + $0x38] sm:$0xff] %v8251
      %8265 = vst.msk [vmem:[%s177 + $0x40] sm:$0xff] %vm8258, %v8252
      %8266 = vst [vmem:[%s177 + $0x48] sm:$0xff] %v8253
      %8267 = vst [vmem:[%s177 + $0x50] sm:$0xff] %v8254
      %8268 = vst.msk [vmem:[%s177 + $0x58] sm:$0xff] %vm8258, %v8255
      %s8269 = smul.u32 4, %s14
      %p8270 = scmp.lt.s32.totalorder %s8269, 7
      %s8271 = scalar_select %p8270, %s8269, 7
      %s8272 = smul.addr %s8271, 3
      %s8273 = smul.addr %s8272, 8
      %s8274 = scalar_lea.vmem %s3, %s8273
      // Predicated region
      $region33: #{ppm_forward.1} parent=31 // pred_check
        %p8275 = pneg %p100
      $region34: #{ppm_forward.1} parent=31 // pred_check_branch
        %8277 = sbr.rel (%p8275) target = $region36
      $region35: #{ppm_forward.1} parent=31 // pred_region
        %s8278 = smul.u32 4, %s14
      $region36: #{ppm_forward.1} parent=31 // pred_fallthru
        _
    $region32: #{ppm_forward.1} parent=5 // pred_fallthru
      _
    %p8279 = scmp.le.s32.totalorder 2, %s9
    // Predicated region
    $region37: #{ppm_forward.1} parent=5 // pred_check
      %p8280 = pneg %p8279
    $region38: #{ppm_forward.1} parent=5 // pred_check_branch
      %8282 = sbr.rel (%p8280) target = $region40
    $region39: #{ppm_forward.1} parent=5 // pred_region
      %s8283 = ssub.s32 %s9, 2
      // Predicated region
      $region41: #{ppm_forward.1} parent=39 // pred_check
        %p8284 = pneg %p106
      $region42: #{ppm_forward.1} parent=39 // pred_check_branch
        %8286 = sbr.rel (%p8284) target = $region44
      $region43: #{ppm_forward.1} parent=39 // pred_region
        %s8287 = smul.u32 4, %s15
        %p8288 = scmp.lt.s32.totalorder %s8287, 7
        %s8289 = scalar_select %p8288, %s8287, 7
        %s8290 = smul.addr %s8289, 3
        %s8291 = smul.addr %s8290, 8
        %s8292 = scalar_lea.vmem %s3, %s8291
      $region44: #{ppm_forward.1} parent=39 // pred_fallthru
        _
    $region40: #{ppm_forward.1} parent=5 // pred_fallthru
      _
  $region6: #{ppm_forward.1} parent=0 // loop_footer
    %s13 = sadd.s32 1, %s9
  $region7: #{ppm_forward.1} parent=0 // loop_footer_branch
    %8 = sbr.rel target = $region3
  $region8: #{ppm_forward.1} parent=0 // loop_exit
    _

</llo_original>
